<compile_context>
chip_gen: v7x
topology: tpu7x:2x2x1
jax: 0.10.0
libtpu: 0.0.40
codegen_flags: <defaults>
</compile_context>

<pallas_src>
import functools

import jax
import jax.numpy as jnp
from jax.experimental import pallas as pl
from jax.experimental.pallas import tpu as pltpu

BN_EPS = 1e-5


# ---------------------------------------------------------------------------
# The single fused cell kernel (one grid step == one image)
# ---------------------------------------------------------------------------
def _make_cell_kernel(steps, multiplier, C, W, HW):
    def kernel(wsk_ref,                      # (E,) f32 in SMEM: skip arch weights
               s0_ref, s1_ref,               # (1, C_in, HW) raw inputs (per image)
               p0w_ref, p0b_ref,             # preprocess0 (BN folded)
               p1w_ref, p1b_ref,             # preprocess1 (BN folded)
               dw1_ref, pw1_ref, b1_ref,     # (E,C,9) / (E,C,C) / (E,C,1), BN folded
               dw2_ref, pw2_ref, b2_ref,     # idem; pw2/b2 also carry w_sep
               mask_ref,                     # (9, C, HW) tap border masks
               o_ref):                       # (1, multiplier*C, HW)

        # ---- preprocess: ReLU -> 1x1 conv (+folded BN) on the MXU ----------
        s0 = jnp.dot(p0w_ref[...], jnp.maximum(s0_ref[0], 0.0),
                     preferred_element_type=jnp.float32) + p0b_ref[...]
        s1 = jnp.dot(p1w_ref[...], jnp.maximum(s1_ref[0], 0.0),
                     preferred_element_type=jnp.float32) + p1b_ref[...]

        # Tap masks, already broadcast to (C, HW) in the wrapper; loaded once
        # and reused by all 28 depthwise convs.  Center tap (t=4) is all-ones.
        mask = [None if t == 4 else mask_ref[t] for t in range(9)]

        def dw3x3(x, w9):
            # x: (C, HW) already ReLU'd; w9: (C, 9) taps, t = ky*3 + kx.
            # Tap (dy,dx) reads source lane m + dy*W + dx -> lane roll by
            # -(dy*W+dx) (jnp.roll convention); out-of-image / wrapped sources
            # are zeroed by the destination-side masks.
            acc = x * w9[:, 4:5]                      # center tap: no roll/mask
            for t in range(9):
                if t == 4:
                    continue
                ky, kx = divmod(t, 3)
                s = (ky - 1) * W + (kx - 1)
                xs = pltpu.roll(x, shift=(-s) % HW, axis=1)
                acc = acc + (xs * mask[t]) * w9[:, t:t + 1]
            return acc

        def pw1x1(x, wp, b):
            # tiny (C,C) x (C,HW) matmul on the (otherwise idle) MXU
            return jnp.dot(wp, x, preferred_element_type=jnp.float32) + b

        # ---- nodes: fully unrolled MixedOp sums -----------------------------
        states = [s0, s1]
        offset = 0
        for _i in range(steps):
            n_in = len(states)
            s_acc = None
            for j in range(n_in):
                e = offset + j
                h = states[j]
                # sep_conv_3x3 (BN + w_sep folded into pw/bias)
                y = dw3x3(jnp.maximum(h, 0.0), dw1_ref[e])
                y = pw1x1(y, pw1_ref[e], b1_ref[e])
                y = dw3x3(jnp.maximum(y, 0.0), dw2_ref[e])
                sep = pw1x1(y, pw2_ref[e], b2_ref[e])
                contrib = wsk_ref[e] * h + sep        # 'none' contributes 0
                s_acc = contrib if s_acc is None else s_acc + contrib
            states.append(s_acc)
            offset += n_in

        for idx, st in enumerate(states[-multiplier:]):
            o_ref[0, idx * C:(idx + 1) * C, :] = st

    return kernel


# ---------------------------------------------------------------------------
# Wrapper-side glue: BN / arch-weight folding, tap masks, free reshapes
# ---------------------------------------------------------------------------
def _fold_bn(w, mean, var):
    """Fold eval-mode affine=False BN into the preceding 1x1 conv (exact)."""
    inv = jax.lax.rsqrt(var + BN_EPS)                 # (C_out,)
    w_f = (w * inv[:, None]).astype(jnp.float32)      # (C_out, C_in)
    b_f = (-mean * inv)[:, None].astype(jnp.float32)  # (C_out, 1)
    return w_f, b_f


def prepare_params(params, steps):
    """Fold BN stats into 1x1 weights and pack all edges into (E, ...) arrays."""
    del steps
    C = params["pre0_w"].shape[0]
    pre0_w, pre0_b = _fold_bn(params["pre0_w"], params["pre0_bn_mean"], params["pre0_bn_var"])
    pre1_w, pre1_b = _fold_bn(params["pre1_w"], params["pre1_bn_mean"], params["pre1_bn_var"])
    dw1, pw1, b1, dw2, pw2, b2 = [], [], [], [], [], []
    for ep in params["edges"]:
        dw1.append(ep["dw1"].reshape(C, 9))
        wf, bf = _fold_bn(ep["pw1"], ep["bn1_mean"], ep["bn1_var"])
        pw1.append(wf), b1.append(bf)
        dw2.append(ep["dw2"].reshape(C, 9))
        wf, bf = _fold_bn(ep["pw2"], ep["bn2_mean"], ep["bn2_var"])
        pw2.append(wf), b2.append(bf)
    return {
        "pre0_w": pre0_w, "pre0_b": pre0_b, "pre1_w": pre1_w, "pre1_b": pre1_b,
        "dw1": jnp.stack(dw1), "pw1": jnp.stack(pw1), "b1": jnp.stack(b1),
        "dw2": jnp.stack(dw2), "pw2": jnp.stack(pw2), "b2": jnp.stack(b2),
    }


def make_tap_masks(H, W, C):
    """(9, C, H*W) masks: 1 where the 3x3 tap's source pixel is inside the image."""
    hw = jnp.arange(H * W, dtype=jnp.int32)
    h = hw // W
    w = hw % W
    rows = []
    for t in range(9):
        ky, kx = divmod(t, 3)
        dy, dx = ky - 1, kx - 1
        rows.append((h + dy >= 0) & (h + dy < H) & (w + dx >= 0) & (w + dx < W))
    m = jnp.stack(rows, axis=0).astype(jnp.float32)           # (9, HW)
    return jnp.broadcast_to(m[:, None, :], (9, C, H * W))     # (9, C, HW)


def cell_forward(s0_nchw, s1_nchw, weights, fparams, *, steps, multiplier):
    """Eval-mode Cell._forward; weights: (num_edges, 3) softmax rows over
    ['none', 'skip_connect', 'sep_conv_3x3']."""
    N, C_pp, H, W = s0_nchw.shape
    C_p = s1_nchw.shape[1]
    C = fparams["pre0_w"].shape[0]
    HW = H * W
    E = fparams["dw1"].shape[0]

    # free reshapes (NCHW memory is already n, c, hw contiguous)
    s0 = s0_nchw.reshape(N, C_pp, HW).astype(jnp.float32)
    s1 = s1_nchw.reshape(N, C_p, HW).astype(jnp.float32)

    # arch weights: skip -> SMEM scalar table; sep -> folded into pw2/b2
    w_skip = weights[:, 1].astype(jnp.float32)                       # (E,)
    w_sep = weights[:, 2].astype(jnp.float32)
    pw2 = (fparams["pw2"] * w_sep[:, None, None]).astype(jnp.float32)
    b2 = (fparams["b2"] * w_sep[:, None, None]).astype(jnp.float32)

    masks = make_tap_masks(H, W, C)        # shape-only -> constant folded

    kernel = _make_cell_kernel(steps, multiplier, C, W, HW)
    out = pl.pallas_call(
        kernel,
        out_shape=jax.ShapeDtypeStruct((N, multiplier * C, HW), jnp.float32),
        grid=(N,),
        in_specs=[
            pl.BlockSpec(memory_space=pltpu.MemorySpace.SMEM),       # w_skip
            pl.BlockSpec((1, C_pp, HW), lambda n: (n, 0, 0)),        # s0 (per image)
            pl.BlockSpec((1, C_p, HW), lambda n: (n, 0, 0)),         # s1 (per image)
            pl.BlockSpec((C, C_pp), lambda n: (0, 0)),               # pre0_w (resident)
            pl.BlockSpec((C, 1), lambda n: (0, 0)),                  # pre0_b
            pl.BlockSpec((C, C_p), lambda n: (0, 0)),                # pre1_w
            pl.BlockSpec((C, 1), lambda n: (0, 0)),                  # pre1_b
            pl.BlockSpec((E, C, 9), lambda n: (0, 0, 0)),            # dw1 (resident)
            pl.BlockSpec((E, C, C), lambda n: (0, 0, 0)),            # pw1
            pl.BlockSpec((E, C, 1), lambda n: (0, 0, 0)),            # b1
            pl.BlockSpec((E, C, 9), lambda n: (0, 0, 0)),            # dw2
            pl.BlockSpec((E, C, C), lambda n: (0, 0, 0)),            # pw2 (w_sep folded)
            pl.BlockSpec((E, C, 1), lambda n: (0, 0, 0)),            # b2  (w_sep folded)
            pl.BlockSpec((9, C, HW), lambda n: (0, 0, 0)),           # tap masks
        ],
        out_specs=pl.BlockSpec((1, multiplier * C, HW), lambda n: (n, 0, 0)),
        compiler_params=pltpu.CompilerParams(dimension_semantics=("parallel",)),
    )(w_skip, s0, s1,
      fparams["pre0_w"], fparams["pre0_b"], fparams["pre1_w"], fparams["pre1_b"],
      fparams["dw1"], fparams["pw1"], fparams["b1"],
      fparams["dw2"], pw2, b2, masks)

    return out.reshape(N, multiplier * C, H, W)


# ---------------------------------------------------------------------------
# Pure-JAX reference (mirrors the PyTorch module) for the self-check
# ---------------------------------------------------------------------------
def ref_cell_forward(s0, s1, weights, raw, *, steps, multiplier):
    hp = jax.lax.Precision.HIGHEST

    def bn(x, mean, var):
        return (x - mean[None, :, None, None]) * jax.lax.rsqrt(var + BN_EPS)[None, :, None, None]

    def conv1x1(x, w):
        return jnp.einsum("oc,nchw->nohw", w, x, precision=hp)

    def dw3x3(x, w):                       # w: (C, 3, 3), pad=1, stride=1
        _, _, H_, W_ = x.shape
        xp = jnp.pad(x, ((0, 0), (0, 0), (1, 1), (1, 1)))
        out = jnp.zeros_like(x)
        for ky in range(3):
            for kx in range(3):
                out = out + xp[:, :, ky:ky + H_, kx:kx + W_] * w[None, :, ky, kx, None, None]
        return out

    def relu_conv_bn(x, w, mean, var):
        return bn(conv1x1(jax.nn.relu(x), w), mean, var)

    def sep_conv(x, ep):
        y = jax.nn.relu(x)
        y = bn(conv1x1(dw3x3(y, ep["dw1"]), ep["pw1"]), ep["bn1_mean"], ep["bn1_var"])
        y = jax.nn.relu(y)
        y = bn(conv1x1(dw3x3(y, ep["dw2"]), ep["pw2"]), ep["bn2_mean"], ep["bn2_var"])
        return y

    s0 = relu_conv_bn(s0, raw["pre0_w"], raw["pre0_bn_mean"], raw["pre0_bn_var"])
    s1 = relu_conv_bn(s1, raw["pre1_w"], raw["pre1_bn_mean"], raw["pre1_bn_var"])
    states = [s0, s1]
    offset = 0
    for _ in range(steps):
        s = None
        for j, h in enumerate(states):
            w_row = weights[offset + j]
            mix = w_row[1] * h + w_row[2] * sep_conv(h, raw["edges"][offset + j])
            s = mix if s is None else s + mix
        offset += len(states)
        states.append(s)
    return jnp.concatenate(states[-multiplier:], axis=1)


# ---------------------------------------------------------------------------
# Deterministic synthetic parameters (module-like shapes, conv = (C_out, C_in))
# ---------------------------------------------------------------------------
def init_params(key, C_pp, C_p, C, steps):
    num_edges = sum(2 + i for i in range(steps))
    keys = iter(jax.random.split(key, 4 + 6 * num_edges))
    scale = 0.4

    def nrm(shape):
        return scale * jax.random.normal(next(keys), shape, jnp.float32)

    def bn_stats():
        k1, k2 = jax.random.split(next(keys))
        return (0.1 * jax.random.normal(k1, (C,), jnp.float32),
                jax.random.uniform(k2, (C,), jnp.float32, 0.5, 1.5))

    p0m, p0v = bn_stats()
    p1m, p1v = bn_stats()
    params = {
        "pre0_w": nrm((C, C_pp)), "pre0_bn_mean": p0m, "pre0_bn_var": p0v,
        "pre1_w": nrm((C, C_p)), "pre1_bn_mean": p1m, "pre1_bn_var": p1v,
        "edges": [],
    }
    for _ in range(num_edges):
        m1, v1 = bn_stats()
        m2, v2 = bn_stats()
        params["edges"].append({
            "dw1": nrm((C, 3, 3)), "pw1": nrm((C, C)), "bn1_mean": m1, "bn1_var": v1,
            "dw2": nrm((C, 3, 3)), "pw2": nrm((C, C)), "bn2_mean": m2, "bn2_var": v2,
        })
    return params


if __name__ == "__main__":
    N, H, W = 2, 16, 16
    C_prev_prev = C_prev = C = 8
    STEPS, MULT = 4, 4
    NUM_EDGES = sum(2 + i for i in range(STEPS))  # 14

    key = jax.random.PRNGKey(0)
    k_s0, k_s1, k_alpha, k_param = jax.random.split(key, 4)
    s0 = jax.random.normal(k_s0, (N, C_prev_prev, H, W), jnp.float32)
    s1 = jax.random.normal(k_s1, (N, C_prev, H, W), jnp.float32)
    # one softmax row per edge over ['none', 'skip_connect', 'sep_conv_3x3']
    weights = jax.nn.softmax(jax.random.normal(k_alpha, (NUM_EDGES, 3), jnp.float32), axis=-1)

    raw_params = init_params(k_param, C_prev_prev, C_prev, C, STEPS)
    fparams = prepare_params(raw_params, STEPS)   # fold BN + pack edge weights once

    fwd = jax.jit(functools.partial(cell_forward, steps=STEPS, multiplier=MULT))
    out = jax.block_until_ready(fwd(s0, s1, weights, fparams))

    assert out.shape == (N, MULT * C, H, W), out.shape
    assert out.dtype == jnp.float32
    assert bool(jnp.all(jnp.isfinite(out)))

    # Self-check vs a pure-JAX reference of the nn.Module forward.  Tolerance is
    # relative to the output scale and leaves headroom for MXU f32 pass
    # precision; structural bugs (wrong tap/roll convention) are >10x larger.
    ref = jax.jit(functools.partial(ref_cell_forward, steps=STEPS, multiplier=MULT))(
        s0, s1, weights, raw_params)
    err = float(jnp.max(jnp.abs(out - ref)))
    scl = float(jnp.max(jnp.abs(ref))) + 1e-6
    assert err <= 0.05 * scl, (err, scl)

    print("KERNEL_OK")
</pallas_src>

<mosaic_0001>
module attributes {stable_mosaic.version = 11 : i64} {
  func.func @kernel(%arg0: i32, %arg1: memref<14xf32, #tpu.memory_space<smem>>, %arg2: memref<1x8x256xf32, #tpu.memory_space<vmem>>, %arg3: memref<1x8x256xf32, #tpu.memory_space<vmem>>, %arg4: memref<8x8xf32, #tpu.memory_space<vmem>>, %arg5: memref<8x1xf32, #tpu.memory_space<vmem>>, %arg6: memref<8x8xf32, #tpu.memory_space<vmem>>, %arg7: memref<8x1xf32, #tpu.memory_space<vmem>>, %arg8: memref<14x8x9xf32, #tpu.memory_space<vmem>>, %arg9: memref<14x8x8xf32, #tpu.memory_space<vmem>>, %arg10: memref<14x8x1xf32, #tpu.memory_space<vmem>>, %arg11: memref<14x8x9xf32, #tpu.memory_space<vmem>>, %arg12: memref<14x8x8xf32, #tpu.memory_space<vmem>>, %arg13: memref<14x8x1xf32, #tpu.memory_space<vmem>>, %arg14: memref<9x8x256xf32, #tpu.memory_space<vmem>>, %arg15: memref<1x32x256xf32, #tpu.memory_space<vmem>>) attributes {dimension_semantics = [#tpu.dimension_semantics<parallel>], iteration_bounds = array<i64: 2>, scalar_prefetch = 0 : i64, scratch_operands = 0 : i64, tpu.core_type = #tpu.core_type<tc>, window_params = [{transform_indices = @transform_0, window_bounds = array<i64: 14>}, {transform_indices = @transform_1, window_bounds = array<i64: 1, 8, 256>}, {transform_indices = @transform_2, window_bounds = array<i64: 1, 8, 256>}, {pipeline_mode = #tpu.pipeline_mode<synchronous>, transform_indices = @transform_3, window_bounds = array<i64: 8, 8>}, {pipeline_mode = #tpu.pipeline_mode<synchronous>, transform_indices = @transform_4, window_bounds = array<i64: 8, 1>}, {pipeline_mode = #tpu.pipeline_mode<synchronous>, transform_indices = @transform_5, window_bounds = array<i64: 8, 8>}, {pipeline_mode = #tpu.pipeline_mode<synchronous>, transform_indices = @transform_6, window_bounds = array<i64: 8, 1>}, {pipeline_mode = #tpu.pipeline_mode<synchronous>, transform_indices = @transform_7, window_bounds = array<i64: 14, 8, 9>}, {pipeline_mode = #tpu.pipeline_mode<synchronous>, transform_indices = @transform_8, window_bounds = array<i64: 14, 8, 8>}, {pipeline_mode = #tpu.pipeline_mode<synchronous>, transform_indices = @transform_9, window_bounds = array<i64: 14, 8, 1>}, {pipeline_mode = #tpu.pipeline_mode<synchronous>, transform_indices = @transform_10, window_bounds = array<i64: 14, 8, 9>}, {pipeline_mode = #tpu.pipeline_mode<synchronous>, transform_indices = @transform_11, window_bounds = array<i64: 14, 8, 8>}, {pipeline_mode = #tpu.pipeline_mode<synchronous>, transform_indices = @transform_12, window_bounds = array<i64: 14, 8, 1>}, {pipeline_mode = #tpu.pipeline_mode<synchronous>, transform_indices = @transform_13, window_bounds = array<i64: 9, 8, 256>}, {transform_indices = @transform_14, window_bounds = array<i64: 1, 32, 256>}]} {
    %c0 = arith.constant 0 : index
    %c0_0 = arith.constant 0 : index
    %0 = vector.load %arg4[%c0, %c0_0] : memref<8x8xf32, #tpu.memory_space<vmem>>, vector<8x8xf32>
    %c0_1 = arith.constant 0 : index
    %c0_2 = arith.constant 0 : index
    %c0_3 = arith.constant 0 : index
    %1 = vector.load %arg2[%c0_1, %c0_2, %c0_3] : memref<1x8x256xf32, #tpu.memory_space<vmem>>, vector<1x8x256xf32>
    %2 = vector.shape_cast %1 : vector<1x8x256xf32> to vector<8x256xf32>
    %cst = arith.constant 0.000000e+00 : f32
    %3 = vector.broadcast %cst : f32 to vector<8x256xf32>
    %4 = arith.maximumf %2, %3 : vector<8x256xf32>
    %cst_4 = arith.constant dense<0.000000e+00> : vector<8x256xf32>
    %5 = tpu.matmul %0, %4, %cst_4 {dimension_numbers = #tpu.dot_dimension_numbers<[1], [0], [0], [1], [0, 0, 1, 1], [], []>} : vector<8x8xf32>, vector<8x256xf32>, vector<8x256xf32> -> vector<8x256xf32>
    %c0_5 = arith.constant 0 : index
    %c0_6 = arith.constant 0 : index
    %6 = vector.load %arg5[%c0_5, %c0_6] : memref<8x1xf32, #tpu.memory_space<vmem>>, vector<8x1xf32>
    %7 = vector.broadcast %6 : vector<8x1xf32> to vector<8x256xf32>
    %8 = arith.addf %5, %7 : vector<8x256xf32>
    %c0_7 = arith.constant 0 : index
    %c0_8 = arith.constant 0 : index
    %9 = vector.load %arg6[%c0_7, %c0_8] : memref<8x8xf32, #tpu.memory_space<vmem>>, vector<8x8xf32>
    %c0_9 = arith.constant 0 : index
    %c0_10 = arith.constant 0 : index
    %c0_11 = arith.constant 0 : index
    %10 = vector.load %arg3[%c0_9, %c0_10, %c0_11] : memref<1x8x256xf32, #tpu.memory_space<vmem>>, vector<1x8x256xf32>
    %11 = vector.shape_cast %10 : vector<1x8x256xf32> to vector<8x256xf32>
    %cst_12 = arith.constant 0.000000e+00 : f32
    %12 = vector.broadcast %cst_12 : f32 to vector<8x256xf32>
    %13 = arith.maximumf %11, %12 : vector<8x256xf32>
    %cst_13 = arith.constant dense<0.000000e+00> : vector<8x256xf32>
    %14 = tpu.matmul %9, %13, %cst_13 {dimension_numbers = #tpu.dot_dimension_numbers<[1], [0], [0], [1], [0, 0, 1, 1], [], []>} : vector<8x8xf32>, vector<8x256xf32>, vector<8x256xf32> -> vector<8x256xf32>
    %c0_14 = arith.constant 0 : index
    %c0_15 = arith.constant 0 : index
    %15 = vector.load %arg7[%c0_14, %c0_15] : memref<8x1xf32, #tpu.memory_space<vmem>>, vector<8x1xf32>
    %16 = vector.broadcast %15 : vector<8x1xf32> to vector<8x256xf32>
    %17 = arith.addf %14, %16 : vector<8x256xf32>
    %c0_16 = arith.constant 0 : index
    %c0_17 = arith.constant 0 : index
    %c0_18 = arith.constant 0 : index
    %18 = vector.load %arg14[%c0_16, %c0_17, %c0_18] : memref<9x8x256xf32, #tpu.memory_space<vmem>>, vector<1x8x256xf32>
    %19 = vector.shape_cast %18 : vector<1x8x256xf32> to vector<8x256xf32>
    %c1 = arith.constant 1 : index
    %c0_19 = arith.constant 0 : index
    %c0_20 = arith.constant 0 : index
    %20 = vector.load %arg14[%c1, %c0_19, %c0_20] : memref<9x8x256xf32, #tpu.memory_space<vmem>>, vector<1x8x256xf32>
    %21 = vector.shape_cast %20 : vector<1x8x256xf32> to vector<8x256xf32>
    %c2 = arith.constant 2 : index
    %c0_21 = arith.constant 0 : index
    %c0_22 = arith.constant 0 : index
    %22 = vector.load %arg14[%c2, %c0_21, %c0_22] : memref<9x8x256xf32, #tpu.memory_space<vmem>>, vector<1x8x256xf32>
    %23 = vector.shape_cast %22 : vector<1x8x256xf32> to vector<8x256xf32>
    %c3 = arith.constant 3 : index
    %c0_23 = arith.constant 0 : index
    %c0_24 = arith.constant 0 : index
    %24 = vector.load %arg14[%c3, %c0_23, %c0_24] : memref<9x8x256xf32, #tpu.memory_space<vmem>>, vector<1x8x256xf32>
    %25 = vector.shape_cast %24 : vector<1x8x256xf32> to vector<8x256xf32>
    %c5 = arith.constant 5 : index
    %c0_25 = arith.constant 0 : index
    %c0_26 = arith.constant 0 : index
    %26 = vector.load %arg14[%c5, %c0_25, %c0_26] : memref<9x8x256xf32, #tpu.memory_space<vmem>>, vector<1x8x256xf32>
    %27 = vector.shape_cast %26 : vector<1x8x256xf32> to vector<8x256xf32>
    %c6 = arith.constant 6 : index
    %c0_27 = arith.constant 0 : index
    %c0_28 = arith.constant 0 : index
    %28 = vector.load %arg14[%c6, %c0_27, %c0_28] : memref<9x8x256xf32, #tpu.memory_space<vmem>>, vector<1x8x256xf32>
    %29 = vector.shape_cast %28 : vector<1x8x256xf32> to vector<8x256xf32>
    %c7 = arith.constant 7 : index
    %c0_29 = arith.constant 0 : index
    %c0_30 = arith.constant 0 : index
    %30 = vector.load %arg14[%c7, %c0_29, %c0_30] : memref<9x8x256xf32, #tpu.memory_space<vmem>>, vector<1x8x256xf32>
    %31 = vector.shape_cast %30 : vector<1x8x256xf32> to vector<8x256xf32>
    %c8 = arith.constant 8 : index
    %c0_31 = arith.constant 0 : index
    %c0_32 = arith.constant 0 : index
    %32 = vector.load %arg14[%c8, %c0_31, %c0_32] : memref<9x8x256xf32, #tpu.memory_space<vmem>>, vector<1x8x256xf32>
    %33 = vector.shape_cast %32 : vector<1x8x256xf32> to vector<8x256xf32>
    %cst_33 = arith.constant 0.000000e+00 : f32
    %34 = vector.broadcast %cst_33 : f32 to vector<8x256xf32>
    %35 = arith.maximumf %8, %34 : vector<8x256xf32>
    %c0_34 = arith.constant 0 : index
    %c0_35 = arith.constant 0 : index
    %c0_36 = arith.constant 0 : index
    %36 = vector.load %arg8[%c0_34, %c0_35, %c0_36] : memref<14x8x9xf32, #tpu.memory_space<vmem>>, vector<1x8x9xf32>
    %37 = vector.shape_cast %36 : vector<1x8x9xf32> to vector<8x9xf32>
    %38 = vector.extract_strided_slice %37 {offsets = [0, 4], sizes = [8, 1], strides = [1, 1]} : vector<8x9xf32> to vector<8x1xf32>
    %39 = vector.broadcast %38 : vector<8x1xf32> to vector<8x256xf32>
    %40 = arith.mulf %35, %39 : vector<8x256xf32>
    %c17_i32 = arith.constant 17 : i32
    %41 = tpu.dynamic_rotate %35 by %c17_i32 dim 1 : vector<8x256xf32>, i32 -> vector<8x256xf32>
    %42 = arith.mulf %41, %19 : vector<8x256xf32>
    %43 = vector.extract_strided_slice %37 {offsets = [0, 0], sizes = [8, 1], strides = [1, 1]} : vector<8x9xf32> to vector<8x1xf32>
    %44 = vector.broadcast %43 : vector<8x1xf32> to vector<8x256xf32>
    %45 = arith.mulf %42, %44 : vector<8x256xf32>
    %46 = arith.addf %40, %45 : vector<8x256xf32>
    %c16_i32 = arith.constant 16 : i32
    %47 = tpu.dynamic_rotate %35 by %c16_i32 dim 1 : vector<8x256xf32>, i32 -> vector<8x256xf32>
    %48 = arith.mulf %47, %21 : vector<8x256xf32>
    %49 = vector.extract_strided_slice %37 {offsets = [0, 1], sizes = [8, 1], strides = [1, 1]} : vector<8x9xf32> to vector<8x1xf32>
    %50 = vector.broadcast %49 : vector<8x1xf32> to vector<8x256xf32>
    %51 = arith.mulf %48, %50 : vector<8x256xf32>
    %52 = arith.addf %46, %51 : vector<8x256xf32>
    %c15_i32 = arith.constant 15 : i32
    %53 = tpu.dynamic_rotate %35 by %c15_i32 dim 1 : vector<8x256xf32>, i32 -> vector<8x256xf32>
    %54 = arith.mulf %53, %23 : vector<8x256xf32>
    %55 = vector.extract_strided_slice %37 {offsets = [0, 2], sizes = [8, 1], strides = [1, 1]} : vector<8x9xf32> to vector<8x1xf32>
    %56 = vector.broadcast %55 : vector<8x1xf32> to vector<8x256xf32>
    %57 = arith.mulf %54, %56 : vector<8x256xf32>
    %58 = arith.addf %52, %57 : vector<8x256xf32>
    %c1_i32 = arith.constant 1 : i32
    %59 = tpu.dynamic_rotate %35 by %c1_i32 dim 1 : vector<8x256xf32>, i32 -> vector<8x256xf32>
    %60 = arith.mulf %59, %25 : vector<8x256xf32>
    %61 = vector.extract_strided_slice %37 {offsets = [0, 3], sizes = [8, 1], strides = [1, 1]} : vector<8x9xf32> to vector<8x1xf32>
    %62 = vector.broadcast %61 : vector<8x1xf32> to vector<8x256xf32>
    %63 = arith.mulf %60, %62 : vector<8x256xf32>
    %64 = arith.addf %58, %63 : vector<8x256xf32>
    %c255_i32 = arith.constant 255 : i32
    %65 = tpu.dynamic_rotate %35 by %c255_i32 dim 1 : vector<8x256xf32>, i32 -> vector<8x256xf32>
    %66 = arith.mulf %65, %27 : vector<8x256xf32>
    %67 = vector.extract_strided_slice %37 {offsets = [0, 5], sizes = [8, 1], strides = [1, 1]} : vector<8x9xf32> to vector<8x1xf32>
    %68 = vector.broadcast %67 : vector<8x1xf32> to vector<8x256xf32>
    %69 = arith.mulf %66, %68 : vector<8x256xf32>
    %70 = arith.addf %64, %69 : vector<8x256xf32>
    %c241_i32 = arith.constant 241 : i32
    %71 = tpu.dynamic_rotate %35 by %c241_i32 dim 1 : vector<8x256xf32>, i32 -> vector<8x256xf32>
    %72 = arith.mulf %71, %29 : vector<8x256xf32>
    %73 = vector.extract_strided_slice %37 {offsets = [0, 6], sizes = [8, 1], strides = [1, 1]} : vector<8x9xf32> to vector<8x1xf32>
    %74 = vector.broadcast %73 : vector<8x1xf32> to vector<8x256xf32>
    %75 = arith.mulf %72, %74 : vector<8x256xf32>
    %76 = arith.addf %70, %75 : vector<8x256xf32>
    %c240_i32 = arith.constant 240 : i32
    %77 = tpu.dynamic_rotate %35 by %c240_i32 dim 1 : vector<8x256xf32>, i32 -> vector<8x256xf32>
    %78 = arith.mulf %77, %31 : vector<8x256xf32>
    %79 = vector.extract_strided_slice %37 {offsets = [0, 7], sizes = [8, 1], strides = [1, 1]} : vector<8x9xf32> to vector<8x1xf32>
    %80 = vector.broadcast %79 : vector<8x1xf32> to vector<8x256xf32>
    %81 = arith.mulf %78, %80 : vector<8x256xf32>
    %82 = arith.addf %76, %81 : vector<8x256xf32>
    %c239_i32 = arith.constant 239 : i32
    %83 = tpu.dynamic_rotate %35 by %c239_i32 dim 1 : vector<8x256xf32>, i32 -> vector<8x256xf32>
    %84 = arith.mulf %83, %33 : vector<8x256xf32>
    %85 = vector.extract_strided_slice %37 {offsets = [0, 8], sizes = [8, 1], strides = [1, 1]} : vector<8x9xf32> to vector<8x1xf32>
    %86 = vector.broadcast %85 : vector<8x1xf32> to vector<8x256xf32>
    %87 = arith.mulf %84, %86 : vector<8x256xf32>
    %88 = arith.addf %82, %87 : vector<8x256xf32>
    %c0_37 = arith.constant 0 : index
    %c0_38 = arith.constant 0 : index
    %c0_39 = arith.constant 0 : index
    %89 = vector.load %arg9[%c0_37, %c0_38, %c0_39] : memref<14x8x8xf32, #tpu.memory_space<vmem>>, vector<1x8x8xf32>
    %90 = vector.shape_cast %89 : vector<1x8x8xf32> to vector<8x8xf32>
    %c0_40 = arith.constant 0 : index
    %c0_41 = arith.constant 0 : index
    %c0_42 = arith.constant 0 : index
    %91 = vector.load %arg10[%c0_40, %c0_41, %c0_42] : memref<14x8x1xf32, #tpu.memory_space<vmem>>, vector<1x8x1xf32>
    %92 = vector.shape_cast %91 : vector<1x8x1xf32> to vector<8x1xf32>
    %cst_43 = arith.constant dense<0.000000e+00> : vector<8x256xf32>
    %93 = tpu.matmul %90, %88, %cst_43 {dimension_numbers = #tpu.dot_dimension_numbers<[1], [0], [0], [1], [0, 0, 1, 1], [], []>} : vector<8x8xf32>, vector<8x256xf32>, vector<8x256xf32> -> vector<8x256xf32>
    %94 = vector.broadcast %92 : vector<8x1xf32> to vector<8x256xf32>
    %95 = arith.addf %93, %94 : vector<8x256xf32>
    %cst_44 = arith.constant 0.000000e+00 : f32
    %96 = vector.broadcast %cst_44 : f32 to vector<8x256xf32>
    %97 = arith.maximumf %95, %96 : vector<8x256xf32>
    %c0_45 = arith.constant 0 : index
    %c0_46 = arith.constant 0 : index
    %c0_47 = arith.constant 0 : index
    %98 = vector.load %arg11[%c0_45, %c0_46, %c0_47] : memref<14x8x9xf32, #tpu.memory_space<vmem>>, vector<1x8x9xf32>
    %99 = vector.shape_cast %98 : vector<1x8x9xf32> to vector<8x9xf32>
    %100 = vector.extract_strided_slice %99 {offsets = [0, 4], sizes = [8, 1], strides = [1, 1]} : vector<8x9xf32> to vector<8x1xf32>
    %101 = vector.broadcast %100 : vector<8x1xf32> to vector<8x256xf32>
    %102 = arith.mulf %97, %101 : vector<8x256xf32>
    %c17_i32_48 = arith.constant 17 : i32
    %103 = tpu.dynamic_rotate %97 by %c17_i32_48 dim 1 : vector<8x256xf32>, i32 -> vector<8x256xf32>
    %104 = arith.mulf %103, %19 : vector<8x256xf32>
    %105 = vector.extract_strided_slice %99 {offsets = [0, 0], sizes = [8, 1], strides = [1, 1]} : vector<8x9xf32> to vector<8x1xf32>
    %106 = vector.broadcast %105 : vector<8x1xf32> to vector<8x256xf32>
    %107 = arith.mulf %104, %106 : vector<8x256xf32>
    %108 = arith.addf %102, %107 : vector<8x256xf32>
    %c16_i32_49 = arith.constant 16 : i32
    %109 = tpu.dynamic_rotate %97 by %c16_i32_49 dim 1 : vector<8x256xf32>, i32 -> vector<8x256xf32>
    %110 = arith.mulf %109, %21 : vector<8x256xf32>
    %111 = vector.extract_strided_slice %99 {offsets = [0, 1], sizes = [8, 1], strides = [1, 1]} : vector<8x9xf32> to vector<8x1xf32>
    %112 = vector.broadcast %111 : vector<8x1xf32> to vector<8x256xf32>
    %113 = arith.mulf %110, %112 : vector<8x256xf32>
    %114 = arith.addf %108, %113 : vector<8x256xf32>
    %c15_i32_50 = arith.constant 15 : i32
    %115 = tpu.dynamic_rotate %97 by %c15_i32_50 dim 1 : vector<8x256xf32>, i32 -> vector<8x256xf32>
    %116 = arith.mulf %115, %23 : vector<8x256xf32>
    %117 = vector.extract_strided_slice %99 {offsets = [0, 2], sizes = [8, 1], strides = [1, 1]} : vector<8x9xf32> to vector<8x1xf32>
    %118 = vector.broadcast %117 : vector<8x1xf32> to vector<8x256xf32>
    %119 = arith.mulf %116, %118 : vector<8x256xf32>
    %120 = arith.addf %114, %119 : vector<8x256xf32>
    %c1_i32_51 = arith.constant 1 : i32
    %121 = tpu.dynamic_rotate %97 by %c1_i32_51 dim 1 : vector<8x256xf32>, i32 -> vector<8x256xf32>
    %122 = arith.mulf %121, %25 : vector<8x256xf32>
    %123 = vector.extract_strided_slice %99 {offsets = [0, 3], sizes = [8, 1], strides = [1, 1]} : vector<8x9xf32> to vector<8x1xf32>
    %124 = vector.broadcast %123 : vector<8x1xf32> to vector<8x256xf32>
    %125 = arith.mulf %122, %124 : vector<8x256xf32>
    %126 = arith.addf %120, %125 : vector<8x256xf32>
    %c255_i32_52 = arith.constant 255 : i32
    %127 = tpu.dynamic_rotate %97 by %c255_i32_52 dim 1 : vector<8x256xf32>, i32 -> vector<8x256xf32>
    %128 = arith.mulf %127, %27 : vector<8x256xf32>
    %129 = vector.extract_strided_slice %99 {offsets = [0, 5], sizes = [8, 1], strides = [1, 1]} : vector<8x9xf32> to vector<8x1xf32>
    %130 = vector.broadcast %129 : vector<8x1xf32> to vector<8x256xf32>
    %131 = arith.mulf %128, %130 : vector<8x256xf32>
    %132 = arith.addf %126, %131 : vector<8x256xf32>
    %c241_i32_53 = arith.constant 241 : i32
    %133 = tpu.dynamic_rotate %97 by %c241_i32_53 dim 1 : vector<8x256xf32>, i32 -> vector<8x256xf32>
    %134 = arith.mulf %133, %29 : vector<8x256xf32>
    %135 = vector.extract_strided_slice %99 {offsets = [0, 6], sizes = [8, 1], strides = [1, 1]} : vector<8x9xf32> to vector<8x1xf32>
    %136 = vector.broadcast %135 : vector<8x1xf32> to vector<8x256xf32>
    %137 = arith.mulf %134, %136 : vector<8x256xf32>
    %138 = arith.addf %132, %137 : vector<8x256xf32>
    %c240_i32_54 = arith.constant 240 : i32
    %139 = tpu.dynamic_rotate %97 by %c240_i32_54 dim 1 : vector<8x256xf32>, i32 -> vector<8x256xf32>
    %140 = arith.mulf %139, %31 : vector<8x256xf32>
    %141 = vector.extract_strided_slice %99 {offsets = [0, 7], sizes = [8, 1], strides = [1, 1]} : vector<8x9xf32> to vector<8x1xf32>
    %142 = vector.broadcast %141 : vector<8x1xf32> to vector<8x256xf32>
    %143 = arith.mulf %140, %142 : vector<8x256xf32>
    %144 = arith.addf %138, %143 : vector<8x256xf32>
    %c239_i32_55 = arith.constant 239 : i32
    %145 = tpu.dynamic_rotate %97 by %c239_i32_55 dim 1 : vector<8x256xf32>, i32 -> vector<8x256xf32>
    %146 = arith.mulf %145, %33 : vector<8x256xf32>
    %147 = vector.extract_strided_slice %99 {offsets = [0, 8], sizes = [8, 1], strides = [1, 1]} : vector<8x9xf32> to vector<8x1xf32>
    %148 = vector.broadcast %147 : vector<8x1xf32> to vector<8x256xf32>
    %149 = arith.mulf %146, %148 : vector<8x256xf32>
    %150 = arith.addf %144, %149 : vector<8x256xf32>
    %c0_56 = arith.constant 0 : index
    %c0_57 = arith.constant 0 : index
    %c0_58 = arith.constant 0 : index
    %151 = vector.load %arg12[%c0_56, %c0_57, %c0_58] : memref<14x8x8xf32, #tpu.memory_space<vmem>>, vector<1x8x8xf32>
    %152 = vector.shape_cast %151 : vector<1x8x8xf32> to vector<8x8xf32>
    %c0_59 = arith.constant 0 : index
    %c0_60 = arith.constant 0 : index
    %c0_61 = arith.constant 0 : index
    %153 = vector.load %arg13[%c0_59, %c0_60, %c0_61] : memref<14x8x1xf32, #tpu.memory_space<vmem>>, vector<1x8x1xf32>
    %154 = vector.shape_cast %153 : vector<1x8x1xf32> to vector<8x1xf32>
    %cst_62 = arith.constant dense<0.000000e+00> : vector<8x256xf32>
    %155 = tpu.matmul %152, %150, %cst_62 {dimension_numbers = #tpu.dot_dimension_numbers<[1], [0], [0], [1], [0, 0, 1, 1], [], []>} : vector<8x8xf32>, vector<8x256xf32>, vector<8x256xf32> -> vector<8x256xf32>
    %156 = vector.broadcast %154 : vector<8x1xf32> to vector<8x256xf32>
    %157 = arith.addf %155, %156 : vector<8x256xf32>
    %c0_63 = arith.constant 0 : index
    %158 = memref.load %arg1[%c0_63] : memref<14xf32, #tpu.memory_space<smem>>
    %159 = vector.broadcast %158 : f32 to vector<8x256xf32>
    %160 = arith.mulf %159, %8 : vector<8x256xf32>
    %161 = arith.addf %160, %157 : vector<8x256xf32>
    %cst_64 = arith.constant 0.000000e+00 : f32
    %162 = vector.broadcast %cst_64 : f32 to vector<8x256xf32>
    %163 = arith.maximumf %17, %162 : vector<8x256xf32>
    %c1_65 = arith.constant 1 : index
    %c0_66 = arith.constant 0 : index
    %c0_67 = arith.constant 0 : index
    %164 = vector.load %arg8[%c1_65, %c0_66, %c0_67] : memref<14x8x9xf32, #tpu.memory_space<vmem>>, vector<1x8x9xf32>
    %165 = vector.shape_cast %164 : vector<1x8x9xf32> to vector<8x9xf32>
    %166 = vector.extract_strided_slice %165 {offsets = [0, 4], sizes = [8, 1], strides = [1, 1]} : vector<8x9xf32> to vector<8x1xf32>
    %167 = vector.broadcast %166 : vector<8x1xf32> to vector<8x256xf32>
    %168 = arith.mulf %163, %167 : vector<8x256xf32>
    %c17_i32_68 = arith.constant 17 : i32
    %169 = tpu.dynamic_rotate %163 by %c17_i32_68 dim 1 : vector<8x256xf32>, i32 -> vector<8x256xf32>
    %170 = arith.mulf %169, %19 : vector<8x256xf32>
    %171 = vector.extract_strided_slice %165 {offsets = [0, 0], sizes = [8, 1], strides = [1, 1]} : vector<8x9xf32> to vector<8x1xf32>
    %172 = vector.broadcast %171 : vector<8x1xf32> to vector<8x256xf32>
    %173 = arith.mulf %170, %172 : vector<8x256xf32>
    %174 = arith.addf %168, %173 : vector<8x256xf32>
    %c16_i32_69 = arith.constant 16 : i32
    %175 = tpu.dynamic_rotate %163 by %c16_i32_69 dim 1 : vector<8x256xf32>, i32 -> vector<8x256xf32>
    %176 = arith.mulf %175, %21 : vector<8x256xf32>
    %177 = vector.extract_strided_slice %165 {offsets = [0, 1], sizes = [8, 1], strides = [1, 1]} : vector<8x9xf32> to vector<8x1xf32>
    %178 = vector.broadcast %177 : vector<8x1xf32> to vector<8x256xf32>
    %179 = arith.mulf %176, %178 : vector<8x256xf32>
    %180 = arith.addf %174, %179 : vector<8x256xf32>
    %c15_i32_70 = arith.constant 15 : i32
    %181 = tpu.dynamic_rotate %163 by %c15_i32_70 dim 1 : vector<8x256xf32>, i32 -> vector<8x256xf32>
    %182 = arith.mulf %181, %23 : vector<8x256xf32>
    %183 = vector.extract_strided_slice %165 {offsets = [0, 2], sizes = [8, 1], strides = [1, 1]} : vector<8x9xf32> to vector<8x1xf32>
    %184 = vector.broadcast %183 : vector<8x1xf32> to vector<8x256xf32>
    %185 = arith.mulf %182, %184 : vector<8x256xf32>
    %186 = arith.addf %180, %185 : vector<8x256xf32>
    %c1_i32_71 = arith.constant 1 : i32
    %187 = tpu.dynamic_rotate %163 by %c1_i32_71 dim 1 : vector<8x256xf32>, i32 -> vector<8x256xf32>
    %188 = arith.mulf %187, %25 : vector<8x256xf32>
    %189 = vector.extract_strided_slice %165 {offsets = [0, 3], sizes = [8, 1], strides = [1, 1]} : vector<8x9xf32> to vector<8x1xf32>
    %190 = vector.broadcast %189 : vector<8x1xf32> to vector<8x256xf32>
    %191 = arith.mulf %188, %190 : vector<8x256xf32>
    %192 = arith.addf %186, %191 : vector<8x256xf32>
    %c255_i32_72 = arith.constant 255 : i32
    %193 = tpu.dynamic_rotate %163 by %c255_i32_72 dim 1 : vector<8x256xf32>, i32 -> vector<8x256xf32>
    %194 = arith.mulf %193, %27 : vector<8x256xf32>
    %195 = vector.extract_strided_slice %165 {offsets = [0, 5], sizes = [8, 1], strides = [1, 1]} : vector<8x9xf32> to vector<8x1xf32>
    %196 = vector.broadcast %195 : vector<8x1xf32> to vector<8x256xf32>
    %197 = arith.mulf %194, %196 : vector<8x256xf32>
    %198 = arith.addf %192, %197 : vector<8x256xf32>
    %c241_i32_73 = arith.constant 241 : i32
    %199 = tpu.dynamic_rotate %163 by %c241_i32_73 dim 1 : vector<8x256xf32>, i32 -> vector<8x256xf32>
    %200 = arith.mulf %199, %29 : vector<8x256xf32>
    %201 = vector.extract_strided_slice %165 {offsets = [0, 6], sizes = [8, 1], strides = [1, 1]} : vector<8x9xf32> to vector<8x1xf32>
    %202 = vector.broadcast %201 : vector<8x1xf32> to vector<8x256xf32>
    %203 = arith.mulf %200, %202 : vector<8x256xf32>
    %204 = arith.addf %198, %203 : vector<8x256xf32>
    %c240_i32_74 = arith.constant 240 : i32
    %205 = tpu.dynamic_rotate %163 by %c240_i32_74 dim 1 : vector<8x256xf32>, i32 -> vector<8x256xf32>
    %206 = arith.mulf %205, %31 : vector<8x256xf32>
    %207 = vector.extract_strided_slice %165 {offsets = [0, 7], sizes = [8, 1], strides = [1, 1]} : vector<8x9xf32> to vector<8x1xf32>
    %208 = vector.broadcast %207 : vector<8x1xf32> to vector<8x256xf32>
    %209 = arith.mulf %206, %208 : vector<8x256xf32>
    %210 = arith.addf %204, %209 : vector<8x256xf32>
    %c239_i32_75 = arith.constant 239 : i32
    %211 = tpu.dynamic_rotate %163 by %c239_i32_75 dim 1 : vector<8x256xf32>, i32 -> vector<8x256xf32>
    %212 = arith.mulf %211, %33 : vector<8x256xf32>
    %213 = vector.extract_strided_slice %165 {offsets = [0, 8], sizes = [8, 1], strides = [1, 1]} : vector<8x9xf32> to vector<8x1xf32>
    %214 = vector.broadcast %213 : vector<8x1xf32> to vector<8x256xf32>
    %215 = arith.mulf %212, %214 : vector<8x256xf32>
    %216 = arith.addf %210, %215 : vector<8x256xf32>
    %c1_76 = arith.constant 1 : index
    %c0_77 = arith.constant 0 : index
    %c0_78 = arith.constant 0 : index
    %217 = vector.load %arg9[%c1_76, %c0_77, %c0_78] : memref<14x8x8xf32, #tpu.memory_space<vmem>>, vector<1x8x8xf32>
    %218 = vector.shape_cast %217 : vector<1x8x8xf32> to vector<8x8xf32>
    %c1_79 = arith.constant 1 : index
    %c0_80 = arith.constant 0 : index
    %c0_81 = arith.constant 0 : index
    %219 = vector.load %arg10[%c1_79, %c0_80, %c0_81] : memref<14x8x1xf32, #tpu.memory_space<vmem>>, vector<1x8x1xf32>
    %220 = vector.shape_cast %219 : vector<1x8x1xf32> to vector<8x1xf32>
    %cst_82 = arith.constant dense<0.000000e+00> : vector<8x256xf32>
    %221 = tpu.matmul %218, %216, %cst_82 {dimension_numbers = #tpu.dot_dimension_numbers<[1], [0], [0], [1], [0, 0, 1, 1], [], []>} : vector<8x8xf32>, vector<8x256xf32>, vector<8x256xf32> -> vector<8x256xf32>
    %222 = vector.broadcast %220 : vector<8x1xf32> to vector<8x256xf32>
    %223 = arith.addf %221, %222 : vector<8x256xf32>
    %cst_83 = arith.constant 0.000000e+00 : f32
    %224 = vector.broadcast %cst_83 : f32 to vector<8x256xf32>
    %225 = arith.maximumf %223, %224 : vector<8x256xf32>
    %c1_84 = arith.constant 1 : index
    %c0_85 = arith.constant 0 : index
    %c0_86 = arith.constant 0 : index
    %226 = vector.load %arg11[%c1_84, %c0_85, %c0_86] : memref<14x8x9xf32, #tpu.memory_space<vmem>>, vector<1x8x9xf32>
    %227 = vector.shape_cast %226 : vector<1x8x9xf32> to vector<8x9xf32>
    %228 = vector.extract_strided_slice %227 {offsets = [0, 4], sizes = [8, 1], strides = [1, 1]} : vector<8x9xf32> to vector<8x1xf32>
    %229 = vector.broadcast %228 : vector<8x1xf32> to vector<8x256xf32>
    %230 = arith.mulf %225, %229 : vector<8x256xf32>
    %c17_i32_87 = arith.constant 17 : i32
    %231 = tpu.dynamic_rotate %225 by %c17_i32_87 dim 1 : vector<8x256xf32>, i32 -> vector<8x256xf32>
    %232 = arith.mulf %231, %19 : vector<8x256xf32>
    %233 = vector.extract_strided_slice %227 {offsets = [0, 0], sizes = [8, 1], strides = [1, 1]} : vector<8x9xf32> to vector<8x1xf32>
    %234 = vector.broadcast %233 : vector<8x1xf32> to vector<8x256xf32>
    %235 = arith.mulf %232, %234 : vector<8x256xf32>
    %236 = arith.addf %230, %235 : vector<8x256xf32>
    %c16_i32_88 = arith.constant 16 : i32
    %237 = tpu.dynamic_rotate %225 by %c16_i32_88 dim 1 : vector<8x256xf32>, i32 -> vector<8x256xf32>
    %238 = arith.mulf %237, %21 : vector<8x256xf32>
    %239 = vector.extract_strided_slice %227 {offsets = [0, 1], sizes = [8, 1], strides = [1, 1]} : vector<8x9xf32> to vector<8x1xf32>
    %240 = vector.broadcast %239 : vector<8x1xf32> to vector<8x256xf32>
    %241 = arith.mulf %238, %240 : vector<8x256xf32>
    %242 = arith.addf %236, %241 : vector<8x256xf32>
    %c15_i32_89 = arith.constant 15 : i32
    %243 = tpu.dynamic_rotate %225 by %c15_i32_89 dim 1 : vector<8x256xf32>, i32 -> vector<8x256xf32>
    %244 = arith.mulf %243, %23 : vector<8x256xf32>
    %245 = vector.extract_strided_slice %227 {offsets = [0, 2], sizes = [8, 1], strides = [1, 1]} : vector<8x9xf32> to vector<8x1xf32>
    %246 = vector.broadcast %245 : vector<8x1xf32> to vector<8x256xf32>
    %247 = arith.mulf %244, %246 : vector<8x256xf32>
    %248 = arith.addf %242, %247 : vector<8x256xf32>
    %c1_i32_90 = arith.constant 1 : i32
    %249 = tpu.dynamic_rotate %225 by %c1_i32_90 dim 1 : vector<8x256xf32>, i32 -> vector<8x256xf32>
    %250 = arith.mulf %249, %25 : vector<8x256xf32>
    %251 = vector.extract_strided_slice %227 {offsets = [0, 3], sizes = [8, 1], strides = [1, 1]} : vector<8x9xf32> to vector<8x1xf32>
    %252 = vector.broadcast %251 : vector<8x1xf32> to vector<8x256xf32>
    %253 = arith.mulf %250, %252 : vector<8x256xf32>
    %254 = arith.addf %248, %253 : vector<8x256xf32>
    %c255_i32_91 = arith.constant 255 : i32
    %255 = tpu.dynamic_rotate %225 by %c255_i32_91 dim 1 : vector<8x256xf32>, i32 -> vector<8x256xf32>
    %256 = arith.mulf %255, %27 : vector<8x256xf32>
    %257 = vector.extract_strided_slice %227 {offsets = [0, 5], sizes = [8, 1], strides = [1, 1]} : vector<8x9xf32> to vector<8x1xf32>
    %258 = vector.broadcast %257 : vector<8x1xf32> to vector<8x256xf32>
    %259 = arith.mulf %256, %258 : vector<8x256xf32>
    %260 = arith.addf %254, %259 : vector<8x256xf32>
    %c241_i32_92 = arith.constant 241 : i32
    %261 = tpu.dynamic_rotate %225 by %c241_i32_92 dim 1 : vector<8x256xf32>, i32 -> vector<8x256xf32>
    %262 = arith.mulf %261, %29 : vector<8x256xf32>
    %263 = vector.extract_strided_slice %227 {offsets = [0, 6], sizes = [8, 1], strides = [1, 1]} : vector<8x9xf32> to vector<8x1xf32>
    %264 = vector.broadcast %263 : vector<8x1xf32> to vector<8x256xf32>
    %265 = arith.mulf %262, %264 : vector<8x256xf32>
    %266 = arith.addf %260, %265 : vector<8x256xf32>
    %c240_i32_93 = arith.constant 240 : i32
    %267 = tpu.dynamic_rotate %225 by %c240_i32_93 dim 1 : vector<8x256xf32>, i32 -> vector<8x256xf32>
    %268 = arith.mulf %267, %31 : vector<8x256xf32>
    %269 = vector.extract_strided_slice %227 {offsets = [0, 7], sizes = [8, 1], strides = [1, 1]} : vector<8x9xf32> to vector<8x1xf32>
    %270 = vector.broadcast %269 : vector<8x1xf32> to vector<8x256xf32>
    %271 = arith.mulf %268, %270 : vector<8x256xf32>
    %272 = arith.addf %266, %271 : vector<8x256xf32>
    %c239_i32_94 = arith.constant 239 : i32
    %273 = tpu.dynamic_rotate %225 by %c239_i32_94 dim 1 : vector<8x256xf32>, i32 -> vector<8x256xf32>
    %274 = arith.mulf %273, %33 : vector<8x256xf32>
    %275 = vector.extract_strided_slice %227 {offsets = [0, 8], sizes = [8, 1], strides = [1, 1]} : vector<8x9xf32> to vector<8x1xf32>
    %276 = vector.broadcast %275 : vector<8x1xf32> to vector<8x256xf32>
    %277 = arith.mulf %274, %276 : vector<8x256xf32>
    %278 = arith.addf %272, %277 : vector<8x256xf32>
    %c1_95 = arith.constant 1 : index
    %c0_96 = arith.constant 0 : index
    %c0_97 = arith.constant 0 : index
    %279 = vector.load %arg12[%c1_95, %c0_96, %c0_97] : memref<14x8x8xf32, #tpu.memory_space<vmem>>, vector<1x8x8xf32>
    %280 = vector.shape_cast %279 : vector<1x8x8xf32> to vector<8x8xf32>
    %c1_98 = arith.constant 1 : index
    %c0_99 = arith.constant 0 : index
    %c0_100 = arith.constant 0 : index
    %281 = vector.load %arg13[%c1_98, %c0_99, %c0_100] : memref<14x8x1xf32, #tpu.memory_space<vmem>>, vector<1x8x1xf32>
    %282 = vector.shape_cast %281 : vector<1x8x1xf32> to vector<8x1xf32>
    %cst_101 = arith.constant dense<0.000000e+00> : vector<8x256xf32>
    %283 = tpu.matmul %280, %278, %cst_101 {dimension_numbers = #tpu.dot_dimension_numbers<[1], [0], [0], [1], [0, 0, 1, 1], [], []>} : vector<8x8xf32>, vector<8x256xf32>, vector<8x256xf32> -> vector<8x256xf32>
    %284 = vector.broadcast %282 : vector<8x1xf32> to vector<8x256xf32>
    %285 = arith.addf %283, %284 : vector<8x256xf32>
    %c1_102 = arith.constant 1 : index
    %286 = memref.load %arg1[%c1_102] : memref<14xf32, #tpu.memory_space<smem>>
    %287 = vector.broadcast %286 : f32 to vector<8x256xf32>
    %288 = arith.mulf %287, %17 : vector<8x256xf32>
    %289 = arith.addf %288, %285 : vector<8x256xf32>
    %290 = arith.addf %161, %289 : vector<8x256xf32>
    %cst_103 = arith.constant 0.000000e+00 : f32
    %291 = vector.broadcast %cst_103 : f32 to vector<8x256xf32>
    %292 = arith.maximumf %8, %291 : vector<8x256xf32>
    %c2_104 = arith.constant 2 : index
    %c0_105 = arith.constant 0 : index
    %c0_106 = arith.constant 0 : index
    %293 = vector.load %arg8[%c2_104, %c0_105, %c0_106] : memref<14x8x9xf32, #tpu.memory_space<vmem>>, vector<1x8x9xf32>
    %294 = vector.shape_cast %293 : vector<1x8x9xf32> to vector<8x9xf32>
    %295 = vector.extract_strided_slice %294 {offsets = [0, 4], sizes = [8, 1], strides = [1, 1]} : vector<8x9xf32> to vector<8x1xf32>
    %296 = vector.broadcast %295 : vector<8x1xf32> to vector<8x256xf32>
    %297 = arith.mulf %292, %296 : vector<8x256xf32>
    %c17_i32_107 = arith.constant 17 : i32
    %298 = tpu.dynamic_rotate %292 by %c17_i32_107 dim 1 : vector<8x256xf32>, i32 -> vector<8x256xf32>
    %299 = arith.mulf %298, %19 : vector<8x256xf32>
    %300 = vector.extract_strided_slice %294 {offsets = [0, 0], sizes = [8, 1], strides = [1, 1]} : vector<8x9xf32> to vector<8x1xf32>
    %301 = vector.broadcast %300 : vector<8x1xf32> to vector<8x256xf32>
    %302 = arith.mulf %299, %301 : vector<8x256xf32>
    %303 = arith.addf %297, %302 : vector<8x256xf32>
    %c16_i32_108 = arith.constant 16 : i32
    %304 = tpu.dynamic_rotate %292 by %c16_i32_108 dim 1 : vector<8x256xf32>, i32 -> vector<8x256xf32>
    %305 = arith.mulf %304, %21 : vector<8x256xf32>
    %306 = vector.extract_strided_slice %294 {offsets = [0, 1], sizes = [8, 1], strides = [1, 1]} : vector<8x9xf32> to vector<8x1xf32>
    %307 = vector.broadcast %306 : vector<8x1xf32> to vector<8x256xf32>
    %308 = arith.mulf %305, %307 : vector<8x256xf32>
    %309 = arith.addf %303, %308 : vector<8x256xf32>
    %c15_i32_109 = arith.constant 15 : i32
    %310 = tpu.dynamic_rotate %292 by %c15_i32_109 dim 1 : vector<8x256xf32>, i32 -> vector<8x256xf32>
    %311 = arith.mulf %310, %23 : vector<8x256xf32>
    %312 = vector.extract_strided_slice %294 {offsets = [0, 2], sizes = [8, 1], strides = [1, 1]} : vector<8x9xf32> to vector<8x1xf32>
    %313 = vector.broadcast %312 : vector<8x1xf32> to vector<8x256xf32>
    %314 = arith.mulf %311, %313 : vector<8x256xf32>
    %315 = arith.addf %309, %314 : vector<8x256xf32>
    %c1_i32_110 = arith.constant 1 : i32
    %316 = tpu.dynamic_rotate %292 by %c1_i32_110 dim 1 : vector<8x256xf32>, i32 -> vector<8x256xf32>
    %317 = arith.mulf %316, %25 : vector<8x256xf32>
    %318 = vector.extract_strided_slice %294 {offsets = [0, 3], sizes = [8, 1], strides = [1, 1]} : vector<8x9xf32> to vector<8x1xf32>
    %319 = vector.broadcast %318 : vector<8x1xf32> to vector<8x256xf32>
    %320 = arith.mulf %317, %319 : vector<8x256xf32>
    %321 = arith.addf %315, %320 : vector<8x256xf32>
    %c255_i32_111 = arith.constant 255 : i32
    %322 = tpu.dynamic_rotate %292 by %c255_i32_111 dim 1 : vector<8x256xf32>, i32 -> vector<8x256xf32>
    %323 = arith.mulf %322, %27 : vector<8x256xf32>
    %324 = vector.extract_strided_slice %294 {offsets = [0, 5], sizes = [8, 1], strides = [1, 1]} : vector<8x9xf32> to vector<8x1xf32>
    %325 = vector.broadcast %324 : vector<8x1xf32> to vector<8x256xf32>
    %326 = arith.mulf %323, %325 : vector<8x256xf32>
    %327 = arith.addf %321, %326 : vector<8x256xf32>
    %c241_i32_112 = arith.constant 241 : i32
    %328 = tpu.dynamic_rotate %292 by %c241_i32_112 dim 1 : vector<8x256xf32>, i32 -> vector<8x256xf32>
    %329 = arith.mulf %328, %29 : vector<8x256xf32>
    %330 = vector.extract_strided_slice %294 {offsets = [0, 6], sizes = [8, 1], strides = [1, 1]} : vector<8x9xf32> to vector<8x1xf32>
    %331 = vector.broadcast %330 : vector<8x1xf32> to vector<8x256xf32>
    %332 = arith.mulf %329, %331 : vector<8x256xf32>
    %333 = arith.addf %327, %332 : vector<8x256xf32>
    %c240_i32_113 = arith.constant 240 : i32
    %334 = tpu.dynamic_rotate %292 by %c240_i32_113 dim 1 : vector<8x256xf32>, i32 -> vector<8x256xf32>
    %335 = arith.mulf %334, %31 : vector<8x256xf32>
    %336 = vector.extract_strided_slice %294 {offsets = [0, 7], sizes = [8, 1], strides = [1, 1]} : vector<8x9xf32> to vector<8x1xf32>
    %337 = vector.broadcast %336 : vector<8x1xf32> to vector<8x256xf32>
    %338 = arith.mulf %335, %337 : vector<8x256xf32>
    %339 = arith.addf %333, %338 : vector<8x256xf32>
    %c239_i32_114 = arith.constant 239 : i32
    %340 = tpu.dynamic_rotate %292 by %c239_i32_114 dim 1 : vector<8x256xf32>, i32 -> vector<8x256xf32>
    %341 = arith.mulf %340, %33 : vector<8x256xf32>
    %342 = vector.extract_strided_slice %294 {offsets = [0, 8], sizes = [8, 1], strides = [1, 1]} : vector<8x9xf32> to vector<8x1xf32>
    %343 = vector.broadcast %342 : vector<8x1xf32> to vector<8x256xf32>
    %344 = arith.mulf %341, %343 : vector<8x256xf32>
    %345 = arith.addf %339, %344 : vector<8x256xf32>
    %c2_115 = arith.constant 2 : index
    %c0_116 = arith.constant 0 : index
    %c0_117 = arith.constant 0 : index
    %346 = vector.load %arg9[%c2_115, %c0_116, %c0_117] : memref<14x8x8xf32, #tpu.memory_space<vmem>>, vector<1x8x8xf32>
    %347 = vector.shape_cast %346 : vector<1x8x8xf32> to vector<8x8xf32>
    %c2_118 = arith.constant 2 : index
    %c0_119 = arith.constant 0 : index
    %c0_120 = arith.constant 0 : index
    %348 = vector.load %arg10[%c2_118, %c0_119, %c0_120] : memref<14x8x1xf32, #tpu.memory_space<vmem>>, vector<1x8x1xf32>
    %349 = vector.shape_cast %348 : vector<1x8x1xf32> to vector<8x1xf32>
    %cst_121 = arith.constant dense<0.000000e+00> : vector<8x256xf32>
    %350 = tpu.matmul %347, %345, %cst_121 {dimension_numbers = #tpu.dot_dimension_numbers<[1], [0], [0], [1], [0, 0, 1, 1], [], []>} : vector<8x8xf32>, vector<8x256xf32>, vector<8x256xf32> -> vector<8x256xf32>
    %351 = vector.broadcast %349 : vector<8x1xf32> to vector<8x256xf32>
    %352 = arith.addf %350, %351 : vector<8x256xf32>
    %cst_122 = arith.constant 0.000000e+00 : f32
    %353 = vector.broadcast %cst_122 : f32 to vector<8x256xf32>
    %354 = arith.maximumf %352, %353 : vector<8x256xf32>
    %c2_123 = arith.constant 2 : index
    %c0_124 = arith.constant 0 : index
    %c0_125 = arith.constant 0 : index
    %355 = vector.load %arg11[%c2_123, %c0_124, %c0_125] : memref<14x8x9xf32, #tpu.memory_space<vmem>>, vector<1x8x9xf32>
    %356 = vector.shape_cast %355 : vector<1x8x9xf32> to vector<8x9xf32>
    %357 = vector.extract_strided_slice %356 {offsets = [0, 4], sizes = [8, 1], strides = [1, 1]} : vector<8x9xf32> to vector<8x1xf32>
    %358 = vector.broadcast %357 : vector<8x1xf32> to vector<8x256xf32>
    %359 = arith.mulf %354, %358 : vector<8x256xf32>
    %c17_i32_126 = arith.constant 17 : i32
    %360 = tpu.dynamic_rotate %354 by %c17_i32_126 dim 1 : vector<8x256xf32>, i32 -> vector<8x256xf32>
    %361 = arith.mulf %360, %19 : vector<8x256xf32>
    %362 = vector.extract_strided_slice %356 {offsets = [0, 0], sizes = [8, 1], strides = [1, 1]} : vector<8x9xf32> to vector<8x1xf32>
    %363 = vector.broadcast %362 : vector<8x1xf32> to vector<8x256xf32>
    %364 = arith.mulf %361, %363 : vector<8x256xf32>
    %365 = arith.addf %359, %364 : vector<8x256xf32>
    %c16_i32_127 = arith.constant 16 : i32
    %366 = tpu.dynamic_rotate %354 by %c16_i32_127 dim 1 : vector<8x256xf32>, i32 -> vector<8x256xf32>
    %367 = arith.mulf %366, %21 : vector<8x256xf32>
    %368 = vector.extract_strided_slice %356 {offsets = [0, 1], sizes = [8, 1], strides = [1, 1]} : vector<8x9xf32> to vector<8x1xf32>
    %369 = vector.broadcast %368 : vector<8x1xf32> to vector<8x256xf32>
    %370 = arith.mulf %367, %369 : vector<8x256xf32>
    %371 = arith.addf %365, %370 : vector<8x256xf32>
    %c15_i32_128 = arith.constant 15 : i32
    %372 = tpu.dynamic_rotate %354 by %c15_i32_128 dim 1 : vector<8x256xf32>, i32 -> vector<8x256xf32>
    %373 = arith.mulf %372, %23 : vector<8x256xf32>
    %374 = vector.extract_strided_slice %356 {offsets = [0, 2], sizes = [8, 1], strides = [1, 1]} : vector<8x9xf32> to vector<8x1xf32>
    %375 = vector.broadcast %374 : vector<8x1xf32> to vector<8x256xf32>
    %376 = arith.mulf %373, %375 : vector<8x256xf32>
    %377 = arith.addf %371, %376 : vector<8x256xf32>
    %c1_i32_129 = arith.constant 1 : i32
    %378 = tpu.dynamic_rotate %354 by %c1_i32_129 dim 1 : vector<8x256xf32>, i32 -> vector<8x256xf32>
    %379 = arith.mulf %378, %25 : vector<8x256xf32>
    %380 = vector.extract_strided_slice %356 {offsets = [0, 3], sizes = [8, 1], strides = [1, 1]} : vector<8x9xf32> to vector<8x1xf32>
    %381 = vector.broadcast %380 : vector<8x1xf32> to vector<8x256xf32>
    %382 = arith.mulf %379, %381 : vector<8x256xf32>
    %383 = arith.addf %377, %382 : vector<8x256xf32>
    %c255_i32_130 = arith.constant 255 : i32
    %384 = tpu.dynamic_rotate %354 by %c255_i32_130 dim 1 : vector<8x256xf32>, i32 -> vector<8x256xf32>
    %385 = arith.mulf %384, %27 : vector<8x256xf32>
    %386 = vector.extract_strided_slice %356 {offsets = [0, 5], sizes = [8, 1], strides = [1, 1]} : vector<8x9xf32> to vector<8x1xf32>
    %387 = vector.broadcast %386 : vector<8x1xf32> to vector<8x256xf32>
    %388 = arith.mulf %385, %387 : vector<8x256xf32>
    %389 = arith.addf %383, %388 : vector<8x256xf32>
    %c241_i32_131 = arith.constant 241 : i32
    %390 = tpu.dynamic_rotate %354 by %c241_i32_131 dim 1 : vector<8x256xf32>, i32 -> vector<8x256xf32>
    %391 = arith.mulf %390, %29 : vector<8x256xf32>
    %392 = vector.extract_strided_slice %356 {offsets = [0, 6], sizes = [8, 1], strides = [1, 1]} : vector<8x9xf32> to vector<8x1xf32>
    %393 = vector.broadcast %392 : vector<8x1xf32> to vector<8x256xf32>
    %394 = arith.mulf %391, %393 : vector<8x256xf32>
    %395 = arith.addf %389, %394 : vector<8x256xf32>
    %c240_i32_132 = arith.constant 240 : i32
    %396 = tpu.dynamic_rotate %354 by %c240_i32_132 dim 1 : vector<8x256xf32>, i32 -> vector<8x256xf32>
    %397 = arith.mulf %396, %31 : vector<8x256xf32>
    %398 = vector.extract_strided_slice %356 {offsets = [0, 7], sizes = [8, 1], strides = [1, 1]} : vector<8x9xf32> to vector<8x1xf32>
    %399 = vector.broadcast %398 : vector<8x1xf32> to vector<8x256xf32>
    %400 = arith.mulf %397, %399 : vector<8x256xf32>
    %401 = arith.addf %395, %400 : vector<8x256xf32>
    %c239_i32_133 = arith.constant 239 : i32
    %402 = tpu.dynamic_rotate %354 by %c239_i32_133 dim 1 : vector<8x256xf32>, i32 -> vector<8x256xf32>
    %403 = arith.mulf %402, %33 : vector<8x256xf32>
    %404 = vector.extract_strided_slice %356 {offsets = [0, 8], sizes = [8, 1], strides = [1, 1]} : vector<8x9xf32> to vector<8x1xf32>
    %405 = vector.broadcast %404 : vector<8x1xf32> to vector<8x256xf32>
    %406 = arith.mulf %403, %405 : vector<8x256xf32>
    %407 = arith.addf %401, %406 : vector<8x256xf32>
    %c2_134 = arith.constant 2 : index
    %c0_135 = arith.constant 0 : index
    %c0_136 = arith.constant 0 : index
    %408 = vector.load %arg12[%c2_134, %c0_135, %c0_136] : memref<14x8x8xf32, #tpu.memory_space<vmem>>, vector<1x8x8xf32>
    %409 = vector.shape_cast %408 : vector<1x8x8xf32> to vector<8x8xf32>
    %c2_137 = arith.constant 2 : index
    %c0_138 = arith.constant 0 : index
    %c0_139 = arith.constant 0 : index
    %410 = vector.load %arg13[%c2_137, %c0_138, %c0_139] : memref<14x8x1xf32, #tpu.memory_space<vmem>>, vector<1x8x1xf32>
    %411 = vector.shape_cast %410 : vector<1x8x1xf32> to vector<8x1xf32>
    %cst_140 = arith.constant dense<0.000000e+00> : vector<8x256xf32>
    %412 = tpu.matmul %409, %407, %cst_140 {dimension_numbers = #tpu.dot_dimension_numbers<[1], [0], [0], [1], [0, 0, 1, 1], [], []>} : vector<8x8xf32>, vector<8x256xf32>, vector<8x256xf32> -> vector<8x256xf32>
    %413 = vector.broadcast %411 : vector<8x1xf32> to vector<8x256xf32>
    %414 = arith.addf %412, %413 : vector<8x256xf32>
    %c2_141 = arith.constant 2 : index
    %415 = memref.load %arg1[%c2_141] : memref<14xf32, #tpu.memory_space<smem>>
    %416 = vector.broadcast %415 : f32 to vector<8x256xf32>
    %417 = arith.mulf %416, %8 : vector<8x256xf32>
    %418 = arith.addf %417, %414 : vector<8x256xf32>
    %cst_142 = arith.constant 0.000000e+00 : f32
    %419 = vector.broadcast %cst_142 : f32 to vector<8x256xf32>
    %420 = arith.maximumf %17, %419 : vector<8x256xf32>
    %c3_143 = arith.constant 3 : index
    %c0_144 = arith.constant 0 : index
    %c0_145 = arith.constant 0 : index
    %421 = vector.load %arg8[%c3_143, %c0_144, %c0_145] : memref<14x8x9xf32, #tpu.memory_space<vmem>>, vector<1x8x9xf32>
    %422 = vector.shape_cast %421 : vector<1x8x9xf32> to vector<8x9xf32>
    %423 = vector.extract_strided_slice %422 {offsets = [0, 4], sizes = [8, 1], strides = [1, 1]} : vector<8x9xf32> to vector<8x1xf32>
    %424 = vector.broadcast %423 : vector<8x1xf32> to vector<8x256xf32>
    %425 = arith.mulf %420, %424 : vector<8x256xf32>
    %c17_i32_146 = arith.constant 17 : i32
    %426 = tpu.dynamic_rotate %420 by %c17_i32_146 dim 1 : vector<8x256xf32>, i32 -> vector<8x256xf32>
    %427 = arith.mulf %426, %19 : vector<8x256xf32>
    %428 = vector.extract_strided_slice %422 {offsets = [0, 0], sizes = [8, 1], strides = [1, 1]} : vector<8x9xf32> to vector<8x1xf32>
    %429 = vector.broadcast %428 : vector<8x1xf32> to vector<8x256xf32>
    %430 = arith.mulf %427, %429 : vector<8x256xf32>
    %431 = arith.addf %425, %430 : vector<8x256xf32>
    %c16_i32_147 = arith.constant 16 : i32
    %432 = tpu.dynamic_rotate %420 by %c16_i32_147 dim 1 : vector<8x256xf32>, i32 -> vector<8x256xf32>
    %433 = arith.mulf %432, %21 : vector<8x256xf32>
    %434 = vector.extract_strided_slice %422 {offsets = [0, 1], sizes = [8, 1], strides = [1, 1]} : vector<8x9xf32> to vector<8x1xf32>
    %435 = vector.broadcast %434 : vector<8x1xf32> to vector<8x256xf32>
    %436 = arith.mulf %433, %435 : vector<8x256xf32>
    %437 = arith.addf %431, %436 : vector<8x256xf32>
    %c15_i32_148 = arith.constant 15 : i32
    %438 = tpu.dynamic_rotate %420 by %c15_i32_148 dim 1 : vector<8x256xf32>, i32 -> vector<8x256xf32>
    %439 = arith.mulf %438, %23 : vector<8x256xf32>
    %440 = vector.extract_strided_slice %422 {offsets = [0, 2], sizes = [8, 1], strides = [1, 1]} : vector<8x9xf32> to vector<8x1xf32>
    %441 = vector.broadcast %440 : vector<8x1xf32> to vector<8x256xf32>
    %442 = arith.mulf %439, %441 : vector<8x256xf32>
    %443 = arith.addf %437, %442 : vector<8x256xf32>
    %c1_i32_149 = arith.constant 1 : i32
    %444 = tpu.dynamic_rotate %420 by %c1_i32_149 dim 1 : vector<8x256xf32>, i32 -> vector<8x256xf32>
    %445 = arith.mulf %444, %25 : vector<8x256xf32>
    %446 = vector.extract_strided_slice %422 {offsets = [0, 3], sizes = [8, 1], strides = [1, 1]} : vector<8x9xf32> to vector<8x1xf32>
    %447 = vector.broadcast %446 : vector<8x1xf32> to vector<8x256xf32>
    %448 = arith.mulf %445, %447 : vector<8x256xf32>
    %449 = arith.addf %443, %448 : vector<8x256xf32>
    %c255_i32_150 = arith.constant 255 : i32
    %450 = tpu.dynamic_rotate %420 by %c255_i32_150 dim 1 : vector<8x256xf32>, i32 -> vector<8x256xf32>
    %451 = arith.mulf %450, %27 : vector<8x256xf32>
    %452 = vector.extract_strided_slice %422 {offsets = [0, 5], sizes = [8, 1], strides = [1, 1]} : vector<8x9xf32> to vector<8x1xf32>
    %453 = vector.broadcast %452 : vector<8x1xf32> to vector<8x256xf32>
    %454 = arith.mulf %451, %453 : vector<8x256xf32>
    %455 = arith.addf %449, %454 : vector<8x256xf32>
    %c241_i32_151 = arith.constant 241 : i32
    %456 = tpu.dynamic_rotate %420 by %c241_i32_151 dim 1 : vector<8x256xf32>, i32 -> vector<8x256xf32>
    %457 = arith.mulf %456, %29 : vector<8x256xf32>
    %458 = vector.extract_strided_slice %422 {offsets = [0, 6], sizes = [8, 1], strides = [1, 1]} : vector<8x9xf32> to vector<8x1xf32>
    %459 = vector.broadcast %458 : vector<8x1xf32> to vector<8x256xf32>
    %460 = arith.mulf %457, %459 : vector<8x256xf32>
    %461 = arith.addf %455, %460 : vector<8x256xf32>
    %c240_i32_152 = arith.constant 240 : i32
    %462 = tpu.dynamic_rotate %420 by %c240_i32_152 dim 1 : vector<8x256xf32>, i32 -> vector<8x256xf32>
    %463 = arith.mulf %462, %31 : vector<8x256xf32>
    %464 = vector.extract_strided_slice %422 {offsets = [0, 7], sizes = [8, 1], strides = [1, 1]} : vector<8x9xf32> to vector<8x1xf32>
    %465 = vector.broadcast %464 : vector<8x1xf32> to vector<8x256xf32>
    %466 = arith.mulf %463, %465 : vector<8x256xf32>
    %467 = arith.addf %461, %466 : vector<8x256xf32>
    %c239_i32_153 = arith.constant 239 : i32
    %468 = tpu.dynamic_rotate %420 by %c239_i32_153 dim 1 : vector<8x256xf32>, i32 -> vector<8x256xf32>
    %469 = arith.mulf %468, %33 : vector<8x256xf32>
    %470 = vector.extract_strided_slice %422 {offsets = [0, 8], sizes = [8, 1], strides = [1, 1]} : vector<8x9xf32> to vector<8x1xf32>
    %471 = vector.broadcast %470 : vector<8x1xf32> to vector<8x256xf32>
    %472 = arith.mulf %469, %471 : vector<8x256xf32>
    %473 = arith.addf %467, %472 : vector<8x256xf32>
    %c3_154 = arith.constant 3 : index
    %c0_155 = arith.constant 0 : index
    %c0_156 = arith.constant 0 : index
    %474 = vector.load %arg9[%c3_154, %c0_155, %c0_156] : memref<14x8x8xf32, #tpu.memory_space<vmem>>, vector<1x8x8xf32>
    %475 = vector.shape_cast %474 : vector<1x8x8xf32> to vector<8x8xf32>
    %c3_157 = arith.constant 3 : index
    %c0_158 = arith.constant 0 : index
    %c0_159 = arith.constant 0 : index
    %476 = vector.load %arg10[%c3_157, %c0_158, %c0_159] : memref<14x8x1xf32, #tpu.memory_space<vmem>>, vector<1x8x1xf32>
    %477 = vector.shape_cast %476 : vector<1x8x1xf32> to vector<8x1xf32>
    %cst_160 = arith.constant dense<0.000000e+00> : vector<8x256xf32>
    %478 = tpu.matmul %475, %473, %cst_160 {dimension_numbers = #tpu.dot_dimension_numbers<[1], [0], [0], [1], [0, 0, 1, 1], [], []>} : vector<8x8xf32>, vector<8x256xf32>, vector<8x256xf32> -> vector<8x256xf32>
    %479 = vector.broadcast %477 : vector<8x1xf32> to vector<8x256xf32>
    %480 = arith.addf %478, %479 : vector<8x256xf32>
    %cst_161 = arith.constant 0.000000e+00 : f32
    %481 = vector.broadcast %cst_161 : f32 to vector<8x256xf32>
    %482 = arith.maximumf %480, %481 : vector<8x256xf32>
    %c3_162 = arith.constant 3 : index
    %c0_163 = arith.constant 0 : index
    %c0_164 = arith.constant 0 : index
    %483 = vector.load %arg11[%c3_162, %c0_163, %c0_164] : memref<14x8x9xf32, #tpu.memory_space<vmem>>, vector<1x8x9xf32>
    %484 = vector.shape_cast %483 : vector<1x8x9xf32> to vector<8x9xf32>
    %485 = vector.extract_strided_slice %484 {offsets = [0, 4], sizes = [8, 1], strides = [1, 1]} : vector<8x9xf32> to vector<8x1xf32>
    %486 = vector.broadcast %485 : vector<8x1xf32> to vector<8x256xf32>
    %487 = arith.mulf %482, %486 : vector<8x256xf32>
    %c17_i32_165 = arith.constant 17 : i32
    %488 = tpu.dynamic_rotate %482 by %c17_i32_165 dim 1 : vector<8x256xf32>, i32 -> vector<8x256xf32>
    %489 = arith.mulf %488, %19 : vector<8x256xf32>
    %490 = vector.extract_strided_slice %484 {offsets = [0, 0], sizes = [8, 1], strides = [1, 1]} : vector<8x9xf32> to vector<8x1xf32>
    %491 = vector.broadcast %490 : vector<8x1xf32> to vector<8x256xf32>
    %492 = arith.mulf %489, %491 : vector<8x256xf32>
    %493 = arith.addf %487, %492 : vector<8x256xf32>
    %c16_i32_166 = arith.constant 16 : i32
    %494 = tpu.dynamic_rotate %482 by %c16_i32_166 dim 1 : vector<8x256xf32>, i32 -> vector<8x256xf32>
    %495 = arith.mulf %494, %21 : vector<8x256xf32>
    %496 = vector.extract_strided_slice %484 {offsets = [0, 1], sizes = [8, 1], strides = [1, 1]} : vector<8x9xf32> to vector<8x1xf32>
    %497 = vector.broadcast %496 : vector<8x1xf32> to vector<8x256xf32>
    %498 = arith.mulf %495, %497 : vector<8x256xf32>
    %499 = arith.addf %493, %498 : vector<8x256xf32>
    %c15_i32_167 = arith.constant 15 : i32
    %500 = tpu.dynamic_rotate %482 by %c15_i32_167 dim 1 : vector<8x256xf32>, i32 -> vector<8x256xf32>
    %501 = arith.mulf %500, %23 : vector<8x256xf32>
    %502 = vector.extract_strided_slice %484 {offsets = [0, 2], sizes = [8, 1], strides = [1, 1]} : vector<8x9xf32> to vector<8x1xf32>
    %503 = vector.broadcast %502 : vector<8x1xf32> to vector<8x256xf32>
    %504 = arith.mulf %501, %503 : vector<8x256xf32>
    %505 = arith.addf %499, %504 : vector<8x256xf32>
    %c1_i32_168 = arith.constant 1 : i32
    %506 = tpu.dynamic_rotate %482 by %c1_i32_168 dim 1 : vector<8x256xf32>, i32 -> vector<8x256xf32>
    %507 = arith.mulf %506, %25 : vector<8x256xf32>
    %508 = vector.extract_strided_slice %484 {offsets = [0, 3], sizes = [8, 1], strides = [1, 1]} : vector<8x9xf32> to vector<8x1xf32>
    %509 = vector.broadcast %508 : vector<8x1xf32> to vector<8x256xf32>
    %510 = arith.mulf %507, %509 : vector<8x256xf32>
    %511 = arith.addf %505, %510 : vector<8x256xf32>
    %c255_i32_169 = arith.constant 255 : i32
    %512 = tpu.dynamic_rotate %482 by %c255_i32_169 dim 1 : vector<8x256xf32>, i32 -> vector<8x256xf32>
    %513 = arith.mulf %512, %27 : vector<8x256xf32>
    %514 = vector.extract_strided_slice %484 {offsets = [0, 5], sizes = [8, 1], strides = [1, 1]} : vector<8x9xf32> to vector<8x1xf32>
    %515 = vector.broadcast %514 : vector<8x1xf32> to vector<8x256xf32>
    %516 = arith.mulf %513, %515 : vector<8x256xf32>
    %517 = arith.addf %511, %516 : vector<8x256xf32>
    %c241_i32_170 = arith.constant 241 : i32
    %518 = tpu.dynamic_rotate %482 by %c241_i32_170 dim 1 : vector<8x256xf32>, i32 -> vector<8x256xf32>
    %519 = arith.mulf %518, %29 : vector<8x256xf32>
    %520 = vector.extract_strided_slice %484 {offsets = [0, 6], sizes = [8, 1], strides = [1, 1]} : vector<8x9xf32> to vector<8x1xf32>
    %521 = vector.broadcast %520 : vector<8x1xf32> to vector<8x256xf32>
    %522 = arith.mulf %519, %521 : vector<8x256xf32>
    %523 = arith.addf %517, %522 : vector<8x256xf32>
    %c240_i32_171 = arith.constant 240 : i32
    %524 = tpu.dynamic_rotate %482 by %c240_i32_171 dim 1 : vector<8x256xf32>, i32 -> vector<8x256xf32>
    %525 = arith.mulf %524, %31 : vector<8x256xf32>
    %526 = vector.extract_strided_slice %484 {offsets = [0, 7], sizes = [8, 1], strides = [1, 1]} : vector<8x9xf32> to vector<8x1xf32>
    %527 = vector.broadcast %526 : vector<8x1xf32> to vector<8x256xf32>
    %528 = arith.mulf %525, %527 : vector<8x256xf32>
    %529 = arith.addf %523, %528 : vector<8x256xf32>
    %c239_i32_172 = arith.constant 239 : i32
    %530 = tpu.dynamic_rotate %482 by %c239_i32_172 dim 1 : vector<8x256xf32>, i32 -> vector<8x256xf32>
    %531 = arith.mulf %530, %33 : vector<8x256xf32>
    %532 = vector.extract_strided_slice %484 {offsets = [0, 8], sizes = [8, 1], strides = [1, 1]} : vector<8x9xf32> to vector<8x1xf32>
    %533 = vector.broadcast %532 : vector<8x1xf32> to vector<8x256xf32>
    %534 = arith.mulf %531, %533 : vector<8x256xf32>
    %535 = arith.addf %529, %534 : vector<8x256xf32>
    %c3_173 = arith.constant 3 : index
    %c0_174 = arith.constant 0 : index
    %c0_175 = arith.constant 0 : index
    %536 = vector.load %arg12[%c3_173, %c0_174, %c0_175] : memref<14x8x8xf32, #tpu.memory_space<vmem>>, vector<1x8x8xf32>
    %537 = vector.shape_cast %536 : vector<1x8x8xf32> to vector<8x8xf32>
    %c3_176 = arith.constant 3 : index
    %c0_177 = arith.constant 0 : index
    %c0_178 = arith.constant 0 : index
    %538 = vector.load %arg13[%c3_176, %c0_177, %c0_178] : memref<14x8x1xf32, #tpu.memory_space<vmem>>, vector<1x8x1xf32>
    %539 = vector.shape_cast %538 : vector<1x8x1xf32> to vector<8x1xf32>
    %cst_179 = arith.constant dense<0.000000e+00> : vector<8x256xf32>
    %540 = tpu.matmul %537, %535, %cst_179 {dimension_numbers = #tpu.dot_dimension_numbers<[1], [0], [0], [1], [0, 0, 1, 1], [], []>} : vector<8x8xf32>, vector<8x256xf32>, vector<8x256xf32> -> vector<8x256xf32>
    %541 = vector.broadcast %539 : vector<8x1xf32> to vector<8x256xf32>
    %542 = arith.addf %540, %541 : vector<8x256xf32>
    %c3_180 = arith.constant 3 : index
    %543 = memref.load %arg1[%c3_180] : memref<14xf32, #tpu.memory_space<smem>>
    %544 = vector.broadcast %543 : f32 to vector<8x256xf32>
    %545 = arith.mulf %544, %17 : vector<8x256xf32>
    %546 = arith.addf %545, %542 : vector<8x256xf32>
    %547 = arith.addf %418, %546 : vector<8x256xf32>
    %cst_181 = arith.constant 0.000000e+00 : f32
    %548 = vector.broadcast %cst_181 : f32 to vector<8x256xf32>
    %549 = arith.maximumf %290, %548 : vector<8x256xf32>
    %c4 = arith.constant 4 : index
    %c0_182 = arith.constant 0 : index
    %c0_183 = arith.constant 0 : index
    %550 = vector.load %arg8[%c4, %c0_182, %c0_183] : memref<14x8x9xf32, #tpu.memory_space<vmem>>, vector<1x8x9xf32>
    %551 = vector.shape_cast %550 : vector<1x8x9xf32> to vector<8x9xf32>
    %552 = vector.extract_strided_slice %551 {offsets = [0, 4], sizes = [8, 1], strides = [1, 1]} : vector<8x9xf32> to vector<8x1xf32>
    %553 = vector.broadcast %552 : vector<8x1xf32> to vector<8x256xf32>
    %554 = arith.mulf %549, %553 : vector<8x256xf32>
    %c17_i32_184 = arith.constant 17 : i32
    %555 = tpu.dynamic_rotate %549 by %c17_i32_184 dim 1 : vector<8x256xf32>, i32 -> vector<8x256xf32>
    %556 = arith.mulf %555, %19 : vector<8x256xf32>
    %557 = vector.extract_strided_slice %551 {offsets = [0, 0], sizes = [8, 1], strides = [1, 1]} : vector<8x9xf32> to vector<8x1xf32>
    %558 = vector.broadcast %557 : vector<8x1xf32> to vector<8x256xf32>
    %559 = arith.mulf %556, %558 : vector<8x256xf32>
    %560 = arith.addf %554, %559 : vector<8x256xf32>
    %c16_i32_185 = arith.constant 16 : i32
    %561 = tpu.dynamic_rotate %549 by %c16_i32_185 dim 1 : vector<8x256xf32>, i32 -> vector<8x256xf32>
    %562 = arith.mulf %561, %21 : vector<8x256xf32>
    %563 = vector.extract_strided_slice %551 {offsets = [0, 1], sizes = [8, 1], strides = [1, 1]} : vector<8x9xf32> to vector<8x1xf32>
    %564 = vector.broadcast %563 : vector<8x1xf32> to vector<8x256xf32>
    %565 = arith.mulf %562, %564 : vector<8x256xf32>
    %566 = arith.addf %560, %565 : vector<8x256xf32>
    %c15_i32_186 = arith.constant 15 : i32
    %567 = tpu.dynamic_rotate %549 by %c15_i32_186 dim 1 : vector<8x256xf32>, i32 -> vector<8x256xf32>
    %568 = arith.mulf %567, %23 : vector<8x256xf32>
    %569 = vector.extract_strided_slice %551 {offsets = [0, 2], sizes = [8, 1], strides = [1, 1]} : vector<8x9xf32> to vector<8x1xf32>
    %570 = vector.broadcast %569 : vector<8x1xf32> to vector<8x256xf32>
    %571 = arith.mulf %568, %570 : vector<8x256xf32>
    %572 = arith.addf %566, %571 : vector<8x256xf32>
    %c1_i32_187 = arith.constant 1 : i32
    %573 = tpu.dynamic_rotate %549 by %c1_i32_187 dim 1 : vector<8x256xf32>, i32 -> vector<8x256xf32>
    %574 = arith.mulf %573, %25 : vector<8x256xf32>
    %575 = vector.extract_strided_slice %551 {offsets = [0, 3], sizes = [8, 1], strides = [1, 1]} : vector<8x9xf32> to vector<8x1xf32>
    %576 = vector.broadcast %575 : vector<8x1xf32> to vector<8x256xf32>
    %577 = arith.mulf %574, %576 : vector<8x256xf32>
    %578 = arith.addf %572, %577 : vector<8x256xf32>
    %c255_i32_188 = arith.constant 255 : i32
    %579 = tpu.dynamic_rotate %549 by %c255_i32_188 dim 1 : vector<8x256xf32>, i32 -> vector<8x256xf32>
    %580 = arith.mulf %579, %27 : vector<8x256xf32>
    %581 = vector.extract_strided_slice %551 {offsets = [0, 5], sizes = [8, 1], strides = [1, 1]} : vector<8x9xf32> to vector<8x1xf32>
    %582 = vector.broadcast %581 : vector<8x1xf32> to vector<8x256xf32>
    %583 = arith.mulf %580, %582 : vector<8x256xf32>
    %584 = arith.addf %578, %583 : vector<8x256xf32>
    %c241_i32_189 = arith.constant 241 : i32
    %585 = tpu.dynamic_rotate %549 by %c241_i32_189 dim 1 : vector<8x256xf32>, i32 -> vector<8x256xf32>
    %586 = arith.mulf %585, %29 : vector<8x256xf32>
    %587 = vector.extract_strided_slice %551 {offsets = [0, 6], sizes = [8, 1], strides = [1, 1]} : vector<8x9xf32> to vector<8x1xf32>
    %588 = vector.broadcast %587 : vector<8x1xf32> to vector<8x256xf32>
    %589 = arith.mulf %586, %588 : vector<8x256xf32>
    %590 = arith.addf %584, %589 : vector<8x256xf32>
    %c240_i32_190 = arith.constant 240 : i32
    %591 = tpu.dynamic_rotate %549 by %c240_i32_190 dim 1 : vector<8x256xf32>, i32 -> vector<8x256xf32>
    %592 = arith.mulf %591, %31 : vector<8x256xf32>
    %593 = vector.extract_strided_slice %551 {offsets = [0, 7], sizes = [8, 1], strides = [1, 1]} : vector<8x9xf32> to vector<8x1xf32>
    %594 = vector.broadcast %593 : vector<8x1xf32> to vector<8x256xf32>
    %595 = arith.mulf %592, %594 : vector<8x256xf32>
    %596 = arith.addf %590, %595 : vector<8x256xf32>
    %c239_i32_191 = arith.constant 239 : i32
    %597 = tpu.dynamic_rotate %549 by %c239_i32_191 dim 1 : vector<8x256xf32>, i32 -> vector<8x256xf32>
    %598 = arith.mulf %597, %33 : vector<8x256xf32>
    %599 = vector.extract_strided_slice %551 {offsets = [0, 8], sizes = [8, 1], strides = [1, 1]} : vector<8x9xf32> to vector<8x1xf32>
    %600 = vector.broadcast %599 : vector<8x1xf32> to vector<8x256xf32>
    %601 = arith.mulf %598, %600 : vector<8x256xf32>
    %602 = arith.addf %596, %601 : vector<8x256xf32>
    %c4_192 = arith.constant 4 : index
    %c0_193 = arith.constant 0 : index
    %c0_194 = arith.constant 0 : index
    %603 = vector.load %arg9[%c4_192, %c0_193, %c0_194] : memref<14x8x8xf32, #tpu.memory_space<vmem>>, vector<1x8x8xf32>
    %604 = vector.shape_cast %603 : vector<1x8x8xf32> to vector<8x8xf32>
    %c4_195 = arith.constant 4 : index
    %c0_196 = arith.constant 0 : index
    %c0_197 = arith.constant 0 : index
    %605 = vector.load %arg10[%c4_195, %c0_196, %c0_197] : memref<14x8x1xf32, #tpu.memory_space<vmem>>, vector<1x8x1xf32>
    %606 = vector.shape_cast %605 : vector<1x8x1xf32> to vector<8x1xf32>
    %cst_198 = arith.constant dense<0.000000e+00> : vector<8x256xf32>
    %607 = tpu.matmul %604, %602, %cst_198 {dimension_numbers = #tpu.dot_dimension_numbers<[1], [0], [0], [1], [0, 0, 1, 1], [], []>} : vector<8x8xf32>, vector<8x256xf32>, vector<8x256xf32> -> vector<8x256xf32>
    %608 = vector.broadcast %606 : vector<8x1xf32> to vector<8x256xf32>
    %609 = arith.addf %607, %608 : vector<8x256xf32>
    %cst_199 = arith.constant 0.000000e+00 : f32
    %610 = vector.broadcast %cst_199 : f32 to vector<8x256xf32>
    %611 = arith.maximumf %609, %610 : vector<8x256xf32>
    %c4_200 = arith.constant 4 : index
    %c0_201 = arith.constant 0 : index
    %c0_202 = arith.constant 0 : index
    %612 = vector.load %arg11[%c4_200, %c0_201, %c0_202] : memref<14x8x9xf32, #tpu.memory_space<vmem>>, vector<1x8x9xf32>
    %613 = vector.shape_cast %612 : vector<1x8x9xf32> to vector<8x9xf32>
    %614 = vector.extract_strided_slice %613 {offsets = [0, 4], sizes = [8, 1], strides = [1, 1]} : vector<8x9xf32> to vector<8x1xf32>
    %615 = vector.broadcast %614 : vector<8x1xf32> to vector<8x256xf32>
    %616 = arith.mulf %611, %615 : vector<8x256xf32>
    %c17_i32_203 = arith.constant 17 : i32
    %617 = tpu.dynamic_rotate %611 by %c17_i32_203 dim 1 : vector<8x256xf32>, i32 -> vector<8x256xf32>
    %618 = arith.mulf %617, %19 : vector<8x256xf32>
    %619 = vector.extract_strided_slice %613 {offsets = [0, 0], sizes = [8, 1], strides = [1, 1]} : vector<8x9xf32> to vector<8x1xf32>
    %620 = vector.broadcast %619 : vector<8x1xf32> to vector<8x256xf32>
    %621 = arith.mulf %618, %620 : vector<8x256xf32>
    %622 = arith.addf %616, %621 : vector<8x256xf32>
    %c16_i32_204 = arith.constant 16 : i32
    %623 = tpu.dynamic_rotate %611 by %c16_i32_204 dim 1 : vector<8x256xf32>, i32 -> vector<8x256xf32>
    %624 = arith.mulf %623, %21 : vector<8x256xf32>
    %625 = vector.extract_strided_slice %613 {offsets = [0, 1], sizes = [8, 1], strides = [1, 1]} : vector<8x9xf32> to vector<8x1xf32>
    %626 = vector.broadcast %625 : vector<8x1xf32> to vector<8x256xf32>
    %627 = arith.mulf %624, %626 : vector<8x256xf32>
    %628 = arith.addf %622, %627 : vector<8x256xf32>
    %c15_i32_205 = arith.constant 15 : i32
    %629 = tpu.dynamic_rotate %611 by %c15_i32_205 dim 1 : vector<8x256xf32>, i32 -> vector<8x256xf32>
    %630 = arith.mulf %629, %23 : vector<8x256xf32>
    %631 = vector.extract_strided_slice %613 {offsets = [0, 2], sizes = [8, 1], strides = [1, 1]} : vector<8x9xf32> to vector<8x1xf32>
    %632 = vector.broadcast %631 : vector<8x1xf32> to vector<8x256xf32>
    %633 = arith.mulf %630, %632 : vector<8x256xf32>
    %634 = arith.addf %628, %633 : vector<8x256xf32>
    %c1_i32_206 = arith.constant 1 : i32
    %635 = tpu.dynamic_rotate %611 by %c1_i32_206 dim 1 : vector<8x256xf32>, i32 -> vector<8x256xf32>
    %636 = arith.mulf %635, %25 : vector<8x256xf32>
    %637 = vector.extract_strided_slice %613 {offsets = [0, 3], sizes = [8, 1], strides = [1, 1]} : vector<8x9xf32> to vector<8x1xf32>
    %638 = vector.broadcast %637 : vector<8x1xf32> to vector<8x256xf32>
    %639 = arith.mulf %636, %638 : vector<8x256xf32>
    %640 = arith.addf %634, %639 : vector<8x256xf32>
    %c255_i32_207 = arith.constant 255 : i32
    %641 = tpu.dynamic_rotate %611 by %c255_i32_207 dim 1 : vector<8x256xf32>, i32 -> vector<8x256xf32>
    %642 = arith.mulf %641, %27 : vector<8x256xf32>
    %643 = vector.extract_strided_slice %613 {offsets = [0, 5], sizes = [8, 1], strides = [1, 1]} : vector<8x9xf32> to vector<8x1xf32>
    %644 = vector.broadcast %643 : vector<8x1xf32> to vector<8x256xf32>
    %645 = arith.mulf %642, %644 : vector<8x256xf32>
    %646 = arith.addf %640, %645 : vector<8x256xf32>
    %c241_i32_208 = arith.constant 241 : i32
    %647 = tpu.dynamic_rotate %611 by %c241_i32_208 dim 1 : vector<8x256xf32>, i32 -> vector<8x256xf32>
    %648 = arith.mulf %647, %29 : vector<8x256xf32>
    %649 = vector.extract_strided_slice %613 {offsets = [0, 6], sizes = [8, 1], strides = [1, 1]} : vector<8x9xf32> to vector<8x1xf32>
    %650 = vector.broadcast %649 : vector<8x1xf32> to vector<8x256xf32>
    %651 = arith.mulf %648, %650 : vector<8x256xf32>
    %652 = arith.addf %646, %651 : vector<8x256xf32>
    %c240_i32_209 = arith.constant 240 : i32
    %653 = tpu.dynamic_rotate %611 by %c240_i32_209 dim 1 : vector<8x256xf32>, i32 -> vector<8x256xf32>
    %654 = arith.mulf %653, %31 : vector<8x256xf32>
    %655 = vector.extract_strided_slice %613 {offsets = [0, 7], sizes = [8, 1], strides = [1, 1]} : vector<8x9xf32> to vector<8x1xf32>
    %656 = vector.broadcast %655 : vector<8x1xf32> to vector<8x256xf32>
    %657 = arith.mulf %654, %656 : vector<8x256xf32>
    %658 = arith.addf %652, %657 : vector<8x256xf32>
    %c239_i32_210 = arith.constant 239 : i32
    %659 = tpu.dynamic_rotate %611 by %c239_i32_210 dim 1 : vector<8x256xf32>, i32 -> vector<8x256xf32>
    %660 = arith.mulf %659, %33 : vector<8x256xf32>
    %661 = vector.extract_strided_slice %613 {offsets = [0, 8], sizes = [8, 1], strides = [1, 1]} : vector<8x9xf32> to vector<8x1xf32>
    %662 = vector.broadcast %661 : vector<8x1xf32> to vector<8x256xf32>
    %663 = arith.mulf %660, %662 : vector<8x256xf32>
    %664 = arith.addf %658, %663 : vector<8x256xf32>
    %c4_211 = arith.constant 4 : index
    %c0_212 = arith.constant 0 : index
    %c0_213 = arith.constant 0 : index
    %665 = vector.load %arg12[%c4_211, %c0_212, %c0_213] : memref<14x8x8xf32, #tpu.memory_space<vmem>>, vector<1x8x8xf32>
    %666 = vector.shape_cast %665 : vector<1x8x8xf32> to vector<8x8xf32>
    %c4_214 = arith.constant 4 : index
    %c0_215 = arith.constant 0 : index
    %c0_216 = arith.constant 0 : index
    %667 = vector.load %arg13[%c4_214, %c0_215, %c0_216] : memref<14x8x1xf32, #tpu.memory_space<vmem>>, vector<1x8x1xf32>
    %668 = vector.shape_cast %667 : vector<1x8x1xf32> to vector<8x1xf32>
    %cst_217 = arith.constant dense<0.000000e+00> : vector<8x256xf32>
    %669 = tpu.matmul %666, %664, %cst_217 {dimension_numbers = #tpu.dot_dimension_numbers<[1], [0], [0], [1], [0, 0, 1, 1], [], []>} : vector<8x8xf32>, vector<8x256xf32>, vector<8x256xf32> -> vector<8x256xf32>
    %670 = vector.broadcast %668 : vector<8x1xf32> to vector<8x256xf32>
    %671 = arith.addf %669, %670 : vector<8x256xf32>
    %c4_218 = arith.constant 4 : index
    %672 = memref.load %arg1[%c4_218] : memref<14xf32, #tpu.memory_space<smem>>
    %673 = vector.broadcast %672 : f32 to vector<8x256xf32>
    %674 = arith.mulf %673, %290 : vector<8x256xf32>
    %675 = arith.addf %674, %671 : vector<8x256xf32>
    %676 = arith.addf %547, %675 : vector<8x256xf32>
    %cst_219 = arith.constant 0.000000e+00 : f32
    %677 = vector.broadcast %cst_219 : f32 to vector<8x256xf32>
    %678 = arith.maximumf %8, %677 : vector<8x256xf32>
    %c5_220 = arith.constant 5 : index
    %c0_221 = arith.constant 0 : index
    %c0_222 = arith.constant 0 : index
    %679 = vector.load %arg8[%c5_220, %c0_221, %c0_222] : memref<14x8x9xf32, #tpu.memory_space<vmem>>, vector<1x8x9xf32>
    %680 = vector.shape_cast %679 : vector<1x8x9xf32> to vector<8x9xf32>
    %681 = vector.extract_strided_slice %680 {offsets = [0, 4], sizes = [8, 1], strides = [1, 1]} : vector<8x9xf32> to vector<8x1xf32>
    %682 = vector.broadcast %681 : vector<8x1xf32> to vector<8x256xf32>
    %683 = arith.mulf %678, %682 : vector<8x256xf32>
    %c17_i32_223 = arith.constant 17 : i32
    %684 = tpu.dynamic_rotate %678 by %c17_i32_223 dim 1 : vector<8x256xf32>, i32 -> vector<8x256xf32>
    %685 = arith.mulf %684, %19 : vector<8x256xf32>
    %686 = vector.extract_strided_slice %680 {offsets = [0, 0], sizes = [8, 1], strides = [1, 1]} : vector<8x9xf32> to vector<8x1xf32>
    %687 = vector.broadcast %686 : vector<8x1xf32> to vector<8x256xf32>
    %688 = arith.mulf %685, %687 : vector<8x256xf32>
    %689 = arith.addf %683, %688 : vector<8x256xf32>
    %c16_i32_224 = arith.constant 16 : i32
    %690 = tpu.dynamic_rotate %678 by %c16_i32_224 dim 1 : vector<8x256xf32>, i32 -> vector<8x256xf32>
    %691 = arith.mulf %690, %21 : vector<8x256xf32>
    %692 = vector.extract_strided_slice %680 {offsets = [0, 1], sizes = [8, 1], strides = [1, 1]} : vector<8x9xf32> to vector<8x1xf32>
    %693 = vector.broadcast %692 : vector<8x1xf32> to vector<8x256xf32>
    %694 = arith.mulf %691, %693 : vector<8x256xf32>
    %695 = arith.addf %689, %694 : vector<8x256xf32>
    %c15_i32_225 = arith.constant 15 : i32
    %696 = tpu.dynamic_rotate %678 by %c15_i32_225 dim 1 : vector<8x256xf32>, i32 -> vector<8x256xf32>
    %697 = arith.mulf %696, %23 : vector<8x256xf32>
    %698 = vector.extract_strided_slice %680 {offsets = [0, 2], sizes = [8, 1], strides = [1, 1]} : vector<8x9xf32> to vector<8x1xf32>
    %699 = vector.broadcast %698 : vector<8x1xf32> to vector<8x256xf32>
    %700 = arith.mulf %697, %699 : vector<8x256xf32>
    %701 = arith.addf %695, %700 : vector<8x256xf32>
    %c1_i32_226 = arith.constant 1 : i32
    %702 = tpu.dynamic_rotate %678 by %c1_i32_226 dim 1 : vector<8x256xf32>, i32 -> vector<8x256xf32>
    %703 = arith.mulf %702, %25 : vector<8x256xf32>
    %704 = vector.extract_strided_slice %680 {offsets = [0, 3], sizes = [8, 1], strides = [1, 1]} : vector<8x9xf32> to vector<8x1xf32>
    %705 = vector.broadcast %704 : vector<8x1xf32> to vector<8x256xf32>
    %706 = arith.mulf %703, %705 : vector<8x256xf32>
    %707 = arith.addf %701, %706 : vector<8x256xf32>
    %c255_i32_227 = arith.constant 255 : i32
    %708 = tpu.dynamic_rotate %678 by %c255_i32_227 dim 1 : vector<8x256xf32>, i32 -> vector<8x256xf32>
    %709 = arith.mulf %708, %27 : vector<8x256xf32>
    %710 = vector.extract_strided_slice %680 {offsets = [0, 5], sizes = [8, 1], strides = [1, 1]} : vector<8x9xf32> to vector<8x1xf32>
    %711 = vector.broadcast %710 : vector<8x1xf32> to vector<8x256xf32>
    %712 = arith.mulf %709, %711 : vector<8x256xf32>
    %713 = arith.addf %707, %712 : vector<8x256xf32>
    %c241_i32_228 = arith.constant 241 : i32
    %714 = tpu.dynamic_rotate %678 by %c241_i32_228 dim 1 : vector<8x256xf32>, i32 -> vector<8x256xf32>
    %715 = arith.mulf %714, %29 : vector<8x256xf32>
    %716 = vector.extract_strided_slice %680 {offsets = [0, 6], sizes = [8, 1], strides = [1, 1]} : vector<8x9xf32> to vector<8x1xf32>
    %717 = vector.broadcast %716 : vector<8x1xf32> to vector<8x256xf32>
    %718 = arith.mulf %715, %717 : vector<8x256xf32>
    %719 = arith.addf %713, %718 : vector<8x256xf32>
    %c240_i32_229 = arith.constant 240 : i32
    %720 = tpu.dynamic_rotate %678 by %c240_i32_229 dim 1 : vector<8x256xf32>, i32 -> vector<8x256xf32>
    %721 = arith.mulf %720, %31 : vector<8x256xf32>
    %722 = vector.extract_strided_slice %680 {offsets = [0, 7], sizes = [8, 1], strides = [1, 1]} : vector<8x9xf32> to vector<8x1xf32>
    %723 = vector.broadcast %722 : vector<8x1xf32> to vector<8x256xf32>
    %724 = arith.mulf %721, %723 : vector<8x256xf32>
    %725 = arith.addf %719, %724 : vector<8x256xf32>
    %c239_i32_230 = arith.constant 239 : i32
    %726 = tpu.dynamic_rotate %678 by %c239_i32_230 dim 1 : vector<8x256xf32>, i32 -> vector<8x256xf32>
    %727 = arith.mulf %726, %33 : vector<8x256xf32>
    %728 = vector.extract_strided_slice %680 {offsets = [0, 8], sizes = [8, 1], strides = [1, 1]} : vector<8x9xf32> to vector<8x1xf32>
    %729 = vector.broadcast %728 : vector<8x1xf32> to vector<8x256xf32>
    %730 = arith.mulf %727, %729 : vector<8x256xf32>
    %731 = arith.addf %725, %730 : vector<8x256xf32>
    %c5_231 = arith.constant 5 : index
    %c0_232 = arith.constant 0 : index
    %c0_233 = arith.constant 0 : index
    %732 = vector.load %arg9[%c5_231, %c0_232, %c0_233] : memref<14x8x8xf32, #tpu.memory_space<vmem>>, vector<1x8x8xf32>
    %733 = vector.shape_cast %732 : vector<1x8x8xf32> to vector<8x8xf32>
    %c5_234 = arith.constant 5 : index
    %c0_235 = arith.constant 0 : index
    %c0_236 = arith.constant 0 : index
    %734 = vector.load %arg10[%c5_234, %c0_235, %c0_236] : memref<14x8x1xf32, #tpu.memory_space<vmem>>, vector<1x8x1xf32>
    %735 = vector.shape_cast %734 : vector<1x8x1xf32> to vector<8x1xf32>
    %cst_237 = arith.constant dense<0.000000e+00> : vector<8x256xf32>
    %736 = tpu.matmul %733, %731, %cst_237 {dimension_numbers = #tpu.dot_dimension_numbers<[1], [0], [0], [1], [0, 0, 1, 1], [], []>} : vector<8x8xf32>, vector<8x256xf32>, vector<8x256xf32> -> vector<8x256xf32>
    %737 = vector.broadcast %735 : vector<8x1xf32> to vector<8x256xf32>
    %738 = arith.addf %736, %737 : vector<8x256xf32>
    %cst_238 = arith.constant 0.000000e+00 : f32
    %739 = vector.broadcast %cst_238 : f32 to vector<8x256xf32>
    %740 = arith.maximumf %738, %739 : vector<8x256xf32>
    %c5_239 = arith.constant 5 : index
    %c0_240 = arith.constant 0 : index
    %c0_241 = arith.constant 0 : index
    %741 = vector.load %arg11[%c5_239, %c0_240, %c0_241] : memref<14x8x9xf32, #tpu.memory_space<vmem>>, vector<1x8x9xf32>
    %742 = vector.shape_cast %741 : vector<1x8x9xf32> to vector<8x9xf32>
    %743 = vector.extract_strided_slice %742 {offsets = [0, 4], sizes = [8, 1], strides = [1, 1]} : vector<8x9xf32> to vector<8x1xf32>
    %744 = vector.broadcast %743 : vector<8x1xf32> to vector<8x256xf32>
    %745 = arith.mulf %740, %744 : vector<8x256xf32>
    %c17_i32_242 = arith.constant 17 : i32
    %746 = tpu.dynamic_rotate %740 by %c17_i32_242 dim 1 : vector<8x256xf32>, i32 -> vector<8x256xf32>
    %747 = arith.mulf %746, %19 : vector<8x256xf32>
    %748 = vector.extract_strided_slice %742 {offsets = [0, 0], sizes = [8, 1], strides = [1, 1]} : vector<8x9xf32> to vector<8x1xf32>
    %749 = vector.broadcast %748 : vector<8x1xf32> to vector<8x256xf32>
    %750 = arith.mulf %747, %749 : vector<8x256xf32>
    %751 = arith.addf %745, %750 : vector<8x256xf32>
    %c16_i32_243 = arith.constant 16 : i32
    %752 = tpu.dynamic_rotate %740 by %c16_i32_243 dim 1 : vector<8x256xf32>, i32 -> vector<8x256xf32>
    %753 = arith.mulf %752, %21 : vector<8x256xf32>
    %754 = vector.extract_strided_slice %742 {offsets = [0, 1], sizes = [8, 1], strides = [1, 1]} : vector<8x9xf32> to vector<8x1xf32>
    %755 = vector.broadcast %754 : vector<8x1xf32> to vector<8x256xf32>
    %756 = arith.mulf %753, %755 : vector<8x256xf32>
    %757 = arith.addf %751, %756 : vector<8x256xf32>
    %c15_i32_244 = arith.constant 15 : i32
    %758 = tpu.dynamic_rotate %740 by %c15_i32_244 dim 1 : vector<8x256xf32>, i32 -> vector<8x256xf32>
    %759 = arith.mulf %758, %23 : vector<8x256xf32>
    %760 = vector.extract_strided_slice %742 {offsets = [0, 2], sizes = [8, 1], strides = [1, 1]} : vector<8x9xf32> to vector<8x1xf32>
    %761 = vector.broadcast %760 : vector<8x1xf32> to vector<8x256xf32>
    %762 = arith.mulf %759, %761 : vector<8x256xf32>
    %763 = arith.addf %757, %762 : vector<8x256xf32>
    %c1_i32_245 = arith.constant 1 : i32
    %764 = tpu.dynamic_rotate %740 by %c1_i32_245 dim 1 : vector<8x256xf32>, i32 -> vector<8x256xf32>
    %765 = arith.mulf %764, %25 : vector<8x256xf32>
    %766 = vector.extract_strided_slice %742 {offsets = [0, 3], sizes = [8, 1], strides = [1, 1]} : vector<8x9xf32> to vector<8x1xf32>
    %767 = vector.broadcast %766 : vector<8x1xf32> to vector<8x256xf32>
    %768 = arith.mulf %765, %767 : vector<8x256xf32>
    %769 = arith.addf %763, %768 : vector<8x256xf32>
    %c255_i32_246 = arith.constant 255 : i32
    %770 = tpu.dynamic_rotate %740 by %c255_i32_246 dim 1 : vector<8x256xf32>, i32 -> vector<8x256xf32>
    %771 = arith.mulf %770, %27 : vector<8x256xf32>
    %772 = vector.extract_strided_slice %742 {offsets = [0, 5], sizes = [8, 1], strides = [1, 1]} : vector<8x9xf32> to vector<8x1xf32>
    %773 = vector.broadcast %772 : vector<8x1xf32> to vector<8x256xf32>
    %774 = arith.mulf %771, %773 : vector<8x256xf32>
    %775 = arith.addf %769, %774 : vector<8x256xf32>
    %c241_i32_247 = arith.constant 241 : i32
    %776 = tpu.dynamic_rotate %740 by %c241_i32_247 dim 1 : vector<8x256xf32>, i32 -> vector<8x256xf32>
    %777 = arith.mulf %776, %29 : vector<8x256xf32>
    %778 = vector.extract_strided_slice %742 {offsets = [0, 6], sizes = [8, 1], strides = [1, 1]} : vector<8x9xf32> to vector<8x1xf32>
    %779 = vector.broadcast %778 : vector<8x1xf32> to vector<8x256xf32>
    %780 = arith.mulf %777, %779 : vector<8x256xf32>
    %781 = arith.addf %775, %780 : vector<8x256xf32>
    %c240_i32_248 = arith.constant 240 : i32
    %782 = tpu.dynamic_rotate %740 by %c240_i32_248 dim 1 : vector<8x256xf32>, i32 -> vector<8x256xf32>
    %783 = arith.mulf %782, %31 : vector<8x256xf32>
    %784 = vector.extract_strided_slice %742 {offsets = [0, 7], sizes = [8, 1], strides = [1, 1]} : vector<8x9xf32> to vector<8x1xf32>
    %785 = vector.broadcast %784 : vector<8x1xf32> to vector<8x256xf32>
    %786 = arith.mulf %783, %785 : vector<8x256xf32>
    %787 = arith.addf %781, %786 : vector<8x256xf32>
    %c239_i32_249 = arith.constant 239 : i32
    %788 = tpu.dynamic_rotate %740 by %c239_i32_249 dim 1 : vector<8x256xf32>, i32 -> vector<8x256xf32>
    %789 = arith.mulf %788, %33 : vector<8x256xf32>
    %790 = vector.extract_strided_slice %742 {offsets = [0, 8], sizes = [8, 1], strides = [1, 1]} : vector<8x9xf32> to vector<8x1xf32>
    %791 = vector.broadcast %790 : vector<8x1xf32> to vector<8x256xf32>
    %792 = arith.mulf %789, %791 : vector<8x256xf32>
    %793 = arith.addf %787, %792 : vector<8x256xf32>
    %c5_250 = arith.constant 5 : index
    %c0_251 = arith.constant 0 : index
    %c0_252 = arith.constant 0 : index
    %794 = vector.load %arg12[%c5_250, %c0_251, %c0_252] : memref<14x8x8xf32, #tpu.memory_space<vmem>>, vector<1x8x8xf32>
    %795 = vector.shape_cast %794 : vector<1x8x8xf32> to vector<8x8xf32>
    %c5_253 = arith.constant 5 : index
    %c0_254 = arith.constant 0 : index
    %c0_255 = arith.constant 0 : index
    %796 = vector.load %arg13[%c5_253, %c0_254, %c0_255] : memref<14x8x1xf32, #tpu.memory_space<vmem>>, vector<1x8x1xf32>
    %797 = vector.shape_cast %796 : vector<1x8x1xf32> to vector<8x1xf32>
    %cst_256 = arith.constant dense<0.000000e+00> : vector<8x256xf32>
    %798 = tpu.matmul %795, %793, %cst_256 {dimension_numbers = #tpu.dot_dimension_numbers<[1], [0], [0], [1], [0, 0, 1, 1], [], []>} : vector<8x8xf32>, vector<8x256xf32>, vector<8x256xf32> -> vector<8x256xf32>
    %799 = vector.broadcast %797 : vector<8x1xf32> to vector<8x256xf32>
    %800 = arith.addf %798, %799 : vector<8x256xf32>
    %c5_257 = arith.constant 5 : index
    %801 = memref.load %arg1[%c5_257] : memref<14xf32, #tpu.memory_space<smem>>
    %802 = vector.broadcast %801 : f32 to vector<8x256xf32>
    %803 = arith.mulf %802, %8 : vector<8x256xf32>
    %804 = arith.addf %803, %800 : vector<8x256xf32>
    %cst_258 = arith.constant 0.000000e+00 : f32
    %805 = vector.broadcast %cst_258 : f32 to vector<8x256xf32>
    %806 = arith.maximumf %17, %805 : vector<8x256xf32>
    %c6_259 = arith.constant 6 : index
    %c0_260 = arith.constant 0 : index
    %c0_261 = arith.constant 0 : index
    %807 = vector.load %arg8[%c6_259, %c0_260, %c0_261] : memref<14x8x9xf32, #tpu.memory_space<vmem>>, vector<1x8x9xf32>
    %808 = vector.shape_cast %807 : vector<1x8x9xf32> to vector<8x9xf32>
    %809 = vector.extract_strided_slice %808 {offsets = [0, 4], sizes = [8, 1], strides = [1, 1]} : vector<8x9xf32> to vector<8x1xf32>
    %810 = vector.broadcast %809 : vector<8x1xf32> to vector<8x256xf32>
    %811 = arith.mulf %806, %810 : vector<8x256xf32>
    %c17_i32_262 = arith.constant 17 : i32
    %812 = tpu.dynamic_rotate %806 by %c17_i32_262 dim 1 : vector<8x256xf32>, i32 -> vector<8x256xf32>
    %813 = arith.mulf %812, %19 : vector<8x256xf32>
    %814 = vector.extract_strided_slice %808 {offsets = [0, 0], sizes = [8, 1], strides = [1, 1]} : vector<8x9xf32> to vector<8x1xf32>
    %815 = vector.broadcast %814 : vector<8x1xf32> to vector<8x256xf32>
    %816 = arith.mulf %813, %815 : vector<8x256xf32>
    %817 = arith.addf %811, %816 : vector<8x256xf32>
    %c16_i32_263 = arith.constant 16 : i32
    %818 = tpu.dynamic_rotate %806 by %c16_i32_263 dim 1 : vector<8x256xf32>, i32 -> vector<8x256xf32>
    %819 = arith.mulf %818, %21 : vector<8x256xf32>
    %820 = vector.extract_strided_slice %808 {offsets = [0, 1], sizes = [8, 1], strides = [1, 1]} : vector<8x9xf32> to vector<8x1xf32>
    %821 = vector.broadcast %820 : vector<8x1xf32> to vector<8x256xf32>
    %822 = arith.mulf %819, %821 : vector<8x256xf32>
    %823 = arith.addf %817, %822 : vector<8x256xf32>
    %c15_i32_264 = arith.constant 15 : i32
    %824 = tpu.dynamic_rotate %806 by %c15_i32_264 dim 1 : vector<8x256xf32>, i32 -> vector<8x256xf32>
    %825 = arith.mulf %824, %23 : vector<8x256xf32>
    %826 = vector.extract_strided_slice %808 {offsets = [0, 2], sizes = [8, 1], strides = [1, 1]} : vector<8x9xf32> to vector<8x1xf32>
    %827 = vector.broadcast %826 : vector<8x1xf32> to vector<8x256xf32>
    %828 = arith.mulf %825, %827 : vector<8x256xf32>
    %829 = arith.addf %823, %828 : vector<8x256xf32>
    %c1_i32_265 = arith.constant 1 : i32
    %830 = tpu.dynamic_rotate %806 by %c1_i32_265 dim 1 : vector<8x256xf32>, i32 -> vector<8x256xf32>
    %831 = arith.mulf %830, %25 : vector<8x256xf32>
    %832 = vector.extract_strided_slice %808 {offsets = [0, 3], sizes = [8, 1], strides = [1, 1]} : vector<8x9xf32> to vector<8x1xf32>
    %833 = vector.broadcast %832 : vector<8x1xf32> to vector<8x256xf32>
    %834 = arith.mulf %831, %833 : vector<8x256xf32>
    %835 = arith.addf %829, %834 : vector<8x256xf32>
    %c255_i32_266 = arith.constant 255 : i32
    %836 = tpu.dynamic_rotate %806 by %c255_i32_266 dim 1 : vector<8x256xf32>, i32 -> vector<8x256xf32>
    %837 = arith.mulf %836, %27 : vector<8x256xf32>
    %838 = vector.extract_strided_slice %808 {offsets = [0, 5], sizes = [8, 1], strides = [1, 1]} : vector<8x9xf32> to vector<8x1xf32>
    %839 = vector.broadcast %838 : vector<8x1xf32> to vector<8x256xf32>
    %840 = arith.mulf %837, %839 : vector<8x256xf32>
    %841 = arith.addf %835, %840 : vector<8x256xf32>
    %c241_i32_267 = arith.constant 241 : i32
    %842 = tpu.dynamic_rotate %806 by %c241_i32_267 dim 1 : vector<8x256xf32>, i32 -> vector<8x256xf32>
    %843 = arith.mulf %842, %29 : vector<8x256xf32>
    %844 = vector.extract_strided_slice %808 {offsets = [0, 6], sizes = [8, 1], strides = [1, 1]} : vector<8x9xf32> to vector<8x1xf32>
    %845 = vector.broadcast %844 : vector<8x1xf32> to vector<8x256xf32>
    %846 = arith.mulf %843, %845 : vector<8x256xf32>
    %847 = arith.addf %841, %846 : vector<8x256xf32>
    %c240_i32_268 = arith.constant 240 : i32
    %848 = tpu.dynamic_rotate %806 by %c240_i32_268 dim 1 : vector<8x256xf32>, i32 -> vector<8x256xf32>
    %849 = arith.mulf %848, %31 : vector<8x256xf32>
    %850 = vector.extract_strided_slice %808 {offsets = [0, 7], sizes = [8, 1], strides = [1, 1]} : vector<8x9xf32> to vector<8x1xf32>
    %851 = vector.broadcast %850 : vector<8x1xf32> to vector<8x256xf32>
    %852 = arith.mulf %849, %851 : vector<8x256xf32>
    %853 = arith.addf %847, %852 : vector<8x256xf32>
    %c239_i32_269 = arith.constant 239 : i32
    %854 = tpu.dynamic_rotate %806 by %c239_i32_269 dim 1 : vector<8x256xf32>, i32 -> vector<8x256xf32>
    %855 = arith.mulf %854, %33 : vector<8x256xf32>
    %856 = vector.extract_strided_slice %808 {offsets = [0, 8], sizes = [8, 1], strides = [1, 1]} : vector<8x9xf32> to vector<8x1xf32>
    %857 = vector.broadcast %856 : vector<8x1xf32> to vector<8x256xf32>
    %858 = arith.mulf %855, %857 : vector<8x256xf32>
    %859 = arith.addf %853, %858 : vector<8x256xf32>
    %c6_270 = arith.constant 6 : index
    %c0_271 = arith.constant 0 : index
    %c0_272 = arith.constant 0 : index
    %860 = vector.load %arg9[%c6_270, %c0_271, %c0_272] : memref<14x8x8xf32, #tpu.memory_space<vmem>>, vector<1x8x8xf32>
    %861 = vector.shape_cast %860 : vector<1x8x8xf32> to vector<8x8xf32>
    %c6_273 = arith.constant 6 : index
    %c0_274 = arith.constant 0 : index
    %c0_275 = arith.constant 0 : index
    %862 = vector.load %arg10[%c6_273, %c0_274, %c0_275] : memref<14x8x1xf32, #tpu.memory_space<vmem>>, vector<1x8x1xf32>
    %863 = vector.shape_cast %862 : vector<1x8x1xf32> to vector<8x1xf32>
    %cst_276 = arith.constant dense<0.000000e+00> : vector<8x256xf32>
    %864 = tpu.matmul %861, %859, %cst_276 {dimension_numbers = #tpu.dot_dimension_numbers<[1], [0], [0], [1], [0, 0, 1, 1], [], []>} : vector<8x8xf32>, vector<8x256xf32>, vector<8x256xf32> -> vector<8x256xf32>
    %865 = vector.broadcast %863 : vector<8x1xf32> to vector<8x256xf32>
    %866 = arith.addf %864, %865 : vector<8x256xf32>
    %cst_277 = arith.constant 0.000000e+00 : f32
    %867 = vector.broadcast %cst_277 : f32 to vector<8x256xf32>
    %868 = arith.maximumf %866, %867 : vector<8x256xf32>
    %c6_278 = arith.constant 6 : index
    %c0_279 = arith.constant 0 : index
    %c0_280 = arith.constant 0 : index
    %869 = vector.load %arg11[%c6_278, %c0_279, %c0_280] : memref<14x8x9xf32, #tpu.memory_space<vmem>>, vector<1x8x9xf32>
    %870 = vector.shape_cast %869 : vector<1x8x9xf32> to vector<8x9xf32>
    %871 = vector.extract_strided_slice %870 {offsets = [0, 4], sizes = [8, 1], strides = [1, 1]} : vector<8x9xf32> to vector<8x1xf32>
    %872 = vector.broadcast %871 : vector<8x1xf32> to vector<8x256xf32>
    %873 = arith.mulf %868, %872 : vector<8x256xf32>
    %c17_i32_281 = arith.constant 17 : i32
    %874 = tpu.dynamic_rotate %868 by %c17_i32_281 dim 1 : vector<8x256xf32>, i32 -> vector<8x256xf32>
    %875 = arith.mulf %874, %19 : vector<8x256xf32>
    %876 = vector.extract_strided_slice %870 {offsets = [0, 0], sizes = [8, 1], strides = [1, 1]} : vector<8x9xf32> to vector<8x1xf32>
    %877 = vector.broadcast %876 : vector<8x1xf32> to vector<8x256xf32>
    %878 = arith.mulf %875, %877 : vector<8x256xf32>
    %879 = arith.addf %873, %878 : vector<8x256xf32>
    %c16_i32_282 = arith.constant 16 : i32
    %880 = tpu.dynamic_rotate %868 by %c16_i32_282 dim 1 : vector<8x256xf32>, i32 -> vector<8x256xf32>
    %881 = arith.mulf %880, %21 : vector<8x256xf32>
    %882 = vector.extract_strided_slice %870 {offsets = [0, 1], sizes = [8, 1], strides = [1, 1]} : vector<8x9xf32> to vector<8x1xf32>
    %883 = vector.broadcast %882 : vector<8x1xf32> to vector<8x256xf32>
    %884 = arith.mulf %881, %883 : vector<8x256xf32>
    %885 = arith.addf %879, %884 : vector<8x256xf32>
    %c15_i32_283 = arith.constant 15 : i32
    %886 = tpu.dynamic_rotate %868 by %c15_i32_283 dim 1 : vector<8x256xf32>, i32 -> vector<8x256xf32>
    %887 = arith.mulf %886, %23 : vector<8x256xf32>
    %888 = vector.extract_strided_slice %870 {offsets = [0, 2], sizes = [8, 1], strides = [1, 1]} : vector<8x9xf32> to vector<8x1xf32>
    %889 = vector.broadcast %888 : vector<8x1xf32> to vector<8x256xf32>
    %890 = arith.mulf %887, %889 : vector<8x256xf32>
    %891 = arith.addf %885, %890 : vector<8x256xf32>
    %c1_i32_284 = arith.constant 1 : i32
    %892 = tpu.dynamic_rotate %868 by %c1_i32_284 dim 1 : vector<8x256xf32>, i32 -> vector<8x256xf32>
    %893 = arith.mulf %892, %25 : vector<8x256xf32>
    %894 = vector.extract_strided_slice %870 {offsets = [0, 3], sizes = [8, 1], strides = [1, 1]} : vector<8x9xf32> to vector<8x1xf32>
    %895 = vector.broadcast %894 : vector<8x1xf32> to vector<8x256xf32>
    %896 = arith.mulf %893, %895 : vector<8x256xf32>
    %897 = arith.addf %891, %896 : vector<8x256xf32>
    %c255_i32_285 = arith.constant 255 : i32
    %898 = tpu.dynamic_rotate %868 by %c255_i32_285 dim 1 : vector<8x256xf32>, i32 -> vector<8x256xf32>
    %899 = arith.mulf %898, %27 : vector<8x256xf32>
    %900 = vector.extract_strided_slice %870 {offsets = [0, 5], sizes = [8, 1], strides = [1, 1]} : vector<8x9xf32> to vector<8x1xf32>
    %901 = vector.broadcast %900 : vector<8x1xf32> to vector<8x256xf32>
    %902 = arith.mulf %899, %901 : vector<8x256xf32>
    %903 = arith.addf %897, %902 : vector<8x256xf32>
    %c241_i32_286 = arith.constant 241 : i32
    %904 = tpu.dynamic_rotate %868 by %c241_i32_286 dim 1 : vector<8x256xf32>, i32 -> vector<8x256xf32>
    %905 = arith.mulf %904, %29 : vector<8x256xf32>
    %906 = vector.extract_strided_slice %870 {offsets = [0, 6], sizes = [8, 1], strides = [1, 1]} : vector<8x9xf32> to vector<8x1xf32>
    %907 = vector.broadcast %906 : vector<8x1xf32> to vector<8x256xf32>
    %908 = arith.mulf %905, %907 : vector<8x256xf32>
    %909 = arith.addf %903, %908 : vector<8x256xf32>
    %c240_i32_287 = arith.constant 240 : i32
    %910 = tpu.dynamic_rotate %868 by %c240_i32_287 dim 1 : vector<8x256xf32>, i32 -> vector<8x256xf32>
    %911 = arith.mulf %910, %31 : vector<8x256xf32>
    %912 = vector.extract_strided_slice %870 {offsets = [0, 7], sizes = [8, 1], strides = [1, 1]} : vector<8x9xf32> to vector<8x1xf32>
    %913 = vector.broadcast %912 : vector<8x1xf32> to vector<8x256xf32>
    %914 = arith.mulf %911, %913 : vector<8x256xf32>
    %915 = arith.addf %909, %914 : vector<8x256xf32>
    %c239_i32_288 = arith.constant 239 : i32
    %916 = tpu.dynamic_rotate %868 by %c239_i32_288 dim 1 : vector<8x256xf32>, i32 -> vector<8x256xf32>
    %917 = arith.mulf %916, %33 : vector<8x256xf32>
    %918 = vector.extract_strided_slice %870 {offsets = [0, 8], sizes = [8, 1], strides = [1, 1]} : vector<8x9xf32> to vector<8x1xf32>
    %919 = vector.broadcast %918 : vector<8x1xf32> to vector<8x256xf32>
    %920 = arith.mulf %917, %919 : vector<8x256xf32>
    %921 = arith.addf %915, %920 : vector<8x256xf32>
    %c6_289 = arith.constant 6 : index
    %c0_290 = arith.constant 0 : index
    %c0_291 = arith.constant 0 : index
    %922 = vector.load %arg12[%c6_289, %c0_290, %c0_291] : memref<14x8x8xf32, #tpu.memory_space<vmem>>, vector<1x8x8xf32>
    %923 = vector.shape_cast %922 : vector<1x8x8xf32> to vector<8x8xf32>
    %c6_292 = arith.constant 6 : index
    %c0_293 = arith.constant 0 : index
    %c0_294 = arith.constant 0 : index
    %924 = vector.load %arg13[%c6_292, %c0_293, %c0_294] : memref<14x8x1xf32, #tpu.memory_space<vmem>>, vector<1x8x1xf32>
    %925 = vector.shape_cast %924 : vector<1x8x1xf32> to vector<8x1xf32>
    %cst_295 = arith.constant dense<0.000000e+00> : vector<8x256xf32>
    %926 = tpu.matmul %923, %921, %cst_295 {dimension_numbers = #tpu.dot_dimension_numbers<[1], [0], [0], [1], [0, 0, 1, 1], [], []>} : vector<8x8xf32>, vector<8x256xf32>, vector<8x256xf32> -> vector<8x256xf32>
    %927 = vector.broadcast %925 : vector<8x1xf32> to vector<8x256xf32>
    %928 = arith.addf %926, %927 : vector<8x256xf32>
    %c6_296 = arith.constant 6 : index
    %929 = memref.load %arg1[%c6_296] : memref<14xf32, #tpu.memory_space<smem>>
    %930 = vector.broadcast %929 : f32 to vector<8x256xf32>
    %931 = arith.mulf %930, %17 : vector<8x256xf32>
    %932 = arith.addf %931, %928 : vector<8x256xf32>
    %933 = arith.addf %804, %932 : vector<8x256xf32>
    %cst_297 = arith.constant 0.000000e+00 : f32
    %934 = vector.broadcast %cst_297 : f32 to vector<8x256xf32>
    %935 = arith.maximumf %290, %934 : vector<8x256xf32>
    %c7_298 = arith.constant 7 : index
    %c0_299 = arith.constant 0 : index
    %c0_300 = arith.constant 0 : index
    %936 = vector.load %arg8[%c7_298, %c0_299, %c0_300] : memref<14x8x9xf32, #tpu.memory_space<vmem>>, vector<1x8x9xf32>
    %937 = vector.shape_cast %936 : vector<1x8x9xf32> to vector<8x9xf32>
    %938 = vector.extract_strided_slice %937 {offsets = [0, 4], sizes = [8, 1], strides = [1, 1]} : vector<8x9xf32> to vector<8x1xf32>
    %939 = vector.broadcast %938 : vector<8x1xf32> to vector<8x256xf32>
    %940 = arith.mulf %935, %939 : vector<8x256xf32>
    %c17_i32_301 = arith.constant 17 : i32
    %941 = tpu.dynamic_rotate %935 by %c17_i32_301 dim 1 : vector<8x256xf32>, i32 -> vector<8x256xf32>
    %942 = arith.mulf %941, %19 : vector<8x256xf32>
    %943 = vector.extract_strided_slice %937 {offsets = [0, 0], sizes = [8, 1], strides = [1, 1]} : vector<8x9xf32> to vector<8x1xf32>
    %944 = vector.broadcast %943 : vector<8x1xf32> to vector<8x256xf32>
    %945 = arith.mulf %942, %944 : vector<8x256xf32>
    %946 = arith.addf %940, %945 : vector<8x256xf32>
    %c16_i32_302 = arith.constant 16 : i32
    %947 = tpu.dynamic_rotate %935 by %c16_i32_302 dim 1 : vector<8x256xf32>, i32 -> vector<8x256xf32>
    %948 = arith.mulf %947, %21 : vector<8x256xf32>
    %949 = vector.extract_strided_slice %937 {offsets = [0, 1], sizes = [8, 1], strides = [1, 1]} : vector<8x9xf32> to vector<8x1xf32>
    %950 = vector.broadcast %949 : vector<8x1xf32> to vector<8x256xf32>
    %951 = arith.mulf %948, %950 : vector<8x256xf32>
    %952 = arith.addf %946, %951 : vector<8x256xf32>
    %c15_i32_303 = arith.constant 15 : i32
    %953 = tpu.dynamic_rotate %935 by %c15_i32_303 dim 1 : vector<8x256xf32>, i32 -> vector<8x256xf32>
    %954 = arith.mulf %953, %23 : vector<8x256xf32>
    %955 = vector.extract_strided_slice %937 {offsets = [0, 2], sizes = [8, 1], strides = [1, 1]} : vector<8x9xf32> to vector<8x1xf32>
    %956 = vector.broadcast %955 : vector<8x1xf32> to vector<8x256xf32>
    %957 = arith.mulf %954, %956 : vector<8x256xf32>
    %958 = arith.addf %952, %957 : vector<8x256xf32>
    %c1_i32_304 = arith.constant 1 : i32
    %959 = tpu.dynamic_rotate %935 by %c1_i32_304 dim 1 : vector<8x256xf32>, i32 -> vector<8x256xf32>
    %960 = arith.mulf %959, %25 : vector<8x256xf32>
    %961 = vector.extract_strided_slice %937 {offsets = [0, 3], sizes = [8, 1], strides = [1, 1]} : vector<8x9xf32> to vector<8x1xf32>
    %962 = vector.broadcast %961 : vector<8x1xf32> to vector<8x256xf32>
    %963 = arith.mulf %960, %962 : vector<8x256xf32>
    %964 = arith.addf %958, %963 : vector<8x256xf32>
    %c255_i32_305 = arith.constant 255 : i32
    %965 = tpu.dynamic_rotate %935 by %c255_i32_305 dim 1 : vector<8x256xf32>, i32 -> vector<8x256xf32>
    %966 = arith.mulf %965, %27 : vector<8x256xf32>
    %967 = vector.extract_strided_slice %937 {offsets = [0, 5], sizes = [8, 1], strides = [1, 1]} : vector<8x9xf32> to vector<8x1xf32>
    %968 = vector.broadcast %967 : vector<8x1xf32> to vector<8x256xf32>
    %969 = arith.mulf %966, %968 : vector<8x256xf32>
    %970 = arith.addf %964, %969 : vector<8x256xf32>
    %c241_i32_306 = arith.constant 241 : i32
    %971 = tpu.dynamic_rotate %935 by %c241_i32_306 dim 1 : vector<8x256xf32>, i32 -> vector<8x256xf32>
    %972 = arith.mulf %971, %29 : vector<8x256xf32>
    %973 = vector.extract_strided_slice %937 {offsets = [0, 6], sizes = [8, 1], strides = [1, 1]} : vector<8x9xf32> to vector<8x1xf32>
    %974 = vector.broadcast %973 : vector<8x1xf32> to vector<8x256xf32>
    %975 = arith.mulf %972, %974 : vector<8x256xf32>
    %976 = arith.addf %970, %975 : vector<8x256xf32>
    %c240_i32_307 = arith.constant 240 : i32
    %977 = tpu.dynamic_rotate %935 by %c240_i32_307 dim 1 : vector<8x256xf32>, i32 -> vector<8x256xf32>
    %978 = arith.mulf %977, %31 : vector<8x256xf32>
    %979 = vector.extract_strided_slice %937 {offsets = [0, 7], sizes = [8, 1], strides = [1, 1]} : vector<8x9xf32> to vector<8x1xf32>
    %980 = vector.broadcast %979 : vector<8x1xf32> to vector<8x256xf32>
    %981 = arith.mulf %978, %980 : vector<8x256xf32>
    %982 = arith.addf %976, %981 : vector<8x256xf32>
    %c239_i32_308 = arith.constant 239 : i32
    %983 = tpu.dynamic_rotate %935 by %c239_i32_308 dim 1 : vector<8x256xf32>, i32 -> vector<8x256xf32>
    %984 = arith.mulf %983, %33 : vector<8x256xf32>
    %985 = vector.extract_strided_slice %937 {offsets = [0, 8], sizes = [8, 1], strides = [1, 1]} : vector<8x9xf32> to vector<8x1xf32>
    %986 = vector.broadcast %985 : vector<8x1xf32> to vector<8x256xf32>
    %987 = arith.mulf %984, %986 : vector<8x256xf32>
    %988 = arith.addf %982, %987 : vector<8x256xf32>
    %c7_309 = arith.constant 7 : index
    %c0_310 = arith.constant 0 : index
    %c0_311 = arith.constant 0 : index
    %989 = vector.load %arg9[%c7_309, %c0_310, %c0_311] : memref<14x8x8xf32, #tpu.memory_space<vmem>>, vector<1x8x8xf32>
    %990 = vector.shape_cast %989 : vector<1x8x8xf32> to vector<8x8xf32>
    %c7_312 = arith.constant 7 : index
    %c0_313 = arith.constant 0 : index
    %c0_314 = arith.constant 0 : index
    %991 = vector.load %arg10[%c7_312, %c0_313, %c0_314] : memref<14x8x1xf32, #tpu.memory_space<vmem>>, vector<1x8x1xf32>
    %992 = vector.shape_cast %991 : vector<1x8x1xf32> to vector<8x1xf32>
    %cst_315 = arith.constant dense<0.000000e+00> : vector<8x256xf32>
    %993 = tpu.matmul %990, %988, %cst_315 {dimension_numbers = #tpu.dot_dimension_numbers<[1], [0], [0], [1], [0, 0, 1, 1], [], []>} : vector<8x8xf32>, vector<8x256xf32>, vector<8x256xf32> -> vector<8x256xf32>
    %994 = vector.broadcast %992 : vector<8x1xf32> to vector<8x256xf32>
    %995 = arith.addf %993, %994 : vector<8x256xf32>
    %cst_316 = arith.constant 0.000000e+00 : f32
    %996 = vector.broadcast %cst_316 : f32 to vector<8x256xf32>
    %997 = arith.maximumf %995, %996 : vector<8x256xf32>
    %c7_317 = arith.constant 7 : index
    %c0_318 = arith.constant 0 : index
    %c0_319 = arith.constant 0 : index
    %998 = vector.load %arg11[%c7_317, %c0_318, %c0_319] : memref<14x8x9xf32, #tpu.memory_space<vmem>>, vector<1x8x9xf32>
    %999 = vector.shape_cast %998 : vector<1x8x9xf32> to vector<8x9xf32>
    %1000 = vector.extract_strided_slice %999 {offsets = [0, 4], sizes = [8, 1], strides = [1, 1]} : vector<8x9xf32> to vector<8x1xf32>
    %1001 = vector.broadcast %1000 : vector<8x1xf32> to vector<8x256xf32>
    %1002 = arith.mulf %997, %1001 : vector<8x256xf32>
    %c17_i32_320 = arith.constant 17 : i32
    %1003 = tpu.dynamic_rotate %997 by %c17_i32_320 dim 1 : vector<8x256xf32>, i32 -> vector<8x256xf32>
    %1004 = arith.mulf %1003, %19 : vector<8x256xf32>
    %1005 = vector.extract_strided_slice %999 {offsets = [0, 0], sizes = [8, 1], strides = [1, 1]} : vector<8x9xf32> to vector<8x1xf32>
    %1006 = vector.broadcast %1005 : vector<8x1xf32> to vector<8x256xf32>
    %1007 = arith.mulf %1004, %1006 : vector<8x256xf32>
    %1008 = arith.addf %1002, %1007 : vector<8x256xf32>
    %c16_i32_321 = arith.constant 16 : i32
    %1009 = tpu.dynamic_rotate %997 by %c16_i32_321 dim 1 : vector<8x256xf32>, i32 -> vector<8x256xf32>
    %1010 = arith.mulf %1009, %21 : vector<8x256xf32>
    %1011 = vector.extract_strided_slice %999 {offsets = [0, 1], sizes = [8, 1], strides = [1, 1]} : vector<8x9xf32> to vector<8x1xf32>
    %1012 = vector.broadcast %1011 : vector<8x1xf32> to vector<8x256xf32>
    %1013 = arith.mulf %1010, %1012 : vector<8x256xf32>
    %1014 = arith.addf %1008, %1013 : vector<8x256xf32>
    %c15_i32_322 = arith.constant 15 : i32
    %1015 = tpu.dynamic_rotate %997 by %c15_i32_322 dim 1 : vector<8x256xf32>, i32 -> vector<8x256xf32>
    %1016 = arith.mulf %1015, %23 : vector<8x256xf32>
    %1017 = vector.extract_strided_slice %999 {offsets = [0, 2], sizes = [8, 1], strides = [1, 1]} : vector<8x9xf32> to vector<8x1xf32>
    %1018 = vector.broadcast %1017 : vector<8x1xf32> to vector<8x256xf32>
    %1019 = arith.mulf %1016, %1018 : vector<8x256xf32>
    %1020 = arith.addf %1014, %1019 : vector<8x256xf32>
    %c1_i32_323 = arith.constant 1 : i32
    %1021 = tpu.dynamic_rotate %997 by %c1_i32_323 dim 1 : vector<8x256xf32>, i32 -> vector<8x256xf32>
    %1022 = arith.mulf %1021, %25 : vector<8x256xf32>
    %1023 = vector.extract_strided_slice %999 {offsets = [0, 3], sizes = [8, 1], strides = [1, 1]} : vector<8x9xf32> to vector<8x1xf32>
    %1024 = vector.broadcast %1023 : vector<8x1xf32> to vector<8x256xf32>
    %1025 = arith.mulf %1022, %1024 : vector<8x256xf32>
    %1026 = arith.addf %1020, %1025 : vector<8x256xf32>
    %c255_i32_324 = arith.constant 255 : i32
    %1027 = tpu.dynamic_rotate %997 by %c255_i32_324 dim 1 : vector<8x256xf32>, i32 -> vector<8x256xf32>
    %1028 = arith.mulf %1027, %27 : vector<8x256xf32>
    %1029 = vector.extract_strided_slice %999 {offsets = [0, 5], sizes = [8, 1], strides = [1, 1]} : vector<8x9xf32> to vector<8x1xf32>
    %1030 = vector.broadcast %1029 : vector<8x1xf32> to vector<8x256xf32>
    %1031 = arith.mulf %1028, %1030 : vector<8x256xf32>
    %1032 = arith.addf %1026, %1031 : vector<8x256xf32>
    %c241_i32_325 = arith.constant 241 : i32
    %1033 = tpu.dynamic_rotate %997 by %c241_i32_325 dim 1 : vector<8x256xf32>, i32 -> vector<8x256xf32>
    %1034 = arith.mulf %1033, %29 : vector<8x256xf32>
    %1035 = vector.extract_strided_slice %999 {offsets = [0, 6], sizes = [8, 1], strides = [1, 1]} : vector<8x9xf32> to vector<8x1xf32>
    %1036 = vector.broadcast %1035 : vector<8x1xf32> to vector<8x256xf32>
    %1037 = arith.mulf %1034, %1036 : vector<8x256xf32>
    %1038 = arith.addf %1032, %1037 : vector<8x256xf32>
    %c240_i32_326 = arith.constant 240 : i32
    %1039 = tpu.dynamic_rotate %997 by %c240_i32_326 dim 1 : vector<8x256xf32>, i32 -> vector<8x256xf32>
    %1040 = arith.mulf %1039, %31 : vector<8x256xf32>
    %1041 = vector.extract_strided_slice %999 {offsets = [0, 7], sizes = [8, 1], strides = [1, 1]} : vector<8x9xf32> to vector<8x1xf32>
    %1042 = vector.broadcast %1041 : vector<8x1xf32> to vector<8x256xf32>
    %1043 = arith.mulf %1040, %1042 : vector<8x256xf32>
    %1044 = arith.addf %1038, %1043 : vector<8x256xf32>
    %c239_i32_327 = arith.constant 239 : i32
    %1045 = tpu.dynamic_rotate %997 by %c239_i32_327 dim 1 : vector<8x256xf32>, i32 -> vector<8x256xf32>
    %1046 = arith.mulf %1045, %33 : vector<8x256xf32>
    %1047 = vector.extract_strided_slice %999 {offsets = [0, 8], sizes = [8, 1], strides = [1, 1]} : vector<8x9xf32> to vector<8x1xf32>
    %1048 = vector.broadcast %1047 : vector<8x1xf32> to vector<8x256xf32>
    %1049 = arith.mulf %1046, %1048 : vector<8x256xf32>
    %1050 = arith.addf %1044, %1049 : vector<8x256xf32>
    %c7_328 = arith.constant 7 : index
    %c0_329 = arith.constant 0 : index
    %c0_330 = arith.constant 0 : index
    %1051 = vector.load %arg12[%c7_328, %c0_329, %c0_330] : memref<14x8x8xf32, #tpu.memory_space<vmem>>, vector<1x8x8xf32>
    %1052 = vector.shape_cast %1051 : vector<1x8x8xf32> to vector<8x8xf32>
    %c7_331 = arith.constant 7 : index
    %c0_332 = arith.constant 0 : index
    %c0_333 = arith.constant 0 : index
    %1053 = vector.load %arg13[%c7_331, %c0_332, %c0_333] : memref<14x8x1xf32, #tpu.memory_space<vmem>>, vector<1x8x1xf32>
    %1054 = vector.shape_cast %1053 : vector<1x8x1xf32> to vector<8x1xf32>
    %cst_334 = arith.constant dense<0.000000e+00> : vector<8x256xf32>
    %1055 = tpu.matmul %1052, %1050, %cst_334 {dimension_numbers = #tpu.dot_dimension_numbers<[1], [0], [0], [1], [0, 0, 1, 1], [], []>} : vector<8x8xf32>, vector<8x256xf32>, vector<8x256xf32> -> vector<8x256xf32>
    %1056 = vector.broadcast %1054 : vector<8x1xf32> to vector<8x256xf32>
    %1057 = arith.addf %1055, %1056 : vector<8x256xf32>
    %c7_335 = arith.constant 7 : index
    %1058 = memref.load %arg1[%c7_335] : memref<14xf32, #tpu.memory_space<smem>>
    %1059 = vector.broadcast %1058 : f32 to vector<8x256xf32>
    %1060 = arith.mulf %1059, %290 : vector<8x256xf32>
    %1061 = arith.addf %1060, %1057 : vector<8x256xf32>
    %1062 = arith.addf %933, %1061 : vector<8x256xf32>
    %cst_336 = arith.constant 0.000000e+00 : f32
    %1063 = vector.broadcast %cst_336 : f32 to vector<8x256xf32>
    %1064 = arith.maximumf %676, %1063 : vector<8x256xf32>
    %c8_337 = arith.constant 8 : index
    %c0_338 = arith.constant 0 : index
    %c0_339 = arith.constant 0 : index
    %1065 = vector.load %arg8[%c8_337, %c0_338, %c0_339] : memref<14x8x9xf32, #tpu.memory_space<vmem>>, vector<1x8x9xf32>
    %1066 = vector.shape_cast %1065 : vector<1x8x9xf32> to vector<8x9xf32>
    %1067 = vector.extract_strided_slice %1066 {offsets = [0, 4], sizes = [8, 1], strides = [1, 1]} : vector<8x9xf32> to vector<8x1xf32>
    %1068 = vector.broadcast %1067 : vector<8x1xf32> to vector<8x256xf32>
    %1069 = arith.mulf %1064, %1068 : vector<8x256xf32>
    %c17_i32_340 = arith.constant 17 : i32
    %1070 = tpu.dynamic_rotate %1064 by %c17_i32_340 dim 1 : vector<8x256xf32>, i32 -> vector<8x256xf32>
    %1071 = arith.mulf %1070, %19 : vector<8x256xf32>
    %1072 = vector.extract_strided_slice %1066 {offsets = [0, 0], sizes = [8, 1], strides = [1, 1]} : vector<8x9xf32> to vector<8x1xf32>
    %1073 = vector.broadcast %1072 : vector<8x1xf32> to vector<8x256xf32>
    %1074 = arith.mulf %1071, %1073 : vector<8x256xf32>
    %1075 = arith.addf %1069, %1074 : vector<8x256xf32>
    %c16_i32_341 = arith.constant 16 : i32
    %1076 = tpu.dynamic_rotate %1064 by %c16_i32_341 dim 1 : vector<8x256xf32>, i32 -> vector<8x256xf32>
    %1077 = arith.mulf %1076, %21 : vector<8x256xf32>
    %1078 = vector.extract_strided_slice %1066 {offsets = [0, 1], sizes = [8, 1], strides = [1, 1]} : vector<8x9xf32> to vector<8x1xf32>
    %1079 = vector.broadcast %1078 : vector<8x1xf32> to vector<8x256xf32>
    %1080 = arith.mulf %1077, %1079 : vector<8x256xf32>
    %1081 = arith.addf %1075, %1080 : vector<8x256xf32>
    %c15_i32_342 = arith.constant 15 : i32
    %1082 = tpu.dynamic_rotate %1064 by %c15_i32_342 dim 1 : vector<8x256xf32>, i32 -> vector<8x256xf32>
    %1083 = arith.mulf %1082, %23 : vector<8x256xf32>
    %1084 = vector.extract_strided_slice %1066 {offsets = [0, 2], sizes = [8, 1], strides = [1, 1]} : vector<8x9xf32> to vector<8x1xf32>
    %1085 = vector.broadcast %1084 : vector<8x1xf32> to vector<8x256xf32>
    %1086 = arith.mulf %1083, %1085 : vector<8x256xf32>
    %1087 = arith.addf %1081, %1086 : vector<8x256xf32>
    %c1_i32_343 = arith.constant 1 : i32
    %1088 = tpu.dynamic_rotate %1064 by %c1_i32_343 dim 1 : vector<8x256xf32>, i32 -> vector<8x256xf32>
    %1089 = arith.mulf %1088, %25 : vector<8x256xf32>
    %1090 = vector.extract_strided_slice %1066 {offsets = [0, 3], sizes = [8, 1], strides = [1, 1]} : vector<8x9xf32> to vector<8x1xf32>
    %1091 = vector.broadcast %1090 : vector<8x1xf32> to vector<8x256xf32>
    %1092 = arith.mulf %1089, %1091 : vector<8x256xf32>
    %1093 = arith.addf %1087, %1092 : vector<8x256xf32>
    %c255_i32_344 = arith.constant 255 : i32
    %1094 = tpu.dynamic_rotate %1064 by %c255_i32_344 dim 1 : vector<8x256xf32>, i32 -> vector<8x256xf32>
    %1095 = arith.mulf %1094, %27 : vector<8x256xf32>
    %1096 = vector.extract_strided_slice %1066 {offsets = [0, 5], sizes = [8, 1], strides = [1, 1]} : vector<8x9xf32> to vector<8x1xf32>
    %1097 = vector.broadcast %1096 : vector<8x1xf32> to vector<8x256xf32>
    %1098 = arith.mulf %1095, %1097 : vector<8x256xf32>
    %1099 = arith.addf %1093, %1098 : vector<8x256xf32>
    %c241_i32_345 = arith.constant 241 : i32
    %1100 = tpu.dynamic_rotate %1064 by %c241_i32_345 dim 1 : vector<8x256xf32>, i32 -> vector<8x256xf32>
    %1101 = arith.mulf %1100, %29 : vector<8x256xf32>
    %1102 = vector.extract_strided_slice %1066 {offsets = [0, 6], sizes = [8, 1], strides = [1, 1]} : vector<8x9xf32> to vector<8x1xf32>
    %1103 = vector.broadcast %1102 : vector<8x1xf32> to vector<8x256xf32>
    %1104 = arith.mulf %1101, %1103 : vector<8x256xf32>
    %1105 = arith.addf %1099, %1104 : vector<8x256xf32>
    %c240_i32_346 = arith.constant 240 : i32
    %1106 = tpu.dynamic_rotate %1064 by %c240_i32_346 dim 1 : vector<8x256xf32>, i32 -> vector<8x256xf32>
    %1107 = arith.mulf %1106, %31 : vector<8x256xf32>
    %1108 = vector.extract_strided_slice %1066 {offsets = [0, 7], sizes = [8, 1], strides = [1, 1]} : vector<8x9xf32> to vector<8x1xf32>
    %1109 = vector.broadcast %1108 : vector<8x1xf32> to vector<8x256xf32>
    %1110 = arith.mulf %1107, %1109 : vector<8x256xf32>
    %1111 = arith.addf %1105, %1110 : vector<8x256xf32>
    %c239_i32_347 = arith.constant 239 : i32
    %1112 = tpu.dynamic_rotate %1064 by %c239_i32_347 dim 1 : vector<8x256xf32>, i32 -> vector<8x256xf32>
    %1113 = arith.mulf %1112, %33 : vector<8x256xf32>
    %1114 = vector.extract_strided_slice %1066 {offsets = [0, 8], sizes = [8, 1], strides = [1, 1]} : vector<8x9xf32> to vector<8x1xf32>
    %1115 = vector.broadcast %1114 : vector<8x1xf32> to vector<8x256xf32>
    %1116 = arith.mulf %1113, %1115 : vector<8x256xf32>
    %1117 = arith.addf %1111, %1116 : vector<8x256xf32>
    %c8_348 = arith.constant 8 : index
    %c0_349 = arith.constant 0 : index
    %c0_350 = arith.constant 0 : index
    %1118 = vector.load %arg9[%c8_348, %c0_349, %c0_350] : memref<14x8x8xf32, #tpu.memory_space<vmem>>, vector<1x8x8xf32>
    %1119 = vector.shape_cast %1118 : vector<1x8x8xf32> to vector<8x8xf32>
    %c8_351 = arith.constant 8 : index
    %c0_352 = arith.constant 0 : index
    %c0_353 = arith.constant 0 : index
    %1120 = vector.load %arg10[%c8_351, %c0_352, %c0_353] : memref<14x8x1xf32, #tpu.memory_space<vmem>>, vector<1x8x1xf32>
    %1121 = vector.shape_cast %1120 : vector<1x8x1xf32> to vector<8x1xf32>
    %cst_354 = arith.constant dense<0.000000e+00> : vector<8x256xf32>
    %1122 = tpu.matmul %1119, %1117, %cst_354 {dimension_numbers = #tpu.dot_dimension_numbers<[1], [0], [0], [1], [0, 0, 1, 1], [], []>} : vector<8x8xf32>, vector<8x256xf32>, vector<8x256xf32> -> vector<8x256xf32>
    %1123 = vector.broadcast %1121 : vector<8x1xf32> to vector<8x256xf32>
    %1124 = arith.addf %1122, %1123 : vector<8x256xf32>
    %cst_355 = arith.constant 0.000000e+00 : f32
    %1125 = vector.broadcast %cst_355 : f32 to vector<8x256xf32>
    %1126 = arith.maximumf %1124, %1125 : vector<8x256xf32>
    %c8_356 = arith.constant 8 : index
    %c0_357 = arith.constant 0 : index
    %c0_358 = arith.constant 0 : index
    %1127 = vector.load %arg11[%c8_356, %c0_357, %c0_358] : memref<14x8x9xf32, #tpu.memory_space<vmem>>, vector<1x8x9xf32>
    %1128 = vector.shape_cast %1127 : vector<1x8x9xf32> to vector<8x9xf32>
    %1129 = vector.extract_strided_slice %1128 {offsets = [0, 4], sizes = [8, 1], strides = [1, 1]} : vector<8x9xf32> to vector<8x1xf32>
    %1130 = vector.broadcast %1129 : vector<8x1xf32> to vector<8x256xf32>
    %1131 = arith.mulf %1126, %1130 : vector<8x256xf32>
    %c17_i32_359 = arith.constant 17 : i32
    %1132 = tpu.dynamic_rotate %1126 by %c17_i32_359 dim 1 : vector<8x256xf32>, i32 -> vector<8x256xf32>
    %1133 = arith.mulf %1132, %19 : vector<8x256xf32>
    %1134 = vector.extract_strided_slice %1128 {offsets = [0, 0], sizes = [8, 1], strides = [1, 1]} : vector<8x9xf32> to vector<8x1xf32>
    %1135 = vector.broadcast %1134 : vector<8x1xf32> to vector<8x256xf32>
    %1136 = arith.mulf %1133, %1135 : vector<8x256xf32>
    %1137 = arith.addf %1131, %1136 : vector<8x256xf32>
    %c16_i32_360 = arith.constant 16 : i32
    %1138 = tpu.dynamic_rotate %1126 by %c16_i32_360 dim 1 : vector<8x256xf32>, i32 -> vector<8x256xf32>
    %1139 = arith.mulf %1138, %21 : vector<8x256xf32>
    %1140 = vector.extract_strided_slice %1128 {offsets = [0, 1], sizes = [8, 1], strides = [1, 1]} : vector<8x9xf32> to vector<8x1xf32>
    %1141 = vector.broadcast %1140 : vector<8x1xf32> to vector<8x256xf32>
    %1142 = arith.mulf %1139, %1141 : vector<8x256xf32>
    %1143 = arith.addf %1137, %1142 : vector<8x256xf32>
    %c15_i32_361 = arith.constant 15 : i32
    %1144 = tpu.dynamic_rotate %1126 by %c15_i32_361 dim 1 : vector<8x256xf32>, i32 -> vector<8x256xf32>
    %1145 = arith.mulf %1144, %23 : vector<8x256xf32>
    %1146 = vector.extract_strided_slice %1128 {offsets = [0, 2], sizes = [8, 1], strides = [1, 1]} : vector<8x9xf32> to vector<8x1xf32>
    %1147 = vector.broadcast %1146 : vector<8x1xf32> to vector<8x256xf32>
    %1148 = arith.mulf %1145, %1147 : vector<8x256xf32>
    %1149 = arith.addf %1143, %1148 : vector<8x256xf32>
    %c1_i32_362 = arith.constant 1 : i32
    %1150 = tpu.dynamic_rotate %1126 by %c1_i32_362 dim 1 : vector<8x256xf32>, i32 -> vector<8x256xf32>
    %1151 = arith.mulf %1150, %25 : vector<8x256xf32>
    %1152 = vector.extract_strided_slice %1128 {offsets = [0, 3], sizes = [8, 1], strides = [1, 1]} : vector<8x9xf32> to vector<8x1xf32>
    %1153 = vector.broadcast %1152 : vector<8x1xf32> to vector<8x256xf32>
    %1154 = arith.mulf %1151, %1153 : vector<8x256xf32>
    %1155 = arith.addf %1149, %1154 : vector<8x256xf32>
    %c255_i32_363 = arith.constant 255 : i32
    %1156 = tpu.dynamic_rotate %1126 by %c255_i32_363 dim 1 : vector<8x256xf32>, i32 -> vector<8x256xf32>
    %1157 = arith.mulf %1156, %27 : vector<8x256xf32>
    %1158 = vector.extract_strided_slice %1128 {offsets = [0, 5], sizes = [8, 1], strides = [1, 1]} : vector<8x9xf32> to vector<8x1xf32>
    %1159 = vector.broadcast %1158 : vector<8x1xf32> to vector<8x256xf32>
    %1160 = arith.mulf %1157, %1159 : vector<8x256xf32>
    %1161 = arith.addf %1155, %1160 : vector<8x256xf32>
    %c241_i32_364 = arith.constant 241 : i32
    %1162 = tpu.dynamic_rotate %1126 by %c241_i32_364 dim 1 : vector<8x256xf32>, i32 -> vector<8x256xf32>
    %1163 = arith.mulf %1162, %29 : vector<8x256xf32>
    %1164 = vector.extract_strided_slice %1128 {offsets = [0, 6], sizes = [8, 1], strides = [1, 1]} : vector<8x9xf32> to vector<8x1xf32>
    %1165 = vector.broadcast %1164 : vector<8x1xf32> to vector<8x256xf32>
    %1166 = arith.mulf %1163, %1165 : vector<8x256xf32>
    %1167 = arith.addf %1161, %1166 : vector<8x256xf32>
    %c240_i32_365 = arith.constant 240 : i32
    %1168 = tpu.dynamic_rotate %1126 by %c240_i32_365 dim 1 : vector<8x256xf32>, i32 -> vector<8x256xf32>
    %1169 = arith.mulf %1168, %31 : vector<8x256xf32>
    %1170 = vector.extract_strided_slice %1128 {offsets = [0, 7], sizes = [8, 1], strides = [1, 1]} : vector<8x9xf32> to vector<8x1xf32>
    %1171 = vector.broadcast %1170 : vector<8x1xf32> to vector<8x256xf32>
    %1172 = arith.mulf %1169, %1171 : vector<8x256xf32>
    %1173 = arith.addf %1167, %1172 : vector<8x256xf32>
    %c239_i32_366 = arith.constant 239 : i32
    %1174 = tpu.dynamic_rotate %1126 by %c239_i32_366 dim 1 : vector<8x256xf32>, i32 -> vector<8x256xf32>
    %1175 = arith.mulf %1174, %33 : vector<8x256xf32>
    %1176 = vector.extract_strided_slice %1128 {offsets = [0, 8], sizes = [8, 1], strides = [1, 1]} : vector<8x9xf32> to vector<8x1xf32>
    %1177 = vector.broadcast %1176 : vector<8x1xf32> to vector<8x256xf32>
    %1178 = arith.mulf %1175, %1177 : vector<8x256xf32>
    %1179 = arith.addf %1173, %1178 : vector<8x256xf32>
    %c8_367 = arith.constant 8 : index
    %c0_368 = arith.constant 0 : index
    %c0_369 = arith.constant 0 : index
    %1180 = vector.load %arg12[%c8_367, %c0_368, %c0_369] : memref<14x8x8xf32, #tpu.memory_space<vmem>>, vector<1x8x8xf32>
    %1181 = vector.shape_cast %1180 : vector<1x8x8xf32> to vector<8x8xf32>
    %c8_370 = arith.constant 8 : index
    %c0_371 = arith.constant 0 : index
    %c0_372 = arith.constant 0 : index
    %1182 = vector.load %arg13[%c8_370, %c0_371, %c0_372] : memref<14x8x1xf32, #tpu.memory_space<vmem>>, vector<1x8x1xf32>
    %1183 = vector.shape_cast %1182 : vector<1x8x1xf32> to vector<8x1xf32>
    %cst_373 = arith.constant dense<0.000000e+00> : vector<8x256xf32>
    %1184 = tpu.matmul %1181, %1179, %cst_373 {dimension_numbers = #tpu.dot_dimension_numbers<[1], [0], [0], [1], [0, 0, 1, 1], [], []>} : vector<8x8xf32>, vector<8x256xf32>, vector<8x256xf32> -> vector<8x256xf32>
    %1185 = vector.broadcast %1183 : vector<8x1xf32> to vector<8x256xf32>
    %1186 = arith.addf %1184, %1185 : vector<8x256xf32>
    %c8_374 = arith.constant 8 : index
    %1187 = memref.load %arg1[%c8_374] : memref<14xf32, #tpu.memory_space<smem>>
    %1188 = vector.broadcast %1187 : f32 to vector<8x256xf32>
    %1189 = arith.mulf %1188, %676 : vector<8x256xf32>
    %1190 = arith.addf %1189, %1186 : vector<8x256xf32>
    %1191 = arith.addf %1062, %1190 : vector<8x256xf32>
    %cst_375 = arith.constant 0.000000e+00 : f32
    %1192 = vector.broadcast %cst_375 : f32 to vector<8x256xf32>
    %1193 = arith.maximumf %8, %1192 : vector<8x256xf32>
    %c9 = arith.constant 9 : index
    %c0_376 = arith.constant 0 : index
    %c0_377 = arith.constant 0 : index
    %1194 = vector.load %arg8[%c9, %c0_376, %c0_377] : memref<14x8x9xf32, #tpu.memory_space<vmem>>, vector<1x8x9xf32>
    %1195 = vector.shape_cast %1194 : vector<1x8x9xf32> to vector<8x9xf32>
    %1196 = vector.extract_strided_slice %1195 {offsets = [0, 4], sizes = [8, 1], strides = [1, 1]} : vector<8x9xf32> to vector<8x1xf32>
    %1197 = vector.broadcast %1196 : vector<8x1xf32> to vector<8x256xf32>
    %1198 = arith.mulf %1193, %1197 : vector<8x256xf32>
    %c17_i32_378 = arith.constant 17 : i32
    %1199 = tpu.dynamic_rotate %1193 by %c17_i32_378 dim 1 : vector<8x256xf32>, i32 -> vector<8x256xf32>
    %1200 = arith.mulf %1199, %19 : vector<8x256xf32>
    %1201 = vector.extract_strided_slice %1195 {offsets = [0, 0], sizes = [8, 1], strides = [1, 1]} : vector<8x9xf32> to vector<8x1xf32>
    %1202 = vector.broadcast %1201 : vector<8x1xf32> to vector<8x256xf32>
    %1203 = arith.mulf %1200, %1202 : vector<8x256xf32>
    %1204 = arith.addf %1198, %1203 : vector<8x256xf32>
    %c16_i32_379 = arith.constant 16 : i32
    %1205 = tpu.dynamic_rotate %1193 by %c16_i32_379 dim 1 : vector<8x256xf32>, i32 -> vector<8x256xf32>
    %1206 = arith.mulf %1205, %21 : vector<8x256xf32>
    %1207 = vector.extract_strided_slice %1195 {offsets = [0, 1], sizes = [8, 1], strides = [1, 1]} : vector<8x9xf32> to vector<8x1xf32>
    %1208 = vector.broadcast %1207 : vector<8x1xf32> to vector<8x256xf32>
    %1209 = arith.mulf %1206, %1208 : vector<8x256xf32>
    %1210 = arith.addf %1204, %1209 : vector<8x256xf32>
    %c15_i32_380 = arith.constant 15 : i32
    %1211 = tpu.dynamic_rotate %1193 by %c15_i32_380 dim 1 : vector<8x256xf32>, i32 -> vector<8x256xf32>
    %1212 = arith.mulf %1211, %23 : vector<8x256xf32>
    %1213 = vector.extract_strided_slice %1195 {offsets = [0, 2], sizes = [8, 1], strides = [1, 1]} : vector<8x9xf32> to vector<8x1xf32>
    %1214 = vector.broadcast %1213 : vector<8x1xf32> to vector<8x256xf32>
    %1215 = arith.mulf %1212, %1214 : vector<8x256xf32>
    %1216 = arith.addf %1210, %1215 : vector<8x256xf32>
    %c1_i32_381 = arith.constant 1 : i32
    %1217 = tpu.dynamic_rotate %1193 by %c1_i32_381 dim 1 : vector<8x256xf32>, i32 -> vector<8x256xf32>
    %1218 = arith.mulf %1217, %25 : vector<8x256xf32>
    %1219 = vector.extract_strided_slice %1195 {offsets = [0, 3], sizes = [8, 1], strides = [1, 1]} : vector<8x9xf32> to vector<8x1xf32>
    %1220 = vector.broadcast %1219 : vector<8x1xf32> to vector<8x256xf32>
    %1221 = arith.mulf %1218, %1220 : vector<8x256xf32>
    %1222 = arith.addf %1216, %1221 : vector<8x256xf32>
    %c255_i32_382 = arith.constant 255 : i32
    %1223 = tpu.dynamic_rotate %1193 by %c255_i32_382 dim 1 : vector<8x256xf32>, i32 -> vector<8x256xf32>
    %1224 = arith.mulf %1223, %27 : vector<8x256xf32>
    %1225 = vector.extract_strided_slice %1195 {offsets = [0, 5], sizes = [8, 1], strides = [1, 1]} : vector<8x9xf32> to vector<8x1xf32>
    %1226 = vector.broadcast %1225 : vector<8x1xf32> to vector<8x256xf32>
    %1227 = arith.mulf %1224, %1226 : vector<8x256xf32>
    %1228 = arith.addf %1222, %1227 : vector<8x256xf32>
    %c241_i32_383 = arith.constant 241 : i32
    %1229 = tpu.dynamic_rotate %1193 by %c241_i32_383 dim 1 : vector<8x256xf32>, i32 -> vector<8x256xf32>
    %1230 = arith.mulf %1229, %29 : vector<8x256xf32>
    %1231 = vector.extract_strided_slice %1195 {offsets = [0, 6], sizes = [8, 1], strides = [1, 1]} : vector<8x9xf32> to vector<8x1xf32>
    %1232 = vector.broadcast %1231 : vector<8x1xf32> to vector<8x256xf32>
    %1233 = arith.mulf %1230, %1232 : vector<8x256xf32>
    %1234 = arith.addf %1228, %1233 : vector<8x256xf32>
    %c240_i32_384 = arith.constant 240 : i32
    %1235 = tpu.dynamic_rotate %1193 by %c240_i32_384 dim 1 : vector<8x256xf32>, i32 -> vector<8x256xf32>
    %1236 = arith.mulf %1235, %31 : vector<8x256xf32>
    %1237 = vector.extract_strided_slice %1195 {offsets = [0, 7], sizes = [8, 1], strides = [1, 1]} : vector<8x9xf32> to vector<8x1xf32>
    %1238 = vector.broadcast %1237 : vector<8x1xf32> to vector<8x256xf32>
    %1239 = arith.mulf %1236, %1238 : vector<8x256xf32>
    %1240 = arith.addf %1234, %1239 : vector<8x256xf32>
    %c239_i32_385 = arith.constant 239 : i32
    %1241 = tpu.dynamic_rotate %1193 by %c239_i32_385 dim 1 : vector<8x256xf32>, i32 -> vector<8x256xf32>
    %1242 = arith.mulf %1241, %33 : vector<8x256xf32>
    %1243 = vector.extract_strided_slice %1195 {offsets = [0, 8], sizes = [8, 1], strides = [1, 1]} : vector<8x9xf32> to vector<8x1xf32>
    %1244 = vector.broadcast %1243 : vector<8x1xf32> to vector<8x256xf32>
    %1245 = arith.mulf %1242, %1244 : vector<8x256xf32>
    %1246 = arith.addf %1240, %1245 : vector<8x256xf32>
    %c9_386 = arith.constant 9 : index
    %c0_387 = arith.constant 0 : index
    %c0_388 = arith.constant 0 : index
    %1247 = vector.load %arg9[%c9_386, %c0_387, %c0_388] : memref<14x8x8xf32, #tpu.memory_space<vmem>>, vector<1x8x8xf32>
    %1248 = vector.shape_cast %1247 : vector<1x8x8xf32> to vector<8x8xf32>
    %c9_389 = arith.constant 9 : index
    %c0_390 = arith.constant 0 : index
    %c0_391 = arith.constant 0 : index
    %1249 = vector.load %arg10[%c9_389, %c0_390, %c0_391] : memref<14x8x1xf32, #tpu.memory_space<vmem>>, vector<1x8x1xf32>
    %1250 = vector.shape_cast %1249 : vector<1x8x1xf32> to vector<8x1xf32>
    %cst_392 = arith.constant dense<0.000000e+00> : vector<8x256xf32>
    %1251 = tpu.matmul %1248, %1246, %cst_392 {dimension_numbers = #tpu.dot_dimension_numbers<[1], [0], [0], [1], [0, 0, 1, 1], [], []>} : vector<8x8xf32>, vector<8x256xf32>, vector<8x256xf32> -> vector<8x256xf32>
    %1252 = vector.broadcast %1250 : vector<8x1xf32> to vector<8x256xf32>
    %1253 = arith.addf %1251, %1252 : vector<8x256xf32>
    %cst_393 = arith.constant 0.000000e+00 : f32
    %1254 = vector.broadcast %cst_393 : f32 to vector<8x256xf32>
    %1255 = arith.maximumf %1253, %1254 : vector<8x256xf32>
    %c9_394 = arith.constant 9 : index
    %c0_395 = arith.constant 0 : index
    %c0_396 = arith.constant 0 : index
    %1256 = vector.load %arg11[%c9_394, %c0_395, %c0_396] : memref<14x8x9xf32, #tpu.memory_space<vmem>>, vector<1x8x9xf32>
    %1257 = vector.shape_cast %1256 : vector<1x8x9xf32> to vector<8x9xf32>
    %1258 = vector.extract_strided_slice %1257 {offsets = [0, 4], sizes = [8, 1], strides = [1, 1]} : vector<8x9xf32> to vector<8x1xf32>
    %1259 = vector.broadcast %1258 : vector<8x1xf32> to vector<8x256xf32>
    %1260 = arith.mulf %1255, %1259 : vector<8x256xf32>
    %c17_i32_397 = arith.constant 17 : i32
    %1261 = tpu.dynamic_rotate %1255 by %c17_i32_397 dim 1 : vector<8x256xf32>, i32 -> vector<8x256xf32>
    %1262 = arith.mulf %1261, %19 : vector<8x256xf32>
    %1263 = vector.extract_strided_slice %1257 {offsets = [0, 0], sizes = [8, 1], strides = [1, 1]} : vector<8x9xf32> to vector<8x1xf32>
    %1264 = vector.broadcast %1263 : vector<8x1xf32> to vector<8x256xf32>
    %1265 = arith.mulf %1262, %1264 : vector<8x256xf32>
    %1266 = arith.addf %1260, %1265 : vector<8x256xf32>
    %c16_i32_398 = arith.constant 16 : i32
    %1267 = tpu.dynamic_rotate %1255 by %c16_i32_398 dim 1 : vector<8x256xf32>, i32 -> vector<8x256xf32>
    %1268 = arith.mulf %1267, %21 : vector<8x256xf32>
    %1269 = vector.extract_strided_slice %1257 {offsets = [0, 1], sizes = [8, 1], strides = [1, 1]} : vector<8x9xf32> to vector<8x1xf32>
    %1270 = vector.broadcast %1269 : vector<8x1xf32> to vector<8x256xf32>
    %1271 = arith.mulf %1268, %1270 : vector<8x256xf32>
    %1272 = arith.addf %1266, %1271 : vector<8x256xf32>
    %c15_i32_399 = arith.constant 15 : i32
    %1273 = tpu.dynamic_rotate %1255 by %c15_i32_399 dim 1 : vector<8x256xf32>, i32 -> vector<8x256xf32>
    %1274 = arith.mulf %1273, %23 : vector<8x256xf32>
    %1275 = vector.extract_strided_slice %1257 {offsets = [0, 2], sizes = [8, 1], strides = [1, 1]} : vector<8x9xf32> to vector<8x1xf32>
    %1276 = vector.broadcast %1275 : vector<8x1xf32> to vector<8x256xf32>
    %1277 = arith.mulf %1274, %1276 : vector<8x256xf32>
    %1278 = arith.addf %1272, %1277 : vector<8x256xf32>
    %c1_i32_400 = arith.constant 1 : i32
    %1279 = tpu.dynamic_rotate %1255 by %c1_i32_400 dim 1 : vector<8x256xf32>, i32 -> vector<8x256xf32>
    %1280 = arith.mulf %1279, %25 : vector<8x256xf32>
    %1281 = vector.extract_strided_slice %1257 {offsets = [0, 3], sizes = [8, 1], strides = [1, 1]} : vector<8x9xf32> to vector<8x1xf32>
    %1282 = vector.broadcast %1281 : vector<8x1xf32> to vector<8x256xf32>
    %1283 = arith.mulf %1280, %1282 : vector<8x256xf32>
    %1284 = arith.addf %1278, %1283 : vector<8x256xf32>
    %c255_i32_401 = arith.constant 255 : i32
    %1285 = tpu.dynamic_rotate %1255 by %c255_i32_401 dim 1 : vector<8x256xf32>, i32 -> vector<8x256xf32>
    %1286 = arith.mulf %1285, %27 : vector<8x256xf32>
    %1287 = vector.extract_strided_slice %1257 {offsets = [0, 5], sizes = [8, 1], strides = [1, 1]} : vector<8x9xf32> to vector<8x1xf32>
    %1288 = vector.broadcast %1287 : vector<8x1xf32> to vector<8x256xf32>
    %1289 = arith.mulf %1286, %1288 : vector<8x256xf32>
    %1290 = arith.addf %1284, %1289 : vector<8x256xf32>
    %c241_i32_402 = arith.constant 241 : i32
    %1291 = tpu.dynamic_rotate %1255 by %c241_i32_402 dim 1 : vector<8x256xf32>, i32 -> vector<8x256xf32>
    %1292 = arith.mulf %1291, %29 : vector<8x256xf32>
    %1293 = vector.extract_strided_slice %1257 {offsets = [0, 6], sizes = [8, 1], strides = [1, 1]} : vector<8x9xf32> to vector<8x1xf32>
    %1294 = vector.broadcast %1293 : vector<8x1xf32> to vector<8x256xf32>
    %1295 = arith.mulf %1292, %1294 : vector<8x256xf32>
    %1296 = arith.addf %1290, %1295 : vector<8x256xf32>
    %c240_i32_403 = arith.constant 240 : i32
    %1297 = tpu.dynamic_rotate %1255 by %c240_i32_403 dim 1 : vector<8x256xf32>, i32 -> vector<8x256xf32>
    %1298 = arith.mulf %1297, %31 : vector<8x256xf32>
    %1299 = vector.extract_strided_slice %1257 {offsets = [0, 7], sizes = [8, 1], strides = [1, 1]} : vector<8x9xf32> to vector<8x1xf32>
    %1300 = vector.broadcast %1299 : vector<8x1xf32> to vector<8x256xf32>
    %1301 = arith.mulf %1298, %1300 : vector<8x256xf32>
    %1302 = arith.addf %1296, %1301 : vector<8x256xf32>
    %c239_i32_404 = arith.constant 239 : i32
    %1303 = tpu.dynamic_rotate %1255 by %c239_i32_404 dim 1 : vector<8x256xf32>, i32 -> vector<8x256xf32>
    %1304 = arith.mulf %1303, %33 : vector<8x256xf32>
    %1305 = vector.extract_strided_slice %1257 {offsets = [0, 8], sizes = [8, 1], strides = [1, 1]} : vector<8x9xf32> to vector<8x1xf32>
    %1306 = vector.broadcast %1305 : vector<8x1xf32> to vector<8x256xf32>
    %1307 = arith.mulf %1304, %1306 : vector<8x256xf32>
    %1308 = arith.addf %1302, %1307 : vector<8x256xf32>
    %c9_405 = arith.constant 9 : index
    %c0_406 = arith.constant 0 : index
    %c0_407 = arith.constant 0 : index
    %1309 = vector.load %arg12[%c9_405, %c0_406, %c0_407] : memref<14x8x8xf32, #tpu.memory_space<vmem>>, vector<1x8x8xf32>
    %1310 = vector.shape_cast %1309 : vector<1x8x8xf32> to vector<8x8xf32>
    %c9_408 = arith.constant 9 : index
    %c0_409 = arith.constant 0 : index
    %c0_410 = arith.constant 0 : index
    %1311 = vector.load %arg13[%c9_408, %c0_409, %c0_410] : memref<14x8x1xf32, #tpu.memory_space<vmem>>, vector<1x8x1xf32>
    %1312 = vector.shape_cast %1311 : vector<1x8x1xf32> to vector<8x1xf32>
    %cst_411 = arith.constant dense<0.000000e+00> : vector<8x256xf32>
    %1313 = tpu.matmul %1310, %1308, %cst_411 {dimension_numbers = #tpu.dot_dimension_numbers<[1], [0], [0], [1], [0, 0, 1, 1], [], []>} : vector<8x8xf32>, vector<8x256xf32>, vector<8x256xf32> -> vector<8x256xf32>
    %1314 = vector.broadcast %1312 : vector<8x1xf32> to vector<8x256xf32>
    %1315 = arith.addf %1313, %1314 : vector<8x256xf32>
    %c9_412 = arith.constant 9 : index
    %1316 = memref.load %arg1[%c9_412] : memref<14xf32, #tpu.memory_space<smem>>
    %1317 = vector.broadcast %1316 : f32 to vector<8x256xf32>
    %1318 = arith.mulf %1317, %8 : vector<8x256xf32>
    %1319 = arith.addf %1318, %1315 : vector<8x256xf32>
    %cst_413 = arith.constant 0.000000e+00 : f32
    %1320 = vector.broadcast %cst_413 : f32 to vector<8x256xf32>
    %1321 = arith.maximumf %17, %1320 : vector<8x256xf32>
    %c10 = arith.constant 10 : index
    %c0_414 = arith.constant 0 : index
    %c0_415 = arith.constant 0 : index
    %1322 = vector.load %arg8[%c10, %c0_414, %c0_415] : memref<14x8x9xf32, #tpu.memory_space<vmem>>, vector<1x8x9xf32>
    %1323 = vector.shape_cast %1322 : vector<1x8x9xf32> to vector<8x9xf32>
    %1324 = vector.extract_strided_slice %1323 {offsets = [0, 4], sizes = [8, 1], strides = [1, 1]} : vector<8x9xf32> to vector<8x1xf32>
    %1325 = vector.broadcast %1324 : vector<8x1xf32> to vector<8x256xf32>
    %1326 = arith.mulf %1321, %1325 : vector<8x256xf32>
    %c17_i32_416 = arith.constant 17 : i32
    %1327 = tpu.dynamic_rotate %1321 by %c17_i32_416 dim 1 : vector<8x256xf32>, i32 -> vector<8x256xf32>
    %1328 = arith.mulf %1327, %19 : vector<8x256xf32>
    %1329 = vector.extract_strided_slice %1323 {offsets = [0, 0], sizes = [8, 1], strides = [1, 1]} : vector<8x9xf32> to vector<8x1xf32>
    %1330 = vector.broadcast %1329 : vector<8x1xf32> to vector<8x256xf32>
    %1331 = arith.mulf %1328, %1330 : vector<8x256xf32>
    %1332 = arith.addf %1326, %1331 : vector<8x256xf32>
    %c16_i32_417 = arith.constant 16 : i32
    %1333 = tpu.dynamic_rotate %1321 by %c16_i32_417 dim 1 : vector<8x256xf32>, i32 -> vector<8x256xf32>
    %1334 = arith.mulf %1333, %21 : vector<8x256xf32>
    %1335 = vector.extract_strided_slice %1323 {offsets = [0, 1], sizes = [8, 1], strides = [1, 1]} : vector<8x9xf32> to vector<8x1xf32>
    %1336 = vector.broadcast %1335 : vector<8x1xf32> to vector<8x256xf32>
    %1337 = arith.mulf %1334, %1336 : vector<8x256xf32>
    %1338 = arith.addf %1332, %1337 : vector<8x256xf32>
    %c15_i32_418 = arith.constant 15 : i32
    %1339 = tpu.dynamic_rotate %1321 by %c15_i32_418 dim 1 : vector<8x256xf32>, i32 -> vector<8x256xf32>
    %1340 = arith.mulf %1339, %23 : vector<8x256xf32>
    %1341 = vector.extract_strided_slice %1323 {offsets = [0, 2], sizes = [8, 1], strides = [1, 1]} : vector<8x9xf32> to vector<8x1xf32>
    %1342 = vector.broadcast %1341 : vector<8x1xf32> to vector<8x256xf32>
    %1343 = arith.mulf %1340, %1342 : vector<8x256xf32>
    %1344 = arith.addf %1338, %1343 : vector<8x256xf32>
    %c1_i32_419 = arith.constant 1 : i32
    %1345 = tpu.dynamic_rotate %1321 by %c1_i32_419 dim 1 : vector<8x256xf32>, i32 -> vector<8x256xf32>
    %1346 = arith.mulf %1345, %25 : vector<8x256xf32>
    %1347 = vector.extract_strided_slice %1323 {offsets = [0, 3], sizes = [8, 1], strides = [1, 1]} : vector<8x9xf32> to vector<8x1xf32>
    %1348 = vector.broadcast %1347 : vector<8x1xf32> to vector<8x256xf32>
    %1349 = arith.mulf %1346, %1348 : vector<8x256xf32>
    %1350 = arith.addf %1344, %1349 : vector<8x256xf32>
    %c255_i32_420 = arith.constant 255 : i32
    %1351 = tpu.dynamic_rotate %1321 by %c255_i32_420 dim 1 : vector<8x256xf32>, i32 -> vector<8x256xf32>
    %1352 = arith.mulf %1351, %27 : vector<8x256xf32>
    %1353 = vector.extract_strided_slice %1323 {offsets = [0, 5], sizes = [8, 1], strides = [1, 1]} : vector<8x9xf32> to vector<8x1xf32>
    %1354 = vector.broadcast %1353 : vector<8x1xf32> to vector<8x256xf32>
    %1355 = arith.mulf %1352, %1354 : vector<8x256xf32>
    %1356 = arith.addf %1350, %1355 : vector<8x256xf32>
    %c241_i32_421 = arith.constant 241 : i32
    %1357 = tpu.dynamic_rotate %1321 by %c241_i32_421 dim 1 : vector<8x256xf32>, i32 -> vector<8x256xf32>
    %1358 = arith.mulf %1357, %29 : vector<8x256xf32>
    %1359 = vector.extract_strided_slice %1323 {offsets = [0, 6], sizes = [8, 1], strides = [1, 1]} : vector<8x9xf32> to vector<8x1xf32>
    %1360 = vector.broadcast %1359 : vector<8x1xf32> to vector<8x256xf32>
    %1361 = arith.mulf %1358, %1360 : vector<8x256xf32>
    %1362 = arith.addf %1356, %1361 : vector<8x256xf32>
    %c240_i32_422 = arith.constant 240 : i32
    %1363 = tpu.dynamic_rotate %1321 by %c240_i32_422 dim 1 : vector<8x256xf32>, i32 -> vector<8x256xf32>
    %1364 = arith.mulf %1363, %31 : vector<8x256xf32>
    %1365 = vector.extract_strided_slice %1323 {offsets = [0, 7], sizes = [8, 1], strides = [1, 1]} : vector<8x9xf32> to vector<8x1xf32>
    %1366 = vector.broadcast %1365 : vector<8x1xf32> to vector<8x256xf32>
    %1367 = arith.mulf %1364, %1366 : vector<8x256xf32>
    %1368 = arith.addf %1362, %1367 : vector<8x256xf32>
    %c239_i32_423 = arith.constant 239 : i32
    %1369 = tpu.dynamic_rotate %1321 by %c239_i32_423 dim 1 : vector<8x256xf32>, i32 -> vector<8x256xf32>
    %1370 = arith.mulf %1369, %33 : vector<8x256xf32>
    %1371 = vector.extract_strided_slice %1323 {offsets = [0, 8], sizes = [8, 1], strides = [1, 1]} : vector<8x9xf32> to vector<8x1xf32>
    %1372 = vector.broadcast %1371 : vector<8x1xf32> to vector<8x256xf32>
    %1373 = arith.mulf %1370, %1372 : vector<8x256xf32>
    %1374 = arith.addf %1368, %1373 : vector<8x256xf32>
    %c10_424 = arith.constant 10 : index
    %c0_425 = arith.constant 0 : index
    %c0_426 = arith.constant 0 : index
    %1375 = vector.load %arg9[%c10_424, %c0_425, %c0_426] : memref<14x8x8xf32, #tpu.memory_space<vmem>>, vector<1x8x8xf32>
    %1376 = vector.shape_cast %1375 : vector<1x8x8xf32> to vector<8x8xf32>
    %c10_427 = arith.constant 10 : index
    %c0_428 = arith.constant 0 : index
    %c0_429 = arith.constant 0 : index
    %1377 = vector.load %arg10[%c10_427, %c0_428, %c0_429] : memref<14x8x1xf32, #tpu.memory_space<vmem>>, vector<1x8x1xf32>
    %1378 = vector.shape_cast %1377 : vector<1x8x1xf32> to vector<8x1xf32>
    %cst_430 = arith.constant dense<0.000000e+00> : vector<8x256xf32>
    %1379 = tpu.matmul %1376, %1374, %cst_430 {dimension_numbers = #tpu.dot_dimension_numbers<[1], [0], [0], [1], [0, 0, 1, 1], [], []>} : vector<8x8xf32>, vector<8x256xf32>, vector<8x256xf32> -> vector<8x256xf32>
    %1380 = vector.broadcast %1378 : vector<8x1xf32> to vector<8x256xf32>
    %1381 = arith.addf %1379, %1380 : vector<8x256xf32>
    %cst_431 = arith.constant 0.000000e+00 : f32
    %1382 = vector.broadcast %cst_431 : f32 to vector<8x256xf32>
    %1383 = arith.maximumf %1381, %1382 : vector<8x256xf32>
    %c10_432 = arith.constant 10 : index
    %c0_433 = arith.constant 0 : index
    %c0_434 = arith.constant 0 : index
    %1384 = vector.load %arg11[%c10_432, %c0_433, %c0_434] : memref<14x8x9xf32, #tpu.memory_space<vmem>>, vector<1x8x9xf32>
    %1385 = vector.shape_cast %1384 : vector<1x8x9xf32> to vector<8x9xf32>
    %1386 = vector.extract_strided_slice %1385 {offsets = [0, 4], sizes = [8, 1], strides = [1, 1]} : vector<8x9xf32> to vector<8x1xf32>
    %1387 = vector.broadcast %1386 : vector<8x1xf32> to vector<8x256xf32>
    %1388 = arith.mulf %1383, %1387 : vector<8x256xf32>
    %c17_i32_435 = arith.constant 17 : i32
    %1389 = tpu.dynamic_rotate %1383 by %c17_i32_435 dim 1 : vector<8x256xf32>, i32 -> vector<8x256xf32>
    %1390 = arith.mulf %1389, %19 : vector<8x256xf32>
    %1391 = vector.extract_strided_slice %1385 {offsets = [0, 0], sizes = [8, 1], strides = [1, 1]} : vector<8x9xf32> to vector<8x1xf32>
    %1392 = vector.broadcast %1391 : vector<8x1xf32> to vector<8x256xf32>
    %1393 = arith.mulf %1390, %1392 : vector<8x256xf32>
    %1394 = arith.addf %1388, %1393 : vector<8x256xf32>
    %c16_i32_436 = arith.constant 16 : i32
    %1395 = tpu.dynamic_rotate %1383 by %c16_i32_436 dim 1 : vector<8x256xf32>, i32 -> vector<8x256xf32>
    %1396 = arith.mulf %1395, %21 : vector<8x256xf32>
    %1397 = vector.extract_strided_slice %1385 {offsets = [0, 1], sizes = [8, 1], strides = [1, 1]} : vector<8x9xf32> to vector<8x1xf32>
    %1398 = vector.broadcast %1397 : vector<8x1xf32> to vector<8x256xf32>
    %1399 = arith.mulf %1396, %1398 : vector<8x256xf32>
    %1400 = arith.addf %1394, %1399 : vector<8x256xf32>
    %c15_i32_437 = arith.constant 15 : i32
    %1401 = tpu.dynamic_rotate %1383 by %c15_i32_437 dim 1 : vector<8x256xf32>, i32 -> vector<8x256xf32>
    %1402 = arith.mulf %1401, %23 : vector<8x256xf32>
    %1403 = vector.extract_strided_slice %1385 {offsets = [0, 2], sizes = [8, 1], strides = [1, 1]} : vector<8x9xf32> to vector<8x1xf32>
    %1404 = vector.broadcast %1403 : vector<8x1xf32> to vector<8x256xf32>
    %1405 = arith.mulf %1402, %1404 : vector<8x256xf32>
    %1406 = arith.addf %1400, %1405 : vector<8x256xf32>
    %c1_i32_438 = arith.constant 1 : i32
    %1407 = tpu.dynamic_rotate %1383 by %c1_i32_438 dim 1 : vector<8x256xf32>, i32 -> vector<8x256xf32>
    %1408 = arith.mulf %1407, %25 : vector<8x256xf32>
    %1409 = vector.extract_strided_slice %1385 {offsets = [0, 3], sizes = [8, 1], strides = [1, 1]} : vector<8x9xf32> to vector<8x1xf32>
    %1410 = vector.broadcast %1409 : vector<8x1xf32> to vector<8x256xf32>
    %1411 = arith.mulf %1408, %1410 : vector<8x256xf32>
    %1412 = arith.addf %1406, %1411 : vector<8x256xf32>
    %c255_i32_439 = arith.constant 255 : i32
    %1413 = tpu.dynamic_rotate %1383 by %c255_i32_439 dim 1 : vector<8x256xf32>, i32 -> vector<8x256xf32>
    %1414 = arith.mulf %1413, %27 : vector<8x256xf32>
    %1415 = vector.extract_strided_slice %1385 {offsets = [0, 5], sizes = [8, 1], strides = [1, 1]} : vector<8x9xf32> to vector<8x1xf32>
    %1416 = vector.broadcast %1415 : vector<8x1xf32> to vector<8x256xf32>
    %1417 = arith.mulf %1414, %1416 : vector<8x256xf32>
    %1418 = arith.addf %1412, %1417 : vector<8x256xf32>
    %c241_i32_440 = arith.constant 241 : i32
    %1419 = tpu.dynamic_rotate %1383 by %c241_i32_440 dim 1 : vector<8x256xf32>, i32 -> vector<8x256xf32>
    %1420 = arith.mulf %1419, %29 : vector<8x256xf32>
    %1421 = vector.extract_strided_slice %1385 {offsets = [0, 6], sizes = [8, 1], strides = [1, 1]} : vector<8x9xf32> to vector<8x1xf32>
    %1422 = vector.broadcast %1421 : vector<8x1xf32> to vector<8x256xf32>
    %1423 = arith.mulf %1420, %1422 : vector<8x256xf32>
    %1424 = arith.addf %1418, %1423 : vector<8x256xf32>
    %c240_i32_441 = arith.constant 240 : i32
    %1425 = tpu.dynamic_rotate %1383 by %c240_i32_441 dim 1 : vector<8x256xf32>, i32 -> vector<8x256xf32>
    %1426 = arith.mulf %1425, %31 : vector<8x256xf32>
    %1427 = vector.extract_strided_slice %1385 {offsets = [0, 7], sizes = [8, 1], strides = [1, 1]} : vector<8x9xf32> to vector<8x1xf32>
    %1428 = vector.broadcast %1427 : vector<8x1xf32> to vector<8x256xf32>
    %1429 = arith.mulf %1426, %1428 : vector<8x256xf32>
    %1430 = arith.addf %1424, %1429 : vector<8x256xf32>
    %c239_i32_442 = arith.constant 239 : i32
    %1431 = tpu.dynamic_rotate %1383 by %c239_i32_442 dim 1 : vector<8x256xf32>, i32 -> vector<8x256xf32>
    %1432 = arith.mulf %1431, %33 : vector<8x256xf32>
    %1433 = vector.extract_strided_slice %1385 {offsets = [0, 8], sizes = [8, 1], strides = [1, 1]} : vector<8x9xf32> to vector<8x1xf32>
    %1434 = vector.broadcast %1433 : vector<8x1xf32> to vector<8x256xf32>
    %1435 = arith.mulf %1432, %1434 : vector<8x256xf32>
    %1436 = arith.addf %1430, %1435 : vector<8x256xf32>
    %c10_443 = arith.constant 10 : index
    %c0_444 = arith.constant 0 : index
    %c0_445 = arith.constant 0 : index
    %1437 = vector.load %arg12[%c10_443, %c0_444, %c0_445] : memref<14x8x8xf32, #tpu.memory_space<vmem>>, vector<1x8x8xf32>
    %1438 = vector.shape_cast %1437 : vector<1x8x8xf32> to vector<8x8xf32>
    %c10_446 = arith.constant 10 : index
    %c0_447 = arith.constant 0 : index
    %c0_448 = arith.constant 0 : index
    %1439 = vector.load %arg13[%c10_446, %c0_447, %c0_448] : memref<14x8x1xf32, #tpu.memory_space<vmem>>, vector<1x8x1xf32>
    %1440 = vector.shape_cast %1439 : vector<1x8x1xf32> to vector<8x1xf32>
    %cst_449 = arith.constant dense<0.000000e+00> : vector<8x256xf32>
    %1441 = tpu.matmul %1438, %1436, %cst_449 {dimension_numbers = #tpu.dot_dimension_numbers<[1], [0], [0], [1], [0, 0, 1, 1], [], []>} : vector<8x8xf32>, vector<8x256xf32>, vector<8x256xf32> -> vector<8x256xf32>
    %1442 = vector.broadcast %1440 : vector<8x1xf32> to vector<8x256xf32>
    %1443 = arith.addf %1441, %1442 : vector<8x256xf32>
    %c10_450 = arith.constant 10 : index
    %1444 = memref.load %arg1[%c10_450] : memref<14xf32, #tpu.memory_space<smem>>
    %1445 = vector.broadcast %1444 : f32 to vector<8x256xf32>
    %1446 = arith.mulf %1445, %17 : vector<8x256xf32>
    %1447 = arith.addf %1446, %1443 : vector<8x256xf32>
    %1448 = arith.addf %1319, %1447 : vector<8x256xf32>
    %cst_451 = arith.constant 0.000000e+00 : f32
    %1449 = vector.broadcast %cst_451 : f32 to vector<8x256xf32>
    %1450 = arith.maximumf %290, %1449 : vector<8x256xf32>
    %c11 = arith.constant 11 : index
    %c0_452 = arith.constant 0 : index
    %c0_453 = arith.constant 0 : index
    %1451 = vector.load %arg8[%c11, %c0_452, %c0_453] : memref<14x8x9xf32, #tpu.memory_space<vmem>>, vector<1x8x9xf32>
    %1452 = vector.shape_cast %1451 : vector<1x8x9xf32> to vector<8x9xf32>
    %1453 = vector.extract_strided_slice %1452 {offsets = [0, 4], sizes = [8, 1], strides = [1, 1]} : vector<8x9xf32> to vector<8x1xf32>
    %1454 = vector.broadcast %1453 : vector<8x1xf32> to vector<8x256xf32>
    %1455 = arith.mulf %1450, %1454 : vector<8x256xf32>
    %c17_i32_454 = arith.constant 17 : i32
    %1456 = tpu.dynamic_rotate %1450 by %c17_i32_454 dim 1 : vector<8x256xf32>, i32 -> vector<8x256xf32>
    %1457 = arith.mulf %1456, %19 : vector<8x256xf32>
    %1458 = vector.extract_strided_slice %1452 {offsets = [0, 0], sizes = [8, 1], strides = [1, 1]} : vector<8x9xf32> to vector<8x1xf32>
    %1459 = vector.broadcast %1458 : vector<8x1xf32> to vector<8x256xf32>
    %1460 = arith.mulf %1457, %1459 : vector<8x256xf32>
    %1461 = arith.addf %1455, %1460 : vector<8x256xf32>
    %c16_i32_455 = arith.constant 16 : i32
    %1462 = tpu.dynamic_rotate %1450 by %c16_i32_455 dim 1 : vector<8x256xf32>, i32 -> vector<8x256xf32>
    %1463 = arith.mulf %1462, %21 : vector<8x256xf32>
    %1464 = vector.extract_strided_slice %1452 {offsets = [0, 1], sizes = [8, 1], strides = [1, 1]} : vector<8x9xf32> to vector<8x1xf32>
    %1465 = vector.broadcast %1464 : vector<8x1xf32> to vector<8x256xf32>
    %1466 = arith.mulf %1463, %1465 : vector<8x256xf32>
    %1467 = arith.addf %1461, %1466 : vector<8x256xf32>
    %c15_i32_456 = arith.constant 15 : i32
    %1468 = tpu.dynamic_rotate %1450 by %c15_i32_456 dim 1 : vector<8x256xf32>, i32 -> vector<8x256xf32>
    %1469 = arith.mulf %1468, %23 : vector<8x256xf32>
    %1470 = vector.extract_strided_slice %1452 {offsets = [0, 2], sizes = [8, 1], strides = [1, 1]} : vector<8x9xf32> to vector<8x1xf32>
    %1471 = vector.broadcast %1470 : vector<8x1xf32> to vector<8x256xf32>
    %1472 = arith.mulf %1469, %1471 : vector<8x256xf32>
    %1473 = arith.addf %1467, %1472 : vector<8x256xf32>
    %c1_i32_457 = arith.constant 1 : i32
    %1474 = tpu.dynamic_rotate %1450 by %c1_i32_457 dim 1 : vector<8x256xf32>, i32 -> vector<8x256xf32>
    %1475 = arith.mulf %1474, %25 : vector<8x256xf32>
    %1476 = vector.extract_strided_slice %1452 {offsets = [0, 3], sizes = [8, 1], strides = [1, 1]} : vector<8x9xf32> to vector<8x1xf32>
    %1477 = vector.broadcast %1476 : vector<8x1xf32> to vector<8x256xf32>
    %1478 = arith.mulf %1475, %1477 : vector<8x256xf32>
    %1479 = arith.addf %1473, %1478 : vector<8x256xf32>
    %c255_i32_458 = arith.constant 255 : i32
    %1480 = tpu.dynamic_rotate %1450 by %c255_i32_458 dim 1 : vector<8x256xf32>, i32 -> vector<8x256xf32>
    %1481 = arith.mulf %1480, %27 : vector<8x256xf32>
    %1482 = vector.extract_strided_slice %1452 {offsets = [0, 5], sizes = [8, 1], strides = [1, 1]} : vector<8x9xf32> to vector<8x1xf32>
    %1483 = vector.broadcast %1482 : vector<8x1xf32> to vector<8x256xf32>
    %1484 = arith.mulf %1481, %1483 : vector<8x256xf32>
    %1485 = arith.addf %1479, %1484 : vector<8x256xf32>
    %c241_i32_459 = arith.constant 241 : i32
    %1486 = tpu.dynamic_rotate %1450 by %c241_i32_459 dim 1 : vector<8x256xf32>, i32 -> vector<8x256xf32>
    %1487 = arith.mulf %1486, %29 : vector<8x256xf32>
    %1488 = vector.extract_strided_slice %1452 {offsets = [0, 6], sizes = [8, 1], strides = [1, 1]} : vector<8x9xf32> to vector<8x1xf32>
    %1489 = vector.broadcast %1488 : vector<8x1xf32> to vector<8x256xf32>
    %1490 = arith.mulf %1487, %1489 : vector<8x256xf32>
    %1491 = arith.addf %1485, %1490 : vector<8x256xf32>
    %c240_i32_460 = arith.constant 240 : i32
    %1492 = tpu.dynamic_rotate %1450 by %c240_i32_460 dim 1 : vector<8x256xf32>, i32 -> vector<8x256xf32>
    %1493 = arith.mulf %1492, %31 : vector<8x256xf32>
    %1494 = vector.extract_strided_slice %1452 {offsets = [0, 7], sizes = [8, 1], strides = [1, 1]} : vector<8x9xf32> to vector<8x1xf32>
    %1495 = vector.broadcast %1494 : vector<8x1xf32> to vector<8x256xf32>
    %1496 = arith.mulf %1493, %1495 : vector<8x256xf32>
    %1497 = arith.addf %1491, %1496 : vector<8x256xf32>
    %c239_i32_461 = arith.constant 239 : i32
    %1498 = tpu.dynamic_rotate %1450 by %c239_i32_461 dim 1 : vector<8x256xf32>, i32 -> vector<8x256xf32>
    %1499 = arith.mulf %1498, %33 : vector<8x256xf32>
    %1500 = vector.extract_strided_slice %1452 {offsets = [0, 8], sizes = [8, 1], strides = [1, 1]} : vector<8x9xf32> to vector<8x1xf32>
    %1501 = vector.broadcast %1500 : vector<8x1xf32> to vector<8x256xf32>
    %1502 = arith.mulf %1499, %1501 : vector<8x256xf32>
    %1503 = arith.addf %1497, %1502 : vector<8x256xf32>
    %c11_462 = arith.constant 11 : index
    %c0_463 = arith.constant 0 : index
    %c0_464 = arith.constant 0 : index
    %1504 = vector.load %arg9[%c11_462, %c0_463, %c0_464] : memref<14x8x8xf32, #tpu.memory_space<vmem>>, vector<1x8x8xf32>
    %1505 = vector.shape_cast %1504 : vector<1x8x8xf32> to vector<8x8xf32>
    %c11_465 = arith.constant 11 : index
    %c0_466 = arith.constant 0 : index
    %c0_467 = arith.constant 0 : index
    %1506 = vector.load %arg10[%c11_465, %c0_466, %c0_467] : memref<14x8x1xf32, #tpu.memory_space<vmem>>, vector<1x8x1xf32>
    %1507 = vector.shape_cast %1506 : vector<1x8x1xf32> to vector<8x1xf32>
    %cst_468 = arith.constant dense<0.000000e+00> : vector<8x256xf32>
    %1508 = tpu.matmul %1505, %1503, %cst_468 {dimension_numbers = #tpu.dot_dimension_numbers<[1], [0], [0], [1], [0, 0, 1, 1], [], []>} : vector<8x8xf32>, vector<8x256xf32>, vector<8x256xf32> -> vector<8x256xf32>
    %1509 = vector.broadcast %1507 : vector<8x1xf32> to vector<8x256xf32>
    %1510 = arith.addf %1508, %1509 : vector<8x256xf32>
    %cst_469 = arith.constant 0.000000e+00 : f32
    %1511 = vector.broadcast %cst_469 : f32 to vector<8x256xf32>
    %1512 = arith.maximumf %1510, %1511 : vector<8x256xf32>
    %c11_470 = arith.constant 11 : index
    %c0_471 = arith.constant 0 : index
    %c0_472 = arith.constant 0 : index
    %1513 = vector.load %arg11[%c11_470, %c0_471, %c0_472] : memref<14x8x9xf32, #tpu.memory_space<vmem>>, vector<1x8x9xf32>
    %1514 = vector.shape_cast %1513 : vector<1x8x9xf32> to vector<8x9xf32>
    %1515 = vector.extract_strided_slice %1514 {offsets = [0, 4], sizes = [8, 1], strides = [1, 1]} : vector<8x9xf32> to vector<8x1xf32>
    %1516 = vector.broadcast %1515 : vector<8x1xf32> to vector<8x256xf32>
    %1517 = arith.mulf %1512, %1516 : vector<8x256xf32>
    %c17_i32_473 = arith.constant 17 : i32
    %1518 = tpu.dynamic_rotate %1512 by %c17_i32_473 dim 1 : vector<8x256xf32>, i32 -> vector<8x256xf32>
    %1519 = arith.mulf %1518, %19 : vector<8x256xf32>
    %1520 = vector.extract_strided_slice %1514 {offsets = [0, 0], sizes = [8, 1], strides = [1, 1]} : vector<8x9xf32> to vector<8x1xf32>
    %1521 = vector.broadcast %1520 : vector<8x1xf32> to vector<8x256xf32>
    %1522 = arith.mulf %1519, %1521 : vector<8x256xf32>
    %1523 = arith.addf %1517, %1522 : vector<8x256xf32>
    %c16_i32_474 = arith.constant 16 : i32
    %1524 = tpu.dynamic_rotate %1512 by %c16_i32_474 dim 1 : vector<8x256xf32>, i32 -> vector<8x256xf32>
    %1525 = arith.mulf %1524, %21 : vector<8x256xf32>
    %1526 = vector.extract_strided_slice %1514 {offsets = [0, 1], sizes = [8, 1], strides = [1, 1]} : vector<8x9xf32> to vector<8x1xf32>
    %1527 = vector.broadcast %1526 : vector<8x1xf32> to vector<8x256xf32>
    %1528 = arith.mulf %1525, %1527 : vector<8x256xf32>
    %1529 = arith.addf %1523, %1528 : vector<8x256xf32>
    %c15_i32_475 = arith.constant 15 : i32
    %1530 = tpu.dynamic_rotate %1512 by %c15_i32_475 dim 1 : vector<8x256xf32>, i32 -> vector<8x256xf32>
    %1531 = arith.mulf %1530, %23 : vector<8x256xf32>
    %1532 = vector.extract_strided_slice %1514 {offsets = [0, 2], sizes = [8, 1], strides = [1, 1]} : vector<8x9xf32> to vector<8x1xf32>
    %1533 = vector.broadcast %1532 : vector<8x1xf32> to vector<8x256xf32>
    %1534 = arith.mulf %1531, %1533 : vector<8x256xf32>
    %1535 = arith.addf %1529, %1534 : vector<8x256xf32>
    %c1_i32_476 = arith.constant 1 : i32
    %1536 = tpu.dynamic_rotate %1512 by %c1_i32_476 dim 1 : vector<8x256xf32>, i32 -> vector<8x256xf32>
    %1537 = arith.mulf %1536, %25 : vector<8x256xf32>
    %1538 = vector.extract_strided_slice %1514 {offsets = [0, 3], sizes = [8, 1], strides = [1, 1]} : vector<8x9xf32> to vector<8x1xf32>
    %1539 = vector.broadcast %1538 : vector<8x1xf32> to vector<8x256xf32>
    %1540 = arith.mulf %1537, %1539 : vector<8x256xf32>
    %1541 = arith.addf %1535, %1540 : vector<8x256xf32>
    %c255_i32_477 = arith.constant 255 : i32
    %1542 = tpu.dynamic_rotate %1512 by %c255_i32_477 dim 1 : vector<8x256xf32>, i32 -> vector<8x256xf32>
    %1543 = arith.mulf %1542, %27 : vector<8x256xf32>
    %1544 = vector.extract_strided_slice %1514 {offsets = [0, 5], sizes = [8, 1], strides = [1, 1]} : vector<8x9xf32> to vector<8x1xf32>
    %1545 = vector.broadcast %1544 : vector<8x1xf32> to vector<8x256xf32>
    %1546 = arith.mulf %1543, %1545 : vector<8x256xf32>
    %1547 = arith.addf %1541, %1546 : vector<8x256xf32>
    %c241_i32_478 = arith.constant 241 : i32
    %1548 = tpu.dynamic_rotate %1512 by %c241_i32_478 dim 1 : vector<8x256xf32>, i32 -> vector<8x256xf32>
    %1549 = arith.mulf %1548, %29 : vector<8x256xf32>
    %1550 = vector.extract_strided_slice %1514 {offsets = [0, 6], sizes = [8, 1], strides = [1, 1]} : vector<8x9xf32> to vector<8x1xf32>
    %1551 = vector.broadcast %1550 : vector<8x1xf32> to vector<8x256xf32>
    %1552 = arith.mulf %1549, %1551 : vector<8x256xf32>
    %1553 = arith.addf %1547, %1552 : vector<8x256xf32>
    %c240_i32_479 = arith.constant 240 : i32
    %1554 = tpu.dynamic_rotate %1512 by %c240_i32_479 dim 1 : vector<8x256xf32>, i32 -> vector<8x256xf32>
    %1555 = arith.mulf %1554, %31 : vector<8x256xf32>
    %1556 = vector.extract_strided_slice %1514 {offsets = [0, 7], sizes = [8, 1], strides = [1, 1]} : vector<8x9xf32> to vector<8x1xf32>
    %1557 = vector.broadcast %1556 : vector<8x1xf32> to vector<8x256xf32>
    %1558 = arith.mulf %1555, %1557 : vector<8x256xf32>
    %1559 = arith.addf %1553, %1558 : vector<8x256xf32>
    %c239_i32_480 = arith.constant 239 : i32
    %1560 = tpu.dynamic_rotate %1512 by %c239_i32_480 dim 1 : vector<8x256xf32>, i32 -> vector<8x256xf32>
    %1561 = arith.mulf %1560, %33 : vector<8x256xf32>
    %1562 = vector.extract_strided_slice %1514 {offsets = [0, 8], sizes = [8, 1], strides = [1, 1]} : vector<8x9xf32> to vector<8x1xf32>
    %1563 = vector.broadcast %1562 : vector<8x1xf32> to vector<8x256xf32>
    %1564 = arith.mulf %1561, %1563 : vector<8x256xf32>
    %1565 = arith.addf %1559, %1564 : vector<8x256xf32>
    %c11_481 = arith.constant 11 : index
    %c0_482 = arith.constant 0 : index
    %c0_483 = arith.constant 0 : index
    %1566 = vector.load %arg12[%c11_481, %c0_482, %c0_483] : memref<14x8x8xf32, #tpu.memory_space<vmem>>, vector<1x8x8xf32>
    %1567 = vector.shape_cast %1566 : vector<1x8x8xf32> to vector<8x8xf32>
    %c11_484 = arith.constant 11 : index
    %c0_485 = arith.constant 0 : index
    %c0_486 = arith.constant 0 : index
    %1568 = vector.load %arg13[%c11_484, %c0_485, %c0_486] : memref<14x8x1xf32, #tpu.memory_space<vmem>>, vector<1x8x1xf32>
    %1569 = vector.shape_cast %1568 : vector<1x8x1xf32> to vector<8x1xf32>
    %cst_487 = arith.constant dense<0.000000e+00> : vector<8x256xf32>
    %1570 = tpu.matmul %1567, %1565, %cst_487 {dimension_numbers = #tpu.dot_dimension_numbers<[1], [0], [0], [1], [0, 0, 1, 1], [], []>} : vector<8x8xf32>, vector<8x256xf32>, vector<8x256xf32> -> vector<8x256xf32>
    %1571 = vector.broadcast %1569 : vector<8x1xf32> to vector<8x256xf32>
    %1572 = arith.addf %1570, %1571 : vector<8x256xf32>
    %c11_488 = arith.constant 11 : index
    %1573 = memref.load %arg1[%c11_488] : memref<14xf32, #tpu.memory_space<smem>>
    %1574 = vector.broadcast %1573 : f32 to vector<8x256xf32>
    %1575 = arith.mulf %1574, %290 : vector<8x256xf32>
    %1576 = arith.addf %1575, %1572 : vector<8x256xf32>
    %1577 = arith.addf %1448, %1576 : vector<8x256xf32>
    %cst_489 = arith.constant 0.000000e+00 : f32
    %1578 = vector.broadcast %cst_489 : f32 to vector<8x256xf32>
    %1579 = arith.maximumf %676, %1578 : vector<8x256xf32>
    %c12 = arith.constant 12 : index
    %c0_490 = arith.constant 0 : index
    %c0_491 = arith.constant 0 : index
    %1580 = vector.load %arg8[%c12, %c0_490, %c0_491] : memref<14x8x9xf32, #tpu.memory_space<vmem>>, vector<1x8x9xf32>
    %1581 = vector.shape_cast %1580 : vector<1x8x9xf32> to vector<8x9xf32>
    %1582 = vector.extract_strided_slice %1581 {offsets = [0, 4], sizes = [8, 1], strides = [1, 1]} : vector<8x9xf32> to vector<8x1xf32>
    %1583 = vector.broadcast %1582 : vector<8x1xf32> to vector<8x256xf32>
    %1584 = arith.mulf %1579, %1583 : vector<8x256xf32>
    %c17_i32_492 = arith.constant 17 : i32
    %1585 = tpu.dynamic_rotate %1579 by %c17_i32_492 dim 1 : vector<8x256xf32>, i32 -> vector<8x256xf32>
    %1586 = arith.mulf %1585, %19 : vector<8x256xf32>
    %1587 = vector.extract_strided_slice %1581 {offsets = [0, 0], sizes = [8, 1], strides = [1, 1]} : vector<8x9xf32> to vector<8x1xf32>
    %1588 = vector.broadcast %1587 : vector<8x1xf32> to vector<8x256xf32>
    %1589 = arith.mulf %1586, %1588 : vector<8x256xf32>
    %1590 = arith.addf %1584, %1589 : vector<8x256xf32>
    %c16_i32_493 = arith.constant 16 : i32
    %1591 = tpu.dynamic_rotate %1579 by %c16_i32_493 dim 1 : vector<8x256xf32>, i32 -> vector<8x256xf32>
    %1592 = arith.mulf %1591, %21 : vector<8x256xf32>
    %1593 = vector.extract_strided_slice %1581 {offsets = [0, 1], sizes = [8, 1], strides = [1, 1]} : vector<8x9xf32> to vector<8x1xf32>
    %1594 = vector.broadcast %1593 : vector<8x1xf32> to vector<8x256xf32>
    %1595 = arith.mulf %1592, %1594 : vector<8x256xf32>
    %1596 = arith.addf %1590, %1595 : vector<8x256xf32>
    %c15_i32_494 = arith.constant 15 : i32
    %1597 = tpu.dynamic_rotate %1579 by %c15_i32_494 dim 1 : vector<8x256xf32>, i32 -> vector<8x256xf32>
    %1598 = arith.mulf %1597, %23 : vector<8x256xf32>
    %1599 = vector.extract_strided_slice %1581 {offsets = [0, 2], sizes = [8, 1], strides = [1, 1]} : vector<8x9xf32> to vector<8x1xf32>
    %1600 = vector.broadcast %1599 : vector<8x1xf32> to vector<8x256xf32>
    %1601 = arith.mulf %1598, %1600 : vector<8x256xf32>
    %1602 = arith.addf %1596, %1601 : vector<8x256xf32>
    %c1_i32_495 = arith.constant 1 : i32
    %1603 = tpu.dynamic_rotate %1579 by %c1_i32_495 dim 1 : vector<8x256xf32>, i32 -> vector<8x256xf32>
    %1604 = arith.mulf %1603, %25 : vector<8x256xf32>
    %1605 = vector.extract_strided_slice %1581 {offsets = [0, 3], sizes = [8, 1], strides = [1, 1]} : vector<8x9xf32> to vector<8x1xf32>
    %1606 = vector.broadcast %1605 : vector<8x1xf32> to vector<8x256xf32>
    %1607 = arith.mulf %1604, %1606 : vector<8x256xf32>
    %1608 = arith.addf %1602, %1607 : vector<8x256xf32>
    %c255_i32_496 = arith.constant 255 : i32
    %1609 = tpu.dynamic_rotate %1579 by %c255_i32_496 dim 1 : vector<8x256xf32>, i32 -> vector<8x256xf32>
    %1610 = arith.mulf %1609, %27 : vector<8x256xf32>
    %1611 = vector.extract_strided_slice %1581 {offsets = [0, 5], sizes = [8, 1], strides = [1, 1]} : vector<8x9xf32> to vector<8x1xf32>
    %1612 = vector.broadcast %1611 : vector<8x1xf32> to vector<8x256xf32>
    %1613 = arith.mulf %1610, %1612 : vector<8x256xf32>
    %1614 = arith.addf %1608, %1613 : vector<8x256xf32>
    %c241_i32_497 = arith.constant 241 : i32
    %1615 = tpu.dynamic_rotate %1579 by %c241_i32_497 dim 1 : vector<8x256xf32>, i32 -> vector<8x256xf32>
    %1616 = arith.mulf %1615, %29 : vector<8x256xf32>
    %1617 = vector.extract_strided_slice %1581 {offsets = [0, 6], sizes = [8, 1], strides = [1, 1]} : vector<8x9xf32> to vector<8x1xf32>
    %1618 = vector.broadcast %1617 : vector<8x1xf32> to vector<8x256xf32>
    %1619 = arith.mulf %1616, %1618 : vector<8x256xf32>
    %1620 = arith.addf %1614, %1619 : vector<8x256xf32>
    %c240_i32_498 = arith.constant 240 : i32
    %1621 = tpu.dynamic_rotate %1579 by %c240_i32_498 dim 1 : vector<8x256xf32>, i32 -> vector<8x256xf32>
    %1622 = arith.mulf %1621, %31 : vector<8x256xf32>
    %1623 = vector.extract_strided_slice %1581 {offsets = [0, 7], sizes = [8, 1], strides = [1, 1]} : vector<8x9xf32> to vector<8x1xf32>
    %1624 = vector.broadcast %1623 : vector<8x1xf32> to vector<8x256xf32>
    %1625 = arith.mulf %1622, %1624 : vector<8x256xf32>
    %1626 = arith.addf %1620, %1625 : vector<8x256xf32>
    %c239_i32_499 = arith.constant 239 : i32
    %1627 = tpu.dynamic_rotate %1579 by %c239_i32_499 dim 1 : vector<8x256xf32>, i32 -> vector<8x256xf32>
    %1628 = arith.mulf %1627, %33 : vector<8x256xf32>
    %1629 = vector.extract_strided_slice %1581 {offsets = [0, 8], sizes = [8, 1], strides = [1, 1]} : vector<8x9xf32> to vector<8x1xf32>
    %1630 = vector.broadcast %1629 : vector<8x1xf32> to vector<8x256xf32>
    %1631 = arith.mulf %1628, %1630 : vector<8x256xf32>
    %1632 = arith.addf %1626, %1631 : vector<8x256xf32>
    %c12_500 = arith.constant 12 : index
    %c0_501 = arith.constant 0 : index
    %c0_502 = arith.constant 0 : index
    %1633 = vector.load %arg9[%c12_500, %c0_501, %c0_502] : memref<14x8x8xf32, #tpu.memory_space<vmem>>, vector<1x8x8xf32>
    %1634 = vector.shape_cast %1633 : vector<1x8x8xf32> to vector<8x8xf32>
    %c12_503 = arith.constant 12 : index
    %c0_504 = arith.constant 0 : index
    %c0_505 = arith.constant 0 : index
    %1635 = vector.load %arg10[%c12_503, %c0_504, %c0_505] : memref<14x8x1xf32, #tpu.memory_space<vmem>>, vector<1x8x1xf32>
    %1636 = vector.shape_cast %1635 : vector<1x8x1xf32> to vector<8x1xf32>
    %cst_506 = arith.constant dense<0.000000e+00> : vector<8x256xf32>
    %1637 = tpu.matmul %1634, %1632, %cst_506 {dimension_numbers = #tpu.dot_dimension_numbers<[1], [0], [0], [1], [0, 0, 1, 1], [], []>} : vector<8x8xf32>, vector<8x256xf32>, vector<8x256xf32> -> vector<8x256xf32>
    %1638 = vector.broadcast %1636 : vector<8x1xf32> to vector<8x256xf32>
    %1639 = arith.addf %1637, %1638 : vector<8x256xf32>
    %cst_507 = arith.constant 0.000000e+00 : f32
    %1640 = vector.broadcast %cst_507 : f32 to vector<8x256xf32>
    %1641 = arith.maximumf %1639, %1640 : vector<8x256xf32>
    %c12_508 = arith.constant 12 : index
    %c0_509 = arith.constant 0 : index
    %c0_510 = arith.constant 0 : index
    %1642 = vector.load %arg11[%c12_508, %c0_509, %c0_510] : memref<14x8x9xf32, #tpu.memory_space<vmem>>, vector<1x8x9xf32>
    %1643 = vector.shape_cast %1642 : vector<1x8x9xf32> to vector<8x9xf32>
    %1644 = vector.extract_strided_slice %1643 {offsets = [0, 4], sizes = [8, 1], strides = [1, 1]} : vector<8x9xf32> to vector<8x1xf32>
    %1645 = vector.broadcast %1644 : vector<8x1xf32> to vector<8x256xf32>
    %1646 = arith.mulf %1641, %1645 : vector<8x256xf32>
    %c17_i32_511 = arith.constant 17 : i32
    %1647 = tpu.dynamic_rotate %1641 by %c17_i32_511 dim 1 : vector<8x256xf32>, i32 -> vector<8x256xf32>
    %1648 = arith.mulf %1647, %19 : vector<8x256xf32>
    %1649 = vector.extract_strided_slice %1643 {offsets = [0, 0], sizes = [8, 1], strides = [1, 1]} : vector<8x9xf32> to vector<8x1xf32>
    %1650 = vector.broadcast %1649 : vector<8x1xf32> to vector<8x256xf32>
    %1651 = arith.mulf %1648, %1650 : vector<8x256xf32>
    %1652 = arith.addf %1646, %1651 : vector<8x256xf32>
    %c16_i32_512 = arith.constant 16 : i32
    %1653 = tpu.dynamic_rotate %1641 by %c16_i32_512 dim 1 : vector<8x256xf32>, i32 -> vector<8x256xf32>
    %1654 = arith.mulf %1653, %21 : vector<8x256xf32>
    %1655 = vector.extract_strided_slice %1643 {offsets = [0, 1], sizes = [8, 1], strides = [1, 1]} : vector<8x9xf32> to vector<8x1xf32>
    %1656 = vector.broadcast %1655 : vector<8x1xf32> to vector<8x256xf32>
    %1657 = arith.mulf %1654, %1656 : vector<8x256xf32>
    %1658 = arith.addf %1652, %1657 : vector<8x256xf32>
    %c15_i32_513 = arith.constant 15 : i32
    %1659 = tpu.dynamic_rotate %1641 by %c15_i32_513 dim 1 : vector<8x256xf32>, i32 -> vector<8x256xf32>
    %1660 = arith.mulf %1659, %23 : vector<8x256xf32>
    %1661 = vector.extract_strided_slice %1643 {offsets = [0, 2], sizes = [8, 1], strides = [1, 1]} : vector<8x9xf32> to vector<8x1xf32>
    %1662 = vector.broadcast %1661 : vector<8x1xf32> to vector<8x256xf32>
    %1663 = arith.mulf %1660, %1662 : vector<8x256xf32>
    %1664 = arith.addf %1658, %1663 : vector<8x256xf32>
    %c1_i32_514 = arith.constant 1 : i32
    %1665 = tpu.dynamic_rotate %1641 by %c1_i32_514 dim 1 : vector<8x256xf32>, i32 -> vector<8x256xf32>
    %1666 = arith.mulf %1665, %25 : vector<8x256xf32>
    %1667 = vector.extract_strided_slice %1643 {offsets = [0, 3], sizes = [8, 1], strides = [1, 1]} : vector<8x9xf32> to vector<8x1xf32>
    %1668 = vector.broadcast %1667 : vector<8x1xf32> to vector<8x256xf32>
    %1669 = arith.mulf %1666, %1668 : vector<8x256xf32>
    %1670 = arith.addf %1664, %1669 : vector<8x256xf32>
    %c255_i32_515 = arith.constant 255 : i32
    %1671 = tpu.dynamic_rotate %1641 by %c255_i32_515 dim 1 : vector<8x256xf32>, i32 -> vector<8x256xf32>
    %1672 = arith.mulf %1671, %27 : vector<8x256xf32>
    %1673 = vector.extract_strided_slice %1643 {offsets = [0, 5], sizes = [8, 1], strides = [1, 1]} : vector<8x9xf32> to vector<8x1xf32>
    %1674 = vector.broadcast %1673 : vector<8x1xf32> to vector<8x256xf32>
    %1675 = arith.mulf %1672, %1674 : vector<8x256xf32>
    %1676 = arith.addf %1670, %1675 : vector<8x256xf32>
    %c241_i32_516 = arith.constant 241 : i32
    %1677 = tpu.dynamic_rotate %1641 by %c241_i32_516 dim 1 : vector<8x256xf32>, i32 -> vector<8x256xf32>
    %1678 = arith.mulf %1677, %29 : vector<8x256xf32>
    %1679 = vector.extract_strided_slice %1643 {offsets = [0, 6], sizes = [8, 1], strides = [1, 1]} : vector<8x9xf32> to vector<8x1xf32>
    %1680 = vector.broadcast %1679 : vector<8x1xf32> to vector<8x256xf32>
    %1681 = arith.mulf %1678, %1680 : vector<8x256xf32>
    %1682 = arith.addf %1676, %1681 : vector<8x256xf32>
    %c240_i32_517 = arith.constant 240 : i32
    %1683 = tpu.dynamic_rotate %1641 by %c240_i32_517 dim 1 : vector<8x256xf32>, i32 -> vector<8x256xf32>
    %1684 = arith.mulf %1683, %31 : vector<8x256xf32>
    %1685 = vector.extract_strided_slice %1643 {offsets = [0, 7], sizes = [8, 1], strides = [1, 1]} : vector<8x9xf32> to vector<8x1xf32>
    %1686 = vector.broadcast %1685 : vector<8x1xf32> to vector<8x256xf32>
    %1687 = arith.mulf %1684, %1686 : vector<8x256xf32>
    %1688 = arith.addf %1682, %1687 : vector<8x256xf32>
    %c239_i32_518 = arith.constant 239 : i32
    %1689 = tpu.dynamic_rotate %1641 by %c239_i32_518 dim 1 : vector<8x256xf32>, i32 -> vector<8x256xf32>
    %1690 = arith.mulf %1689, %33 : vector<8x256xf32>
    %1691 = vector.extract_strided_slice %1643 {offsets = [0, 8], sizes = [8, 1], strides = [1, 1]} : vector<8x9xf32> to vector<8x1xf32>
    %1692 = vector.broadcast %1691 : vector<8x1xf32> to vector<8x256xf32>
    %1693 = arith.mulf %1690, %1692 : vector<8x256xf32>
    %1694 = arith.addf %1688, %1693 : vector<8x256xf32>
    %c12_519 = arith.constant 12 : index
    %c0_520 = arith.constant 0 : index
    %c0_521 = arith.constant 0 : index
    %1695 = vector.load %arg12[%c12_519, %c0_520, %c0_521] : memref<14x8x8xf32, #tpu.memory_space<vmem>>, vector<1x8x8xf32>
    %1696 = vector.shape_cast %1695 : vector<1x8x8xf32> to vector<8x8xf32>
    %c12_522 = arith.constant 12 : index
    %c0_523 = arith.constant 0 : index
    %c0_524 = arith.constant 0 : index
    %1697 = vector.load %arg13[%c12_522, %c0_523, %c0_524] : memref<14x8x1xf32, #tpu.memory_space<vmem>>, vector<1x8x1xf32>
    %1698 = vector.shape_cast %1697 : vector<1x8x1xf32> to vector<8x1xf32>
    %cst_525 = arith.constant dense<0.000000e+00> : vector<8x256xf32>
    %1699 = tpu.matmul %1696, %1694, %cst_525 {dimension_numbers = #tpu.dot_dimension_numbers<[1], [0], [0], [1], [0, 0, 1, 1], [], []>} : vector<8x8xf32>, vector<8x256xf32>, vector<8x256xf32> -> vector<8x256xf32>
    %1700 = vector.broadcast %1698 : vector<8x1xf32> to vector<8x256xf32>
    %1701 = arith.addf %1699, %1700 : vector<8x256xf32>
    %c12_526 = arith.constant 12 : index
    %1702 = memref.load %arg1[%c12_526] : memref<14xf32, #tpu.memory_space<smem>>
    %1703 = vector.broadcast %1702 : f32 to vector<8x256xf32>
    %1704 = arith.mulf %1703, %676 : vector<8x256xf32>
    %1705 = arith.addf %1704, %1701 : vector<8x256xf32>
    %1706 = arith.addf %1577, %1705 : vector<8x256xf32>
    %cst_527 = arith.constant 0.000000e+00 : f32
    %1707 = vector.broadcast %cst_527 : f32 to vector<8x256xf32>
    %1708 = arith.maximumf %1191, %1707 : vector<8x256xf32>
    %c13 = arith.constant 13 : index
    %c0_528 = arith.constant 0 : index
    %c0_529 = arith.constant 0 : index
    %1709 = vector.load %arg8[%c13, %c0_528, %c0_529] : memref<14x8x9xf32, #tpu.memory_space<vmem>>, vector<1x8x9xf32>
    %1710 = vector.shape_cast %1709 : vector<1x8x9xf32> to vector<8x9xf32>
    %1711 = vector.extract_strided_slice %1710 {offsets = [0, 4], sizes = [8, 1], strides = [1, 1]} : vector<8x9xf32> to vector<8x1xf32>
    %1712 = vector.broadcast %1711 : vector<8x1xf32> to vector<8x256xf32>
    %1713 = arith.mulf %1708, %1712 : vector<8x256xf32>
    %c17_i32_530 = arith.constant 17 : i32
    %1714 = tpu.dynamic_rotate %1708 by %c17_i32_530 dim 1 : vector<8x256xf32>, i32 -> vector<8x256xf32>
    %1715 = arith.mulf %1714, %19 : vector<8x256xf32>
    %1716 = vector.extract_strided_slice %1710 {offsets = [0, 0], sizes = [8, 1], strides = [1, 1]} : vector<8x9xf32> to vector<8x1xf32>
    %1717 = vector.broadcast %1716 : vector<8x1xf32> to vector<8x256xf32>
    %1718 = arith.mulf %1715, %1717 : vector<8x256xf32>
    %1719 = arith.addf %1713, %1718 : vector<8x256xf32>
    %c16_i32_531 = arith.constant 16 : i32
    %1720 = tpu.dynamic_rotate %1708 by %c16_i32_531 dim 1 : vector<8x256xf32>, i32 -> vector<8x256xf32>
    %1721 = arith.mulf %1720, %21 : vector<8x256xf32>
    %1722 = vector.extract_strided_slice %1710 {offsets = [0, 1], sizes = [8, 1], strides = [1, 1]} : vector<8x9xf32> to vector<8x1xf32>
    %1723 = vector.broadcast %1722 : vector<8x1xf32> to vector<8x256xf32>
    %1724 = arith.mulf %1721, %1723 : vector<8x256xf32>
    %1725 = arith.addf %1719, %1724 : vector<8x256xf32>
    %c15_i32_532 = arith.constant 15 : i32
    %1726 = tpu.dynamic_rotate %1708 by %c15_i32_532 dim 1 : vector<8x256xf32>, i32 -> vector<8x256xf32>
    %1727 = arith.mulf %1726, %23 : vector<8x256xf32>
    %1728 = vector.extract_strided_slice %1710 {offsets = [0, 2], sizes = [8, 1], strides = [1, 1]} : vector<8x9xf32> to vector<8x1xf32>
    %1729 = vector.broadcast %1728 : vector<8x1xf32> to vector<8x256xf32>
    %1730 = arith.mulf %1727, %1729 : vector<8x256xf32>
    %1731 = arith.addf %1725, %1730 : vector<8x256xf32>
    %c1_i32_533 = arith.constant 1 : i32
    %1732 = tpu.dynamic_rotate %1708 by %c1_i32_533 dim 1 : vector<8x256xf32>, i32 -> vector<8x256xf32>
    %1733 = arith.mulf %1732, %25 : vector<8x256xf32>
    %1734 = vector.extract_strided_slice %1710 {offsets = [0, 3], sizes = [8, 1], strides = [1, 1]} : vector<8x9xf32> to vector<8x1xf32>
    %1735 = vector.broadcast %1734 : vector<8x1xf32> to vector<8x256xf32>
    %1736 = arith.mulf %1733, %1735 : vector<8x256xf32>
    %1737 = arith.addf %1731, %1736 : vector<8x256xf32>
    %c255_i32_534 = arith.constant 255 : i32
    %1738 = tpu.dynamic_rotate %1708 by %c255_i32_534 dim 1 : vector<8x256xf32>, i32 -> vector<8x256xf32>
    %1739 = arith.mulf %1738, %27 : vector<8x256xf32>
    %1740 = vector.extract_strided_slice %1710 {offsets = [0, 5], sizes = [8, 1], strides = [1, 1]} : vector<8x9xf32> to vector<8x1xf32>
    %1741 = vector.broadcast %1740 : vector<8x1xf32> to vector<8x256xf32>
    %1742 = arith.mulf %1739, %1741 : vector<8x256xf32>
    %1743 = arith.addf %1737, %1742 : vector<8x256xf32>
    %c241_i32_535 = arith.constant 241 : i32
    %1744 = tpu.dynamic_rotate %1708 by %c241_i32_535 dim 1 : vector<8x256xf32>, i32 -> vector<8x256xf32>
    %1745 = arith.mulf %1744, %29 : vector<8x256xf32>
    %1746 = vector.extract_strided_slice %1710 {offsets = [0, 6], sizes = [8, 1], strides = [1, 1]} : vector<8x9xf32> to vector<8x1xf32>
    %1747 = vector.broadcast %1746 : vector<8x1xf32> to vector<8x256xf32>
    %1748 = arith.mulf %1745, %1747 : vector<8x256xf32>
    %1749 = arith.addf %1743, %1748 : vector<8x256xf32>
    %c240_i32_536 = arith.constant 240 : i32
    %1750 = tpu.dynamic_rotate %1708 by %c240_i32_536 dim 1 : vector<8x256xf32>, i32 -> vector<8x256xf32>
    %1751 = arith.mulf %1750, %31 : vector<8x256xf32>
    %1752 = vector.extract_strided_slice %1710 {offsets = [0, 7], sizes = [8, 1], strides = [1, 1]} : vector<8x9xf32> to vector<8x1xf32>
    %1753 = vector.broadcast %1752 : vector<8x1xf32> to vector<8x256xf32>
    %1754 = arith.mulf %1751, %1753 : vector<8x256xf32>
    %1755 = arith.addf %1749, %1754 : vector<8x256xf32>
    %c239_i32_537 = arith.constant 239 : i32
    %1756 = tpu.dynamic_rotate %1708 by %c239_i32_537 dim 1 : vector<8x256xf32>, i32 -> vector<8x256xf32>
    %1757 = arith.mulf %1756, %33 : vector<8x256xf32>
    %1758 = vector.extract_strided_slice %1710 {offsets = [0, 8], sizes = [8, 1], strides = [1, 1]} : vector<8x9xf32> to vector<8x1xf32>
    %1759 = vector.broadcast %1758 : vector<8x1xf32> to vector<8x256xf32>
    %1760 = arith.mulf %1757, %1759 : vector<8x256xf32>
    %1761 = arith.addf %1755, %1760 : vector<8x256xf32>
    %c13_538 = arith.constant 13 : index
    %c0_539 = arith.constant 0 : index
    %c0_540 = arith.constant 0 : index
    %1762 = vector.load %arg9[%c13_538, %c0_539, %c0_540] : memref<14x8x8xf32, #tpu.memory_space<vmem>>, vector<1x8x8xf32>
    %1763 = vector.shape_cast %1762 : vector<1x8x8xf32> to vector<8x8xf32>
    %c13_541 = arith.constant 13 : index
    %c0_542 = arith.constant 0 : index
    %c0_543 = arith.constant 0 : index
    %1764 = vector.load %arg10[%c13_541, %c0_542, %c0_543] : memref<14x8x1xf32, #tpu.memory_space<vmem>>, vector<1x8x1xf32>
    %1765 = vector.shape_cast %1764 : vector<1x8x1xf32> to vector<8x1xf32>
    %cst_544 = arith.constant dense<0.000000e+00> : vector<8x256xf32>
    %1766 = tpu.matmul %1763, %1761, %cst_544 {dimension_numbers = #tpu.dot_dimension_numbers<[1], [0], [0], [1], [0, 0, 1, 1], [], []>} : vector<8x8xf32>, vector<8x256xf32>, vector<8x256xf32> -> vector<8x256xf32>
    %1767 = vector.broadcast %1765 : vector<8x1xf32> to vector<8x256xf32>
    %1768 = arith.addf %1766, %1767 : vector<8x256xf32>
    %cst_545 = arith.constant 0.000000e+00 : f32
    %1769 = vector.broadcast %cst_545 : f32 to vector<8x256xf32>
    %1770 = arith.maximumf %1768, %1769 : vector<8x256xf32>
    %c13_546 = arith.constant 13 : index
    %c0_547 = arith.constant 0 : index
    %c0_548 = arith.constant 0 : index
    %1771 = vector.load %arg11[%c13_546, %c0_547, %c0_548] : memref<14x8x9xf32, #tpu.memory_space<vmem>>, vector<1x8x9xf32>
    %1772 = vector.shape_cast %1771 : vector<1x8x9xf32> to vector<8x9xf32>
    %1773 = vector.extract_strided_slice %1772 {offsets = [0, 4], sizes = [8, 1], strides = [1, 1]} : vector<8x9xf32> to vector<8x1xf32>
    %1774 = vector.broadcast %1773 : vector<8x1xf32> to vector<8x256xf32>
    %1775 = arith.mulf %1770, %1774 : vector<8x256xf32>
    %c17_i32_549 = arith.constant 17 : i32
    %1776 = tpu.dynamic_rotate %1770 by %c17_i32_549 dim 1 : vector<8x256xf32>, i32 -> vector<8x256xf32>
    %1777 = arith.mulf %1776, %19 : vector<8x256xf32>
    %1778 = vector.extract_strided_slice %1772 {offsets = [0, 0], sizes = [8, 1], strides = [1, 1]} : vector<8x9xf32> to vector<8x1xf32>
    %1779 = vector.broadcast %1778 : vector<8x1xf32> to vector<8x256xf32>
    %1780 = arith.mulf %1777, %1779 : vector<8x256xf32>
    %1781 = arith.addf %1775, %1780 : vector<8x256xf32>
    %c16_i32_550 = arith.constant 16 : i32
    %1782 = tpu.dynamic_rotate %1770 by %c16_i32_550 dim 1 : vector<8x256xf32>, i32 -> vector<8x256xf32>
    %1783 = arith.mulf %1782, %21 : vector<8x256xf32>
    %1784 = vector.extract_strided_slice %1772 {offsets = [0, 1], sizes = [8, 1], strides = [1, 1]} : vector<8x9xf32> to vector<8x1xf32>
    %1785 = vector.broadcast %1784 : vector<8x1xf32> to vector<8x256xf32>
    %1786 = arith.mulf %1783, %1785 : vector<8x256xf32>
    %1787 = arith.addf %1781, %1786 : vector<8x256xf32>
    %c15_i32_551 = arith.constant 15 : i32
    %1788 = tpu.dynamic_rotate %1770 by %c15_i32_551 dim 1 : vector<8x256xf32>, i32 -> vector<8x256xf32>
    %1789 = arith.mulf %1788, %23 : vector<8x256xf32>
    %1790 = vector.extract_strided_slice %1772 {offsets = [0, 2], sizes = [8, 1], strides = [1, 1]} : vector<8x9xf32> to vector<8x1xf32>
    %1791 = vector.broadcast %1790 : vector<8x1xf32> to vector<8x256xf32>
    %1792 = arith.mulf %1789, %1791 : vector<8x256xf32>
    %1793 = arith.addf %1787, %1792 : vector<8x256xf32>
    %c1_i32_552 = arith.constant 1 : i32
    %1794 = tpu.dynamic_rotate %1770 by %c1_i32_552 dim 1 : vector<8x256xf32>, i32 -> vector<8x256xf32>
    %1795 = arith.mulf %1794, %25 : vector<8x256xf32>
    %1796 = vector.extract_strided_slice %1772 {offsets = [0, 3], sizes = [8, 1], strides = [1, 1]} : vector<8x9xf32> to vector<8x1xf32>
    %1797 = vector.broadcast %1796 : vector<8x1xf32> to vector<8x256xf32>
    %1798 = arith.mulf %1795, %1797 : vector<8x256xf32>
    %1799 = arith.addf %1793, %1798 : vector<8x256xf32>
    %c255_i32_553 = arith.constant 255 : i32
    %1800 = tpu.dynamic_rotate %1770 by %c255_i32_553 dim 1 : vector<8x256xf32>, i32 -> vector<8x256xf32>
    %1801 = arith.mulf %1800, %27 : vector<8x256xf32>
    %1802 = vector.extract_strided_slice %1772 {offsets = [0, 5], sizes = [8, 1], strides = [1, 1]} : vector<8x9xf32> to vector<8x1xf32>
    %1803 = vector.broadcast %1802 : vector<8x1xf32> to vector<8x256xf32>
    %1804 = arith.mulf %1801, %1803 : vector<8x256xf32>
    %1805 = arith.addf %1799, %1804 : vector<8x256xf32>
    %c241_i32_554 = arith.constant 241 : i32
    %1806 = tpu.dynamic_rotate %1770 by %c241_i32_554 dim 1 : vector<8x256xf32>, i32 -> vector<8x256xf32>
    %1807 = arith.mulf %1806, %29 : vector<8x256xf32>
    %1808 = vector.extract_strided_slice %1772 {offsets = [0, 6], sizes = [8, 1], strides = [1, 1]} : vector<8x9xf32> to vector<8x1xf32>
    %1809 = vector.broadcast %1808 : vector<8x1xf32> to vector<8x256xf32>
    %1810 = arith.mulf %1807, %1809 : vector<8x256xf32>
    %1811 = arith.addf %1805, %1810 : vector<8x256xf32>
    %c240_i32_555 = arith.constant 240 : i32
    %1812 = tpu.dynamic_rotate %1770 by %c240_i32_555 dim 1 : vector<8x256xf32>, i32 -> vector<8x256xf32>
    %1813 = arith.mulf %1812, %31 : vector<8x256xf32>
    %1814 = vector.extract_strided_slice %1772 {offsets = [0, 7], sizes = [8, 1], strides = [1, 1]} : vector<8x9xf32> to vector<8x1xf32>
    %1815 = vector.broadcast %1814 : vector<8x1xf32> to vector<8x256xf32>
    %1816 = arith.mulf %1813, %1815 : vector<8x256xf32>
    %1817 = arith.addf %1811, %1816 : vector<8x256xf32>
    %c239_i32_556 = arith.constant 239 : i32
    %1818 = tpu.dynamic_rotate %1770 by %c239_i32_556 dim 1 : vector<8x256xf32>, i32 -> vector<8x256xf32>
    %1819 = arith.mulf %1818, %33 : vector<8x256xf32>
    %1820 = vector.extract_strided_slice %1772 {offsets = [0, 8], sizes = [8, 1], strides = [1, 1]} : vector<8x9xf32> to vector<8x1xf32>
    %1821 = vector.broadcast %1820 : vector<8x1xf32> to vector<8x256xf32>
    %1822 = arith.mulf %1819, %1821 : vector<8x256xf32>
    %1823 = arith.addf %1817, %1822 : vector<8x256xf32>
    %c13_557 = arith.constant 13 : index
    %c0_558 = arith.constant 0 : index
    %c0_559 = arith.constant 0 : index
    %1824 = vector.load %arg12[%c13_557, %c0_558, %c0_559] : memref<14x8x8xf32, #tpu.memory_space<vmem>>, vector<1x8x8xf32>
    %1825 = vector.shape_cast %1824 : vector<1x8x8xf32> to vector<8x8xf32>
    %c13_560 = arith.constant 13 : index
    %c0_561 = arith.constant 0 : index
    %c0_562 = arith.constant 0 : index
    %1826 = vector.load %arg13[%c13_560, %c0_561, %c0_562] : memref<14x8x1xf32, #tpu.memory_space<vmem>>, vector<1x8x1xf32>
    %1827 = vector.shape_cast %1826 : vector<1x8x1xf32> to vector<8x1xf32>
    %cst_563 = arith.constant dense<0.000000e+00> : vector<8x256xf32>
    %1828 = tpu.matmul %1825, %1823, %cst_563 {dimension_numbers = #tpu.dot_dimension_numbers<[1], [0], [0], [1], [0, 0, 1, 1], [], []>} : vector<8x8xf32>, vector<8x256xf32>, vector<8x256xf32> -> vector<8x256xf32>
    %1829 = vector.broadcast %1827 : vector<8x1xf32> to vector<8x256xf32>
    %1830 = arith.addf %1828, %1829 : vector<8x256xf32>
    %c13_564 = arith.constant 13 : index
    %1831 = memref.load %arg1[%c13_564] : memref<14xf32, #tpu.memory_space<smem>>
    %1832 = vector.broadcast %1831 : f32 to vector<8x256xf32>
    %1833 = arith.mulf %1832, %1191 : vector<8x256xf32>
    %1834 = arith.addf %1833, %1830 : vector<8x256xf32>
    %1835 = arith.addf %1706, %1834 : vector<8x256xf32>
    %c0_565 = arith.constant 0 : index
    %c0_566 = arith.constant 0 : index
    %c0_567 = arith.constant 0 : index
    %1836 = vector.load %arg15[%c0_565, %c0_566, %c0_567] : memref<1x32x256xf32, #tpu.memory_space<vmem>>, vector<1x8x256xf32>
    %1837 = vector.shape_cast %1836 : vector<1x8x256xf32> to vector<8x256xf32>
    %1838 = vector.shape_cast %290 : vector<8x256xf32> to vector<1x8x256xf32>
    tpu.vector_store %arg15[%c0_565, %c0_566, %c0_567], %1838 {strides = array<i32>} : memref<1x32x256xf32, #tpu.memory_space<vmem>>, vector<1x8x256xf32>,
    %c0_568 = arith.constant 0 : index
    %c8_569 = arith.constant 8 : index
    %c0_570 = arith.constant 0 : index
    %1839 = vector.load %arg15[%c0_568, %c8_569, %c0_570] : memref<1x32x256xf32, #tpu.memory_space<vmem>>, vector<1x8x256xf32>
    %1840 = vector.shape_cast %1839 : vector<1x8x256xf32> to vector<8x256xf32>
    %1841 = vector.shape_cast %676 : vector<8x256xf32> to vector<1x8x256xf32>
    tpu.vector_store %arg15[%c0_568, %c8_569, %c0_570], %1841 {strides = array<i32>} : memref<1x32x256xf32, #tpu.memory_space<vmem>>, vector<1x8x256xf32>,
    %c0_571 = arith.constant 0 : index
    %c16 = arith.constant 16 : index
    %c0_572 = arith.constant 0 : index
    %1842 = vector.load %arg15[%c0_571, %c16, %c0_572] : memref<1x32x256xf32, #tpu.memory_space<vmem>>, vector<1x8x256xf32>
    %1843 = vector.shape_cast %1842 : vector<1x8x256xf32> to vector<8x256xf32>
    %1844 = vector.shape_cast %1191 : vector<8x256xf32> to vector<1x8x256xf32>
    tpu.vector_store %arg15[%c0_571, %c16, %c0_572], %1844 {strides = array<i32>} : memref<1x32x256xf32, #tpu.memory_space<vmem>>, vector<1x8x256xf32>,
    %c0_573 = arith.constant 0 : index
    %c24 = arith.constant 24 : index
    %c0_574 = arith.constant 0 : index
    %1845 = vector.load %arg15[%c0_573, %c24, %c0_574] : memref<1x32x256xf32, #tpu.memory_space<vmem>>, vector<1x8x256xf32>
    %1846 = vector.shape_cast %1845 : vector<1x8x256xf32> to vector<8x256xf32>
    %1847 = vector.shape_cast %1835 : vector<8x256xf32> to vector<1x8x256xf32>
    tpu.vector_store %arg15[%c0_573, %c24, %c0_574], %1847 {strides = array<i32>} : memref<1x32x256xf32, #tpu.memory_space<vmem>>, vector<1x8x256xf32>,
    return
  }
  func.func @transform_0(%arg0: i32) -> i32 {
    %c0_i32 = arith.constant 0 : i32
    %c0_i32_0 = arith.constant 0 : i32
    return %c0_i32 : i32
  }
  func.func @transform_1(%arg0: i32) -> (i32, i32, i32) {
    %c0_i32 = arith.constant 0 : i32
    %c0_i32_0 = arith.constant 0 : i32
    %c0_i32_1 = arith.constant 0 : i32
    return %arg0, %c0_i32, %c0_i32_0 : i32, i32, i32
  }
  func.func @transform_2(%arg0: i32) -> (i32, i32, i32) {
    %c0_i32 = arith.constant 0 : i32
    %c0_i32_0 = arith.constant 0 : i32
    %c0_i32_1 = arith.constant 0 : i32
    return %arg0, %c0_i32, %c0_i32_0 : i32, i32, i32
  }
  func.func @transform_3(%arg0: i32) -> (i32, i32) {
    %c0_i32 = arith.constant 0 : i32
    %c0_i32_0 = arith.constant 0 : i32
    %c0_i32_1 = arith.constant 0 : i32
    return %c0_i32, %c0_i32_0 : i32, i32
  }
  func.func @transform_4(%arg0: i32) -> (i32, i32) {
    %c0_i32 = arith.constant 0 : i32
    %c0_i32_0 = arith.constant 0 : i32
    %c0_i32_1 = arith.constant 0 : i32
    return %c0_i32, %c0_i32_0 : i32, i32
  }
  func.func @transform_5(%arg0: i32) -> (i32, i32) {
    %c0_i32 = arith.constant 0 : i32
    %c0_i32_0 = arith.constant 0 : i32
    %c0_i32_1 = arith.constant 0 : i32
    return %c0_i32, %c0_i32_0 : i32, i32
  }
  func.func @transform_6(%arg0: i32) -> (i32, i32) {
    %c0_i32 = arith.constant 0 : i32
    %c0_i32_0 = arith.constant 0 : i32
    %c0_i32_1 = arith.constant 0 : i32
    return %c0_i32, %c0_i32_0 : i32, i32
  }
  func.func @transform_7(%arg0: i32) -> (i32, i32, i32) {
    %c0_i32 = arith.constant 0 : i32
    %c0_i32_0 = arith.constant 0 : i32
    %c0_i32_1 = arith.constant 0 : i32
    %c0_i32_2 = arith.constant 0 : i32
    return %c0_i32, %c0_i32_0, %c0_i32_1 : i32, i32, i32
  }
  func.func @transform_8(%arg0: i32) -> (i32, i32, i32) {
    %c0_i32 = arith.constant 0 : i32
    %c0_i32_0 = arith.constant 0 : i32
    %c0_i32_1 = arith.constant 0 : i32
    %c0_i32_2 = arith.constant 0 : i32
    return %c0_i32, %c0_i32_0, %c0_i32_1 : i32, i32, i32
  }
  func.func @transform_9(%arg0: i32) -> (i32, i32, i32) {
    %c0_i32 = arith.constant 0 : i32
    %c0_i32_0 = arith.constant 0 : i32
    %c0_i32_1 = arith.constant 0 : i32
    %c0_i32_2 = arith.constant 0 : i32
    return %c0_i32, %c0_i32_0, %c0_i32_1 : i32, i32, i32
  }
  func.func @transform_10(%arg0: i32) -> (i32, i32, i32) {
    %c0_i32 = arith.constant 0 : i32
    %c0_i32_0 = arith.constant 0 : i32
    %c0_i32_1 = arith.constant 0 : i32
    %c0_i32_2 = arith.constant 0 : i32
    return %c0_i32, %c0_i32_0, %c0_i32_1 : i32, i32, i32
  }
  func.func @transform_11(%arg0: i32) -> (i32, i32, i32) {
    %c0_i32 = arith.constant 0 : i32
    %c0_i32_0 = arith.constant 0 : i32
    %c0_i32_1 = arith.constant 0 : i32
    %c0_i32_2 = arith.constant 0 : i32
    return %c0_i32, %c0_i32_0, %c0_i32_1 : i32, i32, i32
  }
  func.func @transform_12(%arg0: i32) -> (i32, i32, i32) {
    %c0_i32 = arith.constant 0 : i32
    %c0_i32_0 = arith.constant 0 : i32
    %c0_i32_1 = arith.constant 0 : i32
    %c0_i32_2 = arith.constant 0 : i32
    return %c0_i32, %c0_i32_0, %c0_i32_1 : i32, i32, i32
  }
  func.func @transform_13(%arg0: i32) -> (i32, i32, i32) {
    %c0_i32 = arith.constant 0 : i32
    %c0_i32_0 = arith.constant 0 : i32
    %c0_i32_1 = arith.constant 0 : i32
    %c0_i32_2 = arith.constant 0 : i32
    return %c0_i32, %c0_i32_0, %c0_i32_1 : i32, i32, i32
  }
  func.func @transform_14(%arg0: i32) -> (i32, i32, i32) {
    %c0_i32 = arith.constant 0 : i32
    %c0_i32_0 = arith.constant 0 : i32
    %c0_i32_1 = arith.constant 0 : i32
    return %arg0, %c0_i32, %c0_i32_0 : i32, i32, i32
  }
}

</mosaic_0001>

<llo_original>
// kernel: cell_forward.1
$region0: #{cell_forward.1}
  #allocation0 [shape = 'u32[]', space=smem, size = 0x4, offset = 0x4, fixed_abs, tag = 'smem constant byte address 0x4 - core index']
  #allocation1 [shape = 'u32[144,128]{1,0:T(1,128)}', space=vmem, size = 0x12000, scoped, tag = 'internal scratch']
  %s0 = inlined_call_operand.vmem [shape: f32[14], index: 0, kind: input, shape index: {}]
  %s1 = inlined_call_operand.vmem [shape: f32[2,8,256], index: 1, kind: input, shape index: {}]
  %s2 = inlined_call_operand.vmem [shape: f32[2,8,256], index: 2, kind: input, shape index: {}]
  %s3 = inlined_call_operand.vmem [shape: f32[8,8], index: 3, kind: input, shape index: {}]
  %s4 = inlined_call_operand.vmem [shape: f32[8,1], index: 4, kind: input, shape index: {}]
  %s5 = inlined_call_operand.vmem [shape: f32[8,8], index: 5, kind: input, shape index: {}]
  %s6 = inlined_call_operand.vmem [shape: f32[8,1], index: 6, kind: input, shape index: {}]
  %s7 = inlined_call_operand.vmem [shape: f32[14,8,9], index: 7, kind: input, shape index: {}]
  %s8 = inlined_call_operand.vmem [shape: f32[14,8,8], index: 8, kind: input, shape index: {}]
  %s9 = inlined_call_operand.vmem [shape: f32[14,8,1], index: 9, kind: input, shape index: {}]
  %s10 = inlined_call_operand.vmem [shape: f32[14,8,9], index: 10, kind: input, shape index: {}]
  %s11 = inlined_call_operand.vmem [shape: f32[14,8,8], index: 11, kind: input, shape index: {}]
  %s12 = inlined_call_operand.vmem [shape: f32[14,8,1], index: 12, kind: input, shape index: {}]
  %s13 = inlined_call_operand.vmem [shape: f32[9,8,256], index: 13, kind: input, shape index: {}]
  %s14 = inlined_call_operand.vmem [shape: f32[2,32,256], index: 14, kind: output, shape index: {}]
  %s15 = sld [smem:[#allocation0]]
  $region93: #{cell_forward.1} parent=0
    _
  %s17 = ssub.s32 1, %s15
  %s18 = scalar_select 0, %s17, %s15
  $region1: #{cell_forward.1} parent=0
    #allocation2 [shape = 'u8[512]{0}', space=smem, size = 0x200, scoped, tag = 'input window, operand 0, single buffered']
    #allocation3 [shape = 's32[2]{0}', space=sflag, size = 0x8, scoped, tag = 'scoped memory for cell_forward.1']
    %19 = vsyncpa [#allocation3], 0
    loop: start=0, step=1, limit=4
    $region2: #{cell_forward.1} parent=1 // loop_pre_header
      _
    $region3: #{cell_forward.1} parent=1 // loop_header
      %s21 = sphi 0, %s25
      %p22 = scmp.ge.s32.totalorder %s21, 4
      %s29 = sphi 0, %s29
      %s31 = sphi 0, %s29
      %s32 = sphi 0, %s31
      %s46 = sphi 0, %s32
      %s52 = sphi 0, %s54
      %s55 = sphi 0, %s52
      %s56 = sphi 0, %s55
      %s72 = sphi 0, %s56
      %s78 = sphi 0, %s80
      %s81 = sphi 0, %s78
      %s82 = sphi 0, %s81
      %s98 = sphi 0, %s82
      %s102 = sphi 0, %s102
      %s104 = sphi 0, %s102
      %s105 = sphi 0, %s104
      %s119 = sphi 0, %s105
      %s123 = sphi 0, %s123
      %s125 = sphi 0, %s123
      %s126 = sphi 0, %s125
      %s140 = sphi 0, %s126
      %s144 = sphi 0, %s144
      %s146 = sphi 0, %s144
      %s147 = sphi 0, %s146
      %s161 = sphi 0, %s147
      %s165 = sphi 0, %s165
      %s167 = sphi 0, %s165
      %s168 = sphi 0, %s167
      %s182 = sphi 0, %s168
      %s186 = sphi 0, %s186
      %s188 = sphi 0, %s186
      %s189 = sphi 0, %s188
      %s203 = sphi 0, %s189
      %s207 = sphi 0, %s207
      %s209 = sphi 0, %s207
      %s210 = sphi 0, %s209
      %s224 = sphi 0, %s210
      %s228 = sphi 0, %s228
      %s230 = sphi 0, %s228
      %s231 = sphi 0, %s230
      %s245 = sphi 0, %s231
      %s249 = sphi 0, %s249
      %s251 = sphi 0, %s249
      %s252 = sphi 0, %s251
      %s266 = sphi 0, %s252
      %s270 = sphi 0, %s270
      %s272 = sphi 0, %s270
      %s273 = sphi 0, %s272
      %s287 = sphi 0, %s273
      %s291 = sphi 0, %s291
      %s293 = sphi 0, %s291
      %s294 = sphi 0, %s293
      %s308 = sphi 0, %s294
      %s312 = sphi 0, %s312
      %s314 = sphi 0, %s312
      %s315 = sphi 0, %s314
      %s329 = sphi 0, %s315
      %s335 = sphi 0, %s337
      %s338 = sphi 0, %s335
      %s339 = sphi 0, %s338
      %s355 = sphi 0, %s339
    $region4: #{cell_forward.1} parent=1 // loop_header_branch
      %24 = sbr.rel (%p22) target = $region8
    $region5: #{cell_forward.1} parent=1 // loop_body
      %s26 = ssub.s32 %s21, 1
      %s27 = ssub.s32 %s21, 2
      %s28 = sadd.s32 %s21, 1
      %s30 = sadd.s32 %s29, 1
      %p33 = scmp.eq.s32.totalorder %s21, 1
      %p34 = scmp.ne.s32.totalorder %s29, %s31
      %p35 = scmp.eq.s32.totalorder %s21, 0
      %p36 = por %p34, %p35
      %p37 = scmp.ne.s32.totalorder %s29, %s31
      %p38 = scmp.eq.s32.totalorder %s26, 1
      %p39 = por %p37, %p38
      %p40 = scmp.ne.s32.totalorder %s31, %s32
      %p41 = scmp.eq.s32.totalorder %s26, 0
      %p42 = por %p40, %p41
      %p43 = scmp.ne.s32.totalorder %s31, %s32
      %p44 = scmp.eq.s32.totalorder %s27, 1
      %p45 = por %p43, %p44
      %p47 = scmp.ne.s32.totalorder %s32, %s46
      %p48 = scmp.eq.s32.totalorder %s27, 0
      %p49 = por %p47, %p48
      %s50 = ssub.s32 %s21, %s28
      %p51 = scmp.eq.s32.totalorder %s50, 0
      %s53 = sadd.s32 %s52, 1
      %s54 = scalar_select %p51, %s52, %s53
      %p57 = pneg %p51
      %p58 = scmp.eq.s32.totalorder %s21, 1
      %p59 = por %p57, %p58
      %p60 = scmp.ne.s32.totalorder %s52, %s55
      %p61 = scmp.eq.s32.totalorder %s21, 0
      %p62 = por %p60, %p61
      %p63 = scmp.ne.s32.totalorder %s52, %s55
      %p64 = scmp.eq.s32.totalorder %s26, 1
      %p65 = por %p63, %p64
      %p66 = scmp.ne.s32.totalorder %s55, %s56
      %p67 = scmp.eq.s32.totalorder %s26, 0
      %p68 = por %p66, %p67
      %p69 = scmp.ne.s32.totalorder %s55, %s56
      %p70 = scmp.eq.s32.totalorder %s27, 1
      %p71 = por %p69, %p70
      %p73 = scmp.ne.s32.totalorder %s56, %s72
      %p74 = scmp.eq.s32.totalorder %s27, 0
      %p75 = por %p73, %p74
      %s76 = ssub.s32 %s21, %s28
      %p77 = scmp.eq.s32.totalorder %s76, 0
      %s79 = sadd.s32 %s78, 1
      %s80 = scalar_select %p77, %s78, %s79
      %p83 = pneg %p77
      %p84 = scmp.eq.s32.totalorder %s21, 1
      %p85 = por %p83, %p84
      %p86 = scmp.ne.s32.totalorder %s78, %s81
      %p87 = scmp.eq.s32.totalorder %s21, 0
      %p88 = por %p86, %p87
      %p89 = scmp.ne.s32.totalorder %s78, %s81
      %p90 = scmp.eq.s32.totalorder %s26, 1
      %p91 = por %p89, %p90
      %p92 = scmp.ne.s32.totalorder %s81, %s82
      %p93 = scmp.eq.s32.totalorder %s26, 0
      %p94 = por %p92, %p93
      %p95 = scmp.ne.s32.totalorder %s81, %s82
      %p96 = scmp.eq.s32.totalorder %s27, 1
      %p97 = por %p95, %p96
      %p99 = scmp.ne.s32.totalorder %s82, %s98
      %p100 = scmp.eq.s32.totalorder %s27, 0
      %p101 = por %p99, %p100
      %s103 = sadd.s32 %s102, 1
      %p106 = scmp.eq.s32.totalorder %s21, 1
      %p107 = scmp.ne.s32.totalorder %s102, %s104
      %p108 = scmp.eq.s32.totalorder %s21, 0
      %p109 = por %p107, %p108
      %p110 = scmp.ne.s32.totalorder %s102, %s104
      %p111 = scmp.eq.s32.totalorder %s26, 1
      %p112 = por %p110, %p111
      %p113 = scmp.ne.s32.totalorder %s104, %s105
      %p114 = scmp.eq.s32.totalorder %s26, 0
      %p115 = por %p113, %p114
      %p116 = scmp.ne.s32.totalorder %s104, %s105
      %p117 = scmp.eq.s32.totalorder %s27, 1
      %p118 = por %p116, %p117
      %p120 = scmp.ne.s32.totalorder %s105, %s119
      %p121 = scmp.eq.s32.totalorder %s27, 0
      %p122 = por %p120, %p121
      %s124 = sadd.s32 %s123, 1
      %p127 = scmp.eq.s32.totalorder %s21, 1
      %p128 = scmp.ne.s32.totalorder %s123, %s125
      %p129 = scmp.eq.s32.totalorder %s21, 0
      %p130 = por %p128, %p129
      %p131 = scmp.ne.s32.totalorder %s123, %s125
      %p132 = scmp.eq.s32.totalorder %s26, 1
      %p133 = por %p131, %p132
      %p134 = scmp.ne.s32.totalorder %s125, %s126
      %p135 = scmp.eq.s32.totalorder %s26, 0
      %p136 = por %p134, %p135
      %p137 = scmp.ne.s32.totalorder %s125, %s126
      %p138 = scmp.eq.s32.totalorder %s27, 1
      %p139 = por %p137, %p138
      %p141 = scmp.ne.s32.totalorder %s126, %s140
      %p142 = scmp.eq.s32.totalorder %s27, 0
      %p143 = por %p141, %p142
      %s145 = sadd.s32 %s144, 1
      %p148 = scmp.eq.s32.totalorder %s21, 1
      %p149 = scmp.ne.s32.totalorder %s144, %s146
      %p150 = scmp.eq.s32.totalorder %s21, 0
      %p151 = por %p149, %p150
      %p152 = scmp.ne.s32.totalorder %s144, %s146
      %p153 = scmp.eq.s32.totalorder %s26, 1
      %p154 = por %p152, %p153
      %p155 = scmp.ne.s32.totalorder %s146, %s147
      %p156 = scmp.eq.s32.totalorder %s26, 0
      %p157 = por %p155, %p156
      %p158 = scmp.ne.s32.totalorder %s146, %s147
      %p159 = scmp.eq.s32.totalorder %s27, 1
      %p160 = por %p158, %p159
      %p162 = scmp.ne.s32.totalorder %s147, %s161
      %p163 = scmp.eq.s32.totalorder %s27, 0
      %p164 = por %p162, %p163
      %s166 = sadd.s32 %s165, 1
      %p169 = scmp.eq.s32.totalorder %s21, 1
      %p170 = scmp.ne.s32.totalorder %s165, %s167
      %p171 = scmp.eq.s32.totalorder %s21, 0
      %p172 = por %p170, %p171
      %p173 = scmp.ne.s32.totalorder %s165, %s167
      %p174 = scmp.eq.s32.totalorder %s26, 1
      %p175 = por %p173, %p174
      %p176 = scmp.ne.s32.totalorder %s167, %s168
      %p177 = scmp.eq.s32.totalorder %s26, 0
      %p178 = por %p176, %p177
      %p179 = scmp.ne.s32.totalorder %s167, %s168
      %p180 = scmp.eq.s32.totalorder %s27, 1
      %p181 = por %p179, %p180
      %p183 = scmp.ne.s32.totalorder %s168, %s182
      %p184 = scmp.eq.s32.totalorder %s27, 0
      %p185 = por %p183, %p184
      %s187 = sadd.s32 %s186, 1
      %p190 = scmp.eq.s32.totalorder %s21, 1
      %p191 = scmp.ne.s32.totalorder %s186, %s188
      %p192 = scmp.eq.s32.totalorder %s21, 0
      %p193 = por %p191, %p192
      %p194 = scmp.ne.s32.totalorder %s186, %s188
      %p195 = scmp.eq.s32.totalorder %s26, 1
      %p196 = por %p194, %p195
      %p197 = scmp.ne.s32.totalorder %s188, %s189
      %p198 = scmp.eq.s32.totalorder %s26, 0
      %p199 = por %p197, %p198
      %p200 = scmp.ne.s32.totalorder %s188, %s189
      %p201 = scmp.eq.s32.totalorder %s27, 1
      %p202 = por %p200, %p201
      %p204 = scmp.ne.s32.totalorder %s189, %s203
      %p205 = scmp.eq.s32.totalorder %s27, 0
      %p206 = por %p204, %p205
      %s208 = sadd.s32 %s207, 1
      %p211 = scmp.eq.s32.totalorder %s21, 1
      %p212 = scmp.ne.s32.totalorder %s207, %s209
      %p213 = scmp.eq.s32.totalorder %s21, 0
      %p214 = por %p212, %p213
      %p215 = scmp.ne.s32.totalorder %s207, %s209
      %p216 = scmp.eq.s32.totalorder %s26, 1
      %p217 = por %p215, %p216
      %p218 = scmp.ne.s32.totalorder %s209, %s210
      %p219 = scmp.eq.s32.totalorder %s26, 0
      %p220 = por %p218, %p219
      %p221 = scmp.ne.s32.totalorder %s209, %s210
      %p222 = scmp.eq.s32.totalorder %s27, 1
      %p223 = por %p221, %p222
      %p225 = scmp.ne.s32.totalorder %s210, %s224
      %p226 = scmp.eq.s32.totalorder %s27, 0
      %p227 = por %p225, %p226
      %s229 = sadd.s32 %s228, 1
      %p232 = scmp.eq.s32.totalorder %s21, 1
      %p233 = scmp.ne.s32.totalorder %s228, %s230
      %p234 = scmp.eq.s32.totalorder %s21, 0
      %p235 = por %p233, %p234
      %p236 = scmp.ne.s32.totalorder %s228, %s230
      %p237 = scmp.eq.s32.totalorder %s26, 1
      %p238 = por %p236, %p237
      %p239 = scmp.ne.s32.totalorder %s230, %s231
      %p240 = scmp.eq.s32.totalorder %s26, 0
      %p241 = por %p239, %p240
      %p242 = scmp.ne.s32.totalorder %s230, %s231
      %p243 = scmp.eq.s32.totalorder %s27, 1
      %p244 = por %p242, %p243
      %p246 = scmp.ne.s32.totalorder %s231, %s245
      %p247 = scmp.eq.s32.totalorder %s27, 0
      %p248 = por %p246, %p247
      %s250 = sadd.s32 %s249, 1
      %p253 = scmp.eq.s32.totalorder %s21, 1
      %p254 = scmp.ne.s32.totalorder %s249, %s251
      %p255 = scmp.eq.s32.totalorder %s21, 0
      %p256 = por %p254, %p255
      %p257 = scmp.ne.s32.totalorder %s249, %s251
      %p258 = scmp.eq.s32.totalorder %s26, 1
      %p259 = por %p257, %p258
      %p260 = scmp.ne.s32.totalorder %s251, %s252
      %p261 = scmp.eq.s32.totalorder %s26, 0
      %p262 = por %p260, %p261
      %p263 = scmp.ne.s32.totalorder %s251, %s252
      %p264 = scmp.eq.s32.totalorder %s27, 1
      %p265 = por %p263, %p264
      %p267 = scmp.ne.s32.totalorder %s252, %s266
      %p268 = scmp.eq.s32.totalorder %s27, 0
      %p269 = por %p267, %p268
      %s271 = sadd.s32 %s270, 1
      %p274 = scmp.eq.s32.totalorder %s21, 1
      %p275 = scmp.ne.s32.totalorder %s270, %s272
      %p276 = scmp.eq.s32.totalorder %s21, 0
      %p277 = por %p275, %p276
      %p278 = scmp.ne.s32.totalorder %s270, %s272
      %p279 = scmp.eq.s32.totalorder %s26, 1
      %p280 = por %p278, %p279
      %p281 = scmp.ne.s32.totalorder %s272, %s273
      %p282 = scmp.eq.s32.totalorder %s26, 0
      %p283 = por %p281, %p282
      %p284 = scmp.ne.s32.totalorder %s272, %s273
      %p285 = scmp.eq.s32.totalorder %s27, 1
      %p286 = por %p284, %p285
      %p288 = scmp.ne.s32.totalorder %s273, %s287
      %p289 = scmp.eq.s32.totalorder %s27, 0
      %p290 = por %p288, %p289
      %s292 = sadd.s32 %s291, 1
      %p295 = scmp.eq.s32.totalorder %s21, 1
      %p296 = scmp.ne.s32.totalorder %s291, %s293
      %p297 = scmp.eq.s32.totalorder %s21, 0
      %p298 = por %p296, %p297
      %p299 = scmp.ne.s32.totalorder %s291, %s293
      %p300 = scmp.eq.s32.totalorder %s26, 1
      %p301 = por %p299, %p300
      %p302 = scmp.ne.s32.totalorder %s293, %s294
      %p303 = scmp.eq.s32.totalorder %s26, 0
      %p304 = por %p302, %p303
      %p305 = scmp.ne.s32.totalorder %s293, %s294
      %p306 = scmp.eq.s32.totalorder %s27, 1
      %p307 = por %p305, %p306
      %p309 = scmp.ne.s32.totalorder %s294, %s308
      %p310 = scmp.eq.s32.totalorder %s27, 0
      %p311 = por %p309, %p310
      %s313 = sadd.s32 %s312, 1
      %p316 = scmp.eq.s32.totalorder %s21, 1
      %p317 = scmp.ne.s32.totalorder %s312, %s314
      %p318 = scmp.eq.s32.totalorder %s21, 0
      %p319 = por %p317, %p318
      %p320 = scmp.ne.s32.totalorder %s312, %s314
      %p321 = scmp.eq.s32.totalorder %s26, 1
      %p322 = por %p320, %p321
      %p323 = scmp.ne.s32.totalorder %s314, %s315
      %p324 = scmp.eq.s32.totalorder %s26, 0
      %p325 = por %p323, %p324
      %p326 = scmp.ne.s32.totalorder %s314, %s315
      %p327 = scmp.eq.s32.totalorder %s27, 1
      %p328 = por %p326, %p327
      %p330 = scmp.ne.s32.totalorder %s315, %s329
      %p331 = scmp.eq.s32.totalorder %s27, 0
      %p332 = por %p330, %p331
      %s333 = ssub.s32 %s21, %s28
      %p334 = scmp.eq.s32.totalorder %s333, 0
      %s336 = sadd.s32 %s335, 1
      %s337 = scalar_select %p334, %s335, %s336
      %p340 = pneg %p334
      %p341 = scmp.eq.s32.totalorder %s21, 1
      %p342 = por %p340, %p341
      %p343 = scmp.ne.s32.totalorder %s335, %s338
      %p344 = scmp.eq.s32.totalorder %s21, 0
      %p345 = por %p343, %p344
      %p346 = scmp.ne.s32.totalorder %s335, %s338
      %p347 = scmp.eq.s32.totalorder %s26, 1
      %p348 = por %p346, %p347
      %p349 = scmp.ne.s32.totalorder %s338, %s339
      %p350 = scmp.eq.s32.totalorder %s26, 0
      %p351 = por %p349, %p350
      %p352 = scmp.ne.s32.totalorder %s338, %s339
      %p353 = scmp.eq.s32.totalorder %s27, 1
      %p354 = por %p352, %p353
      %p356 = scmp.ne.s32.totalorder %s339, %s355
      %p357 = scmp.eq.s32.totalorder %s27, 0
      %p358 = por %p356, %p357
      %p359 = scmp.le.s32.totalorder 1, %s21
      %p360 = scmp.lt.s32.totalorder %s21, 3
      %p361 = pnand %p359, %p360
      %p362 = pneg %p361
      // Predicated region
      $region9: #{cell_forward.1} parent=5 // pred_check
        _
      $region10: #{cell_forward.1} parent=5 // pred_check_branch
        %364 = sbr.rel (%p361) target = $region12
      $region11: #{cell_forward.1} parent=5 // pred_region
        %s365 = ssub.s32 %s21, 1
        // Predicated region
        $region13: #{cell_forward.1} parent=11 // pred_check
          %p366 = pneg %p42
        $region14: #{cell_forward.1} parent=11 // pred_check_branch
          %368 = sbr.rel (%p366) target = $region16
        $region15: #{cell_forward.1} parent=11 // pred_region
          %s370 = ssub.s32 16, 16
          %371 = vsyncadd [#allocation3], %s370
          %s373 = sshll.u32 %s0, 4
          %s374 = int_to_ptr.vmem [resolvable:$true] %s373
          %376 = dma.vmem_to_smem %s374, 16, [#allocation2], [#allocation3]
        $region16: #{cell_forward.1} parent=11 // pred_fallthru
          _
        // Predicated region
        $region17: #{cell_forward.1} parent=11 // pred_check
          %p377 = pneg %p115
        $region18: #{cell_forward.1} parent=11 // pred_check_branch
          %379 = sbr.rel (%p377) target = $region20
        $region19: #{cell_forward.1} parent=11 // pred_region
          _
        $region20: #{cell_forward.1} parent=11 // pred_fallthru
          _
        // Predicated region
        $region21: #{cell_forward.1} parent=11 // pred_check
          %p380 = pneg %p136
        $region22: #{cell_forward.1} parent=11 // pred_check_branch
          %382 = sbr.rel (%p380) target = $region24
        $region23: #{cell_forward.1} parent=11 // pred_region
          _
        $region24: #{cell_forward.1} parent=11 // pred_fallthru
          _
        // Predicated region
        $region25: #{cell_forward.1} parent=11 // pred_check
          %p383 = pneg %p157
        $region26: #{cell_forward.1} parent=11 // pred_check_branch
          %385 = sbr.rel (%p383) target = $region28
        $region27: #{cell_forward.1} parent=11 // pred_region
          _
        $region28: #{cell_forward.1} parent=11 // pred_fallthru
          _
        // Predicated region
        $region29: #{cell_forward.1} parent=11 // pred_check
          %p386 = pneg %p178
        $region30: #{cell_forward.1} parent=11 // pred_check_branch
          %388 = sbr.rel (%p386) target = $region32
        $region31: #{cell_forward.1} parent=11 // pred_region
          _
        $region32: #{cell_forward.1} parent=11 // pred_fallthru
          _
        // Predicated region
        $region33: #{cell_forward.1} parent=11 // pred_check
          %p389 = pneg %p199
        $region34: #{cell_forward.1} parent=11 // pred_check_branch
          %391 = sbr.rel (%p389) target = $region36
        $region35: #{cell_forward.1} parent=11 // pred_region
          _
        $region36: #{cell_forward.1} parent=11 // pred_fallthru
          _
        // Predicated region
        $region37: #{cell_forward.1} parent=11 // pred_check
          %p392 = pneg %p220
        $region38: #{cell_forward.1} parent=11 // pred_check_branch
          %394 = sbr.rel (%p392) target = $region40
        $region39: #{cell_forward.1} parent=11 // pred_region
          _
        $region40: #{cell_forward.1} parent=11 // pred_fallthru
          _
        // Predicated region
        $region41: #{cell_forward.1} parent=11 // pred_check
          %p395 = pneg %p241
        $region42: #{cell_forward.1} parent=11 // pred_check_branch
          %397 = sbr.rel (%p395) target = $region44
        $region43: #{cell_forward.1} parent=11 // pred_region
          _
        $region44: #{cell_forward.1} parent=11 // pred_fallthru
          _
        // Predicated region
        $region45: #{cell_forward.1} parent=11 // pred_check
          %p398 = pneg %p262
        $region46: #{cell_forward.1} parent=11 // pred_check_branch
          %400 = sbr.rel (%p398) target = $region48
        $region47: #{cell_forward.1} parent=11 // pred_region
          _
        $region48: #{cell_forward.1} parent=11 // pred_fallthru
          _
        // Predicated region
        $region49: #{cell_forward.1} parent=11 // pred_check
          %p401 = pneg %p283
        $region50: #{cell_forward.1} parent=11 // pred_check_branch
          %403 = sbr.rel (%p401) target = $region52
        $region51: #{cell_forward.1} parent=11 // pred_region
          _
        $region52: #{cell_forward.1} parent=11 // pred_fallthru
          _
        // Predicated region
        $region53: #{cell_forward.1} parent=11 // pred_check
          %p404 = pneg %p304
        $region54: #{cell_forward.1} parent=11 // pred_check_branch
          %406 = sbr.rel (%p404) target = $region56
        $region55: #{cell_forward.1} parent=11 // pred_region
          _
        $region56: #{cell_forward.1} parent=11 // pred_fallthru
          _
        // Predicated region
        $region57: #{cell_forward.1} parent=11 // pred_check
          %p407 = pneg %p325
        $region58: #{cell_forward.1} parent=11 // pred_check_branch
          %409 = sbr.rel (%p407) target = $region60
        $region59: #{cell_forward.1} parent=11 // pred_region
          _
        $region60: #{cell_forward.1} parent=11 // pred_fallthru
          _
      $region12: #{cell_forward.1} parent=5 // pred_fallthru
        _
      %p410 = scmp.lt.s32.totalorder %s21, 2
      // Predicated region
      $region61: #{cell_forward.1} parent=5 // pred_check
        %p411 = pneg %p410
      $region62: #{cell_forward.1} parent=5 // pred_check_branch
        %413 = sbr.rel (%p411) target = $region64
      $region63: #{cell_forward.1} parent=5 // pred_region
        // Predicated region
        $region65: #{cell_forward.1} parent=63 // pred_check
          %p414 = pneg %p62
        $region66: #{cell_forward.1} parent=63 // pred_check_branch
          %416 = sbr.rel (%p414) target = $region68
        $region67: #{cell_forward.1} parent=63 // pred_region
          %p417 = scmp.lt.s32.totalorder %s21, 1
          %s418 = scalar_select %p417, %s21, 1
          %s419 = smul.addr %s418, 2
          %s420 = smul.addr %s419, 8
          %s421 = scalar_lea.vmem %s1, %s420
        $region68: #{cell_forward.1} parent=63 // pred_fallthru
          _
        // Predicated region
        $region69: #{cell_forward.1} parent=63 // pred_check
          %p422 = pneg %p88
        $region70: #{cell_forward.1} parent=63 // pred_check_branch
          %424 = sbr.rel (%p422) target = $region72
        $region71: #{cell_forward.1} parent=63 // pred_region
          %p425 = scmp.lt.s32.totalorder %s21, 1
          %s426 = scalar_select %p425, %s21, 1
          %s427 = smul.addr %s426, 2
          %s428 = smul.addr %s427, 8
          %s429 = scalar_lea.vmem %s2, %s428
        $region72: #{cell_forward.1} parent=63 // pred_fallthru
          _
      $region64: #{cell_forward.1} parent=5 // pred_fallthru
        _
      %p430 = scmp.le.s32.totalorder 1, %s21
      %p431 = scmp.lt.s32.totalorder %s21, 3
      %p432 = pnand %p430, %p431
      %p433 = pneg %p432
      // Predicated region
      $region73: #{cell_forward.1} parent=5 // pred_check
        _
      $region74: #{cell_forward.1} parent=5 // pred_check_branch
        %435 = sbr.rel (%p432) target = $region76
      $region75: #{cell_forward.1} parent=5 // pred_region
        %s436 = ssub.s32 %s21, 1
        // Predicated region
        $region77: #{cell_forward.1} parent=75 // pred_check
          %p437 = pneg %p42
        $region78: #{cell_forward.1} parent=75 // pred_check_branch
          %439 = sbr.rel (%p437) target = $region80
        $region79: #{cell_forward.1} parent=75 // pred_region
          %440 = dma.done [#allocation3], 16
        $region80: #{cell_forward.1} parent=75 // pred_fallthru
          _
        %441 = sfence
        %p442 = pneg %p42
        %p443 = pneg %p39
        %p444 = scmp.lt.s32.totalorder %s26, 1
        %s445 = scalar_select %p444, %s26, 1
        %s446 = smul.addr %s445, 2
        %s447 = smul.addr %s446, 8
        %s448 = scalar_lea.vmem %s1, %s447
        %p449 = pneg %p68
        %p450 = pneg %p65
        %p451 = scmp.lt.s32.totalorder %s26, 1
        %s452 = scalar_select %p451, %s26, 1
        %s453 = smul.addr %s452, 2
        %s454 = smul.addr %s453, 8
        %s455 = scalar_lea.vmem %s2, %s454
        %p456 = pneg %p94
        %p457 = pneg %p91
        %p458 = pneg %p115
        %p459 = pneg %p112
        %p460 = pneg %p136
        %p461 = pneg %p133
        %p462 = pneg %p157
        %p463 = pneg %p154
        %p464 = pneg %p178
        %p465 = pneg %p175
        %p466 = pneg %p199
        %p467 = pneg %p196
        %p468 = pneg %p220
        %p469 = pneg %p217
        %p470 = pneg %p241
        %p471 = pneg %p238
        %p472 = pneg %p262
        %p473 = pneg %p259
        %p474 = pneg %p283
        %p475 = pneg %p280
        %p476 = pneg %p304
        %p477 = pneg %p301
        %p478 = pneg %p325
        %p479 = pneg %p322
        %p480 = pneg %p351
        %p481 = pneg %p348
        %p482 = scmp.lt.s32.totalorder %s26, 1
        %s483 = scalar_select %p482, %s26, 1
        %s484 = smul.addr %s483, 8
        %s485 = smul.addr %s484, 8
        %s486 = scalar_lea.vmem %s14, %s485
        %p487 = scmp.lt.s32.totalorder %s26, 1
        %s488 = scalar_select %p487, %s26, 1
        %s489 = smul.addr %s488, 2
        %s490 = smul.addr %s489, 8
        %s491 = scalar_lea.vmem %s1, %s490
        %p492 = scmp.lt.s32.totalorder %s26, 1
        %s493 = scalar_select %p492, %s26, 1
        %s494 = smul.addr %s493, 2
        %s495 = smul.addr %s494, 8
        %s496 = scalar_lea.vmem %s2, %s495
        %p497 = scmp.lt.s32.totalorder %s26, 1
        %s498 = scalar_select %p497, %s26, 1
        %s499 = smul.addr %s498, 8
        %s500 = smul.addr %s499, 8
        %s501 = scalar_lea.vmem %s14, %s500
        %v502 = vld [vmem:[%s3] sm:$0xff]
        %v503 = vld [vmem:[%s491] sm:$0xff]
        %v504 = vld [vmem:[%s491 + $0x8] sm:$0xff]
        %v505 = vmax.f32 %v503, 0.0
        %v506 = vmax.f32 %v504, 0.0
        %v507 = vld [vmem:[%s4] sm:$0xff]
        %509 = vset.pattern.permute.xlu0 0
        %510 = vperm.xlu0 %509, %v507
        %v511 = vpop.permute.xlu0 %510
        %vm513 = vcmask 64512
        %v515 = vsel %vm513, %v502, 0
        %517 = vmatprep.subr.mxu0 %v506
        %518 = vmatpush1.msra.mxu0 %v505
        %519 = vmatprep.subr.mxu0 0.0
        %520 = vmatpush1.msra.mxu0 0.0
        %521 = vmatprep.subr.mxu0 0.0
        %522 = vmatpush1.msra.mxu0 0.0
        %523 = vmatprep.subr.mxu0 0.0
        %524 = vmatpush1.msra.mxu0 0.0
        %525 = vmatprep.subr.mxu0 0.0
        %526 = vmatpush1.msra.mxu0 0.0
        %527 = vmatprep.subr.mxu0 0.0
        %528 = vmatpush1.msra.mxu0 0.0
        %529 = vmatprep.subr.mxu0 0.0
        %530 = vmatpush1.msra.mxu0 0.0
        %531 = vmatprep.subr.mxu0 0.0
        %532 = vmatpush1.msra.mxu0 0.0
        %533 = vmatprep.subr.mxu0 0.0
        %534 = vmatpush1.msra.mxu0 0.0
        %535 = vmatprep.subr.mxu0 0.0
        %536 = vmatpush1.msra.mxu0 0.0
        %537 = vmatprep.subr.mxu0 0.0
        %538 = vmatpush1.msra.mxu0 0.0
        %539 = vmatprep.subr.mxu0 0.0
        %540 = vmatpush1.msra.mxu0 0.0
        %541 = vmatprep.subr.mxu0 0.0
        %542 = vmatpush1.msra.mxu0 0.0
        %543 = vmatprep.subr.mxu0 0.0
        %544 = vmatpush1.msra.mxu0 0.0
        %545 = vmatprep.subr.mxu0 0.0
        %546 = vmatpush1.msra.mxu0 0.0
        %547 = vmatprep.subr.mxu0 0.0
        %548 = vmatpush1.msra.mxu0 0.0
        %549 = vmatprep.subr.mxu0 0.0
        %550 = vmatpush1.msra.mxu0 0.0
        %551 = vmatprep.subr.mxu0 0.0
        %552 = vmatpush1.msra.mxu0 0.0
        %553 = vmatprep.subr.mxu0 0.0
        %554 = vmatpush1.msra.mxu0 0.0
        %555 = vmatprep.subr.mxu0 0.0
        %556 = vmatpush1.msra.mxu0 0.0
        %557 = vmatprep.subr.mxu0 0.0
        %558 = vmatpush1.msra.mxu0 0.0
        %559 = vmatprep.subr.mxu0 0.0
        %560 = vmatpush1.msra.mxu0 0.0
        %561 = vmatprep.subr.mxu0 0.0
        %562 = vmatpush1.msra.mxu0 0.0
        %563 = vmatprep.subr.mxu0 0.0
        %564 = vmatpush1.msra.mxu0 0.0
        %565 = vmatprep.subr.mxu0 0.0
        %566 = vmatpush1.msra.mxu0 0.0
        %567 = vmatprep.subr.mxu0 0.0
        %568 = vmatpush1.msra.mxu0 0.0
        %569 = vmatprep.subr.mxu0 0.0
        %570 = vmatpush1.msra.mxu0 0.0
        %571 = vmatprep.subr.mxu0 0.0
        %572 = vmatpush1.msra.mxu0 0.0
        %573 = vmatprep.subr.mxu0 0.0
        %574 = vmatpush1.msra.mxu0 0.0
        %575 = vmatprep.subr.mxu0 0.0
        %576 = vmatpush1.msra.mxu0 0.0
        %577 = vmatprep.subr.mxu0 0.0
        %578 = vmatpush1.msra.mxu0 0.0
        %579 = vmatprep.subr.mxu0 0.0
        %580 = vmatpush1.msra.mxu0 0.0
        %581 = vmatprep.mubr.f32.mxu0 0.0
        %582 = vmatmul.mubr.f32.gmra.mrb[0].mxu0 %v515
        %v583 = vpop.f32.mrb[0].mxu0
        %v584 = vadd.f32 %v511, %v583
        %v585 = vpop.f32.mrb[0].mxu0
        %v586 = vadd.f32 %v511, %v585
        %587 = vdwg.mxu0
        %v588 = vld [vmem:[%s5] sm:$0xff]
        %v589 = vld [vmem:[%s496] sm:$0xff]
        %v590 = vld [vmem:[%s496 + $0x8] sm:$0xff]
        %v591 = vmax.f32 %v589, 0.0
        %v592 = vmax.f32 %v590, 0.0
        %v593 = vld [vmem:[%s6] sm:$0xff]
        %595 = vset.pattern.permute.xlu0 0
        %596 = vperm.xlu0 %595, %v593
        %v597 = vpop.permute.xlu0 %596
        %v600 = vsel %vm513, %v588, 0
        %602 = vmatprep.subr.mxu0 %v592
        %603 = vmatpush1.msra.mxu0 %v591
        %604 = vmatprep.subr.mxu0 0.0
        %605 = vmatpush1.msra.mxu0 0.0
        %606 = vmatprep.subr.mxu0 0.0
        %607 = vmatpush1.msra.mxu0 0.0
        %608 = vmatprep.subr.mxu0 0.0
        %609 = vmatpush1.msra.mxu0 0.0
        %610 = vmatprep.subr.mxu0 0.0
        %611 = vmatpush1.msra.mxu0 0.0
        %612 = vmatprep.subr.mxu0 0.0
        %613 = vmatpush1.msra.mxu0 0.0
        %614 = vmatprep.subr.mxu0 0.0
        %615 = vmatpush1.msra.mxu0 0.0
        %616 = vmatprep.subr.mxu0 0.0
        %617 = vmatpush1.msra.mxu0 0.0
        %618 = vmatprep.subr.mxu0 0.0
        %619 = vmatpush1.msra.mxu0 0.0
        %620 = vmatprep.subr.mxu0 0.0
        %621 = vmatpush1.msra.mxu0 0.0
        %622 = vmatprep.subr.mxu0 0.0
        %623 = vmatpush1.msra.mxu0 0.0
        %624 = vmatprep.subr.mxu0 0.0
        %625 = vmatpush1.msra.mxu0 0.0
        %626 = vmatprep.subr.mxu0 0.0
        %627 = vmatpush1.msra.mxu0 0.0
        %628 = vmatprep.subr.mxu0 0.0
        %629 = vmatpush1.msra.mxu0 0.0
        %630 = vmatprep.subr.mxu0 0.0
        %631 = vmatpush1.msra.mxu0 0.0
        %632 = vmatprep.subr.mxu0 0.0
        %633 = vmatpush1.msra.mxu0 0.0
        %634 = vmatprep.subr.mxu0 0.0
        %635 = vmatpush1.msra.mxu0 0.0
        %636 = vmatprep.subr.mxu0 0.0
        %637 = vmatpush1.msra.mxu0 0.0
        %638 = vmatprep.subr.mxu0 0.0
        %639 = vmatpush1.msra.mxu0 0.0
        %640 = vmatprep.subr.mxu0 0.0
        %641 = vmatpush1.msra.mxu0 0.0
        %642 = vmatprep.subr.mxu0 0.0
        %643 = vmatpush1.msra.mxu0 0.0
        %644 = vmatprep.subr.mxu0 0.0
        %645 = vmatpush1.msra.mxu0 0.0
        %646 = vmatprep.subr.mxu0 0.0
        %647 = vmatpush1.msra.mxu0 0.0
        %648 = vmatprep.subr.mxu0 0.0
        %649 = vmatpush1.msra.mxu0 0.0
        %650 = vmatprep.subr.mxu0 0.0
        %651 = vmatpush1.msra.mxu0 0.0
        %652 = vmatprep.subr.mxu0 0.0
        %653 = vmatpush1.msra.mxu0 0.0
        %654 = vmatprep.subr.mxu0 0.0
        %655 = vmatpush1.msra.mxu0 0.0
        %656 = vmatprep.subr.mxu0 0.0
        %657 = vmatpush1.msra.mxu0 0.0
        %658 = vmatprep.subr.mxu0 0.0
        %659 = vmatpush1.msra.mxu0 0.0
        %660 = vmatprep.subr.mxu0 0.0
        %661 = vmatpush1.msra.mxu0 0.0
        %662 = vmatprep.subr.mxu0 0.0
        %663 = vmatpush1.msra.mxu0 0.0
        %664 = vmatprep.subr.mxu0 0.0
        %665 = vmatpush1.msra.mxu0 0.0
        %666 = vmatprep.mubr.f32.mxu0 0.0
        %667 = vmatmul.mubr.f32.gmra.mrb[0].mxu0 %v600
        %v668 = vpop.f32.mrb[0].mxu0
        %v669 = vadd.f32 %v597, %v668
        %v670 = vpop.f32.mrb[0].mxu0
        %v671 = vadd.f32 %v597, %v670
        %672 = vdwg.mxu0
        %v673 = vld [vmem:[%s13] sm:$0xff]
        %v674 = vld [vmem:[%s13 + $0x8] sm:$0xff]
        %s675 = scalar_lea.vmem %s13, 16
        %v676 = vld [vmem:[%s675] sm:$0xff]
        %v677 = vld [vmem:[%s675 + $0x8] sm:$0xff]
        %s678 = scalar_lea.vmem %s13, 32
        %v679 = vld [vmem:[%s678] sm:$0xff]
        %v680 = vld [vmem:[%s678 + $0x8] sm:$0xff]
        %s681 = scalar_lea.vmem %s13, 48
        %v682 = vld [vmem:[%s681] sm:$0xff]
        %v683 = vld [vmem:[%s681 + $0x8] sm:$0xff]
        %s684 = scalar_lea.vmem %s13, 80
        %v685 = vld [vmem:[%s684] sm:$0xff]
        %v686 = vld [vmem:[%s684 + $0x8] sm:$0xff]
        %s687 = scalar_lea.vmem %s13, 96
        %v688 = vld [vmem:[%s687] sm:$0xff]
        %v689 = vld [vmem:[%s687 + $0x8] sm:$0xff]
        %s690 = scalar_lea.vmem %s13, 112
        %v691 = vld [vmem:[%s690] sm:$0xff]
        %v692 = vld [vmem:[%s690 + $0x8] sm:$0xff]
        %s693 = scalar_lea.vmem %s13, 128
        %v694 = vld [vmem:[%s693] sm:$0xff]
        %v695 = vld [vmem:[%s693 + $0x8] sm:$0xff]
        %v696 = vmax.f32 %v584, 0.0
        %v697 = vmax.f32 %v586, 0.0
        %v698 = vld [vmem:[%s7] sm:$0xff]
        %700 = vset.pattern.permute.xlu0 4
        %701 = vperm.xlu0 %700, %v698
        %v702 = vpop.permute.xlu0 %701
        %v704 = vmul.f32 %v696, %v702
        %v705 = vmul.f32 %v697, %v702
        %706 = vrot.lane.b32.xlu0 %v696, 17
        %v707 = vpop.permute.xlu0 %706
        %708 = vrot.lane.b32.xlu0 %v697, 17
        %v709 = vpop.permute.xlu0 %708
        %v710 = vlaneseq
        %v711 = vand.u32 %v710, 127
        %vm712 = vcmp.lt.s32.totalorder %v711, 17
        %v713 = vsel %vm712, %v707, %v709
        %v714 = vsel %vm712, %v709, %v707
        %v715 = vmul.f32 %v714, %v673
        %v716 = vmul.f32 %v713, %v674
        %717 = vset.pattern.permute.xlu0 0
        %718 = vperm.xlu0 %717, %v698
        %v719 = vpop.permute.xlu0 %718
        %v721 = vmul.f32 %v715, %v719
        %v722 = vmul.f32 %v716, %v719
        %v723 = vadd.f32 %v704, %v721
        %v724 = vadd.f32 %v705, %v722
        %725 = vrot.lane.b32.xlu0 %v696, 16
        %v726 = vpop.permute.xlu0 %725
        %727 = vrot.lane.b32.xlu0 %v697, 16
        %v728 = vpop.permute.xlu0 %727
        %vm729 = vcmp.lt.s32.totalorder %v711, 16
        %v730 = vsel %vm729, %v726, %v728
        %v731 = vsel %vm729, %v728, %v726
        %v732 = vmul.f32 %v731, %v676
        %v733 = vmul.f32 %v730, %v677
        %734 = vset.pattern.permute.xlu0 1
        %735 = vperm.xlu0 %734, %v698
        %v736 = vpop.permute.xlu0 %735
        %v738 = vmul.f32 %v732, %v736
        %v739 = vmul.f32 %v733, %v736
        %v740 = vadd.f32 %v723, %v738
        %v741 = vadd.f32 %v724, %v739
        %742 = vrot.lane.b32.xlu0 %v696, 15
        %v743 = vpop.permute.xlu0 %742
        %744 = vrot.lane.b32.xlu0 %v697, 15
        %v745 = vpop.permute.xlu0 %744
        %vm746 = vcmp.lt.s32.totalorder %v711, 15
        %v747 = vsel %vm746, %v743, %v745
        %v748 = vsel %vm746, %v745, %v743
        %v749 = vmul.f32 %v748, %v679
        %v750 = vmul.f32 %v747, %v680
        %751 = vset.pattern.permute.xlu0 2
        %752 = vperm.xlu0 %751, %v698
        %v753 = vpop.permute.xlu0 %752
        %v755 = vmul.f32 %v749, %v753
        %v756 = vmul.f32 %v750, %v753
        %v757 = vadd.f32 %v740, %v755
        %v758 = vadd.f32 %v741, %v756
        %759 = vrot.lane.b32.xlu0 %v696, 1
        %v760 = vpop.permute.xlu0 %759
        %761 = vrot.lane.b32.xlu0 %v697, 1
        %v762 = vpop.permute.xlu0 %761
        %vm763 = vcmp.lt.s32.totalorder %v711, 1
        %v764 = vsel %vm763, %v760, %v762
        %v765 = vsel %vm763, %v762, %v760
        %v766 = vmul.f32 %v765, %v682
        %v767 = vmul.f32 %v764, %v683
        %768 = vset.pattern.permute.xlu0 3
        %769 = vperm.xlu0 %768, %v698
        %v770 = vpop.permute.xlu0 %769
        %v772 = vmul.f32 %v766, %v770
        %v773 = vmul.f32 %v767, %v770
        %v774 = vadd.f32 %v757, %v772
        %v775 = vadd.f32 %v758, %v773
        %776 = vrot.lane.b32.xlu0 %v696, 127
        %v777 = vpop.permute.xlu0 %776
        %778 = vrot.lane.b32.xlu0 %v697, 127
        %v779 = vpop.permute.xlu0 %778
        %vm780 = vcmp.lt.s32.totalorder %v711, 127
        %v781 = vsel %vm780, %v777, %v779
        %v782 = vsel %vm780, %v779, %v777
        %v783 = vmul.f32 %v781, %v685
        %v784 = vmul.f32 %v782, %v686
        %785 = vset.pattern.permute.xlu0 5
        %786 = vperm.xlu0 %785, %v698
        %v787 = vpop.permute.xlu0 %786
        %v789 = vmul.f32 %v783, %v787
        %v790 = vmul.f32 %v784, %v787
        %v791 = vadd.f32 %v774, %v789
        %v792 = vadd.f32 %v775, %v790
        %793 = vrot.lane.b32.xlu0 %v696, 113
        %v794 = vpop.permute.xlu0 %793
        %795 = vrot.lane.b32.xlu0 %v697, 113
        %v796 = vpop.permute.xlu0 %795
        %vm797 = vcmp.lt.s32.totalorder %v711, 113
        %v798 = vsel %vm797, %v794, %v796
        %v799 = vsel %vm797, %v796, %v794
        %v800 = vmul.f32 %v798, %v688
        %v801 = vmul.f32 %v799, %v689
        %802 = vset.pattern.permute.xlu0 6
        %803 = vperm.xlu0 %802, %v698
        %v804 = vpop.permute.xlu0 %803
        %v806 = vmul.f32 %v800, %v804
        %v807 = vmul.f32 %v801, %v804
        %v808 = vadd.f32 %v791, %v806
        %v809 = vadd.f32 %v792, %v807
        %810 = vrot.lane.b32.xlu0 %v696, 112
        %v811 = vpop.permute.xlu0 %810
        %812 = vrot.lane.b32.xlu0 %v697, 112
        %v813 = vpop.permute.xlu0 %812
        %vm814 = vcmp.lt.s32.totalorder %v711, 112
        %v815 = vsel %vm814, %v811, %v813
        %v816 = vsel %vm814, %v813, %v811
        %v817 = vmul.f32 %v815, %v691
        %v818 = vmul.f32 %v816, %v692
        %819 = vset.pattern.permute.xlu0 7
        %820 = vperm.xlu0 %819, %v698
        %v821 = vpop.permute.xlu0 %820
        %v823 = vmul.f32 %v817, %v821
        %v824 = vmul.f32 %v818, %v821
        %v825 = vadd.f32 %v808, %v823
        %v826 = vadd.f32 %v809, %v824
        %827 = vrot.lane.b32.xlu0 %v696, 111
        %v828 = vpop.permute.xlu0 %827
        %829 = vrot.lane.b32.xlu0 %v697, 111
        %v830 = vpop.permute.xlu0 %829
        %vm831 = vcmp.lt.s32.totalorder %v711, 111
        %v832 = vsel %vm831, %v828, %v830
        %v833 = vsel %vm831, %v830, %v828
        %v834 = vmul.f32 %v832, %v694
        %v835 = vmul.f32 %v833, %v695
        %836 = vset.pattern.permute.xlu0 8
        %837 = vperm.xlu0 %836, %v698
        %v838 = vpop.permute.xlu0 %837
        %v840 = vmul.f32 %v834, %v838
        %v841 = vmul.f32 %v835, %v838
        %v842 = vadd.f32 %v825, %v840
        %v843 = vadd.f32 %v826, %v841
        %v844 = vld [vmem:[%s8] sm:$0xff]
        %v845 = vld [vmem:[%s9] sm:$0xff]
        %847 = vset.pattern.permute.xlu0 0
        %848 = vperm.xlu0 %847, %v845
        %v849 = vpop.permute.xlu0 %848
        %v852 = vsel %vm513, %v844, 0
        %854 = vmatprep.subr.mxu0 %v843
        %855 = vmatpush1.msra.mxu0 %v842
        %856 = vmatprep.subr.mxu0 0.0
        %857 = vmatpush1.msra.mxu0 0.0
        %858 = vmatprep.subr.mxu0 0.0
        %859 = vmatpush1.msra.mxu0 0.0
        %860 = vmatprep.subr.mxu0 0.0
        %861 = vmatpush1.msra.mxu0 0.0
        %862 = vmatprep.subr.mxu0 0.0
        %863 = vmatpush1.msra.mxu0 0.0
        %864 = vmatprep.subr.mxu0 0.0
        %865 = vmatpush1.msra.mxu0 0.0
        %866 = vmatprep.subr.mxu0 0.0
        %867 = vmatpush1.msra.mxu0 0.0
        %868 = vmatprep.subr.mxu0 0.0
        %869 = vmatpush1.msra.mxu0 0.0
        %870 = vmatprep.subr.mxu0 0.0
        %871 = vmatpush1.msra.mxu0 0.0
        %872 = vmatprep.subr.mxu0 0.0
        %873 = vmatpush1.msra.mxu0 0.0
        %874 = vmatprep.subr.mxu0 0.0
        %875 = vmatpush1.msra.mxu0 0.0
        %876 = vmatprep.subr.mxu0 0.0
        %877 = vmatpush1.msra.mxu0 0.0
        %878 = vmatprep.subr.mxu0 0.0
        %879 = vmatpush1.msra.mxu0 0.0
        %880 = vmatprep.subr.mxu0 0.0
        %881 = vmatpush1.msra.mxu0 0.0
        %882 = vmatprep.subr.mxu0 0.0
        %883 = vmatpush1.msra.mxu0 0.0
        %884 = vmatprep.subr.mxu0 0.0
        %885 = vmatpush1.msra.mxu0 0.0
        %886 = vmatprep.subr.mxu0 0.0
        %887 = vmatpush1.msra.mxu0 0.0
        %888 = vmatprep.subr.mxu0 0.0
        %889 = vmatpush1.msra.mxu0 0.0
        %890 = vmatprep.subr.mxu0 0.0
        %891 = vmatpush1.msra.mxu0 0.0
        %892 = vmatprep.subr.mxu0 0.0
        %893 = vmatpush1.msra.mxu0 0.0
        %894 = vmatprep.subr.mxu0 0.0
        %895 = vmatpush1.msra.mxu0 0.0
        %896 = vmatprep.subr.mxu0 0.0
        %897 = vmatpush1.msra.mxu0 0.0
        %898 = vmatprep.subr.mxu0 0.0
        %899 = vmatpush1.msra.mxu0 0.0
        %900 = vmatprep.subr.mxu0 0.0
        %901 = vmatpush1.msra.mxu0 0.0
        %902 = vmatprep.subr.mxu0 0.0
        %903 = vmatpush1.msra.mxu0 0.0
        %904 = vmatprep.subr.mxu0 0.0
        %905 = vmatpush1.msra.mxu0 0.0
        %906 = vmatprep.subr.mxu0 0.0
        %907 = vmatpush1.msra.mxu0 0.0
        %908 = vmatprep.subr.mxu0 0.0
        %909 = vmatpush1.msra.mxu0 0.0
        %910 = vmatprep.subr.mxu0 0.0
        %911 = vmatpush1.msra.mxu0 0.0
        %912 = vmatprep.subr.mxu0 0.0
        %913 = vmatpush1.msra.mxu0 0.0
        %914 = vmatprep.subr.mxu0 0.0
        %915 = vmatpush1.msra.mxu0 0.0
        %916 = vmatprep.subr.mxu0 0.0
        %917 = vmatpush1.msra.mxu0 0.0
        %918 = vmatprep.mubr.f32.mxu0 0.0
        %919 = vmatmul.mubr.f32.gmra.mrb[0].mxu0 %v852
        %v920 = vpop.f32.mrb[0].mxu0
        %v921 = vadd.f32 %v849, %v920
        %v922 = vpop.f32.mrb[0].mxu0
        %v923 = vadd.f32 %v849, %v922
        %924 = vdwg.mxu0
        %v925 = vmax.f32 %v921, 0.0
        %v926 = vmax.f32 %v923, 0.0
        %v927 = vld [vmem:[%s10] sm:$0xff]
        %929 = vset.pattern.permute.xlu0 4
        %930 = vperm.xlu0 %929, %v927
        %v931 = vpop.permute.xlu0 %930
        %v933 = vmul.f32 %v925, %v931
        %v934 = vmul.f32 %v926, %v931
        %935 = vrot.lane.b32.xlu0 %v925, 17
        %v936 = vpop.permute.xlu0 %935
        %937 = vrot.lane.b32.xlu0 %v926, 17
        %v938 = vpop.permute.xlu0 %937
        %v939 = vsel %vm712, %v936, %v938
        %v940 = vsel %vm712, %v938, %v936
        %v941 = vmul.f32 %v940, %v673
        %v942 = vmul.f32 %v939, %v674
        %943 = vset.pattern.permute.xlu0 0
        %944 = vperm.xlu0 %943, %v927
        %v945 = vpop.permute.xlu0 %944
        %v947 = vmul.f32 %v941, %v945
        %v948 = vmul.f32 %v942, %v945
        %v949 = vadd.f32 %v933, %v947
        %v950 = vadd.f32 %v934, %v948
        %951 = vrot.lane.b32.xlu0 %v925, 16
        %v952 = vpop.permute.xlu0 %951
        %953 = vrot.lane.b32.xlu0 %v926, 16
        %v954 = vpop.permute.xlu0 %953
        %v955 = vsel %vm729, %v952, %v954
        %v956 = vsel %vm729, %v954, %v952
        %v957 = vmul.f32 %v956, %v676
        %v958 = vmul.f32 %v955, %v677
        %959 = vset.pattern.permute.xlu0 1
        %960 = vperm.xlu0 %959, %v927
        %v961 = vpop.permute.xlu0 %960
        %v963 = vmul.f32 %v957, %v961
        %v964 = vmul.f32 %v958, %v961
        %v965 = vadd.f32 %v949, %v963
        %v966 = vadd.f32 %v950, %v964
        %967 = vrot.lane.b32.xlu0 %v925, 15
        %v968 = vpop.permute.xlu0 %967
        %969 = vrot.lane.b32.xlu0 %v926, 15
        %v970 = vpop.permute.xlu0 %969
        %v971 = vsel %vm746, %v968, %v970
        %v972 = vsel %vm746, %v970, %v968
        %v973 = vmul.f32 %v972, %v679
        %v974 = vmul.f32 %v971, %v680
        %975 = vset.pattern.permute.xlu0 2
        %976 = vperm.xlu0 %975, %v927
        %v977 = vpop.permute.xlu0 %976
        %v979 = vmul.f32 %v973, %v977
        %v980 = vmul.f32 %v974, %v977
        %v981 = vadd.f32 %v965, %v979
        %v982 = vadd.f32 %v966, %v980
        %983 = vrot.lane.b32.xlu0 %v925, 1
        %v984 = vpop.permute.xlu0 %983
        %985 = vrot.lane.b32.xlu0 %v926, 1
        %v986 = vpop.permute.xlu0 %985
        %v987 = vsel %vm763, %v984, %v986
        %v988 = vsel %vm763, %v986, %v984
        %v989 = vmul.f32 %v988, %v682
        %v990 = vmul.f32 %v987, %v683
        %991 = vset.pattern.permute.xlu0 3
        %992 = vperm.xlu0 %991, %v927
        %v993 = vpop.permute.xlu0 %992
        %v995 = vmul.f32 %v989, %v993
        %v996 = vmul.f32 %v990, %v993
        %v997 = vadd.f32 %v981, %v995
        %v998 = vadd.f32 %v982, %v996
        %999 = vrot.lane.b32.xlu0 %v925, 127
        %v1000 = vpop.permute.xlu0 %999
        %1001 = vrot.lane.b32.xlu0 %v926, 127
        %v1002 = vpop.permute.xlu0 %1001
        %v1003 = vsel %vm780, %v1000, %v1002
        %v1004 = vsel %vm780, %v1002, %v1000
        %v1005 = vmul.f32 %v1003, %v685
        %v1006 = vmul.f32 %v1004, %v686
        %1007 = vset.pattern.permute.xlu0 5
        %1008 = vperm.xlu0 %1007, %v927
        %v1009 = vpop.permute.xlu0 %1008
        %v1011 = vmul.f32 %v1005, %v1009
        %v1012 = vmul.f32 %v1006, %v1009
        %v1013 = vadd.f32 %v997, %v1011
        %v1014 = vadd.f32 %v998, %v1012
        %1015 = vrot.lane.b32.xlu0 %v925, 113
        %v1016 = vpop.permute.xlu0 %1015
        %1017 = vrot.lane.b32.xlu0 %v926, 113
        %v1018 = vpop.permute.xlu0 %1017
        %v1019 = vsel %vm797, %v1016, %v1018
        %v1020 = vsel %vm797, %v1018, %v1016
        %v1021 = vmul.f32 %v1019, %v688
        %v1022 = vmul.f32 %v1020, %v689
        %1023 = vset.pattern.permute.xlu0 6
        %1024 = vperm.xlu0 %1023, %v927
        %v1025 = vpop.permute.xlu0 %1024
        %v1027 = vmul.f32 %v1021, %v1025
        %v1028 = vmul.f32 %v1022, %v1025
        %v1029 = vadd.f32 %v1013, %v1027
        %v1030 = vadd.f32 %v1014, %v1028
        %1031 = vrot.lane.b32.xlu0 %v925, 112
        %v1032 = vpop.permute.xlu0 %1031
        %1033 = vrot.lane.b32.xlu0 %v926, 112
        %v1034 = vpop.permute.xlu0 %1033
        %v1035 = vsel %vm814, %v1032, %v1034
        %v1036 = vsel %vm814, %v1034, %v1032
        %v1037 = vmul.f32 %v1035, %v691
        %v1038 = vmul.f32 %v1036, %v692
        %1039 = vset.pattern.permute.xlu0 7
        %1040 = vperm.xlu0 %1039, %v927
        %v1041 = vpop.permute.xlu0 %1040
        %v1043 = vmul.f32 %v1037, %v1041
        %v1044 = vmul.f32 %v1038, %v1041
        %v1045 = vadd.f32 %v1029, %v1043
        %v1046 = vadd.f32 %v1030, %v1044
        %1047 = vrot.lane.b32.xlu0 %v925, 111
        %v1048 = vpop.permute.xlu0 %1047
        %1049 = vrot.lane.b32.xlu0 %v926, 111
        %v1050 = vpop.permute.xlu0 %1049
        %v1051 = vsel %vm831, %v1048, %v1050
        %v1052 = vsel %vm831, %v1050, %v1048
        %v1053 = vmul.f32 %v1051, %v694
        %v1054 = vmul.f32 %v1052, %v695
        %1055 = vset.pattern.permute.xlu0 8
        %1056 = vperm.xlu0 %1055, %v927
        %v1057 = vpop.permute.xlu0 %1056
        %v1059 = vmul.f32 %v1053, %v1057
        %v1060 = vmul.f32 %v1054, %v1057
        %v1061 = vadd.f32 %v1045, %v1059
        %v1062 = vadd.f32 %v1046, %v1060
        %v1063 = vld [vmem:[%s11] sm:$0xff]
        %v1064 = vld [vmem:[%s12] sm:$0xff]
        %1066 = vset.pattern.permute.xlu0 0
        %1067 = vperm.xlu0 %1066, %v1064
        %v1068 = vpop.permute.xlu0 %1067
        %v1071 = vsel %vm513, %v1063, 0
        %1073 = vmatprep.subr.mxu0 %v1062
        %1074 = vmatpush1.msra.mxu0 %v1061
        %1075 = vmatprep.subr.mxu0 0.0
        %1076 = vmatpush1.msra.mxu0 0.0
        %1077 = vmatprep.subr.mxu0 0.0
        %1078 = vmatpush1.msra.mxu0 0.0
        %1079 = vmatprep.subr.mxu0 0.0
        %1080 = vmatpush1.msra.mxu0 0.0
        %1081 = vmatprep.subr.mxu0 0.0
        %1082 = vmatpush1.msra.mxu0 0.0
        %1083 = vmatprep.subr.mxu0 0.0
        %1084 = vmatpush1.msra.mxu0 0.0
        %1085 = vmatprep.subr.mxu0 0.0
        %1086 = vmatpush1.msra.mxu0 0.0
        %1087 = vmatprep.subr.mxu0 0.0
        %1088 = vmatpush1.msra.mxu0 0.0
        %1089 = vmatprep.subr.mxu0 0.0
        %1090 = vmatpush1.msra.mxu0 0.0
        %1091 = vmatprep.subr.mxu0 0.0
        %1092 = vmatpush1.msra.mxu0 0.0
        %1093 = vmatprep.subr.mxu0 0.0
        %1094 = vmatpush1.msra.mxu0 0.0
        %1095 = vmatprep.subr.mxu0 0.0
        %1096 = vmatpush1.msra.mxu0 0.0
        %1097 = vmatprep.subr.mxu0 0.0
        %1098 = vmatpush1.msra.mxu0 0.0
        %1099 = vmatprep.subr.mxu0 0.0
        %1100 = vmatpush1.msra.mxu0 0.0
        %1101 = vmatprep.subr.mxu0 0.0
        %1102 = vmatpush1.msra.mxu0 0.0
        %1103 = vmatprep.subr.mxu0 0.0
        %1104 = vmatpush1.msra.mxu0 0.0
        %1105 = vmatprep.subr.mxu0 0.0
        %1106 = vmatpush1.msra.mxu0 0.0
        %1107 = vmatprep.subr.mxu0 0.0
        %1108 = vmatpush1.msra.mxu0 0.0
        %1109 = vmatprep.subr.mxu0 0.0
        %1110 = vmatpush1.msra.mxu0 0.0
        %1111 = vmatprep.subr.mxu0 0.0
        %1112 = vmatpush1.msra.mxu0 0.0
        %1113 = vmatprep.subr.mxu0 0.0
        %1114 = vmatpush1.msra.mxu0 0.0
        %1115 = vmatprep.subr.mxu0 0.0
        %1116 = vmatpush1.msra.mxu0 0.0
        %1117 = vmatprep.subr.mxu0 0.0
        %1118 = vmatpush1.msra.mxu0 0.0
        %1119 = vmatprep.subr.mxu0 0.0
        %1120 = vmatpush1.msra.mxu0 0.0
        %1121 = vmatprep.subr.mxu0 0.0
        %1122 = vmatpush1.msra.mxu0 0.0
        %1123 = vmatprep.subr.mxu0 0.0
        %1124 = vmatpush1.msra.mxu0 0.0
        %1125 = vmatprep.subr.mxu0 0.0
        %1126 = vmatpush1.msra.mxu0 0.0
        %1127 = vmatprep.subr.mxu0 0.0
        %1128 = vmatpush1.msra.mxu0 0.0
        %1129 = vmatprep.subr.mxu0 0.0
        %1130 = vmatpush1.msra.mxu0 0.0
        %1131 = vmatprep.subr.mxu0 0.0
        %1132 = vmatpush1.msra.mxu0 0.0
        %1133 = vmatprep.subr.mxu0 0.0
        %1134 = vmatpush1.msra.mxu0 0.0
        %1135 = vmatprep.subr.mxu0 0.0
        %1136 = vmatpush1.msra.mxu0 0.0
        %1137 = vmatprep.mubr.f32.mxu0 0.0
        %1138 = vmatmul.mubr.f32.gmra.mrb[0].mxu0 %v1071
        %v1139 = vpop.f32.mrb[0].mxu0
        %v1140 = vadd.f32 %v1068, %v1139
        %v1141 = vpop.f32.mrb[0].mxu0
        %v1142 = vadd.f32 %v1068, %v1141
        %1143 = vdwg.mxu0
        %s1144 = sld [smem:[#allocation2]]
        %v1145 = vstv %s1144
        %v1146 = vmul.f32 %v1145, %v584
        %v1147 = vmul.f32 %v1145, %v586
        %v1148 = vadd.f32 %v1146, %v1140
        %v1149 = vadd.f32 %v1147, %v1142
        %v1150 = vmax.f32 %v669, 0.0
        %v1151 = vmax.f32 %v671, 0.0
        %s1152 = scalar_lea.vmem %s7, 8
        %v1153 = vld [vmem:[%s1152] sm:$0xff]
        %1155 = vset.pattern.permute.xlu0 4
        %1156 = vperm.xlu0 %1155, %v1153
        %v1157 = vpop.permute.xlu0 %1156
        %v1159 = vmul.f32 %v1150, %v1157
        %v1160 = vmul.f32 %v1151, %v1157
        %1161 = vrot.lane.b32.xlu0 %v1150, 17
        %v1162 = vpop.permute.xlu0 %1161
        %1163 = vrot.lane.b32.xlu0 %v1151, 17
        %v1164 = vpop.permute.xlu0 %1163
        %v1165 = vsel %vm712, %v1162, %v1164
        %v1166 = vsel %vm712, %v1164, %v1162
        %v1167 = vmul.f32 %v1166, %v673
        %v1168 = vmul.f32 %v1165, %v674
        %1169 = vset.pattern.permute.xlu0 0
        %1170 = vperm.xlu0 %1169, %v1153
        %v1171 = vpop.permute.xlu0 %1170
        %v1173 = vmul.f32 %v1167, %v1171
        %v1174 = vmul.f32 %v1168, %v1171
        %v1175 = vadd.f32 %v1159, %v1173
        %v1176 = vadd.f32 %v1160, %v1174
        %1177 = vrot.lane.b32.xlu0 %v1150, 16
        %v1178 = vpop.permute.xlu0 %1177
        %1179 = vrot.lane.b32.xlu0 %v1151, 16
        %v1180 = vpop.permute.xlu0 %1179
        %v1181 = vsel %vm729, %v1178, %v1180
        %v1182 = vsel %vm729, %v1180, %v1178
        %v1183 = vmul.f32 %v1182, %v676
        %v1184 = vmul.f32 %v1181, %v677
        %1185 = vset.pattern.permute.xlu0 1
        %1186 = vperm.xlu0 %1185, %v1153
        %v1187 = vpop.permute.xlu0 %1186
        %v1189 = vmul.f32 %v1183, %v1187
        %v1190 = vmul.f32 %v1184, %v1187
        %v1191 = vadd.f32 %v1175, %v1189
        %v1192 = vadd.f32 %v1176, %v1190
        %1193 = vrot.lane.b32.xlu0 %v1150, 15
        %v1194 = vpop.permute.xlu0 %1193
        %1195 = vrot.lane.b32.xlu0 %v1151, 15
        %v1196 = vpop.permute.xlu0 %1195
        %v1197 = vsel %vm746, %v1194, %v1196
        %v1198 = vsel %vm746, %v1196, %v1194
        %v1199 = vmul.f32 %v1198, %v679
        %v1200 = vmul.f32 %v1197, %v680
        %1201 = vset.pattern.permute.xlu0 2
        %1202 = vperm.xlu0 %1201, %v1153
        %v1203 = vpop.permute.xlu0 %1202
        %v1205 = vmul.f32 %v1199, %v1203
        %v1206 = vmul.f32 %v1200, %v1203
        %v1207 = vadd.f32 %v1191, %v1205
        %v1208 = vadd.f32 %v1192, %v1206
        %1209 = vrot.lane.b32.xlu0 %v1150, 1
        %v1210 = vpop.permute.xlu0 %1209
        %1211 = vrot.lane.b32.xlu0 %v1151, 1
        %v1212 = vpop.permute.xlu0 %1211
        %v1213 = vsel %vm763, %v1210, %v1212
        %v1214 = vsel %vm763, %v1212, %v1210
        %v1215 = vmul.f32 %v1214, %v682
        %v1216 = vmul.f32 %v1213, %v683
        %1217 = vset.pattern.permute.xlu0 3
        %1218 = vperm.xlu0 %1217, %v1153
        %v1219 = vpop.permute.xlu0 %1218
        %v1221 = vmul.f32 %v1215, %v1219
        %v1222 = vmul.f32 %v1216, %v1219
        %v1223 = vadd.f32 %v1207, %v1221
        %v1224 = vadd.f32 %v1208, %v1222
        %1225 = vrot.lane.b32.xlu0 %v1150, 127
        %v1226 = vpop.permute.xlu0 %1225
        %1227 = vrot.lane.b32.xlu0 %v1151, 127
        %v1228 = vpop.permute.xlu0 %1227
        %v1229 = vsel %vm780, %v1226, %v1228
        %v1230 = vsel %vm780, %v1228, %v1226
        %v1231 = vmul.f32 %v1229, %v685
        %v1232 = vmul.f32 %v1230, %v686
        %1233 = vset.pattern.permute.xlu0 5
        %1234 = vperm.xlu0 %1233, %v1153
        %v1235 = vpop.permute.xlu0 %1234
        %v1237 = vmul.f32 %v1231, %v1235
        %v1238 = vmul.f32 %v1232, %v1235
        %v1239 = vadd.f32 %v1223, %v1237
        %v1240 = vadd.f32 %v1224, %v1238
        %1241 = vrot.lane.b32.xlu0 %v1150, 113
        %v1242 = vpop.permute.xlu0 %1241
        %1243 = vrot.lane.b32.xlu0 %v1151, 113
        %v1244 = vpop.permute.xlu0 %1243
        %v1245 = vsel %vm797, %v1242, %v1244
        %v1246 = vsel %vm797, %v1244, %v1242
        %v1247 = vmul.f32 %v1245, %v688
        %v1248 = vmul.f32 %v1246, %v689
        %1249 = vset.pattern.permute.xlu0 6
        %1250 = vperm.xlu0 %1249, %v1153
        %v1251 = vpop.permute.xlu0 %1250
        %v1253 = vmul.f32 %v1247, %v1251
        %v1254 = vmul.f32 %v1248, %v1251
        %v1255 = vadd.f32 %v1239, %v1253
        %v1256 = vadd.f32 %v1240, %v1254
        %1257 = vrot.lane.b32.xlu0 %v1150, 112
        %v1258 = vpop.permute.xlu0 %1257
        %1259 = vrot.lane.b32.xlu0 %v1151, 112
        %v1260 = vpop.permute.xlu0 %1259
        %v1261 = vsel %vm814, %v1258, %v1260
        %v1262 = vsel %vm814, %v1260, %v1258
        %v1263 = vmul.f32 %v1261, %v691
        %v1264 = vmul.f32 %v1262, %v692
        %1265 = vset.pattern.permute.xlu0 7
        %1266 = vperm.xlu0 %1265, %v1153
        %v1267 = vpop.permute.xlu0 %1266
        %v1269 = vmul.f32 %v1263, %v1267
        %v1270 = vmul.f32 %v1264, %v1267
        %v1271 = vadd.f32 %v1255, %v1269
        %v1272 = vadd.f32 %v1256, %v1270
        %1273 = vrot.lane.b32.xlu0 %v1150, 111
        %v1274 = vpop.permute.xlu0 %1273
        %1275 = vrot.lane.b32.xlu0 %v1151, 111
        %v1276 = vpop.permute.xlu0 %1275
        %v1277 = vsel %vm831, %v1274, %v1276
        %v1278 = vsel %vm831, %v1276, %v1274
        %v1279 = vmul.f32 %v1277, %v694
        %v1280 = vmul.f32 %v1278, %v695
        %1281 = vset.pattern.permute.xlu0 8
        %1282 = vperm.xlu0 %1281, %v1153
        %v1283 = vpop.permute.xlu0 %1282
        %v1285 = vmul.f32 %v1279, %v1283
        %v1286 = vmul.f32 %v1280, %v1283
        %v1287 = vadd.f32 %v1271, %v1285
        %v1288 = vadd.f32 %v1272, %v1286
        %s1289 = scalar_lea.vmem %s8, 8
        %v1290 = vld [vmem:[%s1289] sm:$0xff]
        %s1291 = scalar_lea.vmem %s9, 8
        %v1292 = vld [vmem:[%s1291] sm:$0xff]
        %1294 = vset.pattern.permute.xlu0 0
        %1295 = vperm.xlu0 %1294, %v1292
        %v1296 = vpop.permute.xlu0 %1295
        %v1299 = vsel %vm513, %v1290, 0
        %1301 = vmatprep.subr.mxu0 %v1288
        %1302 = vmatpush1.msra.mxu0 %v1287
        %1303 = vmatprep.subr.mxu0 0.0
        %1304 = vmatpush1.msra.mxu0 0.0
        %1305 = vmatprep.subr.mxu0 0.0
        %1306 = vmatpush1.msra.mxu0 0.0
        %1307 = vmatprep.subr.mxu0 0.0
        %1308 = vmatpush1.msra.mxu0 0.0
        %1309 = vmatprep.subr.mxu0 0.0
        %1310 = vmatpush1.msra.mxu0 0.0
        %1311 = vmatprep.subr.mxu0 0.0
        %1312 = vmatpush1.msra.mxu0 0.0
        %1313 = vmatprep.subr.mxu0 0.0
        %1314 = vmatpush1.msra.mxu0 0.0
        %1315 = vmatprep.subr.mxu0 0.0
        %1316 = vmatpush1.msra.mxu0 0.0
        %1317 = vmatprep.subr.mxu0 0.0
        %1318 = vmatpush1.msra.mxu0 0.0
        %1319 = vmatprep.subr.mxu0 0.0
        %1320 = vmatpush1.msra.mxu0 0.0
        %1321 = vmatprep.subr.mxu0 0.0
        %1322 = vmatpush1.msra.mxu0 0.0
        %1323 = vmatprep.subr.mxu0 0.0
        %1324 = vmatpush1.msra.mxu0 0.0
        %1325 = vmatprep.subr.mxu0 0.0
        %1326 = vmatpush1.msra.mxu0 0.0
        %1327 = vmatprep.subr.mxu0 0.0
        %1328 = vmatpush1.msra.mxu0 0.0
        %1329 = vmatprep.subr.mxu0 0.0
        %1330 = vmatpush1.msra.mxu0 0.0
        %1331 = vmatprep.subr.mxu0 0.0
        %1332 = vmatpush1.msra.mxu0 0.0
        %1333 = vmatprep.subr.mxu0 0.0
        %1334 = vmatpush1.msra.mxu0 0.0
        %1335 = vmatprep.subr.mxu0 0.0
        %1336 = vmatpush1.msra.mxu0 0.0
        %1337 = vmatprep.subr.mxu0 0.0
        %1338 = vmatpush1.msra.mxu0 0.0
        %1339 = vmatprep.subr.mxu0 0.0
        %1340 = vmatpush1.msra.mxu0 0.0
        %1341 = vmatprep.subr.mxu0 0.0
        %1342 = vmatpush1.msra.mxu0 0.0
        %1343 = vmatprep.subr.mxu0 0.0
        %1344 = vmatpush1.msra.mxu0 0.0
        %1345 = vmatprep.subr.mxu0 0.0
        %1346 = vmatpush1.msra.mxu0 0.0
        %1347 = vmatprep.subr.mxu0 0.0
        %1348 = vmatpush1.msra.mxu0 0.0
        %1349 = vmatprep.subr.mxu0 0.0
        %1350 = vmatpush1.msra.mxu0 0.0
        %1351 = vmatprep.subr.mxu0 0.0
        %1352 = vmatpush1.msra.mxu0 0.0
        %1353 = vmatprep.subr.mxu0 0.0
        %1354 = vmatpush1.msra.mxu0 0.0
        %1355 = vmatprep.subr.mxu0 0.0
        %1356 = vmatpush1.msra.mxu0 0.0
        %1357 = vmatprep.subr.mxu0 0.0
        %1358 = vmatpush1.msra.mxu0 0.0
        %1359 = vmatprep.subr.mxu0 0.0
        %1360 = vmatpush1.msra.mxu0 0.0
        %1361 = vmatprep.subr.mxu0 0.0
        %1362 = vmatpush1.msra.mxu0 0.0
        %1363 = vmatprep.subr.mxu0 0.0
        %1364 = vmatpush1.msra.mxu0 0.0
        %1365 = vmatprep.mubr.f32.mxu0 0.0
        %1366 = vmatmul.mubr.f32.gmra.mrb[0].mxu0 %v1299
        %v1367 = vpop.f32.mrb[0].mxu0
        %v1368 = vadd.f32 %v1296, %v1367
        %v1369 = vpop.f32.mrb[0].mxu0
        %v1370 = vadd.f32 %v1296, %v1369
        %1371 = vdwg.mxu0
        %v1372 = vmax.f32 %v1368, 0.0
        %v1373 = vmax.f32 %v1370, 0.0
        %s1374 = scalar_lea.vmem %s10, 8
        %v1375 = vld [vmem:[%s1374] sm:$0xff]
        %1377 = vset.pattern.permute.xlu0 4
        %1378 = vperm.xlu0 %1377, %v1375
        %v1379 = vpop.permute.xlu0 %1378
        %v1381 = vmul.f32 %v1372, %v1379
        %v1382 = vmul.f32 %v1373, %v1379
        %1383 = vrot.lane.b32.xlu0 %v1372, 17
        %v1384 = vpop.permute.xlu0 %1383
        %1385 = vrot.lane.b32.xlu0 %v1373, 17
        %v1386 = vpop.permute.xlu0 %1385
        %v1387 = vsel %vm712, %v1384, %v1386
        %v1388 = vsel %vm712, %v1386, %v1384
        %v1389 = vmul.f32 %v1388, %v673
        %v1390 = vmul.f32 %v1387, %v674
        %1391 = vset.pattern.permute.xlu0 0
        %1392 = vperm.xlu0 %1391, %v1375
        %v1393 = vpop.permute.xlu0 %1392
        %v1395 = vmul.f32 %v1389, %v1393
        %v1396 = vmul.f32 %v1390, %v1393
        %v1397 = vadd.f32 %v1381, %v1395
        %v1398 = vadd.f32 %v1382, %v1396
        %1399 = vrot.lane.b32.xlu0 %v1372, 16
        %v1400 = vpop.permute.xlu0 %1399
        %1401 = vrot.lane.b32.xlu0 %v1373, 16
        %v1402 = vpop.permute.xlu0 %1401
        %v1403 = vsel %vm729, %v1400, %v1402
        %v1404 = vsel %vm729, %v1402, %v1400
        %v1405 = vmul.f32 %v1404, %v676
        %v1406 = vmul.f32 %v1403, %v677
        %1407 = vset.pattern.permute.xlu0 1
        %1408 = vperm.xlu0 %1407, %v1375
        %v1409 = vpop.permute.xlu0 %1408
        %v1411 = vmul.f32 %v1405, %v1409
        %v1412 = vmul.f32 %v1406, %v1409
        %v1413 = vadd.f32 %v1397, %v1411
        %v1414 = vadd.f32 %v1398, %v1412
        %1415 = vrot.lane.b32.xlu0 %v1372, 15
        %v1416 = vpop.permute.xlu0 %1415
        %1417 = vrot.lane.b32.xlu0 %v1373, 15
        %v1418 = vpop.permute.xlu0 %1417
        %v1419 = vsel %vm746, %v1416, %v1418
        %v1420 = vsel %vm746, %v1418, %v1416
        %v1421 = vmul.f32 %v1420, %v679
        %v1422 = vmul.f32 %v1419, %v680
        %1423 = vset.pattern.permute.xlu0 2
        %1424 = vperm.xlu0 %1423, %v1375
        %v1425 = vpop.permute.xlu0 %1424
        %v1427 = vmul.f32 %v1421, %v1425
        %v1428 = vmul.f32 %v1422, %v1425
        %v1429 = vadd.f32 %v1413, %v1427
        %v1430 = vadd.f32 %v1414, %v1428
        %1431 = vrot.lane.b32.xlu0 %v1372, 1
        %v1432 = vpop.permute.xlu0 %1431
        %1433 = vrot.lane.b32.xlu0 %v1373, 1
        %v1434 = vpop.permute.xlu0 %1433
        %v1435 = vsel %vm763, %v1432, %v1434
        %v1436 = vsel %vm763, %v1434, %v1432
        %v1437 = vmul.f32 %v1436, %v682
        %v1438 = vmul.f32 %v1435, %v683
        %1439 = vset.pattern.permute.xlu0 3
        %1440 = vperm.xlu0 %1439, %v1375
        %v1441 = vpop.permute.xlu0 %1440
        %v1443 = vmul.f32 %v1437, %v1441
        %v1444 = vmul.f32 %v1438, %v1441
        %v1445 = vadd.f32 %v1429, %v1443
        %v1446 = vadd.f32 %v1430, %v1444
        %1447 = vrot.lane.b32.xlu0 %v1372, 127
        %v1448 = vpop.permute.xlu0 %1447
        %1449 = vrot.lane.b32.xlu0 %v1373, 127
        %v1450 = vpop.permute.xlu0 %1449
        %v1451 = vsel %vm780, %v1448, %v1450
        %v1452 = vsel %vm780, %v1450, %v1448
        %v1453 = vmul.f32 %v1451, %v685
        %v1454 = vmul.f32 %v1452, %v686
        %1455 = vset.pattern.permute.xlu0 5
        %1456 = vperm.xlu0 %1455, %v1375
        %v1457 = vpop.permute.xlu0 %1456
        %v1459 = vmul.f32 %v1453, %v1457
        %v1460 = vmul.f32 %v1454, %v1457
        %v1461 = vadd.f32 %v1445, %v1459
        %v1462 = vadd.f32 %v1446, %v1460
        %1463 = vrot.lane.b32.xlu0 %v1372, 113
        %v1464 = vpop.permute.xlu0 %1463
        %1465 = vrot.lane.b32.xlu0 %v1373, 113
        %v1466 = vpop.permute.xlu0 %1465
        %v1467 = vsel %vm797, %v1464, %v1466
        %v1468 = vsel %vm797, %v1466, %v1464
        %v1469 = vmul.f32 %v1467, %v688
        %v1470 = vmul.f32 %v1468, %v689
        %1471 = vset.pattern.permute.xlu0 6
        %1472 = vperm.xlu0 %1471, %v1375
        %v1473 = vpop.permute.xlu0 %1472
        %v1475 = vmul.f32 %v1469, %v1473
        %v1476 = vmul.f32 %v1470, %v1473
        %v1477 = vadd.f32 %v1461, %v1475
        %v1478 = vadd.f32 %v1462, %v1476
        %1479 = vrot.lane.b32.xlu0 %v1372, 112
        %v1480 = vpop.permute.xlu0 %1479
        %1481 = vrot.lane.b32.xlu0 %v1373, 112
        %v1482 = vpop.permute.xlu0 %1481
        %v1483 = vsel %vm814, %v1480, %v1482
        %v1484 = vsel %vm814, %v1482, %v1480
        %v1485 = vmul.f32 %v1483, %v691
        %v1486 = vmul.f32 %v1484, %v692
        %1487 = vset.pattern.permute.xlu0 7
        %1488 = vperm.xlu0 %1487, %v1375
        %v1489 = vpop.permute.xlu0 %1488
        %v1491 = vmul.f32 %v1485, %v1489
        %v1492 = vmul.f32 %v1486, %v1489
        %v1493 = vadd.f32 %v1477, %v1491
        %v1494 = vadd.f32 %v1478, %v1492
        %1495 = vrot.lane.b32.xlu0 %v1372, 111
        %v1496 = vpop.permute.xlu0 %1495
        %1497 = vrot.lane.b32.xlu0 %v1373, 111
        %v1498 = vpop.permute.xlu0 %1497
        %v1499 = vsel %vm831, %v1496, %v1498
        %v1500 = vsel %vm831, %v1498, %v1496
        %v1501 = vmul.f32 %v1499, %v694
        %v1502 = vmul.f32 %v1500, %v695
        %1503 = vset.pattern.permute.xlu0 8
        %1504 = vperm.xlu0 %1503, %v1375
        %v1505 = vpop.permute.xlu0 %1504
        %v1507 = vmul.f32 %v1501, %v1505
        %v1508 = vmul.f32 %v1502, %v1505
        %v1509 = vadd.f32 %v1493, %v1507
        %v1510 = vadd.f32 %v1494, %v1508
        %s1511 = scalar_lea.vmem %s11, 8
        %v1512 = vld [vmem:[%s1511] sm:$0xff]
        %s1513 = scalar_lea.vmem %s12, 8
        %v1514 = vld [vmem:[%s1513] sm:$0xff]
        %1516 = vset.pattern.permute.xlu0 0
        %1517 = vperm.xlu0 %1516, %v1514
        %v1518 = vpop.permute.xlu0 %1517
        %v1521 = vsel %vm513, %v1512, 0
        %1523 = vmatprep.subr.mxu0 %v1510
        %1524 = vmatpush1.msra.mxu0 %v1509
        %1525 = vmatprep.subr.mxu0 0.0
        %1526 = vmatpush1.msra.mxu0 0.0
        %1527 = vmatprep.subr.mxu0 0.0
        %1528 = vmatpush1.msra.mxu0 0.0
        %1529 = vmatprep.subr.mxu0 0.0
        %1530 = vmatpush1.msra.mxu0 0.0
        %1531 = vmatprep.subr.mxu0 0.0
        %1532 = vmatpush1.msra.mxu0 0.0
        %1533 = vmatprep.subr.mxu0 0.0
        %1534 = vmatpush1.msra.mxu0 0.0
        %1535 = vmatprep.subr.mxu0 0.0
        %1536 = vmatpush1.msra.mxu0 0.0
        %1537 = vmatprep.subr.mxu0 0.0
        %1538 = vmatpush1.msra.mxu0 0.0
        %1539 = vmatprep.subr.mxu0 0.0
        %1540 = vmatpush1.msra.mxu0 0.0
        %1541 = vmatprep.subr.mxu0 0.0
        %1542 = vmatpush1.msra.mxu0 0.0
        %1543 = vmatprep.subr.mxu0 0.0
        %1544 = vmatpush1.msra.mxu0 0.0
        %1545 = vmatprep.subr.mxu0 0.0
        %1546 = vmatpush1.msra.mxu0 0.0
        %1547 = vmatprep.subr.mxu0 0.0
        %1548 = vmatpush1.msra.mxu0 0.0
        %1549 = vmatprep.subr.mxu0 0.0
        %1550 = vmatpush1.msra.mxu0 0.0
        %1551 = vmatprep.subr.mxu0 0.0
        %1552 = vmatpush1.msra.mxu0 0.0
        %1553 = vmatprep.subr.mxu0 0.0
        %1554 = vmatpush1.msra.mxu0 0.0
        %1555 = vmatprep.subr.mxu0 0.0
        %1556 = vmatpush1.msra.mxu0 0.0
        %1557 = vmatprep.subr.mxu0 0.0
        %1558 = vmatpush1.msra.mxu0 0.0
        %1559 = vmatprep.subr.mxu0 0.0
        %1560 = vmatpush1.msra.mxu0 0.0
        %1561 = vmatprep.subr.mxu0 0.0
        %1562 = vmatpush1.msra.mxu0 0.0
        %1563 = vmatprep.subr.mxu0 0.0
        %1564 = vmatpush1.msra.mxu0 0.0
        %1565 = vmatprep.subr.mxu0 0.0
        %1566 = vmatpush1.msra.mxu0 0.0
        %1567 = vmatprep.subr.mxu0 0.0
        %1568 = vmatpush1.msra.mxu0 0.0
        %1569 = vmatprep.subr.mxu0 0.0
        %1570 = vmatpush1.msra.mxu0 0.0
        %1571 = vmatprep.subr.mxu0 0.0
        %1572 = vmatpush1.msra.mxu0 0.0
        %1573 = vmatprep.subr.mxu0 0.0
        %1574 = vmatpush1.msra.mxu0 0.0
        %1575 = vmatprep.subr.mxu0 0.0
        %1576 = vmatpush1.msra.mxu0 0.0
        %1577 = vmatprep.subr.mxu0 0.0
        %1578 = vmatpush1.msra.mxu0 0.0
        %1579 = vmatprep.subr.mxu0 0.0
        %1580 = vmatpush1.msra.mxu0 0.0
        %1581 = vmatprep.subr.mxu0 0.0
        %1582 = vmatpush1.msra.mxu0 0.0
        %1583 = vmatprep.subr.mxu0 0.0
        %1584 = vmatpush1.msra.mxu0 0.0
        %1585 = vmatprep.subr.mxu0 0.0
        %1586 = vmatpush1.msra.mxu0 0.0
        %1587 = vmatprep.mubr.f32.mxu0 0.0
        %1588 = vmatmul.mubr.f32.gmra.mrb[0].mxu0 %v1521
        %v1589 = vpop.f32.mrb[0].mxu0
        %v1590 = vadd.f32 %v1518, %v1589
        %v1591 = vpop.f32.mrb[0].mxu0
        %v1592 = vadd.f32 %v1518, %v1591
        %1593 = vdwg.mxu0
        %s1594 = sld [smem:[#allocation2 + $0x1]]
        %v1595 = vstv %s1594
        %v1596 = vmul.f32 %v1595, %v669
        %v1597 = vmul.f32 %v1595, %v671
        %v1598 = vadd.f32 %v1596, %v1590
        %v1599 = vadd.f32 %v1597, %v1592
        %v1600 = vadd.f32 %v1148, %v1598
        %v1601 = vadd.f32 %v1149, %v1599
        %s1602 = scalar_lea.vmem %s7, 16
        %v1603 = vld [vmem:[%s1602] sm:$0xff]
        %1605 = vset.pattern.permute.xlu0 4
        %1606 = vperm.xlu0 %1605, %v1603
        %v1607 = vpop.permute.xlu0 %1606
        %v1609 = vmul.f32 %v696, %v1607
        %v1610 = vmul.f32 %v697, %v1607
        %1611 = vset.pattern.permute.xlu0 0
        %1612 = vperm.xlu0 %1611, %v1603
        %v1613 = vpop.permute.xlu0 %1612
        %v1615 = vmul.f32 %v715, %v1613
        %v1616 = vmul.f32 %v716, %v1613
        %v1617 = vadd.f32 %v1609, %v1615
        %v1618 = vadd.f32 %v1610, %v1616
        %1619 = vset.pattern.permute.xlu0 1
        %1620 = vperm.xlu0 %1619, %v1603
        %v1621 = vpop.permute.xlu0 %1620
        %v1623 = vmul.f32 %v732, %v1621
        %v1624 = vmul.f32 %v733, %v1621
        %v1625 = vadd.f32 %v1617, %v1623
        %v1626 = vadd.f32 %v1618, %v1624
        %1627 = vset.pattern.permute.xlu0 2
        %1628 = vperm.xlu0 %1627, %v1603
        %v1629 = vpop.permute.xlu0 %1628
        %v1631 = vmul.f32 %v749, %v1629
        %v1632 = vmul.f32 %v750, %v1629
        %v1633 = vadd.f32 %v1625, %v1631
        %v1634 = vadd.f32 %v1626, %v1632
        %1635 = vset.pattern.permute.xlu0 3
        %1636 = vperm.xlu0 %1635, %v1603
        %v1637 = vpop.permute.xlu0 %1636
        %v1639 = vmul.f32 %v766, %v1637
        %v1640 = vmul.f32 %v767, %v1637
        %v1641 = vadd.f32 %v1633, %v1639
        %v1642 = vadd.f32 %v1634, %v1640
        %1643 = vset.pattern.permute.xlu0 5
        %1644 = vperm.xlu0 %1643, %v1603
        %v1645 = vpop.permute.xlu0 %1644
        %v1647 = vmul.f32 %v783, %v1645
        %v1648 = vmul.f32 %v784, %v1645
        %v1649 = vadd.f32 %v1641, %v1647
        %v1650 = vadd.f32 %v1642, %v1648
        %1651 = vset.pattern.permute.xlu0 6
        %1652 = vperm.xlu0 %1651, %v1603
        %v1653 = vpop.permute.xlu0 %1652
        %v1655 = vmul.f32 %v800, %v1653
        %v1656 = vmul.f32 %v801, %v1653
        %v1657 = vadd.f32 %v1649, %v1655
        %v1658 = vadd.f32 %v1650, %v1656
        %1659 = vset.pattern.permute.xlu0 7
        %1660 = vperm.xlu0 %1659, %v1603
        %v1661 = vpop.permute.xlu0 %1660
        %v1663 = vmul.f32 %v817, %v1661
        %v1664 = vmul.f32 %v818, %v1661
        %v1665 = vadd.f32 %v1657, %v1663
        %v1666 = vadd.f32 %v1658, %v1664
        %1667 = vset.pattern.permute.xlu0 8
        %1668 = vperm.xlu0 %1667, %v1603
        %v1669 = vpop.permute.xlu0 %1668
        %v1671 = vmul.f32 %v834, %v1669
        %v1672 = vmul.f32 %v835, %v1669
        %v1673 = vadd.f32 %v1665, %v1671
        %v1674 = vadd.f32 %v1666, %v1672
        %s1675 = scalar_lea.vmem %s8, 16
        %v1676 = vld [vmem:[%s1675] sm:$0xff]
        %s1677 = scalar_lea.vmem %s9, 16
        %v1678 = vld [vmem:[%s1677] sm:$0xff]
        %1680 = vset.pattern.permute.xlu0 0
        %1681 = vperm.xlu0 %1680, %v1678
        %v1682 = vpop.permute.xlu0 %1681
        %v1685 = vsel %vm513, %v1676, 0
        %1687 = vmatprep.subr.mxu0 %v1674
        %1688 = vmatpush1.msra.mxu0 %v1673
        %1689 = vmatprep.subr.mxu0 0.0
        %1690 = vmatpush1.msra.mxu0 0.0
        %1691 = vmatprep.subr.mxu0 0.0
        %1692 = vmatpush1.msra.mxu0 0.0
        %1693 = vmatprep.subr.mxu0 0.0
        %1694 = vmatpush1.msra.mxu0 0.0
        %1695 = vmatprep.subr.mxu0 0.0
        %1696 = vmatpush1.msra.mxu0 0.0
        %1697 = vmatprep.subr.mxu0 0.0
        %1698 = vmatpush1.msra.mxu0 0.0
        %1699 = vmatprep.subr.mxu0 0.0
        %1700 = vmatpush1.msra.mxu0 0.0
        %1701 = vmatprep.subr.mxu0 0.0
        %1702 = vmatpush1.msra.mxu0 0.0
        %1703 = vmatprep.subr.mxu0 0.0
        %1704 = vmatpush1.msra.mxu0 0.0
        %1705 = vmatprep.subr.mxu0 0.0
        %1706 = vmatpush1.msra.mxu0 0.0
        %1707 = vmatprep.subr.mxu0 0.0
        %1708 = vmatpush1.msra.mxu0 0.0
        %1709 = vmatprep.subr.mxu0 0.0
        %1710 = vmatpush1.msra.mxu0 0.0
        %1711 = vmatprep.subr.mxu0 0.0
        %1712 = vmatpush1.msra.mxu0 0.0
        %1713 = vmatprep.subr.mxu0 0.0
        %1714 = vmatpush1.msra.mxu0 0.0
        %1715 = vmatprep.subr.mxu0 0.0
        %1716 = vmatpush1.msra.mxu0 0.0
        %1717 = vmatprep.subr.mxu0 0.0
        %1718 = vmatpush1.msra.mxu0 0.0
        %1719 = vmatprep.subr.mxu0 0.0
        %1720 = vmatpush1.msra.mxu0 0.0
        %1721 = vmatprep.subr.mxu0 0.0
        %1722 = vmatpush1.msra.mxu0 0.0
        %1723 = vmatprep.subr.mxu0 0.0
        %1724 = vmatpush1.msra.mxu0 0.0
        %1725 = vmatprep.subr.mxu0 0.0
        %1726 = vmatpush1.msra.mxu0 0.0
        %1727 = vmatprep.subr.mxu0 0.0
        %1728 = vmatpush1.msra.mxu0 0.0
        %1729 = vmatprep.subr.mxu0 0.0
        %1730 = vmatpush1.msra.mxu0 0.0
        %1731 = vmatprep.subr.mxu0 0.0
        %1732 = vmatpush1.msra.mxu0 0.0
        %1733 = vmatprep.subr.mxu0 0.0
        %1734 = vmatpush1.msra.mxu0 0.0
        %1735 = vmatprep.subr.mxu0 0.0
        %1736 = vmatpush1.msra.mxu0 0.0
        %1737 = vmatprep.subr.mxu0 0.0
        %1738 = vmatpush1.msra.mxu0 0.0
        %1739 = vmatprep.subr.mxu0 0.0
        %1740 = vmatpush1.msra.mxu0 0.0
        %1741 = vmatprep.subr.mxu0 0.0
        %1742 = vmatpush1.msra.mxu0 0.0
        %1743 = vmatprep.subr.mxu0 0.0
        %1744 = vmatpush1.msra.mxu0 0.0
        %1745 = vmatprep.subr.mxu0 0.0
        %1746 = vmatpush1.msra.mxu0 0.0
        %1747 = vmatprep.subr.mxu0 0.0
        %1748 = vmatpush1.msra.mxu0 0.0
        %1749 = vmatprep.subr.mxu0 0.0
        %1750 = vmatpush1.msra.mxu0 0.0
        %1751 = vmatprep.mubr.f32.mxu0 0.0
        %1752 = vmatmul.mubr.f32.gmra.mrb[0].mxu0 %v1685
        %v1753 = vpop.f32.mrb[0].mxu0
        %v1754 = vadd.f32 %v1682, %v1753
        %v1755 = vpop.f32.mrb[0].mxu0
        %v1756 = vadd.f32 %v1682, %v1755
        %1757 = vdwg.mxu0
        %v1758 = vmax.f32 %v1754, 0.0
        %v1759 = vmax.f32 %v1756, 0.0
        %s1760 = scalar_lea.vmem %s10, 16
        %v1761 = vld [vmem:[%s1760] sm:$0xff]
        %1763 = vset.pattern.permute.xlu0 4
        %1764 = vperm.xlu0 %1763, %v1761
        %v1765 = vpop.permute.xlu0 %1764
        %v1767 = vmul.f32 %v1758, %v1765
        %v1768 = vmul.f32 %v1759, %v1765
        %1769 = vrot.lane.b32.xlu0 %v1758, 17
        %v1770 = vpop.permute.xlu0 %1769
        %1771 = vrot.lane.b32.xlu0 %v1759, 17
        %v1772 = vpop.permute.xlu0 %1771
        %v1773 = vsel %vm712, %v1770, %v1772
        %v1774 = vsel %vm712, %v1772, %v1770
        %v1775 = vmul.f32 %v1774, %v673
        %v1776 = vmul.f32 %v1773, %v674
        %1777 = vset.pattern.permute.xlu0 0
        %1778 = vperm.xlu0 %1777, %v1761
        %v1779 = vpop.permute.xlu0 %1778
        %v1781 = vmul.f32 %v1775, %v1779
        %v1782 = vmul.f32 %v1776, %v1779
        %v1783 = vadd.f32 %v1767, %v1781
        %v1784 = vadd.f32 %v1768, %v1782
        %1785 = vrot.lane.b32.xlu0 %v1758, 16
        %v1786 = vpop.permute.xlu0 %1785
        %1787 = vrot.lane.b32.xlu0 %v1759, 16
        %v1788 = vpop.permute.xlu0 %1787
        %v1789 = vsel %vm729, %v1786, %v1788
        %v1790 = vsel %vm729, %v1788, %v1786
        %v1791 = vmul.f32 %v1790, %v676
        %v1792 = vmul.f32 %v1789, %v677
        %1793 = vset.pattern.permute.xlu0 1
        %1794 = vperm.xlu0 %1793, %v1761
        %v1795 = vpop.permute.xlu0 %1794
        %v1797 = vmul.f32 %v1791, %v1795
        %v1798 = vmul.f32 %v1792, %v1795
        %v1799 = vadd.f32 %v1783, %v1797
        %v1800 = vadd.f32 %v1784, %v1798
        %1801 = vrot.lane.b32.xlu0 %v1758, 15
        %v1802 = vpop.permute.xlu0 %1801
        %1803 = vrot.lane.b32.xlu0 %v1759, 15
        %v1804 = vpop.permute.xlu0 %1803
        %v1805 = vsel %vm746, %v1802, %v1804
        %v1806 = vsel %vm746, %v1804, %v1802
        %v1807 = vmul.f32 %v1806, %v679
        %v1808 = vmul.f32 %v1805, %v680
        %1809 = vset.pattern.permute.xlu0 2
        %1810 = vperm.xlu0 %1809, %v1761
        %v1811 = vpop.permute.xlu0 %1810
        %v1813 = vmul.f32 %v1807, %v1811
        %v1814 = vmul.f32 %v1808, %v1811
        %v1815 = vadd.f32 %v1799, %v1813
        %v1816 = vadd.f32 %v1800, %v1814
        %1817 = vrot.lane.b32.xlu0 %v1758, 1
        %v1818 = vpop.permute.xlu0 %1817
        %1819 = vrot.lane.b32.xlu0 %v1759, 1
        %v1820 = vpop.permute.xlu0 %1819
        %v1821 = vsel %vm763, %v1818, %v1820
        %v1822 = vsel %vm763, %v1820, %v1818
        %v1823 = vmul.f32 %v1822, %v682
        %v1824 = vmul.f32 %v1821, %v683
        %1825 = vset.pattern.permute.xlu0 3
        %1826 = vperm.xlu0 %1825, %v1761
        %v1827 = vpop.permute.xlu0 %1826
        %v1829 = vmul.f32 %v1823, %v1827
        %v1830 = vmul.f32 %v1824, %v1827
        %v1831 = vadd.f32 %v1815, %v1829
        %v1832 = vadd.f32 %v1816, %v1830
        %1833 = vrot.lane.b32.xlu0 %v1758, 127
        %v1834 = vpop.permute.xlu0 %1833
        %1835 = vrot.lane.b32.xlu0 %v1759, 127
        %v1836 = vpop.permute.xlu0 %1835
        %v1837 = vsel %vm780, %v1834, %v1836
        %v1838 = vsel %vm780, %v1836, %v1834
        %v1839 = vmul.f32 %v1837, %v685
        %v1840 = vmul.f32 %v1838, %v686
        %1841 = vset.pattern.permute.xlu0 5
        %1842 = vperm.xlu0 %1841, %v1761
        %v1843 = vpop.permute.xlu0 %1842
        %v1845 = vmul.f32 %v1839, %v1843
        %v1846 = vmul.f32 %v1840, %v1843
        %v1847 = vadd.f32 %v1831, %v1845
        %v1848 = vadd.f32 %v1832, %v1846
        %1849 = vrot.lane.b32.xlu0 %v1758, 113
        %v1850 = vpop.permute.xlu0 %1849
        %1851 = vrot.lane.b32.xlu0 %v1759, 113
        %v1852 = vpop.permute.xlu0 %1851
        %v1853 = vsel %vm797, %v1850, %v1852
        %v1854 = vsel %vm797, %v1852, %v1850
        %v1855 = vmul.f32 %v1853, %v688
        %v1856 = vmul.f32 %v1854, %v689
        %1857 = vset.pattern.permute.xlu0 6
        %1858 = vperm.xlu0 %1857, %v1761
        %v1859 = vpop.permute.xlu0 %1858
        %v1861 = vmul.f32 %v1855, %v1859
        %v1862 = vmul.f32 %v1856, %v1859
        %v1863 = vadd.f32 %v1847, %v1861
        %v1864 = vadd.f32 %v1848, %v1862
        %1865 = vrot.lane.b32.xlu0 %v1758, 112
        %v1866 = vpop.permute.xlu0 %1865
        %1867 = vrot.lane.b32.xlu0 %v1759, 112
        %v1868 = vpop.permute.xlu0 %1867
        %v1869 = vsel %vm814, %v1866, %v1868
        %v1870 = vsel %vm814, %v1868, %v1866
        %v1871 = vmul.f32 %v1869, %v691
        %v1872 = vmul.f32 %v1870, %v692
        %1873 = vset.pattern.permute.xlu0 7
        %1874 = vperm.xlu0 %1873, %v1761
        %v1875 = vpop.permute.xlu0 %1874
        %v1877 = vmul.f32 %v1871, %v1875
        %v1878 = vmul.f32 %v1872, %v1875
        %v1879 = vadd.f32 %v1863, %v1877
        %v1880 = vadd.f32 %v1864, %v1878
        %1881 = vrot.lane.b32.xlu0 %v1758, 111
        %v1882 = vpop.permute.xlu0 %1881
        %1883 = vrot.lane.b32.xlu0 %v1759, 111
        %v1884 = vpop.permute.xlu0 %1883
        %v1885 = vsel %vm831, %v1882, %v1884
        %v1886 = vsel %vm831, %v1884, %v1882
        %v1887 = vmul.f32 %v1885, %v694
        %v1888 = vmul.f32 %v1886, %v695
        %1889 = vset.pattern.permute.xlu0 8
        %1890 = vperm.xlu0 %1889, %v1761
        %v1891 = vpop.permute.xlu0 %1890
        %v1893 = vmul.f32 %v1887, %v1891
        %v1894 = vmul.f32 %v1888, %v1891
        %v1895 = vadd.f32 %v1879, %v1893
        %v1896 = vadd.f32 %v1880, %v1894
        %s1897 = scalar_lea.vmem %s11, 16
        %v1898 = vld [vmem:[%s1897] sm:$0xff]
        %s1899 = scalar_lea.vmem %s12, 16
        %v1900 = vld [vmem:[%s1899] sm:$0xff]
        %1902 = vset.pattern.permute.xlu0 0
        %1903 = vperm.xlu0 %1902, %v1900
        %v1904 = vpop.permute.xlu0 %1903
        %v1907 = vsel %vm513, %v1898, 0
        %1909 = vmatprep.subr.mxu0 %v1896
        %1910 = vmatpush1.msra.mxu0 %v1895
        %1911 = vmatprep.subr.mxu0 0.0
        %1912 = vmatpush1.msra.mxu0 0.0
        %1913 = vmatprep.subr.mxu0 0.0
        %1914 = vmatpush1.msra.mxu0 0.0
        %1915 = vmatprep.subr.mxu0 0.0
        %1916 = vmatpush1.msra.mxu0 0.0
        %1917 = vmatprep.subr.mxu0 0.0
        %1918 = vmatpush1.msra.mxu0 0.0
        %1919 = vmatprep.subr.mxu0 0.0
        %1920 = vmatpush1.msra.mxu0 0.0
        %1921 = vmatprep.subr.mxu0 0.0
        %1922 = vmatpush1.msra.mxu0 0.0
        %1923 = vmatprep.subr.mxu0 0.0
        %1924 = vmatpush1.msra.mxu0 0.0
        %1925 = vmatprep.subr.mxu0 0.0
        %1926 = vmatpush1.msra.mxu0 0.0
        %1927 = vmatprep.subr.mxu0 0.0
        %1928 = vmatpush1.msra.mxu0 0.0
        %1929 = vmatprep.subr.mxu0 0.0
        %1930 = vmatpush1.msra.mxu0 0.0
        %1931 = vmatprep.subr.mxu0 0.0
        %1932 = vmatpush1.msra.mxu0 0.0
        %1933 = vmatprep.subr.mxu0 0.0
        %1934 = vmatpush1.msra.mxu0 0.0
        %1935 = vmatprep.subr.mxu0 0.0
        %1936 = vmatpush1.msra.mxu0 0.0
        %1937 = vmatprep.subr.mxu0 0.0
        %1938 = vmatpush1.msra.mxu0 0.0
        %1939 = vmatprep.subr.mxu0 0.0
        %1940 = vmatpush1.msra.mxu0 0.0
        %1941 = vmatprep.subr.mxu0 0.0
        %1942 = vmatpush1.msra.mxu0 0.0
        %1943 = vmatprep.subr.mxu0 0.0
        %1944 = vmatpush1.msra.mxu0 0.0
        %1945 = vmatprep.subr.mxu0 0.0
        %1946 = vmatpush1.msra.mxu0 0.0
        %1947 = vmatprep.subr.mxu0 0.0
        %1948 = vmatpush1.msra.mxu0 0.0
        %1949 = vmatprep.subr.mxu0 0.0
        %1950 = vmatpush1.msra.mxu0 0.0
        %1951 = vmatprep.subr.mxu0 0.0
        %1952 = vmatpush1.msra.mxu0 0.0
        %1953 = vmatprep.subr.mxu0 0.0
        %1954 = vmatpush1.msra.mxu0 0.0
        %1955 = vmatprep.subr.mxu0 0.0
        %1956 = vmatpush1.msra.mxu0 0.0
        %1957 = vmatprep.subr.mxu0 0.0
        %1958 = vmatpush1.msra.mxu0 0.0
        %1959 = vmatprep.subr.mxu0 0.0
        %1960 = vmatpush1.msra.mxu0 0.0
        %1961 = vmatprep.subr.mxu0 0.0
        %1962 = vmatpush1.msra.mxu0 0.0
        %1963 = vmatprep.subr.mxu0 0.0
        %1964 = vmatpush1.msra.mxu0 0.0
        %1965 = vmatprep.subr.mxu0 0.0
        %1966 = vmatpush1.msra.mxu0 0.0
        %1967 = vmatprep.subr.mxu0 0.0
        %1968 = vmatpush1.msra.mxu0 0.0
        %1969 = vmatprep.subr.mxu0 0.0
        %1970 = vmatpush1.msra.mxu0 0.0
        %1971 = vmatprep.subr.mxu0 0.0
        %1972 = vmatpush1.msra.mxu0 0.0
        %1973 = vmatprep.mubr.f32.mxu0 0.0
        %1974 = vmatmul.mubr.f32.gmra.mrb[0].mxu0 %v1907
        %v1975 = vpop.f32.mrb[0].mxu0
        %v1976 = vadd.f32 %v1904, %v1975
        %v1977 = vpop.f32.mrb[0].mxu0
        %v1978 = vadd.f32 %v1904, %v1977
        %1979 = vdwg.mxu0
        %s1980 = sld [smem:[#allocation2 + $0x2]]
        %v1981 = vstv %s1980
        %v1982 = vmul.f32 %v1981, %v584
        %v1983 = vmul.f32 %v1981, %v586
        %v1984 = vadd.f32 %v1982, %v1976
        %v1985 = vadd.f32 %v1983, %v1978
        %s1986 = scalar_lea.vmem %s7, 24
        %v1987 = vld [vmem:[%s1986] sm:$0xff]
        %1989 = vset.pattern.permute.xlu0 4
        %1990 = vperm.xlu0 %1989, %v1987
        %v1991 = vpop.permute.xlu0 %1990
        %v1993 = vmul.f32 %v1150, %v1991
        %v1994 = vmul.f32 %v1151, %v1991
        %1995 = vset.pattern.permute.xlu0 0
        %1996 = vperm.xlu0 %1995, %v1987
        %v1997 = vpop.permute.xlu0 %1996
        %v1999 = vmul.f32 %v1167, %v1997
        %v2000 = vmul.f32 %v1168, %v1997
        %v2001 = vadd.f32 %v1993, %v1999
        %v2002 = vadd.f32 %v1994, %v2000
        %2003 = vset.pattern.permute.xlu0 1
        %2004 = vperm.xlu0 %2003, %v1987
        %v2005 = vpop.permute.xlu0 %2004
        %v2007 = vmul.f32 %v1183, %v2005
        %v2008 = vmul.f32 %v1184, %v2005
        %v2009 = vadd.f32 %v2001, %v2007
        %v2010 = vadd.f32 %v2002, %v2008
        %2011 = vset.pattern.permute.xlu0 2
        %2012 = vperm.xlu0 %2011, %v1987
        %v2013 = vpop.permute.xlu0 %2012
        %v2015 = vmul.f32 %v1199, %v2013
        %v2016 = vmul.f32 %v1200, %v2013
        %v2017 = vadd.f32 %v2009, %v2015
        %v2018 = vadd.f32 %v2010, %v2016
        %2019 = vset.pattern.permute.xlu0 3
        %2020 = vperm.xlu0 %2019, %v1987
        %v2021 = vpop.permute.xlu0 %2020
        %v2023 = vmul.f32 %v1215, %v2021
        %v2024 = vmul.f32 %v1216, %v2021
        %v2025 = vadd.f32 %v2017, %v2023
        %v2026 = vadd.f32 %v2018, %v2024
        %2027 = vset.pattern.permute.xlu0 5
        %2028 = vperm.xlu0 %2027, %v1987
        %v2029 = vpop.permute.xlu0 %2028
        %v2031 = vmul.f32 %v1231, %v2029
        %v2032 = vmul.f32 %v1232, %v2029
        %v2033 = vadd.f32 %v2025, %v2031
        %v2034 = vadd.f32 %v2026, %v2032
        %2035 = vset.pattern.permute.xlu0 6
        %2036 = vperm.xlu0 %2035, %v1987
        %v2037 = vpop.permute.xlu0 %2036
        %v2039 = vmul.f32 %v1247, %v2037
        %v2040 = vmul.f32 %v1248, %v2037
        %v2041 = vadd.f32 %v2033, %v2039
        %v2042 = vadd.f32 %v2034, %v2040
        %2043 = vset.pattern.permute.xlu0 7
        %2044 = vperm.xlu0 %2043, %v1987
        %v2045 = vpop.permute.xlu0 %2044
        %v2047 = vmul.f32 %v1263, %v2045
        %v2048 = vmul.f32 %v1264, %v2045
        %v2049 = vadd.f32 %v2041, %v2047
        %v2050 = vadd.f32 %v2042, %v2048
        %2051 = vset.pattern.permute.xlu0 8
        %2052 = vperm.xlu0 %2051, %v1987
        %v2053 = vpop.permute.xlu0 %2052
        %v2055 = vmul.f32 %v1279, %v2053
        %v2056 = vmul.f32 %v1280, %v2053
        %v2057 = vadd.f32 %v2049, %v2055
        %v2058 = vadd.f32 %v2050, %v2056
        %s2059 = scalar_lea.vmem %s8, 24
        %v2060 = vld [vmem:[%s2059] sm:$0xff]
        %s2061 = scalar_lea.vmem %s9, 24
        %v2062 = vld [vmem:[%s2061] sm:$0xff]
        %2064 = vset.pattern.permute.xlu0 0
        %2065 = vperm.xlu0 %2064, %v2062
        %v2066 = vpop.permute.xlu0 %2065
        %v2069 = vsel %vm513, %v2060, 0
        %2071 = vmatprep.subr.mxu0 %v2058
        %2072 = vmatpush1.msra.mxu0 %v2057
        %2073 = vmatprep.subr.mxu0 0.0
        %2074 = vmatpush1.msra.mxu0 0.0
        %2075 = vmatprep.subr.mxu0 0.0
        %2076 = vmatpush1.msra.mxu0 0.0
        %2077 = vmatprep.subr.mxu0 0.0
        %2078 = vmatpush1.msra.mxu0 0.0
        %2079 = vmatprep.subr.mxu0 0.0
        %2080 = vmatpush1.msra.mxu0 0.0
        %2081 = vmatprep.subr.mxu0 0.0
        %2082 = vmatpush1.msra.mxu0 0.0
        %2083 = vmatprep.subr.mxu0 0.0
        %2084 = vmatpush1.msra.mxu0 0.0
        %2085 = vmatprep.subr.mxu0 0.0
        %2086 = vmatpush1.msra.mxu0 0.0
        %2087 = vmatprep.subr.mxu0 0.0
        %2088 = vmatpush1.msra.mxu0 0.0
        %2089 = vmatprep.subr.mxu0 0.0
        %2090 = vmatpush1.msra.mxu0 0.0
        %2091 = vmatprep.subr.mxu0 0.0
        %2092 = vmatpush1.msra.mxu0 0.0
        %2093 = vmatprep.subr.mxu0 0.0
        %2094 = vmatpush1.msra.mxu0 0.0
        %2095 = vmatprep.subr.mxu0 0.0
        %2096 = vmatpush1.msra.mxu0 0.0
        %2097 = vmatprep.subr.mxu0 0.0
        %2098 = vmatpush1.msra.mxu0 0.0
        %2099 = vmatprep.subr.mxu0 0.0
        %2100 = vmatpush1.msra.mxu0 0.0
        %2101 = vmatprep.subr.mxu0 0.0
        %2102 = vmatpush1.msra.mxu0 0.0
        %2103 = vmatprep.subr.mxu0 0.0
        %2104 = vmatpush1.msra.mxu0 0.0
        %2105 = vmatprep.subr.mxu0 0.0
        %2106 = vmatpush1.msra.mxu0 0.0
        %2107 = vmatprep.subr.mxu0 0.0
        %2108 = vmatpush1.msra.mxu0 0.0
        %2109 = vmatprep.subr.mxu0 0.0
        %2110 = vmatpush1.msra.mxu0 0.0
        %2111 = vmatprep.subr.mxu0 0.0
        %2112 = vmatpush1.msra.mxu0 0.0
        %2113 = vmatprep.subr.mxu0 0.0
        %2114 = vmatpush1.msra.mxu0 0.0
        %2115 = vmatprep.subr.mxu0 0.0
        %2116 = vmatpush1.msra.mxu0 0.0
        %2117 = vmatprep.subr.mxu0 0.0
        %2118 = vmatpush1.msra.mxu0 0.0
        %2119 = vmatprep.subr.mxu0 0.0
        %2120 = vmatpush1.msra.mxu0 0.0
        %2121 = vmatprep.subr.mxu0 0.0
        %2122 = vmatpush1.msra.mxu0 0.0
        %2123 = vmatprep.subr.mxu0 0.0
        %2124 = vmatpush1.msra.mxu0 0.0
        %2125 = vmatprep.subr.mxu0 0.0
        %2126 = vmatpush1.msra.mxu0 0.0
        %2127 = vmatprep.subr.mxu0 0.0
        %2128 = vmatpush1.msra.mxu0 0.0
        %2129 = vmatprep.subr.mxu0 0.0
        %2130 = vmatpush1.msra.mxu0 0.0
        %2131 = vmatprep.subr.mxu0 0.0
        %2132 = vmatpush1.msra.mxu0 0.0
        %2133 = vmatprep.subr.mxu0 0.0
        %2134 = vmatpush1.msra.mxu0 0.0
        %2135 = vmatprep.mubr.f32.mxu0 0.0
        %2136 = vmatmul.mubr.f32.gmra.mrb[0].mxu0 %v2069
        %v2137 = vpop.f32.mrb[0].mxu0
        %v2138 = vadd.f32 %v2066, %v2137
        %v2139 = vpop.f32.mrb[0].mxu0
        %v2140 = vadd.f32 %v2066, %v2139
        %2141 = vdwg.mxu0
        %v2142 = vmax.f32 %v2138, 0.0
        %v2143 = vmax.f32 %v2140, 0.0
        %s2144 = scalar_lea.vmem %s10, 24
        %v2145 = vld [vmem:[%s2144] sm:$0xff]
        %2147 = vset.pattern.permute.xlu0 4
        %2148 = vperm.xlu0 %2147, %v2145
        %v2149 = vpop.permute.xlu0 %2148
        %v2151 = vmul.f32 %v2142, %v2149
        %v2152 = vmul.f32 %v2143, %v2149
        %2153 = vrot.lane.b32.xlu0 %v2142, 17
        %v2154 = vpop.permute.xlu0 %2153
        %2155 = vrot.lane.b32.xlu0 %v2143, 17
        %v2156 = vpop.permute.xlu0 %2155
        %v2157 = vsel %vm712, %v2154, %v2156
        %v2158 = vsel %vm712, %v2156, %v2154
        %v2159 = vmul.f32 %v2158, %v673
        %v2160 = vmul.f32 %v2157, %v674
        %2161 = vset.pattern.permute.xlu0 0
        %2162 = vperm.xlu0 %2161, %v2145
        %v2163 = vpop.permute.xlu0 %2162
        %v2165 = vmul.f32 %v2159, %v2163
        %v2166 = vmul.f32 %v2160, %v2163
        %v2167 = vadd.f32 %v2151, %v2165
        %v2168 = vadd.f32 %v2152, %v2166
        %2169 = vrot.lane.b32.xlu0 %v2142, 16
        %v2170 = vpop.permute.xlu0 %2169
        %2171 = vrot.lane.b32.xlu0 %v2143, 16
        %v2172 = vpop.permute.xlu0 %2171
        %v2173 = vsel %vm729, %v2170, %v2172
        %v2174 = vsel %vm729, %v2172, %v2170
        %v2175 = vmul.f32 %v2174, %v676
        %v2176 = vmul.f32 %v2173, %v677
        %2177 = vset.pattern.permute.xlu0 1
        %2178 = vperm.xlu0 %2177, %v2145
        %v2179 = vpop.permute.xlu0 %2178
        %v2181 = vmul.f32 %v2175, %v2179
        %v2182 = vmul.f32 %v2176, %v2179
        %v2183 = vadd.f32 %v2167, %v2181
        %v2184 = vadd.f32 %v2168, %v2182
        %2185 = vrot.lane.b32.xlu0 %v2142, 15
        %v2186 = vpop.permute.xlu0 %2185
        %2187 = vrot.lane.b32.xlu0 %v2143, 15
        %v2188 = vpop.permute.xlu0 %2187
        %v2189 = vsel %vm746, %v2186, %v2188
        %v2190 = vsel %vm746, %v2188, %v2186
        %v2191 = vmul.f32 %v2190, %v679
        %v2192 = vmul.f32 %v2189, %v680
        %2193 = vset.pattern.permute.xlu0 2
        %2194 = vperm.xlu0 %2193, %v2145
        %v2195 = vpop.permute.xlu0 %2194
        %v2197 = vmul.f32 %v2191, %v2195
        %v2198 = vmul.f32 %v2192, %v2195
        %v2199 = vadd.f32 %v2183, %v2197
        %v2200 = vadd.f32 %v2184, %v2198
        %2201 = vrot.lane.b32.xlu0 %v2142, 1
        %v2202 = vpop.permute.xlu0 %2201
        %2203 = vrot.lane.b32.xlu0 %v2143, 1
        %v2204 = vpop.permute.xlu0 %2203
        %v2205 = vsel %vm763, %v2202, %v2204
        %v2206 = vsel %vm763, %v2204, %v2202
        %v2207 = vmul.f32 %v2206, %v682
        %v2208 = vmul.f32 %v2205, %v683
        %2209 = vset.pattern.permute.xlu0 3
        %2210 = vperm.xlu0 %2209, %v2145
        %v2211 = vpop.permute.xlu0 %2210
        %v2213 = vmul.f32 %v2207, %v2211
        %v2214 = vmul.f32 %v2208, %v2211
        %v2215 = vadd.f32 %v2199, %v2213
        %v2216 = vadd.f32 %v2200, %v2214
        %2217 = vrot.lane.b32.xlu0 %v2142, 127
        %v2218 = vpop.permute.xlu0 %2217
        %2219 = vrot.lane.b32.xlu0 %v2143, 127
        %v2220 = vpop.permute.xlu0 %2219
        %v2221 = vsel %vm780, %v2218, %v2220
        %v2222 = vsel %vm780, %v2220, %v2218
        %v2223 = vmul.f32 %v2221, %v685
        %v2224 = vmul.f32 %v2222, %v686
        %2225 = vset.pattern.permute.xlu0 5
        %2226 = vperm.xlu0 %2225, %v2145
        %v2227 = vpop.permute.xlu0 %2226
        %v2229 = vmul.f32 %v2223, %v2227
        %v2230 = vmul.f32 %v2224, %v2227
        %v2231 = vadd.f32 %v2215, %v2229
        %v2232 = vadd.f32 %v2216, %v2230
        %2233 = vrot.lane.b32.xlu0 %v2142, 113
        %v2234 = vpop.permute.xlu0 %2233
        %2235 = vrot.lane.b32.xlu0 %v2143, 113
        %v2236 = vpop.permute.xlu0 %2235
        %v2237 = vsel %vm797, %v2234, %v2236
        %v2238 = vsel %vm797, %v2236, %v2234
        %v2239 = vmul.f32 %v2237, %v688
        %v2240 = vmul.f32 %v2238, %v689
        %2241 = vset.pattern.permute.xlu0 6
        %2242 = vperm.xlu0 %2241, %v2145
        %v2243 = vpop.permute.xlu0 %2242
        %v2245 = vmul.f32 %v2239, %v2243
        %v2246 = vmul.f32 %v2240, %v2243
        %v2247 = vadd.f32 %v2231, %v2245
        %v2248 = vadd.f32 %v2232, %v2246
        %2249 = vrot.lane.b32.xlu0 %v2142, 112
        %v2250 = vpop.permute.xlu0 %2249
        %2251 = vrot.lane.b32.xlu0 %v2143, 112
        %v2252 = vpop.permute.xlu0 %2251
        %v2253 = vsel %vm814, %v2250, %v2252
        %v2254 = vsel %vm814, %v2252, %v2250
        %v2255 = vmul.f32 %v2253, %v691
        %v2256 = vmul.f32 %v2254, %v692
        %2257 = vset.pattern.permute.xlu0 7
        %2258 = vperm.xlu0 %2257, %v2145
        %v2259 = vpop.permute.xlu0 %2258
        %v2261 = vmul.f32 %v2255, %v2259
        %v2262 = vmul.f32 %v2256, %v2259
        %v2263 = vadd.f32 %v2247, %v2261
        %v2264 = vadd.f32 %v2248, %v2262
        %2265 = vrot.lane.b32.xlu0 %v2142, 111
        %v2266 = vpop.permute.xlu0 %2265
        %2267 = vrot.lane.b32.xlu0 %v2143, 111
        %v2268 = vpop.permute.xlu0 %2267
        %v2269 = vsel %vm831, %v2266, %v2268
        %v2270 = vsel %vm831, %v2268, %v2266
        %v2271 = vmul.f32 %v2269, %v694
        %v2272 = vmul.f32 %v2270, %v695
        %2273 = vset.pattern.permute.xlu0 8
        %2274 = vperm.xlu0 %2273, %v2145
        %v2275 = vpop.permute.xlu0 %2274
        %v2277 = vmul.f32 %v2271, %v2275
        %v2278 = vmul.f32 %v2272, %v2275
        %v2279 = vadd.f32 %v2263, %v2277
        %v2280 = vadd.f32 %v2264, %v2278
        %s2281 = scalar_lea.vmem %s11, 24
        %v2282 = vld [vmem:[%s2281] sm:$0xff]
        %s2283 = scalar_lea.vmem %s12, 24
        %v2284 = vld [vmem:[%s2283] sm:$0xff]
        %2286 = vset.pattern.permute.xlu0 0
        %2287 = vperm.xlu0 %2286, %v2284
        %v2288 = vpop.permute.xlu0 %2287
        %v2291 = vsel %vm513, %v2282, 0
        %2293 = vmatprep.subr.mxu0 %v2280
        %2294 = vmatpush1.msra.mxu0 %v2279
        %2295 = vmatprep.subr.mxu0 0.0
        %2296 = vmatpush1.msra.mxu0 0.0
        %2297 = vmatprep.subr.mxu0 0.0
        %2298 = vmatpush1.msra.mxu0 0.0
        %2299 = vmatprep.subr.mxu0 0.0
        %2300 = vmatpush1.msra.mxu0 0.0
        %2301 = vmatprep.subr.mxu0 0.0
        %2302 = vmatpush1.msra.mxu0 0.0
        %2303 = vmatprep.subr.mxu0 0.0
        %2304 = vmatpush1.msra.mxu0 0.0
        %2305 = vmatprep.subr.mxu0 0.0
        %2306 = vmatpush1.msra.mxu0 0.0
        %2307 = vmatprep.subr.mxu0 0.0
        %2308 = vmatpush1.msra.mxu0 0.0
        %2309 = vmatprep.subr.mxu0 0.0
        %2310 = vmatpush1.msra.mxu0 0.0
        %2311 = vmatprep.subr.mxu0 0.0
        %2312 = vmatpush1.msra.mxu0 0.0
        %2313 = vmatprep.subr.mxu0 0.0
        %2314 = vmatpush1.msra.mxu0 0.0
        %2315 = vmatprep.subr.mxu0 0.0
        %2316 = vmatpush1.msra.mxu0 0.0
        %2317 = vmatprep.subr.mxu0 0.0
        %2318 = vmatpush1.msra.mxu0 0.0
        %2319 = vmatprep.subr.mxu0 0.0
        %2320 = vmatpush1.msra.mxu0 0.0
        %2321 = vmatprep.subr.mxu0 0.0
        %2322 = vmatpush1.msra.mxu0 0.0
        %2323 = vmatprep.subr.mxu0 0.0
        %2324 = vmatpush1.msra.mxu0 0.0
        %2325 = vmatprep.subr.mxu0 0.0
        %2326 = vmatpush1.msra.mxu0 0.0
        %2327 = vmatprep.subr.mxu0 0.0
        %2328 = vmatpush1.msra.mxu0 0.0
        %2329 = vmatprep.subr.mxu0 0.0
        %2330 = vmatpush1.msra.mxu0 0.0
        %2331 = vmatprep.subr.mxu0 0.0
        %2332 = vmatpush1.msra.mxu0 0.0
        %2333 = vmatprep.subr.mxu0 0.0
        %2334 = vmatpush1.msra.mxu0 0.0
        %2335 = vmatprep.subr.mxu0 0.0
        %2336 = vmatpush1.msra.mxu0 0.0
        %2337 = vmatprep.subr.mxu0 0.0
        %2338 = vmatpush1.msra.mxu0 0.0
        %2339 = vmatprep.subr.mxu0 0.0
        %2340 = vmatpush1.msra.mxu0 0.0
        %2341 = vmatprep.subr.mxu0 0.0
        %2342 = vmatpush1.msra.mxu0 0.0
        %2343 = vmatprep.subr.mxu0 0.0
        %2344 = vmatpush1.msra.mxu0 0.0
        %2345 = vmatprep.subr.mxu0 0.0
        %2346 = vmatpush1.msra.mxu0 0.0
        %2347 = vmatprep.subr.mxu0 0.0
        %2348 = vmatpush1.msra.mxu0 0.0
        %2349 = vmatprep.subr.mxu0 0.0
        %2350 = vmatpush1.msra.mxu0 0.0
        %2351 = vmatprep.subr.mxu0 0.0
        %2352 = vmatpush1.msra.mxu0 0.0
        %2353 = vmatprep.subr.mxu0 0.0
        %2354 = vmatpush1.msra.mxu0 0.0
        %2355 = vmatprep.subr.mxu0 0.0
        %2356 = vmatpush1.msra.mxu0 0.0
        %2357 = vmatprep.mubr.f32.mxu0 0.0
        %2358 = vmatmul.mubr.f32.gmra.mrb[0].mxu0 %v2291
        %v2359 = vpop.f32.mrb[0].mxu0
        %v2360 = vadd.f32 %v2288, %v2359
        %v2361 = vpop.f32.mrb[0].mxu0
        %v2362 = vadd.f32 %v2288, %v2361
        %2363 = vdwg.mxu0
        %s2364 = sld [smem:[#allocation2 + $0x3]]
        %v2365 = vstv %s2364
        %v2366 = vmul.f32 %v2365, %v669
        %v2367 = vmul.f32 %v2365, %v671
        %v2368 = vadd.f32 %v2366, %v2360
        %v2369 = vadd.f32 %v2367, %v2362
        %v2370 = vadd.f32 %v1984, %v2368
        %v2371 = vadd.f32 %v1985, %v2369
        %v2372 = vmax.f32 %v1600, 0.0
        %v2373 = vmax.f32 %v1601, 0.0
        %s2374 = scalar_lea.vmem %s7, 32
        %v2375 = vld [vmem:[%s2374] sm:$0xff]
        %2377 = vset.pattern.permute.xlu0 4
        %2378 = vperm.xlu0 %2377, %v2375
        %v2379 = vpop.permute.xlu0 %2378
        %v2381 = vmul.f32 %v2372, %v2379
        %v2382 = vmul.f32 %v2373, %v2379
        %2383 = vrot.lane.b32.xlu0 %v2372, 17
        %v2384 = vpop.permute.xlu0 %2383
        %2385 = vrot.lane.b32.xlu0 %v2373, 17
        %v2386 = vpop.permute.xlu0 %2385
        %v2387 = vsel %vm712, %v2384, %v2386
        %v2388 = vsel %vm712, %v2386, %v2384
        %v2389 = vmul.f32 %v2388, %v673
        %v2390 = vmul.f32 %v2387, %v674
        %2391 = vset.pattern.permute.xlu0 0
        %2392 = vperm.xlu0 %2391, %v2375
        %v2393 = vpop.permute.xlu0 %2392
        %v2395 = vmul.f32 %v2389, %v2393
        %v2396 = vmul.f32 %v2390, %v2393
        %v2397 = vadd.f32 %v2381, %v2395
        %v2398 = vadd.f32 %v2382, %v2396
        %2399 = vrot.lane.b32.xlu0 %v2372, 16
        %v2400 = vpop.permute.xlu0 %2399
        %2401 = vrot.lane.b32.xlu0 %v2373, 16
        %v2402 = vpop.permute.xlu0 %2401
        %v2403 = vsel %vm729, %v2400, %v2402
        %v2404 = vsel %vm729, %v2402, %v2400
        %v2405 = vmul.f32 %v2404, %v676
        %v2406 = vmul.f32 %v2403, %v677
        %2407 = vset.pattern.permute.xlu0 1
        %2408 = vperm.xlu0 %2407, %v2375
        %v2409 = vpop.permute.xlu0 %2408
        %v2411 = vmul.f32 %v2405, %v2409
        %v2412 = vmul.f32 %v2406, %v2409
        %v2413 = vadd.f32 %v2397, %v2411
        %v2414 = vadd.f32 %v2398, %v2412
        %2415 = vrot.lane.b32.xlu0 %v2372, 15
        %v2416 = vpop.permute.xlu0 %2415
        %2417 = vrot.lane.b32.xlu0 %v2373, 15
        %v2418 = vpop.permute.xlu0 %2417
        %v2419 = vsel %vm746, %v2416, %v2418
        %v2420 = vsel %vm746, %v2418, %v2416
        %v2421 = vmul.f32 %v2420, %v679
        %v2422 = vmul.f32 %v2419, %v680
        %2423 = vset.pattern.permute.xlu0 2
        %2424 = vperm.xlu0 %2423, %v2375
        %v2425 = vpop.permute.xlu0 %2424
        %v2427 = vmul.f32 %v2421, %v2425
        %v2428 = vmul.f32 %v2422, %v2425
        %v2429 = vadd.f32 %v2413, %v2427
        %v2430 = vadd.f32 %v2414, %v2428
        %2431 = vrot.lane.b32.xlu0 %v2372, 1
        %v2432 = vpop.permute.xlu0 %2431
        %2433 = vrot.lane.b32.xlu0 %v2373, 1
        %v2434 = vpop.permute.xlu0 %2433
        %v2435 = vsel %vm763, %v2432, %v2434
        %v2436 = vsel %vm763, %v2434, %v2432
        %v2437 = vmul.f32 %v2436, %v682
        %v2438 = vmul.f32 %v2435, %v683
        %2439 = vset.pattern.permute.xlu0 3
        %2440 = vperm.xlu0 %2439, %v2375
        %v2441 = vpop.permute.xlu0 %2440
        %v2443 = vmul.f32 %v2437, %v2441
        %v2444 = vmul.f32 %v2438, %v2441
        %v2445 = vadd.f32 %v2429, %v2443
        %v2446 = vadd.f32 %v2430, %v2444
        %2447 = vrot.lane.b32.xlu0 %v2372, 127
        %v2448 = vpop.permute.xlu0 %2447
        %2449 = vrot.lane.b32.xlu0 %v2373, 127
        %v2450 = vpop.permute.xlu0 %2449
        %v2451 = vsel %vm780, %v2448, %v2450
        %v2452 = vsel %vm780, %v2450, %v2448
        %v2453 = vmul.f32 %v2451, %v685
        %v2454 = vmul.f32 %v2452, %v686
        %2455 = vset.pattern.permute.xlu0 5
        %2456 = vperm.xlu0 %2455, %v2375
        %v2457 = vpop.permute.xlu0 %2456
        %v2459 = vmul.f32 %v2453, %v2457
        %v2460 = vmul.f32 %v2454, %v2457
        %v2461 = vadd.f32 %v2445, %v2459
        %v2462 = vadd.f32 %v2446, %v2460
        %2463 = vrot.lane.b32.xlu0 %v2372, 113
        %v2464 = vpop.permute.xlu0 %2463
        %2465 = vrot.lane.b32.xlu0 %v2373, 113
        %v2466 = vpop.permute.xlu0 %2465
        %v2467 = vsel %vm797, %v2464, %v2466
        %v2468 = vsel %vm797, %v2466, %v2464
        %v2469 = vmul.f32 %v2467, %v688
        %v2470 = vmul.f32 %v2468, %v689
        %2471 = vset.pattern.permute.xlu0 6
        %2472 = vperm.xlu0 %2471, %v2375
        %v2473 = vpop.permute.xlu0 %2472
        %v2475 = vmul.f32 %v2469, %v2473
        %v2476 = vmul.f32 %v2470, %v2473
        %v2477 = vadd.f32 %v2461, %v2475
        %v2478 = vadd.f32 %v2462, %v2476
        %2479 = vrot.lane.b32.xlu0 %v2372, 112
        %v2480 = vpop.permute.xlu0 %2479
        %2481 = vrot.lane.b32.xlu0 %v2373, 112
        %v2482 = vpop.permute.xlu0 %2481
        %v2483 = vsel %vm814, %v2480, %v2482
        %v2484 = vsel %vm814, %v2482, %v2480
        %v2485 = vmul.f32 %v2483, %v691
        %v2486 = vmul.f32 %v2484, %v692
        %2487 = vset.pattern.permute.xlu0 7
        %2488 = vperm.xlu0 %2487, %v2375
        %v2489 = vpop.permute.xlu0 %2488
        %v2491 = vmul.f32 %v2485, %v2489
        %v2492 = vmul.f32 %v2486, %v2489
        %v2493 = vadd.f32 %v2477, %v2491
        %v2494 = vadd.f32 %v2478, %v2492
        %2495 = vrot.lane.b32.xlu0 %v2372, 111
        %v2496 = vpop.permute.xlu0 %2495
        %2497 = vrot.lane.b32.xlu0 %v2373, 111
        %v2498 = vpop.permute.xlu0 %2497
        %v2499 = vsel %vm831, %v2496, %v2498
        %v2500 = vsel %vm831, %v2498, %v2496
        %v2501 = vmul.f32 %v2499, %v694
        %v2502 = vmul.f32 %v2500, %v695
        %2503 = vset.pattern.permute.xlu0 8
        %2504 = vperm.xlu0 %2503, %v2375
        %v2505 = vpop.permute.xlu0 %2504
        %v2507 = vmul.f32 %v2501, %v2505
        %v2508 = vmul.f32 %v2502, %v2505
        %v2509 = vadd.f32 %v2493, %v2507
        %v2510 = vadd.f32 %v2494, %v2508
        %s2511 = scalar_lea.vmem %s8, 32
        %v2512 = vld [vmem:[%s2511] sm:$0xff]
        %s2513 = scalar_lea.vmem %s9, 32
        %v2514 = vld [vmem:[%s2513] sm:$0xff]
        %2516 = vset.pattern.permute.xlu0 0
        %2517 = vperm.xlu0 %2516, %v2514
        %v2518 = vpop.permute.xlu0 %2517
        %v2521 = vsel %vm513, %v2512, 0
        %2523 = vmatprep.subr.mxu0 %v2510
        %2524 = vmatpush1.msra.mxu0 %v2509
        %2525 = vmatprep.subr.mxu0 0.0
        %2526 = vmatpush1.msra.mxu0 0.0
        %2527 = vmatprep.subr.mxu0 0.0
        %2528 = vmatpush1.msra.mxu0 0.0
        %2529 = vmatprep.subr.mxu0 0.0
        %2530 = vmatpush1.msra.mxu0 0.0
        %2531 = vmatprep.subr.mxu0 0.0
        %2532 = vmatpush1.msra.mxu0 0.0
        %2533 = vmatprep.subr.mxu0 0.0
        %2534 = vmatpush1.msra.mxu0 0.0
        %2535 = vmatprep.subr.mxu0 0.0
        %2536 = vmatpush1.msra.mxu0 0.0
        %2537 = vmatprep.subr.mxu0 0.0
        %2538 = vmatpush1.msra.mxu0 0.0
        %2539 = vmatprep.subr.mxu0 0.0
        %2540 = vmatpush1.msra.mxu0 0.0
        %2541 = vmatprep.subr.mxu0 0.0
        %2542 = vmatpush1.msra.mxu0 0.0
        %2543 = vmatprep.subr.mxu0 0.0
        %2544 = vmatpush1.msra.mxu0 0.0
        %2545 = vmatprep.subr.mxu0 0.0
        %2546 = vmatpush1.msra.mxu0 0.0
        %2547 = vmatprep.subr.mxu0 0.0
        %2548 = vmatpush1.msra.mxu0 0.0
        %2549 = vmatprep.subr.mxu0 0.0
        %2550 = vmatpush1.msra.mxu0 0.0
        %2551 = vmatprep.subr.mxu0 0.0
        %2552 = vmatpush1.msra.mxu0 0.0
        %2553 = vmatprep.subr.mxu0 0.0
        %2554 = vmatpush1.msra.mxu0 0.0
        %2555 = vmatprep.subr.mxu0 0.0
        %2556 = vmatpush1.msra.mxu0 0.0
        %2557 = vmatprep.subr.mxu0 0.0
        %2558 = vmatpush1.msra.mxu0 0.0
        %2559 = vmatprep.subr.mxu0 0.0
        %2560 = vmatpush1.msra.mxu0 0.0
        %2561 = vmatprep.subr.mxu0 0.0
        %2562 = vmatpush1.msra.mxu0 0.0
        %2563 = vmatprep.subr.mxu0 0.0
        %2564 = vmatpush1.msra.mxu0 0.0
        %2565 = vmatprep.subr.mxu0 0.0
        %2566 = vmatpush1.msra.mxu0 0.0
        %2567 = vmatprep.subr.mxu0 0.0
        %2568 = vmatpush1.msra.mxu0 0.0
        %2569 = vmatprep.subr.mxu0 0.0
        %2570 = vmatpush1.msra.mxu0 0.0
        %2571 = vmatprep.subr.mxu0 0.0
        %2572 = vmatpush1.msra.mxu0 0.0
        %2573 = vmatprep.subr.mxu0 0.0
        %2574 = vmatpush1.msra.mxu0 0.0
        %2575 = vmatprep.subr.mxu0 0.0
        %2576 = vmatpush1.msra.mxu0 0.0
        %2577 = vmatprep.subr.mxu0 0.0
        %2578 = vmatpush1.msra.mxu0 0.0
        %2579 = vmatprep.subr.mxu0 0.0
        %2580 = vmatpush1.msra.mxu0 0.0
        %2581 = vmatprep.subr.mxu0 0.0
        %2582 = vmatpush1.msra.mxu0 0.0
        %2583 = vmatprep.subr.mxu0 0.0
        %2584 = vmatpush1.msra.mxu0 0.0
        %2585 = vmatprep.subr.mxu0 0.0
        %2586 = vmatpush1.msra.mxu0 0.0
        %2587 = vmatprep.mubr.f32.mxu0 0.0
        %2588 = vmatmul.mubr.f32.gmra.mrb[0].mxu0 %v2521
        %v2589 = vpop.f32.mrb[0].mxu0
        %v2590 = vadd.f32 %v2518, %v2589
        %v2591 = vpop.f32.mrb[0].mxu0
        %v2592 = vadd.f32 %v2518, %v2591
        %2593 = vdwg.mxu0
        %v2594 = vmax.f32 %v2590, 0.0
        %v2595 = vmax.f32 %v2592, 0.0
        %s2596 = scalar_lea.vmem %s10, 32
        %v2597 = vld [vmem:[%s2596] sm:$0xff]
        %2599 = vset.pattern.permute.xlu0 4
        %2600 = vperm.xlu0 %2599, %v2597
        %v2601 = vpop.permute.xlu0 %2600
        %v2603 = vmul.f32 %v2594, %v2601
        %v2604 = vmul.f32 %v2595, %v2601
        %2605 = vrot.lane.b32.xlu0 %v2594, 17
        %v2606 = vpop.permute.xlu0 %2605
        %2607 = vrot.lane.b32.xlu0 %v2595, 17
        %v2608 = vpop.permute.xlu0 %2607
        %v2609 = vsel %vm712, %v2606, %v2608
        %v2610 = vsel %vm712, %v2608, %v2606
        %v2611 = vmul.f32 %v2610, %v673
        %v2612 = vmul.f32 %v2609, %v674
        %2613 = vset.pattern.permute.xlu0 0
        %2614 = vperm.xlu0 %2613, %v2597
        %v2615 = vpop.permute.xlu0 %2614
        %v2617 = vmul.f32 %v2611, %v2615
        %v2618 = vmul.f32 %v2612, %v2615
        %v2619 = vadd.f32 %v2603, %v2617
        %v2620 = vadd.f32 %v2604, %v2618
        %2621 = vrot.lane.b32.xlu0 %v2594, 16
        %v2622 = vpop.permute.xlu0 %2621
        %2623 = vrot.lane.b32.xlu0 %v2595, 16
        %v2624 = vpop.permute.xlu0 %2623
        %v2625 = vsel %vm729, %v2622, %v2624
        %v2626 = vsel %vm729, %v2624, %v2622
        %v2627 = vmul.f32 %v2626, %v676
        %v2628 = vmul.f32 %v2625, %v677
        %2629 = vset.pattern.permute.xlu0 1
        %2630 = vperm.xlu0 %2629, %v2597
        %v2631 = vpop.permute.xlu0 %2630
        %v2633 = vmul.f32 %v2627, %v2631
        %v2634 = vmul.f32 %v2628, %v2631
        %v2635 = vadd.f32 %v2619, %v2633
        %v2636 = vadd.f32 %v2620, %v2634
        %2637 = vrot.lane.b32.xlu0 %v2594, 15
        %v2638 = vpop.permute.xlu0 %2637
        %2639 = vrot.lane.b32.xlu0 %v2595, 15
        %v2640 = vpop.permute.xlu0 %2639
        %v2641 = vsel %vm746, %v2638, %v2640
        %v2642 = vsel %vm746, %v2640, %v2638
        %v2643 = vmul.f32 %v2642, %v679
        %v2644 = vmul.f32 %v2641, %v680
        %2645 = vset.pattern.permute.xlu0 2
        %2646 = vperm.xlu0 %2645, %v2597
        %v2647 = vpop.permute.xlu0 %2646
        %v2649 = vmul.f32 %v2643, %v2647
        %v2650 = vmul.f32 %v2644, %v2647
        %v2651 = vadd.f32 %v2635, %v2649
        %v2652 = vadd.f32 %v2636, %v2650
        %2653 = vrot.lane.b32.xlu0 %v2594, 1
        %v2654 = vpop.permute.xlu0 %2653
        %2655 = vrot.lane.b32.xlu0 %v2595, 1
        %v2656 = vpop.permute.xlu0 %2655
        %v2657 = vsel %vm763, %v2654, %v2656
        %v2658 = vsel %vm763, %v2656, %v2654
        %v2659 = vmul.f32 %v2658, %v682
        %v2660 = vmul.f32 %v2657, %v683
        %2661 = vset.pattern.permute.xlu0 3
        %2662 = vperm.xlu0 %2661, %v2597
        %v2663 = vpop.permute.xlu0 %2662
        %v2665 = vmul.f32 %v2659, %v2663
        %v2666 = vmul.f32 %v2660, %v2663
        %v2667 = vadd.f32 %v2651, %v2665
        %v2668 = vadd.f32 %v2652, %v2666
        %2669 = vrot.lane.b32.xlu0 %v2594, 127
        %v2670 = vpop.permute.xlu0 %2669
        %2671 = vrot.lane.b32.xlu0 %v2595, 127
        %v2672 = vpop.permute.xlu0 %2671
        %v2673 = vsel %vm780, %v2670, %v2672
        %v2674 = vsel %vm780, %v2672, %v2670
        %v2675 = vmul.f32 %v2673, %v685
        %v2676 = vmul.f32 %v2674, %v686
        %2677 = vset.pattern.permute.xlu0 5
        %2678 = vperm.xlu0 %2677, %v2597
        %v2679 = vpop.permute.xlu0 %2678
        %v2681 = vmul.f32 %v2675, %v2679
        %v2682 = vmul.f32 %v2676, %v2679
        %v2683 = vadd.f32 %v2667, %v2681
        %v2684 = vadd.f32 %v2668, %v2682
        %2685 = vrot.lane.b32.xlu0 %v2594, 113
        %v2686 = vpop.permute.xlu0 %2685
        %2687 = vrot.lane.b32.xlu0 %v2595, 113
        %v2688 = vpop.permute.xlu0 %2687
        %v2689 = vsel %vm797, %v2686, %v2688
        %v2690 = vsel %vm797, %v2688, %v2686
        %v2691 = vmul.f32 %v2689, %v688
        %v2692 = vmul.f32 %v2690, %v689
        %2693 = vset.pattern.permute.xlu0 6
        %2694 = vperm.xlu0 %2693, %v2597
        %v2695 = vpop.permute.xlu0 %2694
        %v2697 = vmul.f32 %v2691, %v2695
        %v2698 = vmul.f32 %v2692, %v2695
        %v2699 = vadd.f32 %v2683, %v2697
        %v2700 = vadd.f32 %v2684, %v2698
        %2701 = vrot.lane.b32.xlu0 %v2594, 112
        %v2702 = vpop.permute.xlu0 %2701
        %2703 = vrot.lane.b32.xlu0 %v2595, 112
        %v2704 = vpop.permute.xlu0 %2703
        %v2705 = vsel %vm814, %v2702, %v2704
        %v2706 = vsel %vm814, %v2704, %v2702
        %v2707 = vmul.f32 %v2705, %v691
        %v2708 = vmul.f32 %v2706, %v692
        %2709 = vset.pattern.permute.xlu0 7
        %2710 = vperm.xlu0 %2709, %v2597
        %v2711 = vpop.permute.xlu0 %2710
        %v2713 = vmul.f32 %v2707, %v2711
        %v2714 = vmul.f32 %v2708, %v2711
        %v2715 = vadd.f32 %v2699, %v2713
        %v2716 = vadd.f32 %v2700, %v2714
        %2717 = vrot.lane.b32.xlu0 %v2594, 111
        %v2718 = vpop.permute.xlu0 %2717
        %2719 = vrot.lane.b32.xlu0 %v2595, 111
        %v2720 = vpop.permute.xlu0 %2719
        %v2721 = vsel %vm831, %v2718, %v2720
        %v2722 = vsel %vm831, %v2720, %v2718
        %v2723 = vmul.f32 %v2721, %v694
        %v2724 = vmul.f32 %v2722, %v695
        %2725 = vset.pattern.permute.xlu0 8
        %2726 = vperm.xlu0 %2725, %v2597
        %v2727 = vpop.permute.xlu0 %2726
        %v2729 = vmul.f32 %v2723, %v2727
        %v2730 = vmul.f32 %v2724, %v2727
        %v2731 = vadd.f32 %v2715, %v2729
        %v2732 = vadd.f32 %v2716, %v2730
        %s2733 = scalar_lea.vmem %s11, 32
        %v2734 = vld [vmem:[%s2733] sm:$0xff]
        %s2735 = scalar_lea.vmem %s12, 32
        %v2736 = vld [vmem:[%s2735] sm:$0xff]
        %2738 = vset.pattern.permute.xlu0 0
        %2739 = vperm.xlu0 %2738, %v2736
        %v2740 = vpop.permute.xlu0 %2739
        %v2743 = vsel %vm513, %v2734, 0
        %2745 = vmatprep.subr.mxu0 %v2732
        %2746 = vmatpush1.msra.mxu0 %v2731
        %2747 = vmatprep.subr.mxu0 0.0
        %2748 = vmatpush1.msra.mxu0 0.0
        %2749 = vmatprep.subr.mxu0 0.0
        %2750 = vmatpush1.msra.mxu0 0.0
        %2751 = vmatprep.subr.mxu0 0.0
        %2752 = vmatpush1.msra.mxu0 0.0
        %2753 = vmatprep.subr.mxu0 0.0
        %2754 = vmatpush1.msra.mxu0 0.0
        %2755 = vmatprep.subr.mxu0 0.0
        %2756 = vmatpush1.msra.mxu0 0.0
        %2757 = vmatprep.subr.mxu0 0.0
        %2758 = vmatpush1.msra.mxu0 0.0
        %2759 = vmatprep.subr.mxu0 0.0
        %2760 = vmatpush1.msra.mxu0 0.0
        %2761 = vmatprep.subr.mxu0 0.0
        %2762 = vmatpush1.msra.mxu0 0.0
        %2763 = vmatprep.subr.mxu0 0.0
        %2764 = vmatpush1.msra.mxu0 0.0
        %2765 = vmatprep.subr.mxu0 0.0
        %2766 = vmatpush1.msra.mxu0 0.0
        %2767 = vmatprep.subr.mxu0 0.0
        %2768 = vmatpush1.msra.mxu0 0.0
        %2769 = vmatprep.subr.mxu0 0.0
        %2770 = vmatpush1.msra.mxu0 0.0
        %2771 = vmatprep.subr.mxu0 0.0
        %2772 = vmatpush1.msra.mxu0 0.0
        %2773 = vmatprep.subr.mxu0 0.0
        %2774 = vmatpush1.msra.mxu0 0.0
        %2775 = vmatprep.subr.mxu0 0.0
        %2776 = vmatpush1.msra.mxu0 0.0
        %2777 = vmatprep.subr.mxu0 0.0
        %2778 = vmatpush1.msra.mxu0 0.0
        %2779 = vmatprep.subr.mxu0 0.0
        %2780 = vmatpush1.msra.mxu0 0.0
        %2781 = vmatprep.subr.mxu0 0.0
        %2782 = vmatpush1.msra.mxu0 0.0
        %2783 = vmatprep.subr.mxu0 0.0
        %2784 = vmatpush1.msra.mxu0 0.0
        %2785 = vmatprep.subr.mxu0 0.0
        %2786 = vmatpush1.msra.mxu0 0.0
        %2787 = vmatprep.subr.mxu0 0.0
        %2788 = vmatpush1.msra.mxu0 0.0
        %2789 = vmatprep.subr.mxu0 0.0
        %2790 = vmatpush1.msra.mxu0 0.0
        %2791 = vmatprep.subr.mxu0 0.0
        %2792 = vmatpush1.msra.mxu0 0.0
        %2793 = vmatprep.subr.mxu0 0.0
        %2794 = vmatpush1.msra.mxu0 0.0
        %2795 = vmatprep.subr.mxu0 0.0
        %2796 = vmatpush1.msra.mxu0 0.0
        %2797 = vmatprep.subr.mxu0 0.0
        %2798 = vmatpush1.msra.mxu0 0.0
        %2799 = vmatprep.subr.mxu0 0.0
        %2800 = vmatpush1.msra.mxu0 0.0
        %2801 = vmatprep.subr.mxu0 0.0
        %2802 = vmatpush1.msra.mxu0 0.0
        %2803 = vmatprep.subr.mxu0 0.0
        %2804 = vmatpush1.msra.mxu0 0.0
        %2805 = vmatprep.subr.mxu0 0.0
        %2806 = vmatpush1.msra.mxu0 0.0
        %2807 = vmatprep.subr.mxu0 0.0
        %2808 = vmatpush1.msra.mxu0 0.0
        %2809 = vmatprep.mubr.f32.mxu0 0.0
        %2810 = vmatmul.mubr.f32.gmra.mrb[0].mxu0 %v2743
        %v2811 = vpop.f32.mrb[0].mxu0
        %v2812 = vadd.f32 %v2740, %v2811
        %v2813 = vpop.f32.mrb[0].mxu0
        %v2814 = vadd.f32 %v2740, %v2813
        %2815 = vdwg.mxu0
        %s2816 = sld [smem:[#allocation2 + $0x4]]
        %v2817 = vstv %s2816
        %v2818 = vmul.f32 %v2817, %v1600
        %v2819 = vmul.f32 %v2817, %v1601
        %v2820 = vadd.f32 %v2818, %v2812
        %v2821 = vadd.f32 %v2819, %v2814
        %v2822 = vadd.f32 %v2370, %v2820
        %v2823 = vadd.f32 %v2371, %v2821
        %s2824 = scalar_lea.vmem %s7, 40
        %v2825 = vld [vmem:[%s2824] sm:$0xff]
        %2827 = vset.pattern.permute.xlu0 4
        %2828 = vperm.xlu0 %2827, %v2825
        %v2829 = vpop.permute.xlu0 %2828
        %v2831 = vmul.f32 %v696, %v2829
        %v2832 = vmul.f32 %v697, %v2829
        %2833 = vset.pattern.permute.xlu0 0
        %2834 = vperm.xlu0 %2833, %v2825
        %v2835 = vpop.permute.xlu0 %2834
        %v2837 = vmul.f32 %v715, %v2835
        %v2838 = vmul.f32 %v716, %v2835
        %v2839 = vadd.f32 %v2831, %v2837
        %v2840 = vadd.f32 %v2832, %v2838
        %2841 = vset.pattern.permute.xlu0 1
        %2842 = vperm.xlu0 %2841, %v2825
        %v2843 = vpop.permute.xlu0 %2842
        %v2845 = vmul.f32 %v732, %v2843
        %v2846 = vmul.f32 %v733, %v2843
        %v2847 = vadd.f32 %v2839, %v2845
        %v2848 = vadd.f32 %v2840, %v2846
        %2849 = vset.pattern.permute.xlu0 2
        %2850 = vperm.xlu0 %2849, %v2825
        %v2851 = vpop.permute.xlu0 %2850
        %v2853 = vmul.f32 %v749, %v2851
        %v2854 = vmul.f32 %v750, %v2851
        %v2855 = vadd.f32 %v2847, %v2853
        %v2856 = vadd.f32 %v2848, %v2854
        %2857 = vset.pattern.permute.xlu0 3
        %2858 = vperm.xlu0 %2857, %v2825
        %v2859 = vpop.permute.xlu0 %2858
        %v2861 = vmul.f32 %v766, %v2859
        %v2862 = vmul.f32 %v767, %v2859
        %v2863 = vadd.f32 %v2855, %v2861
        %v2864 = vadd.f32 %v2856, %v2862
        %2865 = vset.pattern.permute.xlu0 5
        %2866 = vperm.xlu0 %2865, %v2825
        %v2867 = vpop.permute.xlu0 %2866
        %v2869 = vmul.f32 %v783, %v2867
        %v2870 = vmul.f32 %v784, %v2867
        %v2871 = vadd.f32 %v2863, %v2869
        %v2872 = vadd.f32 %v2864, %v2870
        %2873 = vset.pattern.permute.xlu0 6
        %2874 = vperm.xlu0 %2873, %v2825
        %v2875 = vpop.permute.xlu0 %2874
        %v2877 = vmul.f32 %v800, %v2875
        %v2878 = vmul.f32 %v801, %v2875
        %v2879 = vadd.f32 %v2871, %v2877
        %v2880 = vadd.f32 %v2872, %v2878
        %2881 = vset.pattern.permute.xlu0 7
        %2882 = vperm.xlu0 %2881, %v2825
        %v2883 = vpop.permute.xlu0 %2882
        %v2885 = vmul.f32 %v817, %v2883
        %v2886 = vmul.f32 %v818, %v2883
        %v2887 = vadd.f32 %v2879, %v2885
        %v2888 = vadd.f32 %v2880, %v2886
        %2889 = vset.pattern.permute.xlu0 8
        %2890 = vperm.xlu0 %2889, %v2825
        %v2891 = vpop.permute.xlu0 %2890
        %v2893 = vmul.f32 %v834, %v2891
        %v2894 = vmul.f32 %v835, %v2891
        %v2895 = vadd.f32 %v2887, %v2893
        %v2896 = vadd.f32 %v2888, %v2894
        %s2897 = scalar_lea.vmem %s8, 40
        %v2898 = vld [vmem:[%s2897] sm:$0xff]
        %s2899 = scalar_lea.vmem %s9, 40
        %v2900 = vld [vmem:[%s2899] sm:$0xff]
        %2902 = vset.pattern.permute.xlu0 0
        %2903 = vperm.xlu0 %2902, %v2900
        %v2904 = vpop.permute.xlu0 %2903
        %v2907 = vsel %vm513, %v2898, 0
        %2909 = vmatprep.subr.mxu0 %v2896
        %2910 = vmatpush1.msra.mxu0 %v2895
        %2911 = vmatprep.subr.mxu0 0.0
        %2912 = vmatpush1.msra.mxu0 0.0
        %2913 = vmatprep.subr.mxu0 0.0
        %2914 = vmatpush1.msra.mxu0 0.0
        %2915 = vmatprep.subr.mxu0 0.0
        %2916 = vmatpush1.msra.mxu0 0.0
        %2917 = vmatprep.subr.mxu0 0.0
        %2918 = vmatpush1.msra.mxu0 0.0
        %2919 = vmatprep.subr.mxu0 0.0
        %2920 = vmatpush1.msra.mxu0 0.0
        %2921 = vmatprep.subr.mxu0 0.0
        %2922 = vmatpush1.msra.mxu0 0.0
        %2923 = vmatprep.subr.mxu0 0.0
        %2924 = vmatpush1.msra.mxu0 0.0
        %2925 = vmatprep.subr.mxu0 0.0
        %2926 = vmatpush1.msra.mxu0 0.0
        %2927 = vmatprep.subr.mxu0 0.0
        %2928 = vmatpush1.msra.mxu0 0.0
        %2929 = vmatprep.subr.mxu0 0.0
        %2930 = vmatpush1.msra.mxu0 0.0
        %2931 = vmatprep.subr.mxu0 0.0
        %2932 = vmatpush1.msra.mxu0 0.0
        %2933 = vmatprep.subr.mxu0 0.0
        %2934 = vmatpush1.msra.mxu0 0.0
        %2935 = vmatprep.subr.mxu0 0.0
        %2936 = vmatpush1.msra.mxu0 0.0
        %2937 = vmatprep.subr.mxu0 0.0
        %2938 = vmatpush1.msra.mxu0 0.0
        %2939 = vmatprep.subr.mxu0 0.0
        %2940 = vmatpush1.msra.mxu0 0.0
        %2941 = vmatprep.subr.mxu0 0.0
        %2942 = vmatpush1.msra.mxu0 0.0
        %2943 = vmatprep.subr.mxu0 0.0
        %2944 = vmatpush1.msra.mxu0 0.0
        %2945 = vmatprep.subr.mxu0 0.0
        %2946 = vmatpush1.msra.mxu0 0.0
        %2947 = vmatprep.subr.mxu0 0.0
        %2948 = vmatpush1.msra.mxu0 0.0
        %2949 = vmatprep.subr.mxu0 0.0
        %2950 = vmatpush1.msra.mxu0 0.0
        %2951 = vmatprep.subr.mxu0 0.0
        %2952 = vmatpush1.msra.mxu0 0.0
        %2953 = vmatprep.subr.mxu0 0.0
        %2954 = vmatpush1.msra.mxu0 0.0
        %2955 = vmatprep.subr.mxu0 0.0
        %2956 = vmatpush1.msra.mxu0 0.0
        %2957 = vmatprep.subr.mxu0 0.0
        %2958 = vmatpush1.msra.mxu0 0.0
        %2959 = vmatprep.subr.mxu0 0.0
        %2960 = vmatpush1.msra.mxu0 0.0
        %2961 = vmatprep.subr.mxu0 0.0
        %2962 = vmatpush1.msra.mxu0 0.0
        %2963 = vmatprep.subr.mxu0 0.0
        %2964 = vmatpush1.msra.mxu0 0.0
        %2965 = vmatprep.subr.mxu0 0.0
        %2966 = vmatpush1.msra.mxu0 0.0
        %2967 = vmatprep.subr.mxu0 0.0
        %2968 = vmatpush1.msra.mxu0 0.0
        %2969 = vmatprep.subr.mxu0 0.0
        %2970 = vmatpush1.msra.mxu0 0.0
        %2971 = vmatprep.subr.mxu0 0.0
        %2972 = vmatpush1.msra.mxu0 0.0
        %2973 = vmatprep.mubr.f32.mxu0 0.0
        %2974 = vmatmul.mubr.f32.gmra.mrb[0].mxu0 %v2907
        %v2975 = vpop.f32.mrb[0].mxu0
        %v2976 = vadd.f32 %v2904, %v2975
        %v2977 = vpop.f32.mrb[0].mxu0
        %v2978 = vadd.f32 %v2904, %v2977
        %2979 = vdwg.mxu0
        %v2980 = vmax.f32 %v2976, 0.0
        %v2981 = vmax.f32 %v2978, 0.0
        %s2982 = scalar_lea.vmem %s10, 40
        %v2983 = vld [vmem:[%s2982] sm:$0xff]
        %2985 = vset.pattern.permute.xlu0 4
        %2986 = vperm.xlu0 %2985, %v2983
        %v2987 = vpop.permute.xlu0 %2986
        %v2989 = vmul.f32 %v2980, %v2987
        %v2990 = vmul.f32 %v2981, %v2987
        %2991 = vrot.lane.b32.xlu0 %v2980, 17
        %v2992 = vpop.permute.xlu0 %2991
        %2993 = vrot.lane.b32.xlu0 %v2981, 17
        %v2994 = vpop.permute.xlu0 %2993
        %v2995 = vsel %vm712, %v2992, %v2994
        %v2996 = vsel %vm712, %v2994, %v2992
        %v2997 = vmul.f32 %v2996, %v673
        %v2998 = vmul.f32 %v2995, %v674
        %2999 = vset.pattern.permute.xlu0 0
        %3000 = vperm.xlu0 %2999, %v2983
        %v3001 = vpop.permute.xlu0 %3000
        %v3003 = vmul.f32 %v2997, %v3001
        %v3004 = vmul.f32 %v2998, %v3001
        %v3005 = vadd.f32 %v2989, %v3003
        %v3006 = vadd.f32 %v2990, %v3004
        %3007 = vrot.lane.b32.xlu0 %v2980, 16
        %v3008 = vpop.permute.xlu0 %3007
        %3009 = vrot.lane.b32.xlu0 %v2981, 16
        %v3010 = vpop.permute.xlu0 %3009
        %v3011 = vsel %vm729, %v3008, %v3010
        %v3012 = vsel %vm729, %v3010, %v3008
        %v3013 = vmul.f32 %v3012, %v676
        %v3014 = vmul.f32 %v3011, %v677
        %3015 = vset.pattern.permute.xlu0 1
        %3016 = vperm.xlu0 %3015, %v2983
        %v3017 = vpop.permute.xlu0 %3016
        %v3019 = vmul.f32 %v3013, %v3017
        %v3020 = vmul.f32 %v3014, %v3017
        %v3021 = vadd.f32 %v3005, %v3019
        %v3022 = vadd.f32 %v3006, %v3020
        %3023 = vrot.lane.b32.xlu0 %v2980, 15
        %v3024 = vpop.permute.xlu0 %3023
        %3025 = vrot.lane.b32.xlu0 %v2981, 15
        %v3026 = vpop.permute.xlu0 %3025
        %v3027 = vsel %vm746, %v3024, %v3026
        %v3028 = vsel %vm746, %v3026, %v3024
        %v3029 = vmul.f32 %v3028, %v679
        %v3030 = vmul.f32 %v3027, %v680
        %3031 = vset.pattern.permute.xlu0 2
        %3032 = vperm.xlu0 %3031, %v2983
        %v3033 = vpop.permute.xlu0 %3032
        %v3035 = vmul.f32 %v3029, %v3033
        %v3036 = vmul.f32 %v3030, %v3033
        %v3037 = vadd.f32 %v3021, %v3035
        %v3038 = vadd.f32 %v3022, %v3036
        %3039 = vrot.lane.b32.xlu0 %v2980, 1
        %v3040 = vpop.permute.xlu0 %3039
        %3041 = vrot.lane.b32.xlu0 %v2981, 1
        %v3042 = vpop.permute.xlu0 %3041
        %v3043 = vsel %vm763, %v3040, %v3042
        %v3044 = vsel %vm763, %v3042, %v3040
        %v3045 = vmul.f32 %v3044, %v682
        %v3046 = vmul.f32 %v3043, %v683
        %3047 = vset.pattern.permute.xlu0 3
        %3048 = vperm.xlu0 %3047, %v2983
        %v3049 = vpop.permute.xlu0 %3048
        %v3051 = vmul.f32 %v3045, %v3049
        %v3052 = vmul.f32 %v3046, %v3049
        %v3053 = vadd.f32 %v3037, %v3051
        %v3054 = vadd.f32 %v3038, %v3052
        %3055 = vrot.lane.b32.xlu0 %v2980, 127
        %v3056 = vpop.permute.xlu0 %3055
        %3057 = vrot.lane.b32.xlu0 %v2981, 127
        %v3058 = vpop.permute.xlu0 %3057
        %v3059 = vsel %vm780, %v3056, %v3058
        %v3060 = vsel %vm780, %v3058, %v3056
        %v3061 = vmul.f32 %v3059, %v685
        %v3062 = vmul.f32 %v3060, %v686
        %3063 = vset.pattern.permute.xlu0 5
        %3064 = vperm.xlu0 %3063, %v2983
        %v3065 = vpop.permute.xlu0 %3064
        %v3067 = vmul.f32 %v3061, %v3065
        %v3068 = vmul.f32 %v3062, %v3065
        %v3069 = vadd.f32 %v3053, %v3067
        %v3070 = vadd.f32 %v3054, %v3068
        %3071 = vrot.lane.b32.xlu0 %v2980, 113
        %v3072 = vpop.permute.xlu0 %3071
        %3073 = vrot.lane.b32.xlu0 %v2981, 113
        %v3074 = vpop.permute.xlu0 %3073
        %v3075 = vsel %vm797, %v3072, %v3074
        %v3076 = vsel %vm797, %v3074, %v3072
        %v3077 = vmul.f32 %v3075, %v688
        %v3078 = vmul.f32 %v3076, %v689
        %3079 = vset.pattern.permute.xlu0 6
        %3080 = vperm.xlu0 %3079, %v2983
        %v3081 = vpop.permute.xlu0 %3080
        %v3083 = vmul.f32 %v3077, %v3081
        %v3084 = vmul.f32 %v3078, %v3081
        %v3085 = vadd.f32 %v3069, %v3083
        %v3086 = vadd.f32 %v3070, %v3084
        %3087 = vrot.lane.b32.xlu0 %v2980, 112
        %v3088 = vpop.permute.xlu0 %3087
        %3089 = vrot.lane.b32.xlu0 %v2981, 112
        %v3090 = vpop.permute.xlu0 %3089
        %v3091 = vsel %vm814, %v3088, %v3090
        %v3092 = vsel %vm814, %v3090, %v3088
        %v3093 = vmul.f32 %v3091, %v691
        %v3094 = vmul.f32 %v3092, %v692
        %3095 = vset.pattern.permute.xlu0 7
        %3096 = vperm.xlu0 %3095, %v2983
        %v3097 = vpop.permute.xlu0 %3096
        %v3099 = vmul.f32 %v3093, %v3097
        %v3100 = vmul.f32 %v3094, %v3097
        %v3101 = vadd.f32 %v3085, %v3099
        %v3102 = vadd.f32 %v3086, %v3100
        %3103 = vrot.lane.b32.xlu0 %v2980, 111
        %v3104 = vpop.permute.xlu0 %3103
        %3105 = vrot.lane.b32.xlu0 %v2981, 111
        %v3106 = vpop.permute.xlu0 %3105
        %v3107 = vsel %vm831, %v3104, %v3106
        %v3108 = vsel %vm831, %v3106, %v3104
        %v3109 = vmul.f32 %v3107, %v694
        %v3110 = vmul.f32 %v3108, %v695
        %3111 = vset.pattern.permute.xlu0 8
        %3112 = vperm.xlu0 %3111, %v2983
        %v3113 = vpop.permute.xlu0 %3112
        %v3115 = vmul.f32 %v3109, %v3113
        %v3116 = vmul.f32 %v3110, %v3113
        %v3117 = vadd.f32 %v3101, %v3115
        %v3118 = vadd.f32 %v3102, %v3116
        %s3119 = scalar_lea.vmem %s11, 40
        %v3120 = vld [vmem:[%s3119] sm:$0xff]
        %s3121 = scalar_lea.vmem %s12, 40
        %v3122 = vld [vmem:[%s3121] sm:$0xff]
        %3124 = vset.pattern.permute.xlu0 0
        %3125 = vperm.xlu0 %3124, %v3122
        %v3126 = vpop.permute.xlu0 %3125
        %v3129 = vsel %vm513, %v3120, 0
        %3131 = vmatprep.subr.mxu0 %v3118
        %3132 = vmatpush1.msra.mxu0 %v3117
        %3133 = vmatprep.subr.mxu0 0.0
        %3134 = vmatpush1.msra.mxu0 0.0
        %3135 = vmatprep.subr.mxu0 0.0
        %3136 = vmatpush1.msra.mxu0 0.0
        %3137 = vmatprep.subr.mxu0 0.0
        %3138 = vmatpush1.msra.mxu0 0.0
        %3139 = vmatprep.subr.mxu0 0.0
        %3140 = vmatpush1.msra.mxu0 0.0
        %3141 = vmatprep.subr.mxu0 0.0
        %3142 = vmatpush1.msra.mxu0 0.0
        %3143 = vmatprep.subr.mxu0 0.0
        %3144 = vmatpush1.msra.mxu0 0.0
        %3145 = vmatprep.subr.mxu0 0.0
        %3146 = vmatpush1.msra.mxu0 0.0
        %3147 = vmatprep.subr.mxu0 0.0
        %3148 = vmatpush1.msra.mxu0 0.0
        %3149 = vmatprep.subr.mxu0 0.0
        %3150 = vmatpush1.msra.mxu0 0.0
        %3151 = vmatprep.subr.mxu0 0.0
        %3152 = vmatpush1.msra.mxu0 0.0
        %3153 = vmatprep.subr.mxu0 0.0
        %3154 = vmatpush1.msra.mxu0 0.0
        %3155 = vmatprep.subr.mxu0 0.0
        %3156 = vmatpush1.msra.mxu0 0.0
        %3157 = vmatprep.subr.mxu0 0.0
        %3158 = vmatpush1.msra.mxu0 0.0
        %3159 = vmatprep.subr.mxu0 0.0
        %3160 = vmatpush1.msra.mxu0 0.0
        %3161 = vmatprep.subr.mxu0 0.0
        %3162 = vmatpush1.msra.mxu0 0.0
        %3163 = vmatprep.subr.mxu0 0.0
        %3164 = vmatpush1.msra.mxu0 0.0
        %3165 = vmatprep.subr.mxu0 0.0
        %3166 = vmatpush1.msra.mxu0 0.0
        %3167 = vmatprep.subr.mxu0 0.0
        %3168 = vmatpush1.msra.mxu0 0.0
        %3169 = vmatprep.subr.mxu0 0.0
        %3170 = vmatpush1.msra.mxu0 0.0
        %3171 = vmatprep.subr.mxu0 0.0
        %3172 = vmatpush1.msra.mxu0 0.0
        %3173 = vmatprep.subr.mxu0 0.0
        %3174 = vmatpush1.msra.mxu0 0.0
        %3175 = vmatprep.subr.mxu0 0.0
        %3176 = vmatpush1.msra.mxu0 0.0
        %3177 = vmatprep.subr.mxu0 0.0
        %3178 = vmatpush1.msra.mxu0 0.0
        %3179 = vmatprep.subr.mxu0 0.0
        %3180 = vmatpush1.msra.mxu0 0.0
        %3181 = vmatprep.subr.mxu0 0.0
        %3182 = vmatpush1.msra.mxu0 0.0
        %3183 = vmatprep.subr.mxu0 0.0
        %3184 = vmatpush1.msra.mxu0 0.0
        %3185 = vmatprep.subr.mxu0 0.0
        %3186 = vmatpush1.msra.mxu0 0.0
        %3187 = vmatprep.subr.mxu0 0.0
        %3188 = vmatpush1.msra.mxu0 0.0
        %3189 = vmatprep.subr.mxu0 0.0
        %3190 = vmatpush1.msra.mxu0 0.0
        %3191 = vmatprep.subr.mxu0 0.0
        %3192 = vmatpush1.msra.mxu0 0.0
        %3193 = vmatprep.subr.mxu0 0.0
        %3194 = vmatpush1.msra.mxu0 0.0
        %3195 = vmatprep.mubr.f32.mxu0 0.0
        %3196 = vmatmul.mubr.f32.gmra.mrb[0].mxu0 %v3129
        %v3197 = vpop.f32.mrb[0].mxu0
        %v3198 = vadd.f32 %v3126, %v3197
        %v3199 = vpop.f32.mrb[0].mxu0
        %v3200 = vadd.f32 %v3126, %v3199
        %3201 = vdwg.mxu0
        %s3202 = sld [smem:[#allocation2 + $0x5]]
        %v3203 = vstv %s3202
        %v3204 = vmul.f32 %v3203, %v584
        %v3205 = vmul.f32 %v3203, %v586
        %v3206 = vadd.f32 %v3204, %v3198
        %v3207 = vadd.f32 %v3205, %v3200
        %s3208 = scalar_lea.vmem %s7, 48
        %v3209 = vld [vmem:[%s3208] sm:$0xff]
        %3211 = vset.pattern.permute.xlu0 4
        %3212 = vperm.xlu0 %3211, %v3209
        %v3213 = vpop.permute.xlu0 %3212
        %v3215 = vmul.f32 %v1150, %v3213
        %v3216 = vmul.f32 %v1151, %v3213
        %3217 = vset.pattern.permute.xlu0 0
        %3218 = vperm.xlu0 %3217, %v3209
        %v3219 = vpop.permute.xlu0 %3218
        %v3221 = vmul.f32 %v1167, %v3219
        %v3222 = vmul.f32 %v1168, %v3219
        %v3223 = vadd.f32 %v3215, %v3221
        %v3224 = vadd.f32 %v3216, %v3222
        %3225 = vset.pattern.permute.xlu0 1
        %3226 = vperm.xlu0 %3225, %v3209
        %v3227 = vpop.permute.xlu0 %3226
        %v3229 = vmul.f32 %v1183, %v3227
        %v3230 = vmul.f32 %v1184, %v3227
        %v3231 = vadd.f32 %v3223, %v3229
        %v3232 = vadd.f32 %v3224, %v3230
        %3233 = vset.pattern.permute.xlu0 2
        %3234 = vperm.xlu0 %3233, %v3209
        %v3235 = vpop.permute.xlu0 %3234
        %v3237 = vmul.f32 %v1199, %v3235
        %v3238 = vmul.f32 %v1200, %v3235
        %v3239 = vadd.f32 %v3231, %v3237
        %v3240 = vadd.f32 %v3232, %v3238
        %3241 = vset.pattern.permute.xlu0 3
        %3242 = vperm.xlu0 %3241, %v3209
        %v3243 = vpop.permute.xlu0 %3242
        %v3245 = vmul.f32 %v1215, %v3243
        %v3246 = vmul.f32 %v1216, %v3243
        %v3247 = vadd.f32 %v3239, %v3245
        %v3248 = vadd.f32 %v3240, %v3246
        %3249 = vset.pattern.permute.xlu0 5
        %3250 = vperm.xlu0 %3249, %v3209
        %v3251 = vpop.permute.xlu0 %3250
        %v3253 = vmul.f32 %v1231, %v3251
        %v3254 = vmul.f32 %v1232, %v3251
        %v3255 = vadd.f32 %v3247, %v3253
        %v3256 = vadd.f32 %v3248, %v3254
        %3257 = vset.pattern.permute.xlu0 6
        %3258 = vperm.xlu0 %3257, %v3209
        %v3259 = vpop.permute.xlu0 %3258
        %v3261 = vmul.f32 %v1247, %v3259
        %v3262 = vmul.f32 %v1248, %v3259
        %v3263 = vadd.f32 %v3255, %v3261
        %v3264 = vadd.f32 %v3256, %v3262
        %3265 = vset.pattern.permute.xlu0 7
        %3266 = vperm.xlu0 %3265, %v3209
        %v3267 = vpop.permute.xlu0 %3266
        %v3269 = vmul.f32 %v1263, %v3267
        %v3270 = vmul.f32 %v1264, %v3267
        %v3271 = vadd.f32 %v3263, %v3269
        %v3272 = vadd.f32 %v3264, %v3270
        %3273 = vset.pattern.permute.xlu0 8
        %3274 = vperm.xlu0 %3273, %v3209
        %v3275 = vpop.permute.xlu0 %3274
        %v3277 = vmul.f32 %v1279, %v3275
        %v3278 = vmul.f32 %v1280, %v3275
        %v3279 = vadd.f32 %v3271, %v3277
        %v3280 = vadd.f32 %v3272, %v3278
        %s3281 = scalar_lea.vmem %s8, 48
        %v3282 = vld [vmem:[%s3281] sm:$0xff]
        %s3283 = scalar_lea.vmem %s9, 48
        %v3284 = vld [vmem:[%s3283] sm:$0xff]
        %3286 = vset.pattern.permute.xlu0 0
        %3287 = vperm.xlu0 %3286, %v3284
        %v3288 = vpop.permute.xlu0 %3287
        %v3291 = vsel %vm513, %v3282, 0
        %3293 = vmatprep.subr.mxu0 %v3280
        %3294 = vmatpush1.msra.mxu0 %v3279
        %3295 = vmatprep.subr.mxu0 0.0
        %3296 = vmatpush1.msra.mxu0 0.0
        %3297 = vmatprep.subr.mxu0 0.0
        %3298 = vmatpush1.msra.mxu0 0.0
        %3299 = vmatprep.subr.mxu0 0.0
        %3300 = vmatpush1.msra.mxu0 0.0
        %3301 = vmatprep.subr.mxu0 0.0
        %3302 = vmatpush1.msra.mxu0 0.0
        %3303 = vmatprep.subr.mxu0 0.0
        %3304 = vmatpush1.msra.mxu0 0.0
        %3305 = vmatprep.subr.mxu0 0.0
        %3306 = vmatpush1.msra.mxu0 0.0
        %3307 = vmatprep.subr.mxu0 0.0
        %3308 = vmatpush1.msra.mxu0 0.0
        %3309 = vmatprep.subr.mxu0 0.0
        %3310 = vmatpush1.msra.mxu0 0.0
        %3311 = vmatprep.subr.mxu0 0.0
        %3312 = vmatpush1.msra.mxu0 0.0
        %3313 = vmatprep.subr.mxu0 0.0
        %3314 = vmatpush1.msra.mxu0 0.0
        %3315 = vmatprep.subr.mxu0 0.0
        %3316 = vmatpush1.msra.mxu0 0.0
        %3317 = vmatprep.subr.mxu0 0.0
        %3318 = vmatpush1.msra.mxu0 0.0
        %3319 = vmatprep.subr.mxu0 0.0
        %3320 = vmatpush1.msra.mxu0 0.0
        %3321 = vmatprep.subr.mxu0 0.0
        %3322 = vmatpush1.msra.mxu0 0.0
        %3323 = vmatprep.subr.mxu0 0.0
        %3324 = vmatpush1.msra.mxu0 0.0
        %3325 = vmatprep.subr.mxu0 0.0
        %3326 = vmatpush1.msra.mxu0 0.0
        %3327 = vmatprep.subr.mxu0 0.0
        %3328 = vmatpush1.msra.mxu0 0.0
        %3329 = vmatprep.subr.mxu0 0.0
        %3330 = vmatpush1.msra.mxu0 0.0
        %3331 = vmatprep.subr.mxu0 0.0
        %3332 = vmatpush1.msra.mxu0 0.0
        %3333 = vmatprep.subr.mxu0 0.0
        %3334 = vmatpush1.msra.mxu0 0.0
        %3335 = vmatprep.subr.mxu0 0.0
        %3336 = vmatpush1.msra.mxu0 0.0
        %3337 = vmatprep.subr.mxu0 0.0
        %3338 = vmatpush1.msra.mxu0 0.0
        %3339 = vmatprep.subr.mxu0 0.0
        %3340 = vmatpush1.msra.mxu0 0.0
        %3341 = vmatprep.subr.mxu0 0.0
        %3342 = vmatpush1.msra.mxu0 0.0
        %3343 = vmatprep.subr.mxu0 0.0
        %3344 = vmatpush1.msra.mxu0 0.0
        %3345 = vmatprep.subr.mxu0 0.0
        %3346 = vmatpush1.msra.mxu0 0.0
        %3347 = vmatprep.subr.mxu0 0.0
        %3348 = vmatpush1.msra.mxu0 0.0
        %3349 = vmatprep.subr.mxu0 0.0
        %3350 = vmatpush1.msra.mxu0 0.0
        %3351 = vmatprep.subr.mxu0 0.0
        %3352 = vmatpush1.msra.mxu0 0.0
        %3353 = vmatprep.subr.mxu0 0.0
        %3354 = vmatpush1.msra.mxu0 0.0
        %3355 = vmatprep.subr.mxu0 0.0
        %3356 = vmatpush1.msra.mxu0 0.0
        %3357 = vmatprep.mubr.f32.mxu0 0.0
        %3358 = vmatmul.mubr.f32.gmra.mrb[0].mxu0 %v3291
        %v3359 = vpop.f32.mrb[0].mxu0
        %v3360 = vadd.f32 %v3288, %v3359
        %v3361 = vpop.f32.mrb[0].mxu0
        %v3362 = vadd.f32 %v3288, %v3361
        %3363 = vdwg.mxu0
        %v3364 = vmax.f32 %v3360, 0.0
        %v3365 = vmax.f32 %v3362, 0.0
        %s3366 = scalar_lea.vmem %s10, 48
        %v3367 = vld [vmem:[%s3366] sm:$0xff]
        %3369 = vset.pattern.permute.xlu0 4
        %3370 = vperm.xlu0 %3369, %v3367
        %v3371 = vpop.permute.xlu0 %3370
        %v3373 = vmul.f32 %v3364, %v3371
        %v3374 = vmul.f32 %v3365, %v3371
        %3375 = vrot.lane.b32.xlu0 %v3364, 17
        %v3376 = vpop.permute.xlu0 %3375
        %3377 = vrot.lane.b32.xlu0 %v3365, 17
        %v3378 = vpop.permute.xlu0 %3377
        %v3379 = vsel %vm712, %v3376, %v3378
        %v3380 = vsel %vm712, %v3378, %v3376
        %v3381 = vmul.f32 %v3380, %v673
        %v3382 = vmul.f32 %v3379, %v674
        %3383 = vset.pattern.permute.xlu0 0
        %3384 = vperm.xlu0 %3383, %v3367
        %v3385 = vpop.permute.xlu0 %3384
        %v3387 = vmul.f32 %v3381, %v3385
        %v3388 = vmul.f32 %v3382, %v3385
        %v3389 = vadd.f32 %v3373, %v3387
        %v3390 = vadd.f32 %v3374, %v3388
        %3391 = vrot.lane.b32.xlu0 %v3364, 16
        %v3392 = vpop.permute.xlu0 %3391
        %3393 = vrot.lane.b32.xlu0 %v3365, 16
        %v3394 = vpop.permute.xlu0 %3393
        %v3395 = vsel %vm729, %v3392, %v3394
        %v3396 = vsel %vm729, %v3394, %v3392
        %v3397 = vmul.f32 %v3396, %v676
        %v3398 = vmul.f32 %v3395, %v677
        %3399 = vset.pattern.permute.xlu0 1
        %3400 = vperm.xlu0 %3399, %v3367
        %v3401 = vpop.permute.xlu0 %3400
        %v3403 = vmul.f32 %v3397, %v3401
        %v3404 = vmul.f32 %v3398, %v3401
        %v3405 = vadd.f32 %v3389, %v3403
        %v3406 = vadd.f32 %v3390, %v3404
        %3407 = vrot.lane.b32.xlu0 %v3364, 15
        %v3408 = vpop.permute.xlu0 %3407
        %3409 = vrot.lane.b32.xlu0 %v3365, 15
        %v3410 = vpop.permute.xlu0 %3409
        %v3411 = vsel %vm746, %v3408, %v3410
        %v3412 = vsel %vm746, %v3410, %v3408
        %v3413 = vmul.f32 %v3412, %v679
        %v3414 = vmul.f32 %v3411, %v680
        %3415 = vset.pattern.permute.xlu0 2
        %3416 = vperm.xlu0 %3415, %v3367
        %v3417 = vpop.permute.xlu0 %3416
        %v3419 = vmul.f32 %v3413, %v3417
        %v3420 = vmul.f32 %v3414, %v3417
        %v3421 = vadd.f32 %v3405, %v3419
        %v3422 = vadd.f32 %v3406, %v3420
        %3423 = vrot.lane.b32.xlu0 %v3364, 1
        %v3424 = vpop.permute.xlu0 %3423
        %3425 = vrot.lane.b32.xlu0 %v3365, 1
        %v3426 = vpop.permute.xlu0 %3425
        %v3427 = vsel %vm763, %v3424, %v3426
        %v3428 = vsel %vm763, %v3426, %v3424
        %v3429 = vmul.f32 %v3428, %v682
        %v3430 = vmul.f32 %v3427, %v683
        %3431 = vset.pattern.permute.xlu0 3
        %3432 = vperm.xlu0 %3431, %v3367
        %v3433 = vpop.permute.xlu0 %3432
        %v3435 = vmul.f32 %v3429, %v3433
        %v3436 = vmul.f32 %v3430, %v3433
        %v3437 = vadd.f32 %v3421, %v3435
        %v3438 = vadd.f32 %v3422, %v3436
        %3439 = vrot.lane.b32.xlu0 %v3364, 127
        %v3440 = vpop.permute.xlu0 %3439
        %3441 = vrot.lane.b32.xlu0 %v3365, 127
        %v3442 = vpop.permute.xlu0 %3441
        %v3443 = vsel %vm780, %v3440, %v3442
        %v3444 = vsel %vm780, %v3442, %v3440
        %v3445 = vmul.f32 %v3443, %v685
        %v3446 = vmul.f32 %v3444, %v686
        %3447 = vset.pattern.permute.xlu0 5
        %3448 = vperm.xlu0 %3447, %v3367
        %v3449 = vpop.permute.xlu0 %3448
        %v3451 = vmul.f32 %v3445, %v3449
        %v3452 = vmul.f32 %v3446, %v3449
        %v3453 = vadd.f32 %v3437, %v3451
        %v3454 = vadd.f32 %v3438, %v3452
        %3455 = vrot.lane.b32.xlu0 %v3364, 113
        %v3456 = vpop.permute.xlu0 %3455
        %3457 = vrot.lane.b32.xlu0 %v3365, 113
        %v3458 = vpop.permute.xlu0 %3457
        %v3459 = vsel %vm797, %v3456, %v3458
        %v3460 = vsel %vm797, %v3458, %v3456
        %v3461 = vmul.f32 %v3459, %v688
        %v3462 = vmul.f32 %v3460, %v689
        %3463 = vset.pattern.permute.xlu0 6
        %3464 = vperm.xlu0 %3463, %v3367
        %v3465 = vpop.permute.xlu0 %3464
        %v3467 = vmul.f32 %v3461, %v3465
        %v3468 = vmul.f32 %v3462, %v3465
        %v3469 = vadd.f32 %v3453, %v3467
        %v3470 = vadd.f32 %v3454, %v3468
        %3471 = vrot.lane.b32.xlu0 %v3364, 112
        %v3472 = vpop.permute.xlu0 %3471
        %3473 = vrot.lane.b32.xlu0 %v3365, 112
        %v3474 = vpop.permute.xlu0 %3473
        %v3475 = vsel %vm814, %v3472, %v3474
        %v3476 = vsel %vm814, %v3474, %v3472
        %v3477 = vmul.f32 %v3475, %v691
        %v3478 = vmul.f32 %v3476, %v692
        %3479 = vset.pattern.permute.xlu0 7
        %3480 = vperm.xlu0 %3479, %v3367
        %v3481 = vpop.permute.xlu0 %3480
        %v3483 = vmul.f32 %v3477, %v3481
        %v3484 = vmul.f32 %v3478, %v3481
        %v3485 = vadd.f32 %v3469, %v3483
        %v3486 = vadd.f32 %v3470, %v3484
        %3487 = vrot.lane.b32.xlu0 %v3364, 111
        %v3488 = vpop.permute.xlu0 %3487
        %3489 = vrot.lane.b32.xlu0 %v3365, 111
        %v3490 = vpop.permute.xlu0 %3489
        %v3491 = vsel %vm831, %v3488, %v3490
        %v3492 = vsel %vm831, %v3490, %v3488
        %v3493 = vmul.f32 %v3491, %v694
        %v3494 = vmul.f32 %v3492, %v695
        %3495 = vset.pattern.permute.xlu0 8
        %3496 = vperm.xlu0 %3495, %v3367
        %v3497 = vpop.permute.xlu0 %3496
        %v3499 = vmul.f32 %v3493, %v3497
        %v3500 = vmul.f32 %v3494, %v3497
        %v3501 = vadd.f32 %v3485, %v3499
        %v3502 = vadd.f32 %v3486, %v3500
        %s3503 = scalar_lea.vmem %s11, 48
        %v3504 = vld [vmem:[%s3503] sm:$0xff]
        %s3505 = scalar_lea.vmem %s12, 48
        %v3506 = vld [vmem:[%s3505] sm:$0xff]
        %3508 = vset.pattern.permute.xlu0 0
        %3509 = vperm.xlu0 %3508, %v3506
        %v3510 = vpop.permute.xlu0 %3509
        %v3513 = vsel %vm513, %v3504, 0
        %3515 = vmatprep.subr.mxu0 %v3502
        %3516 = vmatpush1.msra.mxu0 %v3501
        %3517 = vmatprep.subr.mxu0 0.0
        %3518 = vmatpush1.msra.mxu0 0.0
        %3519 = vmatprep.subr.mxu0 0.0
        %3520 = vmatpush1.msra.mxu0 0.0
        %3521 = vmatprep.subr.mxu0 0.0
        %3522 = vmatpush1.msra.mxu0 0.0
        %3523 = vmatprep.subr.mxu0 0.0
        %3524 = vmatpush1.msra.mxu0 0.0
        %3525 = vmatprep.subr.mxu0 0.0
        %3526 = vmatpush1.msra.mxu0 0.0
        %3527 = vmatprep.subr.mxu0 0.0
        %3528 = vmatpush1.msra.mxu0 0.0
        %3529 = vmatprep.subr.mxu0 0.0
        %3530 = vmatpush1.msra.mxu0 0.0
        %3531 = vmatprep.subr.mxu0 0.0
        %3532 = vmatpush1.msra.mxu0 0.0
        %3533 = vmatprep.subr.mxu0 0.0
        %3534 = vmatpush1.msra.mxu0 0.0
        %3535 = vmatprep.subr.mxu0 0.0
        %3536 = vmatpush1.msra.mxu0 0.0
        %3537 = vmatprep.subr.mxu0 0.0
        %3538 = vmatpush1.msra.mxu0 0.0
        %3539 = vmatprep.subr.mxu0 0.0
        %3540 = vmatpush1.msra.mxu0 0.0
        %3541 = vmatprep.subr.mxu0 0.0
        %3542 = vmatpush1.msra.mxu0 0.0
        %3543 = vmatprep.subr.mxu0 0.0
        %3544 = vmatpush1.msra.mxu0 0.0
        %3545 = vmatprep.subr.mxu0 0.0
        %3546 = vmatpush1.msra.mxu0 0.0
        %3547 = vmatprep.subr.mxu0 0.0
        %3548 = vmatpush1.msra.mxu0 0.0
        %3549 = vmatprep.subr.mxu0 0.0
        %3550 = vmatpush1.msra.mxu0 0.0
        %3551 = vmatprep.subr.mxu0 0.0
        %3552 = vmatpush1.msra.mxu0 0.0
        %3553 = vmatprep.subr.mxu0 0.0
        %3554 = vmatpush1.msra.mxu0 0.0
        %3555 = vmatprep.subr.mxu0 0.0
        %3556 = vmatpush1.msra.mxu0 0.0
        %3557 = vmatprep.subr.mxu0 0.0
        %3558 = vmatpush1.msra.mxu0 0.0
        %3559 = vmatprep.subr.mxu0 0.0
        %3560 = vmatpush1.msra.mxu0 0.0
        %3561 = vmatprep.subr.mxu0 0.0
        %3562 = vmatpush1.msra.mxu0 0.0
        %3563 = vmatprep.subr.mxu0 0.0
        %3564 = vmatpush1.msra.mxu0 0.0
        %3565 = vmatprep.subr.mxu0 0.0
        %3566 = vmatpush1.msra.mxu0 0.0
        %3567 = vmatprep.subr.mxu0 0.0
        %3568 = vmatpush1.msra.mxu0 0.0
        %3569 = vmatprep.subr.mxu0 0.0
        %3570 = vmatpush1.msra.mxu0 0.0
        %3571 = vmatprep.subr.mxu0 0.0
        %3572 = vmatpush1.msra.mxu0 0.0
        %3573 = vmatprep.subr.mxu0 0.0
        %3574 = vmatpush1.msra.mxu0 0.0
        %3575 = vmatprep.subr.mxu0 0.0
        %3576 = vmatpush1.msra.mxu0 0.0
        %3577 = vmatprep.subr.mxu0 0.0
        %3578 = vmatpush1.msra.mxu0 0.0
        %3579 = vmatprep.mubr.f32.mxu0 0.0
        %3580 = vmatmul.mubr.f32.gmra.mrb[0].mxu0 %v3513
        %v3581 = vpop.f32.mrb[0].mxu0
        %v3582 = vadd.f32 %v3510, %v3581
        %v3583 = vpop.f32.mrb[0].mxu0
        %v3584 = vadd.f32 %v3510, %v3583
        %3585 = vdwg.mxu0
        %s3586 = sld [smem:[#allocation2 + $0x6]]
        %v3587 = vstv %s3586
        %v3588 = vmul.f32 %v3587, %v669
        %v3589 = vmul.f32 %v3587, %v671
        %v3590 = vadd.f32 %v3588, %v3582
        %v3591 = vadd.f32 %v3589, %v3584
        %v3592 = vadd.f32 %v3206, %v3590
        %v3593 = vadd.f32 %v3207, %v3591
        %s3594 = scalar_lea.vmem %s7, 56
        %v3595 = vld [vmem:[%s3594] sm:$0xff]
        %3597 = vset.pattern.permute.xlu0 4
        %3598 = vperm.xlu0 %3597, %v3595
        %v3599 = vpop.permute.xlu0 %3598
        %v3601 = vmul.f32 %v2372, %v3599
        %v3602 = vmul.f32 %v2373, %v3599
        %3603 = vset.pattern.permute.xlu0 0
        %3604 = vperm.xlu0 %3603, %v3595
        %v3605 = vpop.permute.xlu0 %3604
        %v3607 = vmul.f32 %v2389, %v3605
        %v3608 = vmul.f32 %v2390, %v3605
        %v3609 = vadd.f32 %v3601, %v3607
        %v3610 = vadd.f32 %v3602, %v3608
        %3611 = vset.pattern.permute.xlu0 1
        %3612 = vperm.xlu0 %3611, %v3595
        %v3613 = vpop.permute.xlu0 %3612
        %v3615 = vmul.f32 %v2405, %v3613
        %v3616 = vmul.f32 %v2406, %v3613
        %v3617 = vadd.f32 %v3609, %v3615
        %v3618 = vadd.f32 %v3610, %v3616
        %3619 = vset.pattern.permute.xlu0 2
        %3620 = vperm.xlu0 %3619, %v3595
        %v3621 = vpop.permute.xlu0 %3620
        %v3623 = vmul.f32 %v2421, %v3621
        %v3624 = vmul.f32 %v2422, %v3621
        %v3625 = vadd.f32 %v3617, %v3623
        %v3626 = vadd.f32 %v3618, %v3624
        %3627 = vset.pattern.permute.xlu0 3
        %3628 = vperm.xlu0 %3627, %v3595
        %v3629 = vpop.permute.xlu0 %3628
        %v3631 = vmul.f32 %v2437, %v3629
        %v3632 = vmul.f32 %v2438, %v3629
        %v3633 = vadd.f32 %v3625, %v3631
        %v3634 = vadd.f32 %v3626, %v3632
        %3635 = vset.pattern.permute.xlu0 5
        %3636 = vperm.xlu0 %3635, %v3595
        %v3637 = vpop.permute.xlu0 %3636
        %v3639 = vmul.f32 %v2453, %v3637
        %v3640 = vmul.f32 %v2454, %v3637
        %v3641 = vadd.f32 %v3633, %v3639
        %v3642 = vadd.f32 %v3634, %v3640
        %3643 = vset.pattern.permute.xlu0 6
        %3644 = vperm.xlu0 %3643, %v3595
        %v3645 = vpop.permute.xlu0 %3644
        %v3647 = vmul.f32 %v2469, %v3645
        %v3648 = vmul.f32 %v2470, %v3645
        %v3649 = vadd.f32 %v3641, %v3647
        %v3650 = vadd.f32 %v3642, %v3648
        %3651 = vset.pattern.permute.xlu0 7
        %3652 = vperm.xlu0 %3651, %v3595
        %v3653 = vpop.permute.xlu0 %3652
        %v3655 = vmul.f32 %v2485, %v3653
        %v3656 = vmul.f32 %v2486, %v3653
        %v3657 = vadd.f32 %v3649, %v3655
        %v3658 = vadd.f32 %v3650, %v3656
        %3659 = vset.pattern.permute.xlu0 8
        %3660 = vperm.xlu0 %3659, %v3595
        %v3661 = vpop.permute.xlu0 %3660
        %v3663 = vmul.f32 %v2501, %v3661
        %v3664 = vmul.f32 %v2502, %v3661
        %v3665 = vadd.f32 %v3657, %v3663
        %v3666 = vadd.f32 %v3658, %v3664
        %s3667 = scalar_lea.vmem %s8, 56
        %v3668 = vld [vmem:[%s3667] sm:$0xff]
        %s3669 = scalar_lea.vmem %s9, 56
        %v3670 = vld [vmem:[%s3669] sm:$0xff]
        %3672 = vset.pattern.permute.xlu0 0
        %3673 = vperm.xlu0 %3672, %v3670
        %v3674 = vpop.permute.xlu0 %3673
        %v3677 = vsel %vm513, %v3668, 0
        %3679 = vmatprep.subr.mxu0 %v3666
        %3680 = vmatpush1.msra.mxu0 %v3665
        %3681 = vmatprep.subr.mxu0 0.0
        %3682 = vmatpush1.msra.mxu0 0.0
        %3683 = vmatprep.subr.mxu0 0.0
        %3684 = vmatpush1.msra.mxu0 0.0
        %3685 = vmatprep.subr.mxu0 0.0
        %3686 = vmatpush1.msra.mxu0 0.0
        %3687 = vmatprep.subr.mxu0 0.0
        %3688 = vmatpush1.msra.mxu0 0.0
        %3689 = vmatprep.subr.mxu0 0.0
        %3690 = vmatpush1.msra.mxu0 0.0
        %3691 = vmatprep.subr.mxu0 0.0
        %3692 = vmatpush1.msra.mxu0 0.0
        %3693 = vmatprep.subr.mxu0 0.0
        %3694 = vmatpush1.msra.mxu0 0.0
        %3695 = vmatprep.subr.mxu0 0.0
        %3696 = vmatpush1.msra.mxu0 0.0
        %3697 = vmatprep.subr.mxu0 0.0
        %3698 = vmatpush1.msra.mxu0 0.0
        %3699 = vmatprep.subr.mxu0 0.0
        %3700 = vmatpush1.msra.mxu0 0.0
        %3701 = vmatprep.subr.mxu0 0.0
        %3702 = vmatpush1.msra.mxu0 0.0
        %3703 = vmatprep.subr.mxu0 0.0
        %3704 = vmatpush1.msra.mxu0 0.0
        %3705 = vmatprep.subr.mxu0 0.0
        %3706 = vmatpush1.msra.mxu0 0.0
        %3707 = vmatprep.subr.mxu0 0.0
        %3708 = vmatpush1.msra.mxu0 0.0
        %3709 = vmatprep.subr.mxu0 0.0
        %3710 = vmatpush1.msra.mxu0 0.0
        %3711 = vmatprep.subr.mxu0 0.0
        %3712 = vmatpush1.msra.mxu0 0.0
        %3713 = vmatprep.subr.mxu0 0.0
        %3714 = vmatpush1.msra.mxu0 0.0
        %3715 = vmatprep.subr.mxu0 0.0
        %3716 = vmatpush1.msra.mxu0 0.0
        %3717 = vmatprep.subr.mxu0 0.0
        %3718 = vmatpush1.msra.mxu0 0.0
        %3719 = vmatprep.subr.mxu0 0.0
        %3720 = vmatpush1.msra.mxu0 0.0
        %3721 = vmatprep.subr.mxu0 0.0
        %3722 = vmatpush1.msra.mxu0 0.0
        %3723 = vmatprep.subr.mxu0 0.0
        %3724 = vmatpush1.msra.mxu0 0.0
        %3725 = vmatprep.subr.mxu0 0.0
        %3726 = vmatpush1.msra.mxu0 0.0
        %3727 = vmatprep.subr.mxu0 0.0
        %3728 = vmatpush1.msra.mxu0 0.0
        %3729 = vmatprep.subr.mxu0 0.0
        %3730 = vmatpush1.msra.mxu0 0.0
        %3731 = vmatprep.subr.mxu0 0.0
        %3732 = vmatpush1.msra.mxu0 0.0
        %3733 = vmatprep.subr.mxu0 0.0
        %3734 = vmatpush1.msra.mxu0 0.0
        %3735 = vmatprep.subr.mxu0 0.0
        %3736 = vmatpush1.msra.mxu0 0.0
        %3737 = vmatprep.subr.mxu0 0.0
        %3738 = vmatpush1.msra.mxu0 0.0
        %3739 = vmatprep.subr.mxu0 0.0
        %3740 = vmatpush1.msra.mxu0 0.0
        %3741 = vmatprep.subr.mxu0 0.0
        %3742 = vmatpush1.msra.mxu0 0.0
        %3743 = vmatprep.mubr.f32.mxu0 0.0
        %3744 = vmatmul.mubr.f32.gmra.mrb[0].mxu0 %v3677
        %v3745 = vpop.f32.mrb[0].mxu0
        %v3746 = vadd.f32 %v3674, %v3745
        %v3747 = vpop.f32.mrb[0].mxu0
        %v3748 = vadd.f32 %v3674, %v3747
        %3749 = vdwg.mxu0
        %v3750 = vmax.f32 %v3746, 0.0
        %v3751 = vmax.f32 %v3748, 0.0
        %s3752 = scalar_lea.vmem %s10, 56
        %v3753 = vld [vmem:[%s3752] sm:$0xff]
        %3755 = vset.pattern.permute.xlu0 4
        %3756 = vperm.xlu0 %3755, %v3753
        %v3757 = vpop.permute.xlu0 %3756
        %v3759 = vmul.f32 %v3750, %v3757
        %v3760 = vmul.f32 %v3751, %v3757
        %3761 = vrot.lane.b32.xlu0 %v3750, 17
        %v3762 = vpop.permute.xlu0 %3761
        %3763 = vrot.lane.b32.xlu0 %v3751, 17
        %v3764 = vpop.permute.xlu0 %3763
        %v3765 = vsel %vm712, %v3762, %v3764
        %v3766 = vsel %vm712, %v3764, %v3762
        %v3767 = vmul.f32 %v3766, %v673
        %v3768 = vmul.f32 %v3765, %v674
        %3769 = vset.pattern.permute.xlu0 0
        %3770 = vperm.xlu0 %3769, %v3753
        %v3771 = vpop.permute.xlu0 %3770
        %v3773 = vmul.f32 %v3767, %v3771
        %v3774 = vmul.f32 %v3768, %v3771
        %v3775 = vadd.f32 %v3759, %v3773
        %v3776 = vadd.f32 %v3760, %v3774
        %3777 = vrot.lane.b32.xlu0 %v3750, 16
        %v3778 = vpop.permute.xlu0 %3777
        %3779 = vrot.lane.b32.xlu0 %v3751, 16
        %v3780 = vpop.permute.xlu0 %3779
        %v3781 = vsel %vm729, %v3778, %v3780
        %v3782 = vsel %vm729, %v3780, %v3778
        %v3783 = vmul.f32 %v3782, %v676
        %v3784 = vmul.f32 %v3781, %v677
        %3785 = vset.pattern.permute.xlu0 1
        %3786 = vperm.xlu0 %3785, %v3753
        %v3787 = vpop.permute.xlu0 %3786
        %v3789 = vmul.f32 %v3783, %v3787
        %v3790 = vmul.f32 %v3784, %v3787
        %v3791 = vadd.f32 %v3775, %v3789
        %v3792 = vadd.f32 %v3776, %v3790
        %3793 = vrot.lane.b32.xlu0 %v3750, 15
        %v3794 = vpop.permute.xlu0 %3793
        %3795 = vrot.lane.b32.xlu0 %v3751, 15
        %v3796 = vpop.permute.xlu0 %3795
        %v3797 = vsel %vm746, %v3794, %v3796
        %v3798 = vsel %vm746, %v3796, %v3794
        %v3799 = vmul.f32 %v3798, %v679
        %v3800 = vmul.f32 %v3797, %v680
        %3801 = vset.pattern.permute.xlu0 2
        %3802 = vperm.xlu0 %3801, %v3753
        %v3803 = vpop.permute.xlu0 %3802
        %v3805 = vmul.f32 %v3799, %v3803
        %v3806 = vmul.f32 %v3800, %v3803
        %v3807 = vadd.f32 %v3791, %v3805
        %v3808 = vadd.f32 %v3792, %v3806
        %3809 = vrot.lane.b32.xlu0 %v3750, 1
        %v3810 = vpop.permute.xlu0 %3809
        %3811 = vrot.lane.b32.xlu0 %v3751, 1
        %v3812 = vpop.permute.xlu0 %3811
        %v3813 = vsel %vm763, %v3810, %v3812
        %v3814 = vsel %vm763, %v3812, %v3810
        %v3815 = vmul.f32 %v3814, %v682
        %v3816 = vmul.f32 %v3813, %v683
        %3817 = vset.pattern.permute.xlu0 3
        %3818 = vperm.xlu0 %3817, %v3753
        %v3819 = vpop.permute.xlu0 %3818
        %v3821 = vmul.f32 %v3815, %v3819
        %v3822 = vmul.f32 %v3816, %v3819
        %v3823 = vadd.f32 %v3807, %v3821
        %v3824 = vadd.f32 %v3808, %v3822
        %3825 = vrot.lane.b32.xlu0 %v3750, 127
        %v3826 = vpop.permute.xlu0 %3825
        %3827 = vrot.lane.b32.xlu0 %v3751, 127
        %v3828 = vpop.permute.xlu0 %3827
        %v3829 = vsel %vm780, %v3826, %v3828
        %v3830 = vsel %vm780, %v3828, %v3826
        %v3831 = vmul.f32 %v3829, %v685
        %v3832 = vmul.f32 %v3830, %v686
        %3833 = vset.pattern.permute.xlu0 5
        %3834 = vperm.xlu0 %3833, %v3753
        %v3835 = vpop.permute.xlu0 %3834
        %v3837 = vmul.f32 %v3831, %v3835
        %v3838 = vmul.f32 %v3832, %v3835
        %v3839 = vadd.f32 %v3823, %v3837
        %v3840 = vadd.f32 %v3824, %v3838
        %3841 = vrot.lane.b32.xlu0 %v3750, 113
        %v3842 = vpop.permute.xlu0 %3841
        %3843 = vrot.lane.b32.xlu0 %v3751, 113
        %v3844 = vpop.permute.xlu0 %3843
        %v3845 = vsel %vm797, %v3842, %v3844
        %v3846 = vsel %vm797, %v3844, %v3842
        %v3847 = vmul.f32 %v3845, %v688
        %v3848 = vmul.f32 %v3846, %v689
        %3849 = vset.pattern.permute.xlu0 6
        %3850 = vperm.xlu0 %3849, %v3753
        %v3851 = vpop.permute.xlu0 %3850
        %v3853 = vmul.f32 %v3847, %v3851
        %v3854 = vmul.f32 %v3848, %v3851
        %v3855 = vadd.f32 %v3839, %v3853
        %v3856 = vadd.f32 %v3840, %v3854
        %3857 = vrot.lane.b32.xlu0 %v3750, 112
        %v3858 = vpop.permute.xlu0 %3857
        %3859 = vrot.lane.b32.xlu0 %v3751, 112
        %v3860 = vpop.permute.xlu0 %3859
        %v3861 = vsel %vm814, %v3858, %v3860
        %v3862 = vsel %vm814, %v3860, %v3858
        %v3863 = vmul.f32 %v3861, %v691
        %v3864 = vmul.f32 %v3862, %v692
        %3865 = vset.pattern.permute.xlu0 7
        %3866 = vperm.xlu0 %3865, %v3753
        %v3867 = vpop.permute.xlu0 %3866
        %v3869 = vmul.f32 %v3863, %v3867
        %v3870 = vmul.f32 %v3864, %v3867
        %v3871 = vadd.f32 %v3855, %v3869
        %v3872 = vadd.f32 %v3856, %v3870
        %3873 = vrot.lane.b32.xlu0 %v3750, 111
        %v3874 = vpop.permute.xlu0 %3873
        %3875 = vrot.lane.b32.xlu0 %v3751, 111
        %v3876 = vpop.permute.xlu0 %3875
        %v3877 = vsel %vm831, %v3874, %v3876
        %v3878 = vsel %vm831, %v3876, %v3874
        %v3879 = vmul.f32 %v3877, %v694
        %v3880 = vmul.f32 %v3878, %v695
        %3881 = vset.pattern.permute.xlu0 8
        %3882 = vperm.xlu0 %3881, %v3753
        %v3883 = vpop.permute.xlu0 %3882
        %v3885 = vmul.f32 %v3879, %v3883
        %v3886 = vmul.f32 %v3880, %v3883
        %v3887 = vadd.f32 %v3871, %v3885
        %v3888 = vadd.f32 %v3872, %v3886
        %s3889 = scalar_lea.vmem %s11, 56
        %v3890 = vld [vmem:[%s3889] sm:$0xff]
        %s3891 = scalar_lea.vmem %s12, 56
        %v3892 = vld [vmem:[%s3891] sm:$0xff]
        %3894 = vset.pattern.permute.xlu0 0
        %3895 = vperm.xlu0 %3894, %v3892
        %v3896 = vpop.permute.xlu0 %3895
        %v3899 = vsel %vm513, %v3890, 0
        %3901 = vmatprep.subr.mxu0 %v3888
        %3902 = vmatpush1.msra.mxu0 %v3887
        %3903 = vmatprep.subr.mxu0 0.0
        %3904 = vmatpush1.msra.mxu0 0.0
        %3905 = vmatprep.subr.mxu0 0.0
        %3906 = vmatpush1.msra.mxu0 0.0
        %3907 = vmatprep.subr.mxu0 0.0
        %3908 = vmatpush1.msra.mxu0 0.0
        %3909 = vmatprep.subr.mxu0 0.0
        %3910 = vmatpush1.msra.mxu0 0.0
        %3911 = vmatprep.subr.mxu0 0.0
        %3912 = vmatpush1.msra.mxu0 0.0
        %3913 = vmatprep.subr.mxu0 0.0
        %3914 = vmatpush1.msra.mxu0 0.0
        %3915 = vmatprep.subr.mxu0 0.0
        %3916 = vmatpush1.msra.mxu0 0.0
        %3917 = vmatprep.subr.mxu0 0.0
        %3918 = vmatpush1.msra.mxu0 0.0
        %3919 = vmatprep.subr.mxu0 0.0
        %3920 = vmatpush1.msra.mxu0 0.0
        %3921 = vmatprep.subr.mxu0 0.0
        %3922 = vmatpush1.msra.mxu0 0.0
        %3923 = vmatprep.subr.mxu0 0.0
        %3924 = vmatpush1.msra.mxu0 0.0
        %3925 = vmatprep.subr.mxu0 0.0
        %3926 = vmatpush1.msra.mxu0 0.0
        %3927 = vmatprep.subr.mxu0 0.0
        %3928 = vmatpush1.msra.mxu0 0.0
        %3929 = vmatprep.subr.mxu0 0.0
        %3930 = vmatpush1.msra.mxu0 0.0
        %3931 = vmatprep.subr.mxu0 0.0
        %3932 = vmatpush1.msra.mxu0 0.0
        %3933 = vmatprep.subr.mxu0 0.0
        %3934 = vmatpush1.msra.mxu0 0.0
        %3935 = vmatprep.subr.mxu0 0.0
        %3936 = vmatpush1.msra.mxu0 0.0
        %3937 = vmatprep.subr.mxu0 0.0
        %3938 = vmatpush1.msra.mxu0 0.0
        %3939 = vmatprep.subr.mxu0 0.0
        %3940 = vmatpush1.msra.mxu0 0.0
        %3941 = vmatprep.subr.mxu0 0.0
        %3942 = vmatpush1.msra.mxu0 0.0
        %3943 = vmatprep.subr.mxu0 0.0
        %3944 = vmatpush1.msra.mxu0 0.0
        %3945 = vmatprep.subr.mxu0 0.0
        %3946 = vmatpush1.msra.mxu0 0.0
        %3947 = vmatprep.subr.mxu0 0.0
        %3948 = vmatpush1.msra.mxu0 0.0
        %3949 = vmatprep.subr.mxu0 0.0
        %3950 = vmatpush1.msra.mxu0 0.0
        %3951 = vmatprep.subr.mxu0 0.0
        %3952 = vmatpush1.msra.mxu0 0.0
        %3953 = vmatprep.subr.mxu0 0.0
        %3954 = vmatpush1.msra.mxu0 0.0
        %3955 = vmatprep.subr.mxu0 0.0
        %3956 = vmatpush1.msra.mxu0 0.0
        %3957 = vmatprep.subr.mxu0 0.0
        %3958 = vmatpush1.msra.mxu0 0.0
        %3959 = vmatprep.subr.mxu0 0.0
        %3960 = vmatpush1.msra.mxu0 0.0
        %3961 = vmatprep.subr.mxu0 0.0
        %3962 = vmatpush1.msra.mxu0 0.0
        %3963 = vmatprep.subr.mxu0 0.0
        %3964 = vmatpush1.msra.mxu0 0.0
        %3965 = vmatprep.mubr.f32.mxu0 0.0
        %3966 = vmatmul.mubr.f32.gmra.mrb[0].mxu0 %v3899
        %v3967 = vpop.f32.mrb[0].mxu0
        %v3968 = vadd.f32 %v3896, %v3967
        %v3969 = vpop.f32.mrb[0].mxu0
        %v3970 = vadd.f32 %v3896, %v3969
        %3971 = vdwg.mxu0
        %s3972 = sld [smem:[#allocation2 + $0x7]]
        %v3973 = vstv %s3972
        %v3974 = vmul.f32 %v3973, %v1600
        %v3975 = vmul.f32 %v3973, %v1601
        %v3976 = vadd.f32 %v3974, %v3968
        %v3977 = vadd.f32 %v3975, %v3970
        %v3978 = vadd.f32 %v3592, %v3976
        %v3979 = vadd.f32 %v3593, %v3977
        %v3980 = vmax.f32 %v2822, 0.0
        %v3981 = vmax.f32 %v2823, 0.0
        %s3982 = scalar_lea.vmem %s7, 64
        %v3983 = vld [vmem:[%s3982] sm:$0xff]
        %3985 = vset.pattern.permute.xlu0 4
        %3986 = vperm.xlu0 %3985, %v3983
        %v3987 = vpop.permute.xlu0 %3986
        %v3989 = vmul.f32 %v3980, %v3987
        %v3990 = vmul.f32 %v3981, %v3987
        %3991 = vrot.lane.b32.xlu0 %v3980, 17
        %v3992 = vpop.permute.xlu0 %3991
        %3993 = vrot.lane.b32.xlu0 %v3981, 17
        %v3994 = vpop.permute.xlu0 %3993
        %v3995 = vsel %vm712, %v3992, %v3994
        %v3996 = vsel %vm712, %v3994, %v3992
        %v3997 = vmul.f32 %v3996, %v673
        %v3998 = vmul.f32 %v3995, %v674
        %3999 = vset.pattern.permute.xlu0 0
        %4000 = vperm.xlu0 %3999, %v3983
        %v4001 = vpop.permute.xlu0 %4000
        %v4003 = vmul.f32 %v3997, %v4001
        %v4004 = vmul.f32 %v3998, %v4001
        %v4005 = vadd.f32 %v3989, %v4003
        %v4006 = vadd.f32 %v3990, %v4004
        %4007 = vrot.lane.b32.xlu0 %v3980, 16
        %v4008 = vpop.permute.xlu0 %4007
        %4009 = vrot.lane.b32.xlu0 %v3981, 16
        %v4010 = vpop.permute.xlu0 %4009
        %v4011 = vsel %vm729, %v4008, %v4010
        %v4012 = vsel %vm729, %v4010, %v4008
        %v4013 = vmul.f32 %v4012, %v676
        %v4014 = vmul.f32 %v4011, %v677
        %4015 = vset.pattern.permute.xlu0 1
        %4016 = vperm.xlu0 %4015, %v3983
        %v4017 = vpop.permute.xlu0 %4016
        %v4019 = vmul.f32 %v4013, %v4017
        %v4020 = vmul.f32 %v4014, %v4017
        %v4021 = vadd.f32 %v4005, %v4019
        %v4022 = vadd.f32 %v4006, %v4020
        %4023 = vrot.lane.b32.xlu0 %v3980, 15
        %v4024 = vpop.permute.xlu0 %4023
        %4025 = vrot.lane.b32.xlu0 %v3981, 15
        %v4026 = vpop.permute.xlu0 %4025
        %v4027 = vsel %vm746, %v4024, %v4026
        %v4028 = vsel %vm746, %v4026, %v4024
        %v4029 = vmul.f32 %v4028, %v679
        %v4030 = vmul.f32 %v4027, %v680
        %4031 = vset.pattern.permute.xlu0 2
        %4032 = vperm.xlu0 %4031, %v3983
        %v4033 = vpop.permute.xlu0 %4032
        %v4035 = vmul.f32 %v4029, %v4033
        %v4036 = vmul.f32 %v4030, %v4033
        %v4037 = vadd.f32 %v4021, %v4035
        %v4038 = vadd.f32 %v4022, %v4036
        %4039 = vrot.lane.b32.xlu0 %v3980, 1
        %v4040 = vpop.permute.xlu0 %4039
        %4041 = vrot.lane.b32.xlu0 %v3981, 1
        %v4042 = vpop.permute.xlu0 %4041
        %v4043 = vsel %vm763, %v4040, %v4042
        %v4044 = vsel %vm763, %v4042, %v4040
        %v4045 = vmul.f32 %v4044, %v682
        %v4046 = vmul.f32 %v4043, %v683
        %4047 = vset.pattern.permute.xlu0 3
        %4048 = vperm.xlu0 %4047, %v3983
        %v4049 = vpop.permute.xlu0 %4048
        %v4051 = vmul.f32 %v4045, %v4049
        %v4052 = vmul.f32 %v4046, %v4049
        %v4053 = vadd.f32 %v4037, %v4051
        %v4054 = vadd.f32 %v4038, %v4052
        %4055 = vrot.lane.b32.xlu0 %v3980, 127
        %v4056 = vpop.permute.xlu0 %4055
        %4057 = vrot.lane.b32.xlu0 %v3981, 127
        %v4058 = vpop.permute.xlu0 %4057
        %v4059 = vsel %vm780, %v4056, %v4058
        %v4060 = vsel %vm780, %v4058, %v4056
        %v4061 = vmul.f32 %v4059, %v685
        %v4062 = vmul.f32 %v4060, %v686
        %4063 = vset.pattern.permute.xlu0 5
        %4064 = vperm.xlu0 %4063, %v3983
        %v4065 = vpop.permute.xlu0 %4064
        %v4067 = vmul.f32 %v4061, %v4065
        %v4068 = vmul.f32 %v4062, %v4065
        %v4069 = vadd.f32 %v4053, %v4067
        %v4070 = vadd.f32 %v4054, %v4068
        %4071 = vrot.lane.b32.xlu0 %v3980, 113
        %v4072 = vpop.permute.xlu0 %4071
        %4073 = vrot.lane.b32.xlu0 %v3981, 113
        %v4074 = vpop.permute.xlu0 %4073
        %v4075 = vsel %vm797, %v4072, %v4074
        %v4076 = vsel %vm797, %v4074, %v4072
        %v4077 = vmul.f32 %v4075, %v688
        %v4078 = vmul.f32 %v4076, %v689
        %4079 = vset.pattern.permute.xlu0 6
        %4080 = vperm.xlu0 %4079, %v3983
        %v4081 = vpop.permute.xlu0 %4080
        %v4083 = vmul.f32 %v4077, %v4081
        %v4084 = vmul.f32 %v4078, %v4081
        %v4085 = vadd.f32 %v4069, %v4083
        %v4086 = vadd.f32 %v4070, %v4084
        %4087 = vrot.lane.b32.xlu0 %v3980, 112
        %v4088 = vpop.permute.xlu0 %4087
        %4089 = vrot.lane.b32.xlu0 %v3981, 112
        %v4090 = vpop.permute.xlu0 %4089
        %v4091 = vsel %vm814, %v4088, %v4090
        %v4092 = vsel %vm814, %v4090, %v4088
        %v4093 = vmul.f32 %v4091, %v691
        %v4094 = vmul.f32 %v4092, %v692
        %4095 = vset.pattern.permute.xlu0 7
        %4096 = vperm.xlu0 %4095, %v3983
        %v4097 = vpop.permute.xlu0 %4096
        %v4099 = vmul.f32 %v4093, %v4097
        %v4100 = vmul.f32 %v4094, %v4097
        %v4101 = vadd.f32 %v4085, %v4099
        %v4102 = vadd.f32 %v4086, %v4100
        %4103 = vrot.lane.b32.xlu0 %v3980, 111
        %v4104 = vpop.permute.xlu0 %4103
        %4105 = vrot.lane.b32.xlu0 %v3981, 111
        %v4106 = vpop.permute.xlu0 %4105
        %v4107 = vsel %vm831, %v4104, %v4106
        %v4108 = vsel %vm831, %v4106, %v4104
        %v4109 = vmul.f32 %v4107, %v694
        %v4110 = vmul.f32 %v4108, %v695
        %4111 = vset.pattern.permute.xlu0 8
        %4112 = vperm.xlu0 %4111, %v3983
        %v4113 = vpop.permute.xlu0 %4112
        %v4115 = vmul.f32 %v4109, %v4113
        %v4116 = vmul.f32 %v4110, %v4113
        %v4117 = vadd.f32 %v4101, %v4115
        %v4118 = vadd.f32 %v4102, %v4116
        %s4119 = scalar_lea.vmem %s8, 64
        %v4120 = vld [vmem:[%s4119] sm:$0xff]
        %s4121 = scalar_lea.vmem %s9, 64
        %v4122 = vld [vmem:[%s4121] sm:$0xff]
        %4124 = vset.pattern.permute.xlu0 0
        %4125 = vperm.xlu0 %4124, %v4122
        %v4126 = vpop.permute.xlu0 %4125
        %v4129 = vsel %vm513, %v4120, 0
        %4131 = vmatprep.subr.mxu0 %v4118
        %4132 = vmatpush1.msra.mxu0 %v4117
        %4133 = vmatprep.subr.mxu0 0.0
        %4134 = vmatpush1.msra.mxu0 0.0
        %4135 = vmatprep.subr.mxu0 0.0
        %4136 = vmatpush1.msra.mxu0 0.0
        %4137 = vmatprep.subr.mxu0 0.0
        %4138 = vmatpush1.msra.mxu0 0.0
        %4139 = vmatprep.subr.mxu0 0.0
        %4140 = vmatpush1.msra.mxu0 0.0
        %4141 = vmatprep.subr.mxu0 0.0
        %4142 = vmatpush1.msra.mxu0 0.0
        %4143 = vmatprep.subr.mxu0 0.0
        %4144 = vmatpush1.msra.mxu0 0.0
        %4145 = vmatprep.subr.mxu0 0.0
        %4146 = vmatpush1.msra.mxu0 0.0
        %4147 = vmatprep.subr.mxu0 0.0
        %4148 = vmatpush1.msra.mxu0 0.0
        %4149 = vmatprep.subr.mxu0 0.0
        %4150 = vmatpush1.msra.mxu0 0.0
        %4151 = vmatprep.subr.mxu0 0.0
        %4152 = vmatpush1.msra.mxu0 0.0
        %4153 = vmatprep.subr.mxu0 0.0
        %4154 = vmatpush1.msra.mxu0 0.0
        %4155 = vmatprep.subr.mxu0 0.0
        %4156 = vmatpush1.msra.mxu0 0.0
        %4157 = vmatprep.subr.mxu0 0.0
        %4158 = vmatpush1.msra.mxu0 0.0
        %4159 = vmatprep.subr.mxu0 0.0
        %4160 = vmatpush1.msra.mxu0 0.0
        %4161 = vmatprep.subr.mxu0 0.0
        %4162 = vmatpush1.msra.mxu0 0.0
        %4163 = vmatprep.subr.mxu0 0.0
        %4164 = vmatpush1.msra.mxu0 0.0
        %4165 = vmatprep.subr.mxu0 0.0
        %4166 = vmatpush1.msra.mxu0 0.0
        %4167 = vmatprep.subr.mxu0 0.0
        %4168 = vmatpush1.msra.mxu0 0.0
        %4169 = vmatprep.subr.mxu0 0.0
        %4170 = vmatpush1.msra.mxu0 0.0
        %4171 = vmatprep.subr.mxu0 0.0
        %4172 = vmatpush1.msra.mxu0 0.0
        %4173 = vmatprep.subr.mxu0 0.0
        %4174 = vmatpush1.msra.mxu0 0.0
        %4175 = vmatprep.subr.mxu0 0.0
        %4176 = vmatpush1.msra.mxu0 0.0
        %4177 = vmatprep.subr.mxu0 0.0
        %4178 = vmatpush1.msra.mxu0 0.0
        %4179 = vmatprep.subr.mxu0 0.0
        %4180 = vmatpush1.msra.mxu0 0.0
        %4181 = vmatprep.subr.mxu0 0.0
        %4182 = vmatpush1.msra.mxu0 0.0
        %4183 = vmatprep.subr.mxu0 0.0
        %4184 = vmatpush1.msra.mxu0 0.0
        %4185 = vmatprep.subr.mxu0 0.0
        %4186 = vmatpush1.msra.mxu0 0.0
        %4187 = vmatprep.subr.mxu0 0.0
        %4188 = vmatpush1.msra.mxu0 0.0
        %4189 = vmatprep.subr.mxu0 0.0
        %4190 = vmatpush1.msra.mxu0 0.0
        %4191 = vmatprep.subr.mxu0 0.0
        %4192 = vmatpush1.msra.mxu0 0.0
        %4193 = vmatprep.subr.mxu0 0.0
        %4194 = vmatpush1.msra.mxu0 0.0
        %4195 = vmatprep.mubr.f32.mxu0 0.0
        %4196 = vmatmul.mubr.f32.gmra.mrb[0].mxu0 %v4129
        %v4197 = vpop.f32.mrb[0].mxu0
        %v4198 = vadd.f32 %v4126, %v4197
        %v4199 = vpop.f32.mrb[0].mxu0
        %v4200 = vadd.f32 %v4126, %v4199
        %4201 = vdwg.mxu0
        %v4202 = vmax.f32 %v4198, 0.0
        %v4203 = vmax.f32 %v4200, 0.0
        %s4204 = scalar_lea.vmem %s10, 64
        %v4205 = vld [vmem:[%s4204] sm:$0xff]
        %4207 = vset.pattern.permute.xlu0 4
        %4208 = vperm.xlu0 %4207, %v4205
        %v4209 = vpop.permute.xlu0 %4208
        %v4211 = vmul.f32 %v4202, %v4209
        %v4212 = vmul.f32 %v4203, %v4209
        %4213 = vrot.lane.b32.xlu0 %v4202, 17
        %v4214 = vpop.permute.xlu0 %4213
        %4215 = vrot.lane.b32.xlu0 %v4203, 17
        %v4216 = vpop.permute.xlu0 %4215
        %v4217 = vsel %vm712, %v4214, %v4216
        %v4218 = vsel %vm712, %v4216, %v4214
        %v4219 = vmul.f32 %v4218, %v673
        %v4220 = vmul.f32 %v4217, %v674
        %4221 = vset.pattern.permute.xlu0 0
        %4222 = vperm.xlu0 %4221, %v4205
        %v4223 = vpop.permute.xlu0 %4222
        %v4225 = vmul.f32 %v4219, %v4223
        %v4226 = vmul.f32 %v4220, %v4223
        %v4227 = vadd.f32 %v4211, %v4225
        %v4228 = vadd.f32 %v4212, %v4226
        %4229 = vrot.lane.b32.xlu0 %v4202, 16
        %v4230 = vpop.permute.xlu0 %4229
        %4231 = vrot.lane.b32.xlu0 %v4203, 16
        %v4232 = vpop.permute.xlu0 %4231
        %v4233 = vsel %vm729, %v4230, %v4232
        %v4234 = vsel %vm729, %v4232, %v4230
        %v4235 = vmul.f32 %v4234, %v676
        %v4236 = vmul.f32 %v4233, %v677
        %4237 = vset.pattern.permute.xlu0 1
        %4238 = vperm.xlu0 %4237, %v4205
        %v4239 = vpop.permute.xlu0 %4238
        %v4241 = vmul.f32 %v4235, %v4239
        %v4242 = vmul.f32 %v4236, %v4239
        %v4243 = vadd.f32 %v4227, %v4241
        %v4244 = vadd.f32 %v4228, %v4242
        %4245 = vrot.lane.b32.xlu0 %v4202, 15
        %v4246 = vpop.permute.xlu0 %4245
        %4247 = vrot.lane.b32.xlu0 %v4203, 15
        %v4248 = vpop.permute.xlu0 %4247
        %v4249 = vsel %vm746, %v4246, %v4248
        %v4250 = vsel %vm746, %v4248, %v4246
        %v4251 = vmul.f32 %v4250, %v679
        %v4252 = vmul.f32 %v4249, %v680
        %4253 = vset.pattern.permute.xlu0 2
        %4254 = vperm.xlu0 %4253, %v4205
        %v4255 = vpop.permute.xlu0 %4254
        %v4257 = vmul.f32 %v4251, %v4255
        %v4258 = vmul.f32 %v4252, %v4255
        %v4259 = vadd.f32 %v4243, %v4257
        %v4260 = vadd.f32 %v4244, %v4258
        %4261 = vrot.lane.b32.xlu0 %v4202, 1
        %v4262 = vpop.permute.xlu0 %4261
        %4263 = vrot.lane.b32.xlu0 %v4203, 1
        %v4264 = vpop.permute.xlu0 %4263
        %v4265 = vsel %vm763, %v4262, %v4264
        %v4266 = vsel %vm763, %v4264, %v4262
        %v4267 = vmul.f32 %v4266, %v682
        %v4268 = vmul.f32 %v4265, %v683
        %4269 = vset.pattern.permute.xlu0 3
        %4270 = vperm.xlu0 %4269, %v4205
        %v4271 = vpop.permute.xlu0 %4270
        %v4273 = vmul.f32 %v4267, %v4271
        %v4274 = vmul.f32 %v4268, %v4271
        %v4275 = vadd.f32 %v4259, %v4273
        %v4276 = vadd.f32 %v4260, %v4274
        %4277 = vrot.lane.b32.xlu0 %v4202, 127
        %v4278 = vpop.permute.xlu0 %4277
        %4279 = vrot.lane.b32.xlu0 %v4203, 127
        %v4280 = vpop.permute.xlu0 %4279
        %v4281 = vsel %vm780, %v4278, %v4280
        %v4282 = vsel %vm780, %v4280, %v4278
        %v4283 = vmul.f32 %v4281, %v685
        %v4284 = vmul.f32 %v4282, %v686
        %4285 = vset.pattern.permute.xlu0 5
        %4286 = vperm.xlu0 %4285, %v4205
        %v4287 = vpop.permute.xlu0 %4286
        %v4289 = vmul.f32 %v4283, %v4287
        %v4290 = vmul.f32 %v4284, %v4287
        %v4291 = vadd.f32 %v4275, %v4289
        %v4292 = vadd.f32 %v4276, %v4290
        %4293 = vrot.lane.b32.xlu0 %v4202, 113
        %v4294 = vpop.permute.xlu0 %4293
        %4295 = vrot.lane.b32.xlu0 %v4203, 113
        %v4296 = vpop.permute.xlu0 %4295
        %v4297 = vsel %vm797, %v4294, %v4296
        %v4298 = vsel %vm797, %v4296, %v4294
        %v4299 = vmul.f32 %v4297, %v688
        %v4300 = vmul.f32 %v4298, %v689
        %4301 = vset.pattern.permute.xlu0 6
        %4302 = vperm.xlu0 %4301, %v4205
        %v4303 = vpop.permute.xlu0 %4302
        %v4305 = vmul.f32 %v4299, %v4303
        %v4306 = vmul.f32 %v4300, %v4303
        %v4307 = vadd.f32 %v4291, %v4305
        %v4308 = vadd.f32 %v4292, %v4306
        %4309 = vrot.lane.b32.xlu0 %v4202, 112
        %v4310 = vpop.permute.xlu0 %4309
        %4311 = vrot.lane.b32.xlu0 %v4203, 112
        %v4312 = vpop.permute.xlu0 %4311
        %v4313 = vsel %vm814, %v4310, %v4312
        %v4314 = vsel %vm814, %v4312, %v4310
        %v4315 = vmul.f32 %v4313, %v691
        %v4316 = vmul.f32 %v4314, %v692
        %4317 = vset.pattern.permute.xlu0 7
        %4318 = vperm.xlu0 %4317, %v4205
        %v4319 = vpop.permute.xlu0 %4318
        %v4321 = vmul.f32 %v4315, %v4319
        %v4322 = vmul.f32 %v4316, %v4319
        %v4323 = vadd.f32 %v4307, %v4321
        %v4324 = vadd.f32 %v4308, %v4322
        %4325 = vrot.lane.b32.xlu0 %v4202, 111
        %v4326 = vpop.permute.xlu0 %4325
        %4327 = vrot.lane.b32.xlu0 %v4203, 111
        %v4328 = vpop.permute.xlu0 %4327
        %v4329 = vsel %vm831, %v4326, %v4328
        %v4330 = vsel %vm831, %v4328, %v4326
        %v4331 = vmul.f32 %v4329, %v694
        %v4332 = vmul.f32 %v4330, %v695
        %4333 = vset.pattern.permute.xlu0 8
        %4334 = vperm.xlu0 %4333, %v4205
        %v4335 = vpop.permute.xlu0 %4334
        %v4337 = vmul.f32 %v4331, %v4335
        %v4338 = vmul.f32 %v4332, %v4335
        %v4339 = vadd.f32 %v4323, %v4337
        %v4340 = vadd.f32 %v4324, %v4338
        %s4341 = scalar_lea.vmem %s11, 64
        %v4342 = vld [vmem:[%s4341] sm:$0xff]
        %s4343 = scalar_lea.vmem %s12, 64
        %v4344 = vld [vmem:[%s4343] sm:$0xff]
        %4346 = vset.pattern.permute.xlu0 0
        %4347 = vperm.xlu0 %4346, %v4344
        %v4348 = vpop.permute.xlu0 %4347
        %v4351 = vsel %vm513, %v4342, 0
        %4353 = vmatprep.subr.mxu0 %v4340
        %4354 = vmatpush1.msra.mxu0 %v4339
        %4355 = vmatprep.subr.mxu0 0.0
        %4356 = vmatpush1.msra.mxu0 0.0
        %4357 = vmatprep.subr.mxu0 0.0
        %4358 = vmatpush1.msra.mxu0 0.0
        %4359 = vmatprep.subr.mxu0 0.0
        %4360 = vmatpush1.msra.mxu0 0.0
        %4361 = vmatprep.subr.mxu0 0.0
        %4362 = vmatpush1.msra.mxu0 0.0
        %4363 = vmatprep.subr.mxu0 0.0
        %4364 = vmatpush1.msra.mxu0 0.0
        %4365 = vmatprep.subr.mxu0 0.0
        %4366 = vmatpush1.msra.mxu0 0.0
        %4367 = vmatprep.subr.mxu0 0.0
        %4368 = vmatpush1.msra.mxu0 0.0
        %4369 = vmatprep.subr.mxu0 0.0
        %4370 = vmatpush1.msra.mxu0 0.0
        %4371 = vmatprep.subr.mxu0 0.0
        %4372 = vmatpush1.msra.mxu0 0.0
        %4373 = vmatprep.subr.mxu0 0.0
        %4374 = vmatpush1.msra.mxu0 0.0
        %4375 = vmatprep.subr.mxu0 0.0
        %4376 = vmatpush1.msra.mxu0 0.0
        %4377 = vmatprep.subr.mxu0 0.0
        %4378 = vmatpush1.msra.mxu0 0.0
        %4379 = vmatprep.subr.mxu0 0.0
        %4380 = vmatpush1.msra.mxu0 0.0
        %4381 = vmatprep.subr.mxu0 0.0
        %4382 = vmatpush1.msra.mxu0 0.0
        %4383 = vmatprep.subr.mxu0 0.0
        %4384 = vmatpush1.msra.mxu0 0.0
        %4385 = vmatprep.subr.mxu0 0.0
        %4386 = vmatpush1.msra.mxu0 0.0
        %4387 = vmatprep.subr.mxu0 0.0
        %4388 = vmatpush1.msra.mxu0 0.0
        %4389 = vmatprep.subr.mxu0 0.0
        %4390 = vmatpush1.msra.mxu0 0.0
        %4391 = vmatprep.subr.mxu0 0.0
        %4392 = vmatpush1.msra.mxu0 0.0
        %4393 = vmatprep.subr.mxu0 0.0
        %4394 = vmatpush1.msra.mxu0 0.0
        %4395 = vmatprep.subr.mxu0 0.0
        %4396 = vmatpush1.msra.mxu0 0.0
        %4397 = vmatprep.subr.mxu0 0.0
        %4398 = vmatpush1.msra.mxu0 0.0
        %4399 = vmatprep.subr.mxu0 0.0
        %4400 = vmatpush1.msra.mxu0 0.0
        %4401 = vmatprep.subr.mxu0 0.0
        %4402 = vmatpush1.msra.mxu0 0.0
        %4403 = vmatprep.subr.mxu0 0.0
        %4404 = vmatpush1.msra.mxu0 0.0
        %4405 = vmatprep.subr.mxu0 0.0
        %4406 = vmatpush1.msra.mxu0 0.0
        %4407 = vmatprep.subr.mxu0 0.0
        %4408 = vmatpush1.msra.mxu0 0.0
        %4409 = vmatprep.subr.mxu0 0.0
        %4410 = vmatpush1.msra.mxu0 0.0
        %4411 = vmatprep.subr.mxu0 0.0
        %4412 = vmatpush1.msra.mxu0 0.0
        %4413 = vmatprep.subr.mxu0 0.0
        %4414 = vmatpush1.msra.mxu0 0.0
        %4415 = vmatprep.subr.mxu0 0.0
        %4416 = vmatpush1.msra.mxu0 0.0
        %4417 = vmatprep.mubr.f32.mxu0 0.0
        %4418 = vmatmul.mubr.f32.gmra.mrb[0].mxu0 %v4351
        %v4419 = vpop.f32.mrb[0].mxu0
        %v4420 = vadd.f32 %v4348, %v4419
        %v4421 = vpop.f32.mrb[0].mxu0
        %v4422 = vadd.f32 %v4348, %v4421
        %4423 = vdwg.mxu0
        %s4424 = sld [smem:[#allocation2 + $0x8]]
        %v4425 = vstv %s4424
        %v4426 = vmul.f32 %v4425, %v2822
        %v4427 = vmul.f32 %v4425, %v2823
        %v4428 = vadd.f32 %v4426, %v4420
        %v4429 = vadd.f32 %v4427, %v4422
        %v4430 = vadd.f32 %v3978, %v4428
        %v4431 = vadd.f32 %v3979, %v4429
        %s4432 = scalar_lea.vmem %s7, 72
        %v4433 = vld [vmem:[%s4432] sm:$0xff]
        %4435 = vset.pattern.permute.xlu0 4
        %4436 = vperm.xlu0 %4435, %v4433
        %v4437 = vpop.permute.xlu0 %4436
        %v4439 = vmul.f32 %v696, %v4437
        %v4440 = vmul.f32 %v697, %v4437
        %4441 = vset.pattern.permute.xlu0 0
        %4442 = vperm.xlu0 %4441, %v4433
        %v4443 = vpop.permute.xlu0 %4442
        %v4445 = vmul.f32 %v715, %v4443
        %v4446 = vmul.f32 %v716, %v4443
        %v4447 = vadd.f32 %v4439, %v4445
        %v4448 = vadd.f32 %v4440, %v4446
        %4449 = vset.pattern.permute.xlu0 1
        %4450 = vperm.xlu0 %4449, %v4433
        %v4451 = vpop.permute.xlu0 %4450
        %v4453 = vmul.f32 %v732, %v4451
        %v4454 = vmul.f32 %v733, %v4451
        %v4455 = vadd.f32 %v4447, %v4453
        %v4456 = vadd.f32 %v4448, %v4454
        %4457 = vset.pattern.permute.xlu0 2
        %4458 = vperm.xlu0 %4457, %v4433
        %v4459 = vpop.permute.xlu0 %4458
        %v4461 = vmul.f32 %v749, %v4459
        %v4462 = vmul.f32 %v750, %v4459
        %v4463 = vadd.f32 %v4455, %v4461
        %v4464 = vadd.f32 %v4456, %v4462
        %4465 = vset.pattern.permute.xlu0 3
        %4466 = vperm.xlu0 %4465, %v4433
        %v4467 = vpop.permute.xlu0 %4466
        %v4469 = vmul.f32 %v766, %v4467
        %v4470 = vmul.f32 %v767, %v4467
        %v4471 = vadd.f32 %v4463, %v4469
        %v4472 = vadd.f32 %v4464, %v4470
        %4473 = vset.pattern.permute.xlu0 5
        %4474 = vperm.xlu0 %4473, %v4433
        %v4475 = vpop.permute.xlu0 %4474
        %v4477 = vmul.f32 %v783, %v4475
        %v4478 = vmul.f32 %v784, %v4475
        %v4479 = vadd.f32 %v4471, %v4477
        %v4480 = vadd.f32 %v4472, %v4478
        %4481 = vset.pattern.permute.xlu0 6
        %4482 = vperm.xlu0 %4481, %v4433
        %v4483 = vpop.permute.xlu0 %4482
        %v4485 = vmul.f32 %v800, %v4483
        %v4486 = vmul.f32 %v801, %v4483
        %v4487 = vadd.f32 %v4479, %v4485
        %v4488 = vadd.f32 %v4480, %v4486
        %4489 = vset.pattern.permute.xlu0 7
        %4490 = vperm.xlu0 %4489, %v4433
        %v4491 = vpop.permute.xlu0 %4490
        %v4493 = vmul.f32 %v817, %v4491
        %v4494 = vmul.f32 %v818, %v4491
        %v4495 = vadd.f32 %v4487, %v4493
        %v4496 = vadd.f32 %v4488, %v4494
        %4497 = vset.pattern.permute.xlu0 8
        %4498 = vperm.xlu0 %4497, %v4433
        %v4499 = vpop.permute.xlu0 %4498
        %v4501 = vmul.f32 %v834, %v4499
        %v4502 = vmul.f32 %v835, %v4499
        %v4503 = vadd.f32 %v4495, %v4501
        %v4504 = vadd.f32 %v4496, %v4502
        %s4505 = scalar_lea.vmem %s8, 72
        %v4506 = vld [vmem:[%s4505] sm:$0xff]
        %s4507 = scalar_lea.vmem %s9, 72
        %v4508 = vld [vmem:[%s4507] sm:$0xff]
        %4510 = vset.pattern.permute.xlu0 0
        %4511 = vperm.xlu0 %4510, %v4508
        %v4512 = vpop.permute.xlu0 %4511
        %v4515 = vsel %vm513, %v4506, 0
        %4517 = vmatprep.subr.mxu0 %v4504
        %4518 = vmatpush1.msra.mxu0 %v4503
        %4519 = vmatprep.subr.mxu0 0.0
        %4520 = vmatpush1.msra.mxu0 0.0
        %4521 = vmatprep.subr.mxu0 0.0
        %4522 = vmatpush1.msra.mxu0 0.0
        %4523 = vmatprep.subr.mxu0 0.0
        %4524 = vmatpush1.msra.mxu0 0.0
        %4525 = vmatprep.subr.mxu0 0.0
        %4526 = vmatpush1.msra.mxu0 0.0
        %4527 = vmatprep.subr.mxu0 0.0
        %4528 = vmatpush1.msra.mxu0 0.0
        %4529 = vmatprep.subr.mxu0 0.0
        %4530 = vmatpush1.msra.mxu0 0.0
        %4531 = vmatprep.subr.mxu0 0.0
        %4532 = vmatpush1.msra.mxu0 0.0
        %4533 = vmatprep.subr.mxu0 0.0
        %4534 = vmatpush1.msra.mxu0 0.0
        %4535 = vmatprep.subr.mxu0 0.0
        %4536 = vmatpush1.msra.mxu0 0.0
        %4537 = vmatprep.subr.mxu0 0.0
        %4538 = vmatpush1.msra.mxu0 0.0
        %4539 = vmatprep.subr.mxu0 0.0
        %4540 = vmatpush1.msra.mxu0 0.0
        %4541 = vmatprep.subr.mxu0 0.0
        %4542 = vmatpush1.msra.mxu0 0.0
        %4543 = vmatprep.subr.mxu0 0.0
        %4544 = vmatpush1.msra.mxu0 0.0
        %4545 = vmatprep.subr.mxu0 0.0
        %4546 = vmatpush1.msra.mxu0 0.0
        %4547 = vmatprep.subr.mxu0 0.0
        %4548 = vmatpush1.msra.mxu0 0.0
        %4549 = vmatprep.subr.mxu0 0.0
        %4550 = vmatpush1.msra.mxu0 0.0
        %4551 = vmatprep.subr.mxu0 0.0
        %4552 = vmatpush1.msra.mxu0 0.0
        %4553 = vmatprep.subr.mxu0 0.0
        %4554 = vmatpush1.msra.mxu0 0.0
        %4555 = vmatprep.subr.mxu0 0.0
        %4556 = vmatpush1.msra.mxu0 0.0
        %4557 = vmatprep.subr.mxu0 0.0
        %4558 = vmatpush1.msra.mxu0 0.0
        %4559 = vmatprep.subr.mxu0 0.0
        %4560 = vmatpush1.msra.mxu0 0.0
        %4561 = vmatprep.subr.mxu0 0.0
        %4562 = vmatpush1.msra.mxu0 0.0
        %4563 = vmatprep.subr.mxu0 0.0
        %4564 = vmatpush1.msra.mxu0 0.0
        %4565 = vmatprep.subr.mxu0 0.0
        %4566 = vmatpush1.msra.mxu0 0.0
        %4567 = vmatprep.subr.mxu0 0.0
        %4568 = vmatpush1.msra.mxu0 0.0
        %4569 = vmatprep.subr.mxu0 0.0
        %4570 = vmatpush1.msra.mxu0 0.0
        %4571 = vmatprep.subr.mxu0 0.0
        %4572 = vmatpush1.msra.mxu0 0.0
        %4573 = vmatprep.subr.mxu0 0.0
        %4574 = vmatpush1.msra.mxu0 0.0
        %4575 = vmatprep.subr.mxu0 0.0
        %4576 = vmatpush1.msra.mxu0 0.0
        %4577 = vmatprep.subr.mxu0 0.0
        %4578 = vmatpush1.msra.mxu0 0.0
        %4579 = vmatprep.subr.mxu0 0.0
        %4580 = vmatpush1.msra.mxu0 0.0
        %4581 = vmatprep.mubr.f32.mxu0 0.0
        %4582 = vmatmul.mubr.f32.gmra.mrb[0].mxu0 %v4515
        %v4583 = vpop.f32.mrb[0].mxu0
        %v4584 = vadd.f32 %v4512, %v4583
        %v4585 = vpop.f32.mrb[0].mxu0
        %v4586 = vadd.f32 %v4512, %v4585
        %4587 = vdwg.mxu0
        %v4588 = vmax.f32 %v4584, 0.0
        %v4589 = vmax.f32 %v4586, 0.0
        %s4590 = scalar_lea.vmem %s10, 72
        %v4591 = vld [vmem:[%s4590] sm:$0xff]
        %4593 = vset.pattern.permute.xlu0 4
        %4594 = vperm.xlu0 %4593, %v4591
        %v4595 = vpop.permute.xlu0 %4594
        %v4597 = vmul.f32 %v4588, %v4595
        %v4598 = vmul.f32 %v4589, %v4595
        %4599 = vrot.lane.b32.xlu0 %v4588, 17
        %v4600 = vpop.permute.xlu0 %4599
        %4601 = vrot.lane.b32.xlu0 %v4589, 17
        %v4602 = vpop.permute.xlu0 %4601
        %v4603 = vsel %vm712, %v4600, %v4602
        %v4604 = vsel %vm712, %v4602, %v4600
        %v4605 = vmul.f32 %v4604, %v673
        %v4606 = vmul.f32 %v4603, %v674
        %4607 = vset.pattern.permute.xlu0 0
        %4608 = vperm.xlu0 %4607, %v4591
        %v4609 = vpop.permute.xlu0 %4608
        %v4611 = vmul.f32 %v4605, %v4609
        %v4612 = vmul.f32 %v4606, %v4609
        %v4613 = vadd.f32 %v4597, %v4611
        %v4614 = vadd.f32 %v4598, %v4612
        %4615 = vrot.lane.b32.xlu0 %v4588, 16
        %v4616 = vpop.permute.xlu0 %4615
        %4617 = vrot.lane.b32.xlu0 %v4589, 16
        %v4618 = vpop.permute.xlu0 %4617
        %v4619 = vsel %vm729, %v4616, %v4618
        %v4620 = vsel %vm729, %v4618, %v4616
        %v4621 = vmul.f32 %v4620, %v676
        %v4622 = vmul.f32 %v4619, %v677
        %4623 = vset.pattern.permute.xlu0 1
        %4624 = vperm.xlu0 %4623, %v4591
        %v4625 = vpop.permute.xlu0 %4624
        %v4627 = vmul.f32 %v4621, %v4625
        %v4628 = vmul.f32 %v4622, %v4625
        %v4629 = vadd.f32 %v4613, %v4627
        %v4630 = vadd.f32 %v4614, %v4628
        %4631 = vrot.lane.b32.xlu0 %v4588, 15
        %v4632 = vpop.permute.xlu0 %4631
        %4633 = vrot.lane.b32.xlu0 %v4589, 15
        %v4634 = vpop.permute.xlu0 %4633
        %v4635 = vsel %vm746, %v4632, %v4634
        %v4636 = vsel %vm746, %v4634, %v4632
        %v4637 = vmul.f32 %v4636, %v679
        %v4638 = vmul.f32 %v4635, %v680
        %4639 = vset.pattern.permute.xlu0 2
        %4640 = vperm.xlu0 %4639, %v4591
        %v4641 = vpop.permute.xlu0 %4640
        %v4643 = vmul.f32 %v4637, %v4641
        %v4644 = vmul.f32 %v4638, %v4641
        %v4645 = vadd.f32 %v4629, %v4643
        %v4646 = vadd.f32 %v4630, %v4644
        %4647 = vrot.lane.b32.xlu0 %v4588, 1
        %v4648 = vpop.permute.xlu0 %4647
        %4649 = vrot.lane.b32.xlu0 %v4589, 1
        %v4650 = vpop.permute.xlu0 %4649
        %v4651 = vsel %vm763, %v4648, %v4650
        %v4652 = vsel %vm763, %v4650, %v4648
        %v4653 = vmul.f32 %v4652, %v682
        %v4654 = vmul.f32 %v4651, %v683
        %4655 = vset.pattern.permute.xlu0 3
        %4656 = vperm.xlu0 %4655, %v4591
        %v4657 = vpop.permute.xlu0 %4656
        %v4659 = vmul.f32 %v4653, %v4657
        %v4660 = vmul.f32 %v4654, %v4657
        %v4661 = vadd.f32 %v4645, %v4659
        %v4662 = vadd.f32 %v4646, %v4660
        %4663 = vrot.lane.b32.xlu0 %v4588, 127
        %v4664 = vpop.permute.xlu0 %4663
        %4665 = vrot.lane.b32.xlu0 %v4589, 127
        %v4666 = vpop.permute.xlu0 %4665
        %v4667 = vsel %vm780, %v4664, %v4666
        %v4668 = vsel %vm780, %v4666, %v4664
        %v4669 = vmul.f32 %v4667, %v685
        %v4670 = vmul.f32 %v4668, %v686
        %4671 = vset.pattern.permute.xlu0 5
        %4672 = vperm.xlu0 %4671, %v4591
        %v4673 = vpop.permute.xlu0 %4672
        %v4675 = vmul.f32 %v4669, %v4673
        %v4676 = vmul.f32 %v4670, %v4673
        %v4677 = vadd.f32 %v4661, %v4675
        %v4678 = vadd.f32 %v4662, %v4676
        %4679 = vrot.lane.b32.xlu0 %v4588, 113
        %v4680 = vpop.permute.xlu0 %4679
        %4681 = vrot.lane.b32.xlu0 %v4589, 113
        %v4682 = vpop.permute.xlu0 %4681
        %v4683 = vsel %vm797, %v4680, %v4682
        %v4684 = vsel %vm797, %v4682, %v4680
        %v4685 = vmul.f32 %v4683, %v688
        %v4686 = vmul.f32 %v4684, %v689
        %4687 = vset.pattern.permute.xlu0 6
        %4688 = vperm.xlu0 %4687, %v4591
        %v4689 = vpop.permute.xlu0 %4688
        %v4691 = vmul.f32 %v4685, %v4689
        %v4692 = vmul.f32 %v4686, %v4689
        %v4693 = vadd.f32 %v4677, %v4691
        %v4694 = vadd.f32 %v4678, %v4692
        %4695 = vrot.lane.b32.xlu0 %v4588, 112
        %v4696 = vpop.permute.xlu0 %4695
        %4697 = vrot.lane.b32.xlu0 %v4589, 112
        %v4698 = vpop.permute.xlu0 %4697
        %v4699 = vsel %vm814, %v4696, %v4698
        %v4700 = vsel %vm814, %v4698, %v4696
        %v4701 = vmul.f32 %v4699, %v691
        %v4702 = vmul.f32 %v4700, %v692
        %4703 = vset.pattern.permute.xlu0 7
        %4704 = vperm.xlu0 %4703, %v4591
        %v4705 = vpop.permute.xlu0 %4704
        %v4707 = vmul.f32 %v4701, %v4705
        %v4708 = vmul.f32 %v4702, %v4705
        %v4709 = vadd.f32 %v4693, %v4707
        %v4710 = vadd.f32 %v4694, %v4708
        %4711 = vrot.lane.b32.xlu0 %v4588, 111
        %v4712 = vpop.permute.xlu0 %4711
        %4713 = vrot.lane.b32.xlu0 %v4589, 111
        %v4714 = vpop.permute.xlu0 %4713
        %v4715 = vsel %vm831, %v4712, %v4714
        %v4716 = vsel %vm831, %v4714, %v4712
        %v4717 = vmul.f32 %v4715, %v694
        %v4718 = vmul.f32 %v4716, %v695
        %4719 = vset.pattern.permute.xlu0 8
        %4720 = vperm.xlu0 %4719, %v4591
        %v4721 = vpop.permute.xlu0 %4720
        %v4723 = vmul.f32 %v4717, %v4721
        %v4724 = vmul.f32 %v4718, %v4721
        %v4725 = vadd.f32 %v4709, %v4723
        %v4726 = vadd.f32 %v4710, %v4724
        %s4727 = scalar_lea.vmem %s11, 72
        %v4728 = vld [vmem:[%s4727] sm:$0xff]
        %s4729 = scalar_lea.vmem %s12, 72
        %v4730 = vld [vmem:[%s4729] sm:$0xff]
        %4732 = vset.pattern.permute.xlu0 0
        %4733 = vperm.xlu0 %4732, %v4730
        %v4734 = vpop.permute.xlu0 %4733
        %v4737 = vsel %vm513, %v4728, 0
        %4739 = vmatprep.subr.mxu0 %v4726
        %4740 = vmatpush1.msra.mxu0 %v4725
        %4741 = vmatprep.subr.mxu0 0.0
        %4742 = vmatpush1.msra.mxu0 0.0
        %4743 = vmatprep.subr.mxu0 0.0
        %4744 = vmatpush1.msra.mxu0 0.0
        %4745 = vmatprep.subr.mxu0 0.0
        %4746 = vmatpush1.msra.mxu0 0.0
        %4747 = vmatprep.subr.mxu0 0.0
        %4748 = vmatpush1.msra.mxu0 0.0
        %4749 = vmatprep.subr.mxu0 0.0
        %4750 = vmatpush1.msra.mxu0 0.0
        %4751 = vmatprep.subr.mxu0 0.0
        %4752 = vmatpush1.msra.mxu0 0.0
        %4753 = vmatprep.subr.mxu0 0.0
        %4754 = vmatpush1.msra.mxu0 0.0
        %4755 = vmatprep.subr.mxu0 0.0
        %4756 = vmatpush1.msra.mxu0 0.0
        %4757 = vmatprep.subr.mxu0 0.0
        %4758 = vmatpush1.msra.mxu0 0.0
        %4759 = vmatprep.subr.mxu0 0.0
        %4760 = vmatpush1.msra.mxu0 0.0
        %4761 = vmatprep.subr.mxu0 0.0
        %4762 = vmatpush1.msra.mxu0 0.0
        %4763 = vmatprep.subr.mxu0 0.0
        %4764 = vmatpush1.msra.mxu0 0.0
        %4765 = vmatprep.subr.mxu0 0.0
        %4766 = vmatpush1.msra.mxu0 0.0
        %4767 = vmatprep.subr.mxu0 0.0
        %4768 = vmatpush1.msra.mxu0 0.0
        %4769 = vmatprep.subr.mxu0 0.0
        %4770 = vmatpush1.msra.mxu0 0.0
        %4771 = vmatprep.subr.mxu0 0.0
        %4772 = vmatpush1.msra.mxu0 0.0
        %4773 = vmatprep.subr.mxu0 0.0
        %4774 = vmatpush1.msra.mxu0 0.0
        %4775 = vmatprep.subr.mxu0 0.0
        %4776 = vmatpush1.msra.mxu0 0.0
        %4777 = vmatprep.subr.mxu0 0.0
        %4778 = vmatpush1.msra.mxu0 0.0
        %4779 = vmatprep.subr.mxu0 0.0
        %4780 = vmatpush1.msra.mxu0 0.0
        %4781 = vmatprep.subr.mxu0 0.0
        %4782 = vmatpush1.msra.mxu0 0.0
        %4783 = vmatprep.subr.mxu0 0.0
        %4784 = vmatpush1.msra.mxu0 0.0
        %4785 = vmatprep.subr.mxu0 0.0
        %4786 = vmatpush1.msra.mxu0 0.0
        %4787 = vmatprep.subr.mxu0 0.0
        %4788 = vmatpush1.msra.mxu0 0.0
        %4789 = vmatprep.subr.mxu0 0.0
        %4790 = vmatpush1.msra.mxu0 0.0
        %4791 = vmatprep.subr.mxu0 0.0
        %4792 = vmatpush1.msra.mxu0 0.0
        %4793 = vmatprep.subr.mxu0 0.0
        %4794 = vmatpush1.msra.mxu0 0.0
        %4795 = vmatprep.subr.mxu0 0.0
        %4796 = vmatpush1.msra.mxu0 0.0
        %4797 = vmatprep.subr.mxu0 0.0
        %4798 = vmatpush1.msra.mxu0 0.0
        %4799 = vmatprep.subr.mxu0 0.0
        %4800 = vmatpush1.msra.mxu0 0.0
        %4801 = vmatprep.subr.mxu0 0.0
        %4802 = vmatpush1.msra.mxu0 0.0
        %4803 = vmatprep.mubr.f32.mxu0 0.0
        %4804 = vmatmul.mubr.f32.gmra.mrb[0].mxu0 %v4737
        %v4805 = vpop.f32.mrb[0].mxu0
        %v4806 = vadd.f32 %v4734, %v4805
        %v4807 = vpop.f32.mrb[0].mxu0
        %v4808 = vadd.f32 %v4734, %v4807
        %4809 = vdwg.mxu0
        %s4810 = sld [smem:[#allocation2 + $0x9]]
        %v4811 = vstv %s4810
        %v4812 = vmul.f32 %v4811, %v584
        %v4813 = vmul.f32 %v4811, %v586
        %v4814 = vadd.f32 %v4812, %v4806
        %v4815 = vadd.f32 %v4813, %v4808
        %s4816 = scalar_lea.vmem %s7, 80
        %v4817 = vld [vmem:[%s4816] sm:$0xff]
        %4819 = vset.pattern.permute.xlu0 4
        %4820 = vperm.xlu0 %4819, %v4817
        %v4821 = vpop.permute.xlu0 %4820
        %v4823 = vmul.f32 %v1150, %v4821
        %v4824 = vmul.f32 %v1151, %v4821
        %4825 = vset.pattern.permute.xlu0 0
        %4826 = vperm.xlu0 %4825, %v4817
        %v4827 = vpop.permute.xlu0 %4826
        %v4829 = vmul.f32 %v1167, %v4827
        %v4830 = vmul.f32 %v1168, %v4827
        %v4831 = vadd.f32 %v4823, %v4829
        %v4832 = vadd.f32 %v4824, %v4830
        %4833 = vset.pattern.permute.xlu0 1
        %4834 = vperm.xlu0 %4833, %v4817
        %v4835 = vpop.permute.xlu0 %4834
        %v4837 = vmul.f32 %v1183, %v4835
        %v4838 = vmul.f32 %v1184, %v4835
        %v4839 = vadd.f32 %v4831, %v4837
        %v4840 = vadd.f32 %v4832, %v4838
        %4841 = vset.pattern.permute.xlu0 2
        %4842 = vperm.xlu0 %4841, %v4817
        %v4843 = vpop.permute.xlu0 %4842
        %v4845 = vmul.f32 %v1199, %v4843
        %v4846 = vmul.f32 %v1200, %v4843
        %v4847 = vadd.f32 %v4839, %v4845
        %v4848 = vadd.f32 %v4840, %v4846
        %4849 = vset.pattern.permute.xlu0 3
        %4850 = vperm.xlu0 %4849, %v4817
        %v4851 = vpop.permute.xlu0 %4850
        %v4853 = vmul.f32 %v1215, %v4851
        %v4854 = vmul.f32 %v1216, %v4851
        %v4855 = vadd.f32 %v4847, %v4853
        %v4856 = vadd.f32 %v4848, %v4854
        %4857 = vset.pattern.permute.xlu0 5
        %4858 = vperm.xlu0 %4857, %v4817
        %v4859 = vpop.permute.xlu0 %4858
        %v4861 = vmul.f32 %v1231, %v4859
        %v4862 = vmul.f32 %v1232, %v4859
        %v4863 = vadd.f32 %v4855, %v4861
        %v4864 = vadd.f32 %v4856, %v4862
        %4865 = vset.pattern.permute.xlu0 6
        %4866 = vperm.xlu0 %4865, %v4817
        %v4867 = vpop.permute.xlu0 %4866
        %v4869 = vmul.f32 %v1247, %v4867
        %v4870 = vmul.f32 %v1248, %v4867
        %v4871 = vadd.f32 %v4863, %v4869
        %v4872 = vadd.f32 %v4864, %v4870
        %4873 = vset.pattern.permute.xlu0 7
        %4874 = vperm.xlu0 %4873, %v4817
        %v4875 = vpop.permute.xlu0 %4874
        %v4877 = vmul.f32 %v1263, %v4875
        %v4878 = vmul.f32 %v1264, %v4875
        %v4879 = vadd.f32 %v4871, %v4877
        %v4880 = vadd.f32 %v4872, %v4878
        %4881 = vset.pattern.permute.xlu0 8
        %4882 = vperm.xlu0 %4881, %v4817
        %v4883 = vpop.permute.xlu0 %4882
        %v4885 = vmul.f32 %v1279, %v4883
        %v4886 = vmul.f32 %v1280, %v4883
        %v4887 = vadd.f32 %v4879, %v4885
        %v4888 = vadd.f32 %v4880, %v4886
        %s4889 = scalar_lea.vmem %s8, 80
        %v4890 = vld [vmem:[%s4889] sm:$0xff]
        %s4891 = scalar_lea.vmem %s9, 80
        %v4892 = vld [vmem:[%s4891] sm:$0xff]
        %4894 = vset.pattern.permute.xlu0 0
        %4895 = vperm.xlu0 %4894, %v4892
        %v4896 = vpop.permute.xlu0 %4895
        %v4899 = vsel %vm513, %v4890, 0
        %4901 = vmatprep.subr.mxu0 %v4888
        %4902 = vmatpush1.msra.mxu0 %v4887
        %4903 = vmatprep.subr.mxu0 0.0
        %4904 = vmatpush1.msra.mxu0 0.0
        %4905 = vmatprep.subr.mxu0 0.0
        %4906 = vmatpush1.msra.mxu0 0.0
        %4907 = vmatprep.subr.mxu0 0.0
        %4908 = vmatpush1.msra.mxu0 0.0
        %4909 = vmatprep.subr.mxu0 0.0
        %4910 = vmatpush1.msra.mxu0 0.0
        %4911 = vmatprep.subr.mxu0 0.0
        %4912 = vmatpush1.msra.mxu0 0.0
        %4913 = vmatprep.subr.mxu0 0.0
        %4914 = vmatpush1.msra.mxu0 0.0
        %4915 = vmatprep.subr.mxu0 0.0
        %4916 = vmatpush1.msra.mxu0 0.0
        %4917 = vmatprep.subr.mxu0 0.0
        %4918 = vmatpush1.msra.mxu0 0.0
        %4919 = vmatprep.subr.mxu0 0.0
        %4920 = vmatpush1.msra.mxu0 0.0
        %4921 = vmatprep.subr.mxu0 0.0
        %4922 = vmatpush1.msra.mxu0 0.0
        %4923 = vmatprep.subr.mxu0 0.0
        %4924 = vmatpush1.msra.mxu0 0.0
        %4925 = vmatprep.subr.mxu0 0.0
        %4926 = vmatpush1.msra.mxu0 0.0
        %4927 = vmatprep.subr.mxu0 0.0
        %4928 = vmatpush1.msra.mxu0 0.0
        %4929 = vmatprep.subr.mxu0 0.0
        %4930 = vmatpush1.msra.mxu0 0.0
        %4931 = vmatprep.subr.mxu0 0.0
        %4932 = vmatpush1.msra.mxu0 0.0
        %4933 = vmatprep.subr.mxu0 0.0
        %4934 = vmatpush1.msra.mxu0 0.0
        %4935 = vmatprep.subr.mxu0 0.0
        %4936 = vmatpush1.msra.mxu0 0.0
        %4937 = vmatprep.subr.mxu0 0.0
        %4938 = vmatpush1.msra.mxu0 0.0
        %4939 = vmatprep.subr.mxu0 0.0
        %4940 = vmatpush1.msra.mxu0 0.0
        %4941 = vmatprep.subr.mxu0 0.0
        %4942 = vmatpush1.msra.mxu0 0.0
        %4943 = vmatprep.subr.mxu0 0.0
        %4944 = vmatpush1.msra.mxu0 0.0
        %4945 = vmatprep.subr.mxu0 0.0
        %4946 = vmatpush1.msra.mxu0 0.0
        %4947 = vmatprep.subr.mxu0 0.0
        %4948 = vmatpush1.msra.mxu0 0.0
        %4949 = vmatprep.subr.mxu0 0.0
        %4950 = vmatpush1.msra.mxu0 0.0
        %4951 = vmatprep.subr.mxu0 0.0
        %4952 = vmatpush1.msra.mxu0 0.0
        %4953 = vmatprep.subr.mxu0 0.0
        %4954 = vmatpush1.msra.mxu0 0.0
        %4955 = vmatprep.subr.mxu0 0.0
        %4956 = vmatpush1.msra.mxu0 0.0
        %4957 = vmatprep.subr.mxu0 0.0
        %4958 = vmatpush1.msra.mxu0 0.0
        %4959 = vmatprep.subr.mxu0 0.0
        %4960 = vmatpush1.msra.mxu0 0.0
        %4961 = vmatprep.subr.mxu0 0.0
        %4962 = vmatpush1.msra.mxu0 0.0
        %4963 = vmatprep.subr.mxu0 0.0
        %4964 = vmatpush1.msra.mxu0 0.0
        %4965 = vmatprep.mubr.f32.mxu0 0.0
        %4966 = vmatmul.mubr.f32.gmra.mrb[0].mxu0 %v4899
        %v4967 = vpop.f32.mrb[0].mxu0
        %v4968 = vadd.f32 %v4896, %v4967
        %v4969 = vpop.f32.mrb[0].mxu0
        %v4970 = vadd.f32 %v4896, %v4969
        %4971 = vdwg.mxu0
        %v4972 = vmax.f32 %v4968, 0.0
        %v4973 = vmax.f32 %v4970, 0.0
        %s4974 = scalar_lea.vmem %s10, 80
        %v4975 = vld [vmem:[%s4974] sm:$0xff]
        %4977 = vset.pattern.permute.xlu0 4
        %4978 = vperm.xlu0 %4977, %v4975
        %v4979 = vpop.permute.xlu0 %4978
        %v4981 = vmul.f32 %v4972, %v4979
        %v4982 = vmul.f32 %v4973, %v4979
        %4983 = vrot.lane.b32.xlu0 %v4972, 17
        %v4984 = vpop.permute.xlu0 %4983
        %4985 = vrot.lane.b32.xlu0 %v4973, 17
        %v4986 = vpop.permute.xlu0 %4985
        %v4987 = vsel %vm712, %v4984, %v4986
        %v4988 = vsel %vm712, %v4986, %v4984
        %v4989 = vmul.f32 %v4988, %v673
        %v4990 = vmul.f32 %v4987, %v674
        %4991 = vset.pattern.permute.xlu0 0
        %4992 = vperm.xlu0 %4991, %v4975
        %v4993 = vpop.permute.xlu0 %4992
        %v4995 = vmul.f32 %v4989, %v4993
        %v4996 = vmul.f32 %v4990, %v4993
        %v4997 = vadd.f32 %v4981, %v4995
        %v4998 = vadd.f32 %v4982, %v4996
        %4999 = vrot.lane.b32.xlu0 %v4972, 16
        %v5000 = vpop.permute.xlu0 %4999
        %5001 = vrot.lane.b32.xlu0 %v4973, 16
        %v5002 = vpop.permute.xlu0 %5001
        %v5003 = vsel %vm729, %v5000, %v5002
        %v5004 = vsel %vm729, %v5002, %v5000
        %v5005 = vmul.f32 %v5004, %v676
        %v5006 = vmul.f32 %v5003, %v677
        %5007 = vset.pattern.permute.xlu0 1
        %5008 = vperm.xlu0 %5007, %v4975
        %v5009 = vpop.permute.xlu0 %5008
        %v5011 = vmul.f32 %v5005, %v5009
        %v5012 = vmul.f32 %v5006, %v5009
        %v5013 = vadd.f32 %v4997, %v5011
        %v5014 = vadd.f32 %v4998, %v5012
        %5015 = vrot.lane.b32.xlu0 %v4972, 15
        %v5016 = vpop.permute.xlu0 %5015
        %5017 = vrot.lane.b32.xlu0 %v4973, 15
        %v5018 = vpop.permute.xlu0 %5017
        %v5019 = vsel %vm746, %v5016, %v5018
        %v5020 = vsel %vm746, %v5018, %v5016
        %v5021 = vmul.f32 %v5020, %v679
        %v5022 = vmul.f32 %v5019, %v680
        %5023 = vset.pattern.permute.xlu0 2
        %5024 = vperm.xlu0 %5023, %v4975
        %v5025 = vpop.permute.xlu0 %5024
        %v5027 = vmul.f32 %v5021, %v5025
        %v5028 = vmul.f32 %v5022, %v5025
        %v5029 = vadd.f32 %v5013, %v5027
        %v5030 = vadd.f32 %v5014, %v5028
        %5031 = vrot.lane.b32.xlu0 %v4972, 1
        %v5032 = vpop.permute.xlu0 %5031
        %5033 = vrot.lane.b32.xlu0 %v4973, 1
        %v5034 = vpop.permute.xlu0 %5033
        %v5035 = vsel %vm763, %v5032, %v5034
        %v5036 = vsel %vm763, %v5034, %v5032
        %v5037 = vmul.f32 %v5036, %v682
        %v5038 = vmul.f32 %v5035, %v683
        %5039 = vset.pattern.permute.xlu0 3
        %5040 = vperm.xlu0 %5039, %v4975
        %v5041 = vpop.permute.xlu0 %5040
        %v5043 = vmul.f32 %v5037, %v5041
        %v5044 = vmul.f32 %v5038, %v5041
        %v5045 = vadd.f32 %v5029, %v5043
        %v5046 = vadd.f32 %v5030, %v5044
        %5047 = vrot.lane.b32.xlu0 %v4972, 127
        %v5048 = vpop.permute.xlu0 %5047
        %5049 = vrot.lane.b32.xlu0 %v4973, 127
        %v5050 = vpop.permute.xlu0 %5049
        %v5051 = vsel %vm780, %v5048, %v5050
        %v5052 = vsel %vm780, %v5050, %v5048
        %v5053 = vmul.f32 %v5051, %v685
        %v5054 = vmul.f32 %v5052, %v686
        %5055 = vset.pattern.permute.xlu0 5
        %5056 = vperm.xlu0 %5055, %v4975
        %v5057 = vpop.permute.xlu0 %5056
        %v5059 = vmul.f32 %v5053, %v5057
        %v5060 = vmul.f32 %v5054, %v5057
        %v5061 = vadd.f32 %v5045, %v5059
        %v5062 = vadd.f32 %v5046, %v5060
        %5063 = vrot.lane.b32.xlu0 %v4972, 113
        %v5064 = vpop.permute.xlu0 %5063
        %5065 = vrot.lane.b32.xlu0 %v4973, 113
        %v5066 = vpop.permute.xlu0 %5065
        %v5067 = vsel %vm797, %v5064, %v5066
        %v5068 = vsel %vm797, %v5066, %v5064
        %v5069 = vmul.f32 %v5067, %v688
        %v5070 = vmul.f32 %v5068, %v689
        %5071 = vset.pattern.permute.xlu0 6
        %5072 = vperm.xlu0 %5071, %v4975
        %v5073 = vpop.permute.xlu0 %5072
        %v5075 = vmul.f32 %v5069, %v5073
        %v5076 = vmul.f32 %v5070, %v5073
        %v5077 = vadd.f32 %v5061, %v5075
        %v5078 = vadd.f32 %v5062, %v5076
        %5079 = vrot.lane.b32.xlu0 %v4972, 112
        %v5080 = vpop.permute.xlu0 %5079
        %5081 = vrot.lane.b32.xlu0 %v4973, 112
        %v5082 = vpop.permute.xlu0 %5081
        %v5083 = vsel %vm814, %v5080, %v5082
        %v5084 = vsel %vm814, %v5082, %v5080
        %v5085 = vmul.f32 %v5083, %v691
        %v5086 = vmul.f32 %v5084, %v692
        %5087 = vset.pattern.permute.xlu0 7
        %5088 = vperm.xlu0 %5087, %v4975
        %v5089 = vpop.permute.xlu0 %5088
        %v5091 = vmul.f32 %v5085, %v5089
        %v5092 = vmul.f32 %v5086, %v5089
        %v5093 = vadd.f32 %v5077, %v5091
        %v5094 = vadd.f32 %v5078, %v5092
        %5095 = vrot.lane.b32.xlu0 %v4972, 111
        %v5096 = vpop.permute.xlu0 %5095
        %5097 = vrot.lane.b32.xlu0 %v4973, 111
        %v5098 = vpop.permute.xlu0 %5097
        %v5099 = vsel %vm831, %v5096, %v5098
        %v5100 = vsel %vm831, %v5098, %v5096
        %v5101 = vmul.f32 %v5099, %v694
        %v5102 = vmul.f32 %v5100, %v695
        %5103 = vset.pattern.permute.xlu0 8
        %5104 = vperm.xlu0 %5103, %v4975
        %v5105 = vpop.permute.xlu0 %5104
        %v5107 = vmul.f32 %v5101, %v5105
        %v5108 = vmul.f32 %v5102, %v5105
        %v5109 = vadd.f32 %v5093, %v5107
        %v5110 = vadd.f32 %v5094, %v5108
        %s5111 = scalar_lea.vmem %s11, 80
        %v5112 = vld [vmem:[%s5111] sm:$0xff]
        %s5113 = scalar_lea.vmem %s12, 80
        %v5114 = vld [vmem:[%s5113] sm:$0xff]
        %5116 = vset.pattern.permute.xlu0 0
        %5117 = vperm.xlu0 %5116, %v5114
        %v5118 = vpop.permute.xlu0 %5117
        %v5121 = vsel %vm513, %v5112, 0
        %5123 = vmatprep.subr.mxu0 %v5110
        %5124 = vmatpush1.msra.mxu0 %v5109
        %5125 = vmatprep.subr.mxu0 0.0
        %5126 = vmatpush1.msra.mxu0 0.0
        %5127 = vmatprep.subr.mxu0 0.0
        %5128 = vmatpush1.msra.mxu0 0.0
        %5129 = vmatprep.subr.mxu0 0.0
        %5130 = vmatpush1.msra.mxu0 0.0
        %5131 = vmatprep.subr.mxu0 0.0
        %5132 = vmatpush1.msra.mxu0 0.0
        %5133 = vmatprep.subr.mxu0 0.0
        %5134 = vmatpush1.msra.mxu0 0.0
        %5135 = vmatprep.subr.mxu0 0.0
        %5136 = vmatpush1.msra.mxu0 0.0
        %5137 = vmatprep.subr.mxu0 0.0
        %5138 = vmatpush1.msra.mxu0 0.0
        %5139 = vmatprep.subr.mxu0 0.0
        %5140 = vmatpush1.msra.mxu0 0.0
        %5141 = vmatprep.subr.mxu0 0.0
        %5142 = vmatpush1.msra.mxu0 0.0
        %5143 = vmatprep.subr.mxu0 0.0
        %5144 = vmatpush1.msra.mxu0 0.0
        %5145 = vmatprep.subr.mxu0 0.0
        %5146 = vmatpush1.msra.mxu0 0.0
        %5147 = vmatprep.subr.mxu0 0.0
        %5148 = vmatpush1.msra.mxu0 0.0
        %5149 = vmatprep.subr.mxu0 0.0
        %5150 = vmatpush1.msra.mxu0 0.0
        %5151 = vmatprep.subr.mxu0 0.0
        %5152 = vmatpush1.msra.mxu0 0.0
        %5153 = vmatprep.subr.mxu0 0.0
        %5154 = vmatpush1.msra.mxu0 0.0
        %5155 = vmatprep.subr.mxu0 0.0
        %5156 = vmatpush1.msra.mxu0 0.0
        %5157 = vmatprep.subr.mxu0 0.0
        %5158 = vmatpush1.msra.mxu0 0.0
        %5159 = vmatprep.subr.mxu0 0.0
        %5160 = vmatpush1.msra.mxu0 0.0
        %5161 = vmatprep.subr.mxu0 0.0
        %5162 = vmatpush1.msra.mxu0 0.0
        %5163 = vmatprep.subr.mxu0 0.0
        %5164 = vmatpush1.msra.mxu0 0.0
        %5165 = vmatprep.subr.mxu0 0.0
        %5166 = vmatpush1.msra.mxu0 0.0
        %5167 = vmatprep.subr.mxu0 0.0
        %5168 = vmatpush1.msra.mxu0 0.0
        %5169 = vmatprep.subr.mxu0 0.0
        %5170 = vmatpush1.msra.mxu0 0.0
        %5171 = vmatprep.subr.mxu0 0.0
        %5172 = vmatpush1.msra.mxu0 0.0
        %5173 = vmatprep.subr.mxu0 0.0
        %5174 = vmatpush1.msra.mxu0 0.0
        %5175 = vmatprep.subr.mxu0 0.0
        %5176 = vmatpush1.msra.mxu0 0.0
        %5177 = vmatprep.subr.mxu0 0.0
        %5178 = vmatpush1.msra.mxu0 0.0
        %5179 = vmatprep.subr.mxu0 0.0
        %5180 = vmatpush1.msra.mxu0 0.0
        %5181 = vmatprep.subr.mxu0 0.0
        %5182 = vmatpush1.msra.mxu0 0.0
        %5183 = vmatprep.subr.mxu0 0.0
        %5184 = vmatpush1.msra.mxu0 0.0
        %5185 = vmatprep.subr.mxu0 0.0
        %5186 = vmatpush1.msra.mxu0 0.0
        %5187 = vmatprep.mubr.f32.mxu0 0.0
        %5188 = vmatmul.mubr.f32.gmra.mrb[0].mxu0 %v5121
        %v5189 = vpop.f32.mrb[0].mxu0
        %v5190 = vadd.f32 %v5118, %v5189
        %v5191 = vpop.f32.mrb[0].mxu0
        %v5192 = vadd.f32 %v5118, %v5191
        %5193 = vdwg.mxu0
        %s5194 = sld [smem:[#allocation2 + $0xa]]
        %v5195 = vstv %s5194
        %v5196 = vmul.f32 %v5195, %v669
        %v5197 = vmul.f32 %v5195, %v671
        %v5198 = vadd.f32 %v5196, %v5190
        %v5199 = vadd.f32 %v5197, %v5192
        %v5200 = vadd.f32 %v4814, %v5198
        %v5201 = vadd.f32 %v4815, %v5199
        %s5202 = scalar_lea.vmem %s7, 88
        %v5203 = vld [vmem:[%s5202] sm:$0xff]
        %5205 = vset.pattern.permute.xlu0 4
        %5206 = vperm.xlu0 %5205, %v5203
        %v5207 = vpop.permute.xlu0 %5206
        %v5209 = vmul.f32 %v2372, %v5207
        %v5210 = vmul.f32 %v2373, %v5207
        %5211 = vset.pattern.permute.xlu0 0
        %5212 = vperm.xlu0 %5211, %v5203
        %v5213 = vpop.permute.xlu0 %5212
        %v5215 = vmul.f32 %v2389, %v5213
        %v5216 = vmul.f32 %v2390, %v5213
        %v5217 = vadd.f32 %v5209, %v5215
        %v5218 = vadd.f32 %v5210, %v5216
        %5219 = vset.pattern.permute.xlu0 1
        %5220 = vperm.xlu0 %5219, %v5203
        %v5221 = vpop.permute.xlu0 %5220
        %v5223 = vmul.f32 %v2405, %v5221
        %v5224 = vmul.f32 %v2406, %v5221
        %v5225 = vadd.f32 %v5217, %v5223
        %v5226 = vadd.f32 %v5218, %v5224
        %5227 = vset.pattern.permute.xlu0 2
        %5228 = vperm.xlu0 %5227, %v5203
        %v5229 = vpop.permute.xlu0 %5228
        %v5231 = vmul.f32 %v2421, %v5229
        %v5232 = vmul.f32 %v2422, %v5229
        %v5233 = vadd.f32 %v5225, %v5231
        %v5234 = vadd.f32 %v5226, %v5232
        %5235 = vset.pattern.permute.xlu0 3
        %5236 = vperm.xlu0 %5235, %v5203
        %v5237 = vpop.permute.xlu0 %5236
        %v5239 = vmul.f32 %v2437, %v5237
        %v5240 = vmul.f32 %v2438, %v5237
        %v5241 = vadd.f32 %v5233, %v5239
        %v5242 = vadd.f32 %v5234, %v5240
        %5243 = vset.pattern.permute.xlu0 5
        %5244 = vperm.xlu0 %5243, %v5203
        %v5245 = vpop.permute.xlu0 %5244
        %v5247 = vmul.f32 %v2453, %v5245
        %v5248 = vmul.f32 %v2454, %v5245
        %v5249 = vadd.f32 %v5241, %v5247
        %v5250 = vadd.f32 %v5242, %v5248
        %5251 = vset.pattern.permute.xlu0 6
        %5252 = vperm.xlu0 %5251, %v5203
        %v5253 = vpop.permute.xlu0 %5252
        %v5255 = vmul.f32 %v2469, %v5253
        %v5256 = vmul.f32 %v2470, %v5253
        %v5257 = vadd.f32 %v5249, %v5255
        %v5258 = vadd.f32 %v5250, %v5256
        %5259 = vset.pattern.permute.xlu0 7
        %5260 = vperm.xlu0 %5259, %v5203
        %v5261 = vpop.permute.xlu0 %5260
        %v5263 = vmul.f32 %v2485, %v5261
        %v5264 = vmul.f32 %v2486, %v5261
        %v5265 = vadd.f32 %v5257, %v5263
        %v5266 = vadd.f32 %v5258, %v5264
        %5267 = vset.pattern.permute.xlu0 8
        %5268 = vperm.xlu0 %5267, %v5203
        %v5269 = vpop.permute.xlu0 %5268
        %v5271 = vmul.f32 %v2501, %v5269
        %v5272 = vmul.f32 %v2502, %v5269
        %v5273 = vadd.f32 %v5265, %v5271
        %v5274 = vadd.f32 %v5266, %v5272
        %s5275 = scalar_lea.vmem %s8, 88
        %v5276 = vld [vmem:[%s5275] sm:$0xff]
        %s5277 = scalar_lea.vmem %s9, 88
        %v5278 = vld [vmem:[%s5277] sm:$0xff]
        %5280 = vset.pattern.permute.xlu0 0
        %5281 = vperm.xlu0 %5280, %v5278
        %v5282 = vpop.permute.xlu0 %5281
        %v5285 = vsel %vm513, %v5276, 0
        %5287 = vmatprep.subr.mxu0 %v5274
        %5288 = vmatpush1.msra.mxu0 %v5273
        %5289 = vmatprep.subr.mxu0 0.0
        %5290 = vmatpush1.msra.mxu0 0.0
        %5291 = vmatprep.subr.mxu0 0.0
        %5292 = vmatpush1.msra.mxu0 0.0
        %5293 = vmatprep.subr.mxu0 0.0
        %5294 = vmatpush1.msra.mxu0 0.0
        %5295 = vmatprep.subr.mxu0 0.0
        %5296 = vmatpush1.msra.mxu0 0.0
        %5297 = vmatprep.subr.mxu0 0.0
        %5298 = vmatpush1.msra.mxu0 0.0
        %5299 = vmatprep.subr.mxu0 0.0
        %5300 = vmatpush1.msra.mxu0 0.0
        %5301 = vmatprep.subr.mxu0 0.0
        %5302 = vmatpush1.msra.mxu0 0.0
        %5303 = vmatprep.subr.mxu0 0.0
        %5304 = vmatpush1.msra.mxu0 0.0
        %5305 = vmatprep.subr.mxu0 0.0
        %5306 = vmatpush1.msra.mxu0 0.0
        %5307 = vmatprep.subr.mxu0 0.0
        %5308 = vmatpush1.msra.mxu0 0.0
        %5309 = vmatprep.subr.mxu0 0.0
        %5310 = vmatpush1.msra.mxu0 0.0
        %5311 = vmatprep.subr.mxu0 0.0
        %5312 = vmatpush1.msra.mxu0 0.0
        %5313 = vmatprep.subr.mxu0 0.0
        %5314 = vmatpush1.msra.mxu0 0.0
        %5315 = vmatprep.subr.mxu0 0.0
        %5316 = vmatpush1.msra.mxu0 0.0
        %5317 = vmatprep.subr.mxu0 0.0
        %5318 = vmatpush1.msra.mxu0 0.0
        %5319 = vmatprep.subr.mxu0 0.0
        %5320 = vmatpush1.msra.mxu0 0.0
        %5321 = vmatprep.subr.mxu0 0.0
        %5322 = vmatpush1.msra.mxu0 0.0
        %5323 = vmatprep.subr.mxu0 0.0
        %5324 = vmatpush1.msra.mxu0 0.0
        %5325 = vmatprep.subr.mxu0 0.0
        %5326 = vmatpush1.msra.mxu0 0.0
        %5327 = vmatprep.subr.mxu0 0.0
        %5328 = vmatpush1.msra.mxu0 0.0
        %5329 = vmatprep.subr.mxu0 0.0
        %5330 = vmatpush1.msra.mxu0 0.0
        %5331 = vmatprep.subr.mxu0 0.0
        %5332 = vmatpush1.msra.mxu0 0.0
        %5333 = vmatprep.subr.mxu0 0.0
        %5334 = vmatpush1.msra.mxu0 0.0
        %5335 = vmatprep.subr.mxu0 0.0
        %5336 = vmatpush1.msra.mxu0 0.0
        %5337 = vmatprep.subr.mxu0 0.0
        %5338 = vmatpush1.msra.mxu0 0.0
        %5339 = vmatprep.subr.mxu0 0.0
        %5340 = vmatpush1.msra.mxu0 0.0
        %5341 = vmatprep.subr.mxu0 0.0
        %5342 = vmatpush1.msra.mxu0 0.0
        %5343 = vmatprep.subr.mxu0 0.0
        %5344 = vmatpush1.msra.mxu0 0.0
        %5345 = vmatprep.subr.mxu0 0.0
        %5346 = vmatpush1.msra.mxu0 0.0
        %5347 = vmatprep.subr.mxu0 0.0
        %5348 = vmatpush1.msra.mxu0 0.0
        %5349 = vmatprep.subr.mxu0 0.0
        %5350 = vmatpush1.msra.mxu0 0.0
        %5351 = vmatprep.mubr.f32.mxu0 0.0
        %5352 = vmatmul.mubr.f32.gmra.mrb[0].mxu0 %v5285
        %v5353 = vpop.f32.mrb[0].mxu0
        %v5354 = vadd.f32 %v5282, %v5353
        %v5355 = vpop.f32.mrb[0].mxu0
        %v5356 = vadd.f32 %v5282, %v5355
        %5357 = vdwg.mxu0
        %v5358 = vmax.f32 %v5354, 0.0
        %v5359 = vmax.f32 %v5356, 0.0
        %s5360 = scalar_lea.vmem %s10, 88
        %v5361 = vld [vmem:[%s5360] sm:$0xff]
        %5363 = vset.pattern.permute.xlu0 4
        %5364 = vperm.xlu0 %5363, %v5361
        %v5365 = vpop.permute.xlu0 %5364
        %v5367 = vmul.f32 %v5358, %v5365
        %v5368 = vmul.f32 %v5359, %v5365
        %5369 = vrot.lane.b32.xlu0 %v5358, 17
        %v5370 = vpop.permute.xlu0 %5369
        %5371 = vrot.lane.b32.xlu0 %v5359, 17
        %v5372 = vpop.permute.xlu0 %5371
        %v5373 = vsel %vm712, %v5370, %v5372
        %v5374 = vsel %vm712, %v5372, %v5370
        %v5375 = vmul.f32 %v5374, %v673
        %v5376 = vmul.f32 %v5373, %v674
        %5377 = vset.pattern.permute.xlu0 0
        %5378 = vperm.xlu0 %5377, %v5361
        %v5379 = vpop.permute.xlu0 %5378
        %v5381 = vmul.f32 %v5375, %v5379
        %v5382 = vmul.f32 %v5376, %v5379
        %v5383 = vadd.f32 %v5367, %v5381
        %v5384 = vadd.f32 %v5368, %v5382
        %5385 = vrot.lane.b32.xlu0 %v5358, 16
        %v5386 = vpop.permute.xlu0 %5385
        %5387 = vrot.lane.b32.xlu0 %v5359, 16
        %v5388 = vpop.permute.xlu0 %5387
        %v5389 = vsel %vm729, %v5386, %v5388
        %v5390 = vsel %vm729, %v5388, %v5386
        %v5391 = vmul.f32 %v5390, %v676
        %v5392 = vmul.f32 %v5389, %v677
        %5393 = vset.pattern.permute.xlu0 1
        %5394 = vperm.xlu0 %5393, %v5361
        %v5395 = vpop.permute.xlu0 %5394
        %v5397 = vmul.f32 %v5391, %v5395
        %v5398 = vmul.f32 %v5392, %v5395
        %v5399 = vadd.f32 %v5383, %v5397
        %v5400 = vadd.f32 %v5384, %v5398
        %5401 = vrot.lane.b32.xlu0 %v5358, 15
        %v5402 = vpop.permute.xlu0 %5401
        %5403 = vrot.lane.b32.xlu0 %v5359, 15
        %v5404 = vpop.permute.xlu0 %5403
        %v5405 = vsel %vm746, %v5402, %v5404
        %v5406 = vsel %vm746, %v5404, %v5402
        %v5407 = vmul.f32 %v5406, %v679
        %v5408 = vmul.f32 %v5405, %v680
        %5409 = vset.pattern.permute.xlu0 2
        %5410 = vperm.xlu0 %5409, %v5361
        %v5411 = vpop.permute.xlu0 %5410
        %v5413 = vmul.f32 %v5407, %v5411
        %v5414 = vmul.f32 %v5408, %v5411
        %v5415 = vadd.f32 %v5399, %v5413
        %v5416 = vadd.f32 %v5400, %v5414
        %5417 = vrot.lane.b32.xlu0 %v5358, 1
        %v5418 = vpop.permute.xlu0 %5417
        %5419 = vrot.lane.b32.xlu0 %v5359, 1
        %v5420 = vpop.permute.xlu0 %5419
        %v5421 = vsel %vm763, %v5418, %v5420
        %v5422 = vsel %vm763, %v5420, %v5418
        %v5423 = vmul.f32 %v5422, %v682
        %v5424 = vmul.f32 %v5421, %v683
        %5425 = vset.pattern.permute.xlu0 3
        %5426 = vperm.xlu0 %5425, %v5361
        %v5427 = vpop.permute.xlu0 %5426
        %v5429 = vmul.f32 %v5423, %v5427
        %v5430 = vmul.f32 %v5424, %v5427
        %v5431 = vadd.f32 %v5415, %v5429
        %v5432 = vadd.f32 %v5416, %v5430
        %5433 = vrot.lane.b32.xlu0 %v5358, 127
        %v5434 = vpop.permute.xlu0 %5433
        %5435 = vrot.lane.b32.xlu0 %v5359, 127
        %v5436 = vpop.permute.xlu0 %5435
        %v5437 = vsel %vm780, %v5434, %v5436
        %v5438 = vsel %vm780, %v5436, %v5434
        %v5439 = vmul.f32 %v5437, %v685
        %v5440 = vmul.f32 %v5438, %v686
        %5441 = vset.pattern.permute.xlu0 5
        %5442 = vperm.xlu0 %5441, %v5361
        %v5443 = vpop.permute.xlu0 %5442
        %v5445 = vmul.f32 %v5439, %v5443
        %v5446 = vmul.f32 %v5440, %v5443
        %v5447 = vadd.f32 %v5431, %v5445
        %v5448 = vadd.f32 %v5432, %v5446
        %5449 = vrot.lane.b32.xlu0 %v5358, 113
        %v5450 = vpop.permute.xlu0 %5449
        %5451 = vrot.lane.b32.xlu0 %v5359, 113
        %v5452 = vpop.permute.xlu0 %5451
        %v5453 = vsel %vm797, %v5450, %v5452
        %v5454 = vsel %vm797, %v5452, %v5450
        %v5455 = vmul.f32 %v5453, %v688
        %v5456 = vmul.f32 %v5454, %v689
        %5457 = vset.pattern.permute.xlu0 6
        %5458 = vperm.xlu0 %5457, %v5361
        %v5459 = vpop.permute.xlu0 %5458
        %v5461 = vmul.f32 %v5455, %v5459
        %v5462 = vmul.f32 %v5456, %v5459
        %v5463 = vadd.f32 %v5447, %v5461
        %v5464 = vadd.f32 %v5448, %v5462
        %5465 = vrot.lane.b32.xlu0 %v5358, 112
        %v5466 = vpop.permute.xlu0 %5465
        %5467 = vrot.lane.b32.xlu0 %v5359, 112
        %v5468 = vpop.permute.xlu0 %5467
        %v5469 = vsel %vm814, %v5466, %v5468
        %v5470 = vsel %vm814, %v5468, %v5466
        %v5471 = vmul.f32 %v5469, %v691
        %v5472 = vmul.f32 %v5470, %v692
        %5473 = vset.pattern.permute.xlu0 7
        %5474 = vperm.xlu0 %5473, %v5361
        %v5475 = vpop.permute.xlu0 %5474
        %v5477 = vmul.f32 %v5471, %v5475
        %v5478 = vmul.f32 %v5472, %v5475
        %v5479 = vadd.f32 %v5463, %v5477
        %v5480 = vadd.f32 %v5464, %v5478
        %5481 = vrot.lane.b32.xlu0 %v5358, 111
        %v5482 = vpop.permute.xlu0 %5481
        %5483 = vrot.lane.b32.xlu0 %v5359, 111
        %v5484 = vpop.permute.xlu0 %5483
        %v5485 = vsel %vm831, %v5482, %v5484
        %v5486 = vsel %vm831, %v5484, %v5482
        %v5487 = vmul.f32 %v5485, %v694
        %v5488 = vmul.f32 %v5486, %v695
        %5489 = vset.pattern.permute.xlu0 8
        %5490 = vperm.xlu0 %5489, %v5361
        %v5491 = vpop.permute.xlu0 %5490
        %v5493 = vmul.f32 %v5487, %v5491
        %v5494 = vmul.f32 %v5488, %v5491
        %v5495 = vadd.f32 %v5479, %v5493
        %v5496 = vadd.f32 %v5480, %v5494
        %s5497 = scalar_lea.vmem %s11, 88
        %v5498 = vld [vmem:[%s5497] sm:$0xff]
        %s5499 = scalar_lea.vmem %s12, 88
        %v5500 = vld [vmem:[%s5499] sm:$0xff]
        %5502 = vset.pattern.permute.xlu0 0
        %5503 = vperm.xlu0 %5502, %v5500
        %v5504 = vpop.permute.xlu0 %5503
        %v5507 = vsel %vm513, %v5498, 0
        %5509 = vmatprep.subr.mxu0 %v5496
        %5510 = vmatpush1.msra.mxu0 %v5495
        %5511 = vmatprep.subr.mxu0 0.0
        %5512 = vmatpush1.msra.mxu0 0.0
        %5513 = vmatprep.subr.mxu0 0.0
        %5514 = vmatpush1.msra.mxu0 0.0
        %5515 = vmatprep.subr.mxu0 0.0
        %5516 = vmatpush1.msra.mxu0 0.0
        %5517 = vmatprep.subr.mxu0 0.0
        %5518 = vmatpush1.msra.mxu0 0.0
        %5519 = vmatprep.subr.mxu0 0.0
        %5520 = vmatpush1.msra.mxu0 0.0
        %5521 = vmatprep.subr.mxu0 0.0
        %5522 = vmatpush1.msra.mxu0 0.0
        %5523 = vmatprep.subr.mxu0 0.0
        %5524 = vmatpush1.msra.mxu0 0.0
        %5525 = vmatprep.subr.mxu0 0.0
        %5526 = vmatpush1.msra.mxu0 0.0
        %5527 = vmatprep.subr.mxu0 0.0
        %5528 = vmatpush1.msra.mxu0 0.0
        %5529 = vmatprep.subr.mxu0 0.0
        %5530 = vmatpush1.msra.mxu0 0.0
        %5531 = vmatprep.subr.mxu0 0.0
        %5532 = vmatpush1.msra.mxu0 0.0
        %5533 = vmatprep.subr.mxu0 0.0
        %5534 = vmatpush1.msra.mxu0 0.0
        %5535 = vmatprep.subr.mxu0 0.0
        %5536 = vmatpush1.msra.mxu0 0.0
        %5537 = vmatprep.subr.mxu0 0.0
        %5538 = vmatpush1.msra.mxu0 0.0
        %5539 = vmatprep.subr.mxu0 0.0
        %5540 = vmatpush1.msra.mxu0 0.0
        %5541 = vmatprep.subr.mxu0 0.0
        %5542 = vmatpush1.msra.mxu0 0.0
        %5543 = vmatprep.subr.mxu0 0.0
        %5544 = vmatpush1.msra.mxu0 0.0
        %5545 = vmatprep.subr.mxu0 0.0
        %5546 = vmatpush1.msra.mxu0 0.0
        %5547 = vmatprep.subr.mxu0 0.0
        %5548 = vmatpush1.msra.mxu0 0.0
        %5549 = vmatprep.subr.mxu0 0.0
        %5550 = vmatpush1.msra.mxu0 0.0
        %5551 = vmatprep.subr.mxu0 0.0
        %5552 = vmatpush1.msra.mxu0 0.0
        %5553 = vmatprep.subr.mxu0 0.0
        %5554 = vmatpush1.msra.mxu0 0.0
        %5555 = vmatprep.subr.mxu0 0.0
        %5556 = vmatpush1.msra.mxu0 0.0
        %5557 = vmatprep.subr.mxu0 0.0
        %5558 = vmatpush1.msra.mxu0 0.0
        %5559 = vmatprep.subr.mxu0 0.0
        %5560 = vmatpush1.msra.mxu0 0.0
        %5561 = vmatprep.subr.mxu0 0.0
        %5562 = vmatpush1.msra.mxu0 0.0
        %5563 = vmatprep.subr.mxu0 0.0
        %5564 = vmatpush1.msra.mxu0 0.0
        %5565 = vmatprep.subr.mxu0 0.0
        %5566 = vmatpush1.msra.mxu0 0.0
        %5567 = vmatprep.subr.mxu0 0.0
        %5568 = vmatpush1.msra.mxu0 0.0
        %5569 = vmatprep.subr.mxu0 0.0
        %5570 = vmatpush1.msra.mxu0 0.0
        %5571 = vmatprep.subr.mxu0 0.0
        %5572 = vmatpush1.msra.mxu0 0.0
        %5573 = vmatprep.mubr.f32.mxu0 0.0
        %5574 = vmatmul.mubr.f32.gmra.mrb[0].mxu0 %v5507
        %v5575 = vpop.f32.mrb[0].mxu0
        %v5576 = vadd.f32 %v5504, %v5575
        %v5577 = vpop.f32.mrb[0].mxu0
        %v5578 = vadd.f32 %v5504, %v5577
        %5579 = vdwg.mxu0
        %s5580 = sld [smem:[#allocation2 + $0xb]]
        %v5581 = vstv %s5580
        %v5582 = vmul.f32 %v5581, %v1600
        %v5583 = vmul.f32 %v5581, %v1601
        %v5584 = vadd.f32 %v5582, %v5576
        %v5585 = vadd.f32 %v5583, %v5578
        %v5586 = vadd.f32 %v5200, %v5584
        %v5587 = vadd.f32 %v5201, %v5585
        %s5588 = scalar_lea.vmem %s7, 96
        %v5589 = vld [vmem:[%s5588] sm:$0xff]
        %5591 = vset.pattern.permute.xlu0 4
        %5592 = vperm.xlu0 %5591, %v5589
        %v5593 = vpop.permute.xlu0 %5592
        %v5595 = vmul.f32 %v3980, %v5593
        %v5596 = vmul.f32 %v3981, %v5593
        %5597 = vset.pattern.permute.xlu0 0
        %5598 = vperm.xlu0 %5597, %v5589
        %v5599 = vpop.permute.xlu0 %5598
        %v5601 = vmul.f32 %v3997, %v5599
        %v5602 = vmul.f32 %v3998, %v5599
        %v5603 = vadd.f32 %v5595, %v5601
        %v5604 = vadd.f32 %v5596, %v5602
        %5605 = vset.pattern.permute.xlu0 1
        %5606 = vperm.xlu0 %5605, %v5589
        %v5607 = vpop.permute.xlu0 %5606
        %v5609 = vmul.f32 %v4013, %v5607
        %v5610 = vmul.f32 %v4014, %v5607
        %v5611 = vadd.f32 %v5603, %v5609
        %v5612 = vadd.f32 %v5604, %v5610
        %5613 = vset.pattern.permute.xlu0 2
        %5614 = vperm.xlu0 %5613, %v5589
        %v5615 = vpop.permute.xlu0 %5614
        %v5617 = vmul.f32 %v4029, %v5615
        %v5618 = vmul.f32 %v4030, %v5615
        %v5619 = vadd.f32 %v5611, %v5617
        %v5620 = vadd.f32 %v5612, %v5618
        %5621 = vset.pattern.permute.xlu0 3
        %5622 = vperm.xlu0 %5621, %v5589
        %v5623 = vpop.permute.xlu0 %5622
        %v5625 = vmul.f32 %v4045, %v5623
        %v5626 = vmul.f32 %v4046, %v5623
        %v5627 = vadd.f32 %v5619, %v5625
        %v5628 = vadd.f32 %v5620, %v5626
        %5629 = vset.pattern.permute.xlu0 5
        %5630 = vperm.xlu0 %5629, %v5589
        %v5631 = vpop.permute.xlu0 %5630
        %v5633 = vmul.f32 %v4061, %v5631
        %v5634 = vmul.f32 %v4062, %v5631
        %v5635 = vadd.f32 %v5627, %v5633
        %v5636 = vadd.f32 %v5628, %v5634
        %5637 = vset.pattern.permute.xlu0 6
        %5638 = vperm.xlu0 %5637, %v5589
        %v5639 = vpop.permute.xlu0 %5638
        %v5641 = vmul.f32 %v4077, %v5639
        %v5642 = vmul.f32 %v4078, %v5639
        %v5643 = vadd.f32 %v5635, %v5641
        %v5644 = vadd.f32 %v5636, %v5642
        %5645 = vset.pattern.permute.xlu0 7
        %5646 = vperm.xlu0 %5645, %v5589
        %v5647 = vpop.permute.xlu0 %5646
        %v5649 = vmul.f32 %v4093, %v5647
        %v5650 = vmul.f32 %v4094, %v5647
        %v5651 = vadd.f32 %v5643, %v5649
        %v5652 = vadd.f32 %v5644, %v5650
        %5653 = vset.pattern.permute.xlu0 8
        %5654 = vperm.xlu0 %5653, %v5589
        %v5655 = vpop.permute.xlu0 %5654
        %v5657 = vmul.f32 %v4109, %v5655
        %v5658 = vmul.f32 %v4110, %v5655
        %v5659 = vadd.f32 %v5651, %v5657
        %v5660 = vadd.f32 %v5652, %v5658
        %s5661 = scalar_lea.vmem %s8, 96
        %v5662 = vld [vmem:[%s5661] sm:$0xff]
        %s5663 = scalar_lea.vmem %s9, 96
        %v5664 = vld [vmem:[%s5663] sm:$0xff]
        %5666 = vset.pattern.permute.xlu0 0
        %5667 = vperm.xlu0 %5666, %v5664
        %v5668 = vpop.permute.xlu0 %5667
        %v5671 = vsel %vm513, %v5662, 0
        %5673 = vmatprep.subr.mxu0 %v5660
        %5674 = vmatpush1.msra.mxu0 %v5659
        %5675 = vmatprep.subr.mxu0 0.0
        %5676 = vmatpush1.msra.mxu0 0.0
        %5677 = vmatprep.subr.mxu0 0.0
        %5678 = vmatpush1.msra.mxu0 0.0
        %5679 = vmatprep.subr.mxu0 0.0
        %5680 = vmatpush1.msra.mxu0 0.0
        %5681 = vmatprep.subr.mxu0 0.0
        %5682 = vmatpush1.msra.mxu0 0.0
        %5683 = vmatprep.subr.mxu0 0.0
        %5684 = vmatpush1.msra.mxu0 0.0
        %5685 = vmatprep.subr.mxu0 0.0
        %5686 = vmatpush1.msra.mxu0 0.0
        %5687 = vmatprep.subr.mxu0 0.0
        %5688 = vmatpush1.msra.mxu0 0.0
        %5689 = vmatprep.subr.mxu0 0.0
        %5690 = vmatpush1.msra.mxu0 0.0
        %5691 = vmatprep.subr.mxu0 0.0
        %5692 = vmatpush1.msra.mxu0 0.0
        %5693 = vmatprep.subr.mxu0 0.0
        %5694 = vmatpush1.msra.mxu0 0.0
        %5695 = vmatprep.subr.mxu0 0.0
        %5696 = vmatpush1.msra.mxu0 0.0
        %5697 = vmatprep.subr.mxu0 0.0
        %5698 = vmatpush1.msra.mxu0 0.0
        %5699 = vmatprep.subr.mxu0 0.0
        %5700 = vmatpush1.msra.mxu0 0.0
        %5701 = vmatprep.subr.mxu0 0.0
        %5702 = vmatpush1.msra.mxu0 0.0
        %5703 = vmatprep.subr.mxu0 0.0
        %5704 = vmatpush1.msra.mxu0 0.0
        %5705 = vmatprep.subr.mxu0 0.0
        %5706 = vmatpush1.msra.mxu0 0.0
        %5707 = vmatprep.subr.mxu0 0.0
        %5708 = vmatpush1.msra.mxu0 0.0
        %5709 = vmatprep.subr.mxu0 0.0
        %5710 = vmatpush1.msra.mxu0 0.0
        %5711 = vmatprep.subr.mxu0 0.0
        %5712 = vmatpush1.msra.mxu0 0.0
        %5713 = vmatprep.subr.mxu0 0.0
        %5714 = vmatpush1.msra.mxu0 0.0
        %5715 = vmatprep.subr.mxu0 0.0
        %5716 = vmatpush1.msra.mxu0 0.0
        %5717 = vmatprep.subr.mxu0 0.0
        %5718 = vmatpush1.msra.mxu0 0.0
        %5719 = vmatprep.subr.mxu0 0.0
        %5720 = vmatpush1.msra.mxu0 0.0
        %5721 = vmatprep.subr.mxu0 0.0
        %5722 = vmatpush1.msra.mxu0 0.0
        %5723 = vmatprep.subr.mxu0 0.0
        %5724 = vmatpush1.msra.mxu0 0.0
        %5725 = vmatprep.subr.mxu0 0.0
        %5726 = vmatpush1.msra.mxu0 0.0
        %5727 = vmatprep.subr.mxu0 0.0
        %5728 = vmatpush1.msra.mxu0 0.0
        %5729 = vmatprep.subr.mxu0 0.0
        %5730 = vmatpush1.msra.mxu0 0.0
        %5731 = vmatprep.subr.mxu0 0.0
        %5732 = vmatpush1.msra.mxu0 0.0
        %5733 = vmatprep.subr.mxu0 0.0
        %5734 = vmatpush1.msra.mxu0 0.0
        %5735 = vmatprep.subr.mxu0 0.0
        %5736 = vmatpush1.msra.mxu0 0.0
        %5737 = vmatprep.mubr.f32.mxu0 0.0
        %5738 = vmatmul.mubr.f32.gmra.mrb[0].mxu0 %v5671
        %v5739 = vpop.f32.mrb[0].mxu0
        %v5740 = vadd.f32 %v5668, %v5739
        %v5741 = vpop.f32.mrb[0].mxu0
        %v5742 = vadd.f32 %v5668, %v5741
        %5743 = vdwg.mxu0
        %v5744 = vmax.f32 %v5740, 0.0
        %v5745 = vmax.f32 %v5742, 0.0
        %s5746 = scalar_lea.vmem %s10, 96
        %v5747 = vld [vmem:[%s5746] sm:$0xff]
        %5749 = vset.pattern.permute.xlu0 4
        %5750 = vperm.xlu0 %5749, %v5747
        %v5751 = vpop.permute.xlu0 %5750
        %v5753 = vmul.f32 %v5744, %v5751
        %v5754 = vmul.f32 %v5745, %v5751
        %5755 = vrot.lane.b32.xlu0 %v5744, 17
        %v5756 = vpop.permute.xlu0 %5755
        %5757 = vrot.lane.b32.xlu0 %v5745, 17
        %v5758 = vpop.permute.xlu0 %5757
        %v5759 = vsel %vm712, %v5756, %v5758
        %v5760 = vsel %vm712, %v5758, %v5756
        %v5761 = vmul.f32 %v5760, %v673
        %v5762 = vmul.f32 %v5759, %v674
        %5763 = vset.pattern.permute.xlu0 0
        %5764 = vperm.xlu0 %5763, %v5747
        %v5765 = vpop.permute.xlu0 %5764
        %v5767 = vmul.f32 %v5761, %v5765
        %v5768 = vmul.f32 %v5762, %v5765
        %v5769 = vadd.f32 %v5753, %v5767
        %v5770 = vadd.f32 %v5754, %v5768
        %5771 = vrot.lane.b32.xlu0 %v5744, 16
        %v5772 = vpop.permute.xlu0 %5771
        %5773 = vrot.lane.b32.xlu0 %v5745, 16
        %v5774 = vpop.permute.xlu0 %5773
        %v5775 = vsel %vm729, %v5772, %v5774
        %v5776 = vsel %vm729, %v5774, %v5772
        %v5777 = vmul.f32 %v5776, %v676
        %v5778 = vmul.f32 %v5775, %v677
        %5779 = vset.pattern.permute.xlu0 1
        %5780 = vperm.xlu0 %5779, %v5747
        %v5781 = vpop.permute.xlu0 %5780
        %v5783 = vmul.f32 %v5777, %v5781
        %v5784 = vmul.f32 %v5778, %v5781
        %v5785 = vadd.f32 %v5769, %v5783
        %v5786 = vadd.f32 %v5770, %v5784
        %5787 = vrot.lane.b32.xlu0 %v5744, 15
        %v5788 = vpop.permute.xlu0 %5787
        %5789 = vrot.lane.b32.xlu0 %v5745, 15
        %v5790 = vpop.permute.xlu0 %5789
        %v5791 = vsel %vm746, %v5788, %v5790
        %v5792 = vsel %vm746, %v5790, %v5788
        %v5793 = vmul.f32 %v5792, %v679
        %v5794 = vmul.f32 %v5791, %v680
        %5795 = vset.pattern.permute.xlu0 2
        %5796 = vperm.xlu0 %5795, %v5747
        %v5797 = vpop.permute.xlu0 %5796
        %v5799 = vmul.f32 %v5793, %v5797
        %v5800 = vmul.f32 %v5794, %v5797
        %v5801 = vadd.f32 %v5785, %v5799
        %v5802 = vadd.f32 %v5786, %v5800
        %5803 = vrot.lane.b32.xlu0 %v5744, 1
        %v5804 = vpop.permute.xlu0 %5803
        %5805 = vrot.lane.b32.xlu0 %v5745, 1
        %v5806 = vpop.permute.xlu0 %5805
        %v5807 = vsel %vm763, %v5804, %v5806
        %v5808 = vsel %vm763, %v5806, %v5804
        %v5809 = vmul.f32 %v5808, %v682
        %v5810 = vmul.f32 %v5807, %v683
        %5811 = vset.pattern.permute.xlu0 3
        %5812 = vperm.xlu0 %5811, %v5747
        %v5813 = vpop.permute.xlu0 %5812
        %v5815 = vmul.f32 %v5809, %v5813
        %v5816 = vmul.f32 %v5810, %v5813
        %v5817 = vadd.f32 %v5801, %v5815
        %v5818 = vadd.f32 %v5802, %v5816
        %5819 = vrot.lane.b32.xlu0 %v5744, 127
        %v5820 = vpop.permute.xlu0 %5819
        %5821 = vrot.lane.b32.xlu0 %v5745, 127
        %v5822 = vpop.permute.xlu0 %5821
        %v5823 = vsel %vm780, %v5820, %v5822
        %v5824 = vsel %vm780, %v5822, %v5820
        %v5825 = vmul.f32 %v5823, %v685
        %v5826 = vmul.f32 %v5824, %v686
        %5827 = vset.pattern.permute.xlu0 5
        %5828 = vperm.xlu0 %5827, %v5747
        %v5829 = vpop.permute.xlu0 %5828
        %v5831 = vmul.f32 %v5825, %v5829
        %v5832 = vmul.f32 %v5826, %v5829
        %v5833 = vadd.f32 %v5817, %v5831
        %v5834 = vadd.f32 %v5818, %v5832
        %5835 = vrot.lane.b32.xlu0 %v5744, 113
        %v5836 = vpop.permute.xlu0 %5835
        %5837 = vrot.lane.b32.xlu0 %v5745, 113
        %v5838 = vpop.permute.xlu0 %5837
        %v5839 = vsel %vm797, %v5836, %v5838
        %v5840 = vsel %vm797, %v5838, %v5836
        %v5841 = vmul.f32 %v5839, %v688
        %v5842 = vmul.f32 %v5840, %v689
        %5843 = vset.pattern.permute.xlu0 6
        %5844 = vperm.xlu0 %5843, %v5747
        %v5845 = vpop.permute.xlu0 %5844
        %v5847 = vmul.f32 %v5841, %v5845
        %v5848 = vmul.f32 %v5842, %v5845
        %v5849 = vadd.f32 %v5833, %v5847
        %v5850 = vadd.f32 %v5834, %v5848
        %5851 = vrot.lane.b32.xlu0 %v5744, 112
        %v5852 = vpop.permute.xlu0 %5851
        %5853 = vrot.lane.b32.xlu0 %v5745, 112
        %v5854 = vpop.permute.xlu0 %5853
        %v5855 = vsel %vm814, %v5852, %v5854
        %v5856 = vsel %vm814, %v5854, %v5852
        %v5857 = vmul.f32 %v5855, %v691
        %v5858 = vmul.f32 %v5856, %v692
        %5859 = vset.pattern.permute.xlu0 7
        %5860 = vperm.xlu0 %5859, %v5747
        %v5861 = vpop.permute.xlu0 %5860
        %v5863 = vmul.f32 %v5857, %v5861
        %v5864 = vmul.f32 %v5858, %v5861
        %v5865 = vadd.f32 %v5849, %v5863
        %v5866 = vadd.f32 %v5850, %v5864
        %5867 = vrot.lane.b32.xlu0 %v5744, 111
        %v5868 = vpop.permute.xlu0 %5867
        %5869 = vrot.lane.b32.xlu0 %v5745, 111
        %v5870 = vpop.permute.xlu0 %5869
        %v5871 = vsel %vm831, %v5868, %v5870
        %v5872 = vsel %vm831, %v5870, %v5868
        %v5873 = vmul.f32 %v5871, %v694
        %v5874 = vmul.f32 %v5872, %v695
        %5875 = vset.pattern.permute.xlu0 8
        %5876 = vperm.xlu0 %5875, %v5747
        %v5877 = vpop.permute.xlu0 %5876
        %v5879 = vmul.f32 %v5873, %v5877
        %v5880 = vmul.f32 %v5874, %v5877
        %v5881 = vadd.f32 %v5865, %v5879
        %v5882 = vadd.f32 %v5866, %v5880
        %s5883 = scalar_lea.vmem %s11, 96
        %v5884 = vld [vmem:[%s5883] sm:$0xff]
        %s5885 = scalar_lea.vmem %s12, 96
        %v5886 = vld [vmem:[%s5885] sm:$0xff]
        %5888 = vset.pattern.permute.xlu0 0
        %5889 = vperm.xlu0 %5888, %v5886
        %v5890 = vpop.permute.xlu0 %5889
        %v5893 = vsel %vm513, %v5884, 0
        %5895 = vmatprep.subr.mxu0 %v5882
        %5896 = vmatpush1.msra.mxu0 %v5881
        %5897 = vmatprep.subr.mxu0 0.0
        %5898 = vmatpush1.msra.mxu0 0.0
        %5899 = vmatprep.subr.mxu0 0.0
        %5900 = vmatpush1.msra.mxu0 0.0
        %5901 = vmatprep.subr.mxu0 0.0
        %5902 = vmatpush1.msra.mxu0 0.0
        %5903 = vmatprep.subr.mxu0 0.0
        %5904 = vmatpush1.msra.mxu0 0.0
        %5905 = vmatprep.subr.mxu0 0.0
        %5906 = vmatpush1.msra.mxu0 0.0
        %5907 = vmatprep.subr.mxu0 0.0
        %5908 = vmatpush1.msra.mxu0 0.0
        %5909 = vmatprep.subr.mxu0 0.0
        %5910 = vmatpush1.msra.mxu0 0.0
        %5911 = vmatprep.subr.mxu0 0.0
        %5912 = vmatpush1.msra.mxu0 0.0
        %5913 = vmatprep.subr.mxu0 0.0
        %5914 = vmatpush1.msra.mxu0 0.0
        %5915 = vmatprep.subr.mxu0 0.0
        %5916 = vmatpush1.msra.mxu0 0.0
        %5917 = vmatprep.subr.mxu0 0.0
        %5918 = vmatpush1.msra.mxu0 0.0
        %5919 = vmatprep.subr.mxu0 0.0
        %5920 = vmatpush1.msra.mxu0 0.0
        %5921 = vmatprep.subr.mxu0 0.0
        %5922 = vmatpush1.msra.mxu0 0.0
        %5923 = vmatprep.subr.mxu0 0.0
        %5924 = vmatpush1.msra.mxu0 0.0
        %5925 = vmatprep.subr.mxu0 0.0
        %5926 = vmatpush1.msra.mxu0 0.0
        %5927 = vmatprep.subr.mxu0 0.0
        %5928 = vmatpush1.msra.mxu0 0.0
        %5929 = vmatprep.subr.mxu0 0.0
        %5930 = vmatpush1.msra.mxu0 0.0
        %5931 = vmatprep.subr.mxu0 0.0
        %5932 = vmatpush1.msra.mxu0 0.0
        %5933 = vmatprep.subr.mxu0 0.0
        %5934 = vmatpush1.msra.mxu0 0.0
        %5935 = vmatprep.subr.mxu0 0.0
        %5936 = vmatpush1.msra.mxu0 0.0
        %5937 = vmatprep.subr.mxu0 0.0
        %5938 = vmatpush1.msra.mxu0 0.0
        %5939 = vmatprep.subr.mxu0 0.0
        %5940 = vmatpush1.msra.mxu0 0.0
        %5941 = vmatprep.subr.mxu0 0.0
        %5942 = vmatpush1.msra.mxu0 0.0
        %5943 = vmatprep.subr.mxu0 0.0
        %5944 = vmatpush1.msra.mxu0 0.0
        %5945 = vmatprep.subr.mxu0 0.0
        %5946 = vmatpush1.msra.mxu0 0.0
        %5947 = vmatprep.subr.mxu0 0.0
        %5948 = vmatpush1.msra.mxu0 0.0
        %5949 = vmatprep.subr.mxu0 0.0
        %5950 = vmatpush1.msra.mxu0 0.0
        %5951 = vmatprep.subr.mxu0 0.0
        %5952 = vmatpush1.msra.mxu0 0.0
        %5953 = vmatprep.subr.mxu0 0.0
        %5954 = vmatpush1.msra.mxu0 0.0
        %5955 = vmatprep.subr.mxu0 0.0
        %5956 = vmatpush1.msra.mxu0 0.0
        %5957 = vmatprep.subr.mxu0 0.0
        %5958 = vmatpush1.msra.mxu0 0.0
        %5959 = vmatprep.mubr.f32.mxu0 0.0
        %5960 = vmatmul.mubr.f32.gmra.mrb[0].mxu0 %v5893
        %v5961 = vpop.f32.mrb[0].mxu0
        %v5962 = vadd.f32 %v5890, %v5961
        %v5963 = vpop.f32.mrb[0].mxu0
        %v5964 = vadd.f32 %v5890, %v5963
        %5965 = vdwg.mxu0
        %s5966 = sld [smem:[#allocation2 + $0xc]]
        %v5967 = vstv %s5966
        %v5968 = vmul.f32 %v5967, %v2822
        %v5969 = vmul.f32 %v5967, %v2823
        %v5970 = vadd.f32 %v5968, %v5962
        %v5971 = vadd.f32 %v5969, %v5964
        %v5972 = vadd.f32 %v5586, %v5970
        %v5973 = vadd.f32 %v5587, %v5971
        %v5974 = vmax.f32 %v4430, 0.0
        %v5975 = vmax.f32 %v4431, 0.0
        %s5976 = scalar_lea.vmem %s7, 104
        %v5977 = vld [vmem:[%s5976] sm:$0xff]
        %5979 = vset.pattern.permute.xlu0 4
        %5980 = vperm.xlu0 %5979, %v5977
        %v5981 = vpop.permute.xlu0 %5980
        %v5983 = vmul.f32 %v5974, %v5981
        %v5984 = vmul.f32 %v5975, %v5981
        %5985 = vrot.lane.b32.xlu0 %v5974, 17
        %v5986 = vpop.permute.xlu0 %5985
        %5987 = vrot.lane.b32.xlu0 %v5975, 17
        %v5988 = vpop.permute.xlu0 %5987
        %v5989 = vsel %vm712, %v5986, %v5988
        %v5990 = vsel %vm712, %v5988, %v5986
        %v5991 = vmul.f32 %v5990, %v673
        %v5992 = vmul.f32 %v5989, %v674
        %5993 = vset.pattern.permute.xlu0 0
        %5994 = vperm.xlu0 %5993, %v5977
        %v5995 = vpop.permute.xlu0 %5994
        %v5997 = vmul.f32 %v5991, %v5995
        %v5998 = vmul.f32 %v5992, %v5995
        %v5999 = vadd.f32 %v5983, %v5997
        %v6000 = vadd.f32 %v5984, %v5998
        %6001 = vrot.lane.b32.xlu0 %v5974, 16
        %v6002 = vpop.permute.xlu0 %6001
        %6003 = vrot.lane.b32.xlu0 %v5975, 16
        %v6004 = vpop.permute.xlu0 %6003
        %v6005 = vsel %vm729, %v6002, %v6004
        %v6006 = vsel %vm729, %v6004, %v6002
        %v6007 = vmul.f32 %v6006, %v676
        %v6008 = vmul.f32 %v6005, %v677
        %6009 = vset.pattern.permute.xlu0 1
        %6010 = vperm.xlu0 %6009, %v5977
        %v6011 = vpop.permute.xlu0 %6010
        %v6013 = vmul.f32 %v6007, %v6011
        %v6014 = vmul.f32 %v6008, %v6011
        %v6015 = vadd.f32 %v5999, %v6013
        %v6016 = vadd.f32 %v6000, %v6014
        %6017 = vrot.lane.b32.xlu0 %v5974, 15
        %v6018 = vpop.permute.xlu0 %6017
        %6019 = vrot.lane.b32.xlu0 %v5975, 15
        %v6020 = vpop.permute.xlu0 %6019
        %v6021 = vsel %vm746, %v6018, %v6020
        %v6022 = vsel %vm746, %v6020, %v6018
        %v6023 = vmul.f32 %v6022, %v679
        %v6024 = vmul.f32 %v6021, %v680
        %6025 = vset.pattern.permute.xlu0 2
        %6026 = vperm.xlu0 %6025, %v5977
        %v6027 = vpop.permute.xlu0 %6026
        %v6029 = vmul.f32 %v6023, %v6027
        %v6030 = vmul.f32 %v6024, %v6027
        %v6031 = vadd.f32 %v6015, %v6029
        %v6032 = vadd.f32 %v6016, %v6030
        %6033 = vrot.lane.b32.xlu0 %v5974, 1
        %v6034 = vpop.permute.xlu0 %6033
        %6035 = vrot.lane.b32.xlu0 %v5975, 1
        %v6036 = vpop.permute.xlu0 %6035
        %v6037 = vsel %vm763, %v6034, %v6036
        %v6038 = vsel %vm763, %v6036, %v6034
        %v6039 = vmul.f32 %v6038, %v682
        %v6040 = vmul.f32 %v6037, %v683
        %6041 = vset.pattern.permute.xlu0 3
        %6042 = vperm.xlu0 %6041, %v5977
        %v6043 = vpop.permute.xlu0 %6042
        %v6045 = vmul.f32 %v6039, %v6043
        %v6046 = vmul.f32 %v6040, %v6043
        %v6047 = vadd.f32 %v6031, %v6045
        %v6048 = vadd.f32 %v6032, %v6046
        %6049 = vrot.lane.b32.xlu0 %v5974, 127
        %v6050 = vpop.permute.xlu0 %6049
        %6051 = vrot.lane.b32.xlu0 %v5975, 127
        %v6052 = vpop.permute.xlu0 %6051
        %v6053 = vsel %vm780, %v6050, %v6052
        %v6054 = vsel %vm780, %v6052, %v6050
        %v6055 = vmul.f32 %v6053, %v685
        %v6056 = vmul.f32 %v6054, %v686
        %6057 = vset.pattern.permute.xlu0 5
        %6058 = vperm.xlu0 %6057, %v5977
        %v6059 = vpop.permute.xlu0 %6058
        %v6061 = vmul.f32 %v6055, %v6059
        %v6062 = vmul.f32 %v6056, %v6059
        %v6063 = vadd.f32 %v6047, %v6061
        %v6064 = vadd.f32 %v6048, %v6062
        %6065 = vrot.lane.b32.xlu0 %v5974, 113
        %v6066 = vpop.permute.xlu0 %6065
        %6067 = vrot.lane.b32.xlu0 %v5975, 113
        %v6068 = vpop.permute.xlu0 %6067
        %v6069 = vsel %vm797, %v6066, %v6068
        %v6070 = vsel %vm797, %v6068, %v6066
        %v6071 = vmul.f32 %v6069, %v688
        %v6072 = vmul.f32 %v6070, %v689
        %6073 = vset.pattern.permute.xlu0 6
        %6074 = vperm.xlu0 %6073, %v5977
        %v6075 = vpop.permute.xlu0 %6074
        %v6077 = vmul.f32 %v6071, %v6075
        %v6078 = vmul.f32 %v6072, %v6075
        %v6079 = vadd.f32 %v6063, %v6077
        %v6080 = vadd.f32 %v6064, %v6078
        %6081 = vrot.lane.b32.xlu0 %v5974, 112
        %v6082 = vpop.permute.xlu0 %6081
        %6083 = vrot.lane.b32.xlu0 %v5975, 112
        %v6084 = vpop.permute.xlu0 %6083
        %v6085 = vsel %vm814, %v6082, %v6084
        %v6086 = vsel %vm814, %v6084, %v6082
        %v6087 = vmul.f32 %v6085, %v691
        %v6088 = vmul.f32 %v6086, %v692
        %6089 = vset.pattern.permute.xlu0 7
        %6090 = vperm.xlu0 %6089, %v5977
        %v6091 = vpop.permute.xlu0 %6090
        %v6093 = vmul.f32 %v6087, %v6091
        %v6094 = vmul.f32 %v6088, %v6091
        %v6095 = vadd.f32 %v6079, %v6093
        %v6096 = vadd.f32 %v6080, %v6094
        %6097 = vrot.lane.b32.xlu0 %v5974, 111
        %v6098 = vpop.permute.xlu0 %6097
        %6099 = vrot.lane.b32.xlu0 %v5975, 111
        %v6100 = vpop.permute.xlu0 %6099
        %v6101 = vsel %vm831, %v6098, %v6100
        %v6102 = vsel %vm831, %v6100, %v6098
        %v6103 = vmul.f32 %v6101, %v694
        %v6104 = vmul.f32 %v6102, %v695
        %6105 = vset.pattern.permute.xlu0 8
        %6106 = vperm.xlu0 %6105, %v5977
        %v6107 = vpop.permute.xlu0 %6106
        %v6109 = vmul.f32 %v6103, %v6107
        %v6110 = vmul.f32 %v6104, %v6107
        %v6111 = vadd.f32 %v6095, %v6109
        %v6112 = vadd.f32 %v6096, %v6110
        %s6113 = scalar_lea.vmem %s8, 104
        %v6114 = vld [vmem:[%s6113] sm:$0xff]
        %s6115 = scalar_lea.vmem %s9, 104
        %v6116 = vld [vmem:[%s6115] sm:$0xff]
        %6118 = vset.pattern.permute.xlu0 0
        %6119 = vperm.xlu0 %6118, %v6116
        %v6120 = vpop.permute.xlu0 %6119
        %v6123 = vsel %vm513, %v6114, 0
        %6125 = vmatprep.subr.mxu0 %v6112
        %6126 = vmatpush1.msra.mxu0 %v6111
        %6127 = vmatprep.subr.mxu0 0.0
        %6128 = vmatpush1.msra.mxu0 0.0
        %6129 = vmatprep.subr.mxu0 0.0
        %6130 = vmatpush1.msra.mxu0 0.0
        %6131 = vmatprep.subr.mxu0 0.0
        %6132 = vmatpush1.msra.mxu0 0.0
        %6133 = vmatprep.subr.mxu0 0.0
        %6134 = vmatpush1.msra.mxu0 0.0
        %6135 = vmatprep.subr.mxu0 0.0
        %6136 = vmatpush1.msra.mxu0 0.0
        %6137 = vmatprep.subr.mxu0 0.0
        %6138 = vmatpush1.msra.mxu0 0.0
        %6139 = vmatprep.subr.mxu0 0.0
        %6140 = vmatpush1.msra.mxu0 0.0
        %6141 = vmatprep.subr.mxu0 0.0
        %6142 = vmatpush1.msra.mxu0 0.0
        %6143 = vmatprep.subr.mxu0 0.0
        %6144 = vmatpush1.msra.mxu0 0.0
        %6145 = vmatprep.subr.mxu0 0.0
        %6146 = vmatpush1.msra.mxu0 0.0
        %6147 = vmatprep.subr.mxu0 0.0
        %6148 = vmatpush1.msra.mxu0 0.0
        %6149 = vmatprep.subr.mxu0 0.0
        %6150 = vmatpush1.msra.mxu0 0.0
        %6151 = vmatprep.subr.mxu0 0.0
        %6152 = vmatpush1.msra.mxu0 0.0
        %6153 = vmatprep.subr.mxu0 0.0
        %6154 = vmatpush1.msra.mxu0 0.0
        %6155 = vmatprep.subr.mxu0 0.0
        %6156 = vmatpush1.msra.mxu0 0.0
        %6157 = vmatprep.subr.mxu0 0.0
        %6158 = vmatpush1.msra.mxu0 0.0
        %6159 = vmatprep.subr.mxu0 0.0
        %6160 = vmatpush1.msra.mxu0 0.0
        %6161 = vmatprep.subr.mxu0 0.0
        %6162 = vmatpush1.msra.mxu0 0.0
        %6163 = vmatprep.subr.mxu0 0.0
        %6164 = vmatpush1.msra.mxu0 0.0
        %6165 = vmatprep.subr.mxu0 0.0
        %6166 = vmatpush1.msra.mxu0 0.0
        %6167 = vmatprep.subr.mxu0 0.0
        %6168 = vmatpush1.msra.mxu0 0.0
        %6169 = vmatprep.subr.mxu0 0.0
        %6170 = vmatpush1.msra.mxu0 0.0
        %6171 = vmatprep.subr.mxu0 0.0
        %6172 = vmatpush1.msra.mxu0 0.0
        %6173 = vmatprep.subr.mxu0 0.0
        %6174 = vmatpush1.msra.mxu0 0.0
        %6175 = vmatprep.subr.mxu0 0.0
        %6176 = vmatpush1.msra.mxu0 0.0
        %6177 = vmatprep.subr.mxu0 0.0
        %6178 = vmatpush1.msra.mxu0 0.0
        %6179 = vmatprep.subr.mxu0 0.0
        %6180 = vmatpush1.msra.mxu0 0.0
        %6181 = vmatprep.subr.mxu0 0.0
        %6182 = vmatpush1.msra.mxu0 0.0
        %6183 = vmatprep.subr.mxu0 0.0
        %6184 = vmatpush1.msra.mxu0 0.0
        %6185 = vmatprep.subr.mxu0 0.0
        %6186 = vmatpush1.msra.mxu0 0.0
        %6187 = vmatprep.subr.mxu0 0.0
        %6188 = vmatpush1.msra.mxu0 0.0
        %6189 = vmatprep.mubr.f32.mxu0 0.0
        %6190 = vmatmul.mubr.f32.gmra.mrb[0].mxu0 %v6123
        %v6191 = vpop.f32.mrb[0].mxu0
        %v6192 = vadd.f32 %v6120, %v6191
        %v6193 = vpop.f32.mrb[0].mxu0
        %v6194 = vadd.f32 %v6120, %v6193
        %6195 = vdwg.mxu0
        %v6196 = vmax.f32 %v6192, 0.0
        %v6197 = vmax.f32 %v6194, 0.0
        %s6198 = scalar_lea.vmem %s10, 104
        %v6199 = vld [vmem:[%s6198] sm:$0xff]
        %6201 = vset.pattern.permute.xlu0 4
        %6202 = vperm.xlu0 %6201, %v6199
        %v6203 = vpop.permute.xlu0 %6202
        %v6205 = vmul.f32 %v6196, %v6203
        %v6206 = vmul.f32 %v6197, %v6203
        %6207 = vrot.lane.b32.xlu0 %v6196, 17
        %v6208 = vpop.permute.xlu0 %6207
        %6209 = vrot.lane.b32.xlu0 %v6197, 17
        %v6210 = vpop.permute.xlu0 %6209
        %v6211 = vsel %vm712, %v6208, %v6210
        %v6212 = vsel %vm712, %v6210, %v6208
        %v6213 = vmul.f32 %v6212, %v673
        %v6214 = vmul.f32 %v6211, %v674
        %6215 = vset.pattern.permute.xlu0 0
        %6216 = vperm.xlu0 %6215, %v6199
        %v6217 = vpop.permute.xlu0 %6216
        %v6219 = vmul.f32 %v6213, %v6217
        %v6220 = vmul.f32 %v6214, %v6217
        %v6221 = vadd.f32 %v6205, %v6219
        %v6222 = vadd.f32 %v6206, %v6220
        %6223 = vrot.lane.b32.xlu0 %v6196, 16
        %v6224 = vpop.permute.xlu0 %6223
        %6225 = vrot.lane.b32.xlu0 %v6197, 16
        %v6226 = vpop.permute.xlu0 %6225
        %v6227 = vsel %vm729, %v6224, %v6226
        %v6228 = vsel %vm729, %v6226, %v6224
        %v6229 = vmul.f32 %v6228, %v676
        %v6230 = vmul.f32 %v6227, %v677
        %6231 = vset.pattern.permute.xlu0 1
        %6232 = vperm.xlu0 %6231, %v6199
        %v6233 = vpop.permute.xlu0 %6232
        %v6235 = vmul.f32 %v6229, %v6233
        %v6236 = vmul.f32 %v6230, %v6233
        %v6237 = vadd.f32 %v6221, %v6235
        %v6238 = vadd.f32 %v6222, %v6236
        %6239 = vrot.lane.b32.xlu0 %v6196, 15
        %v6240 = vpop.permute.xlu0 %6239
        %6241 = vrot.lane.b32.xlu0 %v6197, 15
        %v6242 = vpop.permute.xlu0 %6241
        %v6243 = vsel %vm746, %v6240, %v6242
        %v6244 = vsel %vm746, %v6242, %v6240
        %v6245 = vmul.f32 %v6244, %v679
        %v6246 = vmul.f32 %v6243, %v680
        %6247 = vset.pattern.permute.xlu0 2
        %6248 = vperm.xlu0 %6247, %v6199
        %v6249 = vpop.permute.xlu0 %6248
        %v6251 = vmul.f32 %v6245, %v6249
        %v6252 = vmul.f32 %v6246, %v6249
        %v6253 = vadd.f32 %v6237, %v6251
        %v6254 = vadd.f32 %v6238, %v6252
        %6255 = vrot.lane.b32.xlu0 %v6196, 1
        %v6256 = vpop.permute.xlu0 %6255
        %6257 = vrot.lane.b32.xlu0 %v6197, 1
        %v6258 = vpop.permute.xlu0 %6257
        %v6259 = vsel %vm763, %v6256, %v6258
        %v6260 = vsel %vm763, %v6258, %v6256
        %v6261 = vmul.f32 %v6260, %v682
        %v6262 = vmul.f32 %v6259, %v683
        %6263 = vset.pattern.permute.xlu0 3
        %6264 = vperm.xlu0 %6263, %v6199
        %v6265 = vpop.permute.xlu0 %6264
        %v6267 = vmul.f32 %v6261, %v6265
        %v6268 = vmul.f32 %v6262, %v6265
        %v6269 = vadd.f32 %v6253, %v6267
        %v6270 = vadd.f32 %v6254, %v6268
        %6271 = vrot.lane.b32.xlu0 %v6196, 127
        %v6272 = vpop.permute.xlu0 %6271
        %6273 = vrot.lane.b32.xlu0 %v6197, 127
        %v6274 = vpop.permute.xlu0 %6273
        %v6275 = vsel %vm780, %v6272, %v6274
        %v6276 = vsel %vm780, %v6274, %v6272
        %v6277 = vmul.f32 %v6275, %v685
        %v6278 = vmul.f32 %v6276, %v686
        %6279 = vset.pattern.permute.xlu0 5
        %6280 = vperm.xlu0 %6279, %v6199
        %v6281 = vpop.permute.xlu0 %6280
        %v6283 = vmul.f32 %v6277, %v6281
        %v6284 = vmul.f32 %v6278, %v6281
        %v6285 = vadd.f32 %v6269, %v6283
        %v6286 = vadd.f32 %v6270, %v6284
        %6287 = vrot.lane.b32.xlu0 %v6196, 113
        %v6288 = vpop.permute.xlu0 %6287
        %6289 = vrot.lane.b32.xlu0 %v6197, 113
        %v6290 = vpop.permute.xlu0 %6289
        %v6291 = vsel %vm797, %v6288, %v6290
        %v6292 = vsel %vm797, %v6290, %v6288
        %v6293 = vmul.f32 %v6291, %v688
        %v6294 = vmul.f32 %v6292, %v689
        %6295 = vset.pattern.permute.xlu0 6
        %6296 = vperm.xlu0 %6295, %v6199
        %v6297 = vpop.permute.xlu0 %6296
        %v6299 = vmul.f32 %v6293, %v6297
        %v6300 = vmul.f32 %v6294, %v6297
        %v6301 = vadd.f32 %v6285, %v6299
        %v6302 = vadd.f32 %v6286, %v6300
        %6303 = vrot.lane.b32.xlu0 %v6196, 112
        %v6304 = vpop.permute.xlu0 %6303
        %6305 = vrot.lane.b32.xlu0 %v6197, 112
        %v6306 = vpop.permute.xlu0 %6305
        %v6307 = vsel %vm814, %v6304, %v6306
        %v6308 = vsel %vm814, %v6306, %v6304
        %v6309 = vmul.f32 %v6307, %v691
        %v6310 = vmul.f32 %v6308, %v692
        %6311 = vset.pattern.permute.xlu0 7
        %6312 = vperm.xlu0 %6311, %v6199
        %v6313 = vpop.permute.xlu0 %6312
        %v6315 = vmul.f32 %v6309, %v6313
        %v6316 = vmul.f32 %v6310, %v6313
        %v6317 = vadd.f32 %v6301, %v6315
        %v6318 = vadd.f32 %v6302, %v6316
        %6319 = vrot.lane.b32.xlu0 %v6196, 111
        %v6320 = vpop.permute.xlu0 %6319
        %6321 = vrot.lane.b32.xlu0 %v6197, 111
        %v6322 = vpop.permute.xlu0 %6321
        %v6323 = vsel %vm831, %v6320, %v6322
        %v6324 = vsel %vm831, %v6322, %v6320
        %v6325 = vmul.f32 %v6323, %v694
        %v6326 = vmul.f32 %v6324, %v695
        %6327 = vset.pattern.permute.xlu0 8
        %6328 = vperm.xlu0 %6327, %v6199
        %v6329 = vpop.permute.xlu0 %6328
        %v6331 = vmul.f32 %v6325, %v6329
        %v6332 = vmul.f32 %v6326, %v6329
        %v6333 = vadd.f32 %v6317, %v6331
        %v6334 = vadd.f32 %v6318, %v6332
        %s6335 = scalar_lea.vmem %s11, 104
        %v6336 = vld [vmem:[%s6335] sm:$0xff]
        %s6337 = scalar_lea.vmem %s12, 104
        %v6338 = vld [vmem:[%s6337] sm:$0xff]
        %6340 = vset.pattern.permute.xlu0 0
        %6341 = vperm.xlu0 %6340, %v6338
        %v6342 = vpop.permute.xlu0 %6341
        %v6345 = vsel %vm513, %v6336, 0
        %6347 = vmatprep.subr.mxu0 %v6334
        %6348 = vmatpush1.msra.mxu0 %v6333
        %6349 = vmatprep.subr.mxu0 0.0
        %6350 = vmatpush1.msra.mxu0 0.0
        %6351 = vmatprep.subr.mxu0 0.0
        %6352 = vmatpush1.msra.mxu0 0.0
        %6353 = vmatprep.subr.mxu0 0.0
        %6354 = vmatpush1.msra.mxu0 0.0
        %6355 = vmatprep.subr.mxu0 0.0
        %6356 = vmatpush1.msra.mxu0 0.0
        %6357 = vmatprep.subr.mxu0 0.0
        %6358 = vmatpush1.msra.mxu0 0.0
        %6359 = vmatprep.subr.mxu0 0.0
        %6360 = vmatpush1.msra.mxu0 0.0
        %6361 = vmatprep.subr.mxu0 0.0
        %6362 = vmatpush1.msra.mxu0 0.0
        %6363 = vmatprep.subr.mxu0 0.0
        %6364 = vmatpush1.msra.mxu0 0.0
        %6365 = vmatprep.subr.mxu0 0.0
        %6366 = vmatpush1.msra.mxu0 0.0
        %6367 = vmatprep.subr.mxu0 0.0
        %6368 = vmatpush1.msra.mxu0 0.0
        %6369 = vmatprep.subr.mxu0 0.0
        %6370 = vmatpush1.msra.mxu0 0.0
        %6371 = vmatprep.subr.mxu0 0.0
        %6372 = vmatpush1.msra.mxu0 0.0
        %6373 = vmatprep.subr.mxu0 0.0
        %6374 = vmatpush1.msra.mxu0 0.0
        %6375 = vmatprep.subr.mxu0 0.0
        %6376 = vmatpush1.msra.mxu0 0.0
        %6377 = vmatprep.subr.mxu0 0.0
        %6378 = vmatpush1.msra.mxu0 0.0
        %6379 = vmatprep.subr.mxu0 0.0
        %6380 = vmatpush1.msra.mxu0 0.0
        %6381 = vmatprep.subr.mxu0 0.0
        %6382 = vmatpush1.msra.mxu0 0.0
        %6383 = vmatprep.subr.mxu0 0.0
        %6384 = vmatpush1.msra.mxu0 0.0
        %6385 = vmatprep.subr.mxu0 0.0
        %6386 = vmatpush1.msra.mxu0 0.0
        %6387 = vmatprep.subr.mxu0 0.0
        %6388 = vmatpush1.msra.mxu0 0.0
        %6389 = vmatprep.subr.mxu0 0.0
        %6390 = vmatpush1.msra.mxu0 0.0
        %6391 = vmatprep.subr.mxu0 0.0
        %6392 = vmatpush1.msra.mxu0 0.0
        %6393 = vmatprep.subr.mxu0 0.0
        %6394 = vmatpush1.msra.mxu0 0.0
        %6395 = vmatprep.subr.mxu0 0.0
        %6396 = vmatpush1.msra.mxu0 0.0
        %6397 = vmatprep.subr.mxu0 0.0
        %6398 = vmatpush1.msra.mxu0 0.0
        %6399 = vmatprep.subr.mxu0 0.0
        %6400 = vmatpush1.msra.mxu0 0.0
        %6401 = vmatprep.subr.mxu0 0.0
        %6402 = vmatpush1.msra.mxu0 0.0
        %6403 = vmatprep.subr.mxu0 0.0
        %6404 = vmatpush1.msra.mxu0 0.0
        %6405 = vmatprep.subr.mxu0 0.0
        %6406 = vmatpush1.msra.mxu0 0.0
        %6407 = vmatprep.subr.mxu0 0.0
        %6408 = vmatpush1.msra.mxu0 0.0
        %6409 = vmatprep.subr.mxu0 0.0
        %6410 = vmatpush1.msra.mxu0 0.0
        %6411 = vmatprep.mubr.f32.mxu0 0.0
        %6412 = vmatmul.mubr.f32.gmra.mrb[0].mxu0 %v6345
        %v6413 = vpop.f32.mrb[0].mxu0
        %v6414 = vadd.f32 %v6342, %v6413
        %v6415 = vpop.f32.mrb[0].mxu0
        %v6416 = vadd.f32 %v6342, %v6415
        %6417 = vdwg.mxu0
        %s6418 = sld [smem:[#allocation2 + $0xd]]
        %v6419 = vstv %s6418
        %v6420 = vmul.f32 %v6419, %v4430
        %v6421 = vmul.f32 %v6419, %v4431
        %v6422 = vadd.f32 %v6420, %v6414
        %v6423 = vadd.f32 %v6421, %v6416
        %v6424 = vadd.f32 %v5972, %v6422
        %v6425 = vadd.f32 %v5973, %v6423
        %6426 = vst [vmem:[%s501] sm:$0xff] %v1600
        %6427 = vst [vmem:[%s501 + $0x8] sm:$0xff] %v1601
        %6428 = vst [vmem:[%s501 + $0x10] sm:$0xff] %v2822
        %6429 = vst [vmem:[%s501 + $0x18] sm:$0xff] %v2823
        %6430 = vst [vmem:[%s501 + $0x20] sm:$0xff] %v4430
        %6431 = vst [vmem:[%s501 + $0x28] sm:$0xff] %v4431
        %6432 = vst [vmem:[%s501 + $0x30] sm:$0xff] %v6424
        %6433 = vst [vmem:[%s501 + $0x38] sm:$0xff] %v6425
        %p6434 = scmp.lt.s32.totalorder %s26, 1
        %s6435 = scalar_select %p6434, %s26, 1
        %s6436 = smul.addr %s6435, 8
        %s6437 = smul.addr %s6436, 8
        %s6438 = scalar_lea.vmem %s14, %s6437
        // Predicated region
        $region81: #{cell_forward.1} parent=75 // pred_check
          %p6439 = pneg %p348
        $region82: #{cell_forward.1} parent=75 // pred_check_branch
          %6441 = sbr.rel (%p6439) target = $region84
        $region83: #{cell_forward.1} parent=75 // pred_region
          _
        $region84: #{cell_forward.1} parent=75 // pred_fallthru
          _
      $region76: #{cell_forward.1} parent=5 // pred_fallthru
        _
      %p6442 = scmp.le.s32.totalorder 2, %s21
      // Predicated region
      $region85: #{cell_forward.1} parent=5 // pred_check
        %p6443 = pneg %p6442
      $region86: #{cell_forward.1} parent=5 // pred_check_branch
        %6445 = sbr.rel (%p6443) target = $region88
      $region87: #{cell_forward.1} parent=5 // pred_region
        %s6446 = ssub.s32 %s21, 2
        // Predicated region
        $region89: #{cell_forward.1} parent=87 // pred_check
          %p6447 = pneg %p354
        $region90: #{cell_forward.1} parent=87 // pred_check_branch
          %6449 = sbr.rel (%p6447) target = $region92
        $region91: #{cell_forward.1} parent=87 // pred_region
          %p6450 = scmp.lt.s32.totalorder %s27, 1
          %s6451 = scalar_select %p6450, %s27, 1
          %s6452 = smul.addr %s6451, 8
          %s6453 = smul.addr %s6452, 8
          %s6454 = scalar_lea.vmem %s14, %s6453
        $region92: #{cell_forward.1} parent=87 // pred_fallthru
          _
      $region88: #{cell_forward.1} parent=5 // pred_fallthru
        _
    $region6: #{cell_forward.1} parent=1 // loop_footer
      %s25 = sadd.s32 1, %s21
    $region7: #{cell_forward.1} parent=1 // loop_footer_branch
      %20 = sbr.rel target = $region3
    $region8: #{cell_forward.1} parent=1 // loop_exit
      _
    %6455 = vsyncpa [#allocation3], 1
    %s6456 = scalar_lea.sflag [#allocation3], 1
    %6457 = vsyncpa %s6456, 1

</llo_original>
